<compile_context>
chip_gen: v5e
topology: v5e:2x2
jax: 0.10.0
libtpu: 0.0.40
codegen_flags: <defaults>
</compile_context>

<pallas_src>
import jax
import jax.numpy as jnp
from jax.experimental import pallas as pl
from jax.experimental.pallas import tpu as pltpu

BN_EPS = 1e-5
# Scoped-VMEM budget: above v5e/v6e's scoped defaults, below v7x's 64 MiB physical.
VMEM_LIMIT_BYTES = 48 * 1024 * 1024
# Cap on one bf16 W1 tile (double-buffered => 2x this in VMEM).
W1_TILE_BYTES = 8 * 1024 * 1024


def _tensorcores_per_chip():
    """2 on v7x (megacore-style 2 TCs/chip), 1 on v5e/v6e/unknown."""
    try:
        kind = (jax.devices()[0].device_kind or "").lower()
    except Exception:
        return 1
    return 2 if "v7" in kind else 1


def _linear_bn_relu_kernel(x_ref, w1_ref, b1_ref, g1_ref, be1_ref, h1_ref):
    """h1 = ReLU(BN1(x @ W1 + b1)).

    Grid: (H1 tiles [parallel], K tiles [arbitrary/reduction]).
    x is fully VMEM-resident as (B, FEAT) bf16 (constant block index);
    W1 streams one contiguous (tk, tn) bf16 tile per step. The f32 output
    block (B, tn) ignores k, so it is VMEM-resident and used as accumulator.
    """
    k = pl.program_id(1)
    tk = w1_ref.shape[0]

    @pl.when(k == 0)
    def _():
        h1_ref[...] = jnp.zeros_like(h1_ref)

    start = pl.multiple_of(k * tk, tk)
    x_blk = x_ref[:, pl.ds(start, tk)]                 # (B, tk) bf16
    h1_ref[...] += jnp.dot(x_blk, w1_ref[...],
                           preferred_element_type=jnp.float32)

    @pl.when(k == pl.num_programs(1) - 1)
    def _():
        h = h1_ref[...] + b1_ref[...]
        # BatchNorm1d in training mode (batch statistics, biased variance).
        # Stats are per-feature over the batch, so each H1 slice is independent.
        mu = jnp.mean(h, axis=0, keepdims=True)
        var = jnp.mean((h - mu) ** 2, axis=0, keepdims=True)
        h = (h - mu) * jax.lax.rsqrt(var + BN_EPS) * g1_ref[...] + be1_ref[...]
        h1_ref[...] = jnp.maximum(h, 0.0)


def _tail_kernel(h1_ref, w2_ref, b2_ref, g2_ref, be2_ref, w3_ref, b3_ref,
                 out_ref):
    """Linear2 -> BN2 -> ReLU -> Linear3 -> Softmax(dim=1). Tiny; one step."""
    h2 = jnp.dot(h1_ref[...], w2_ref[...],
                 preferred_element_type=jnp.float32) + b2_ref[...]
    mu = jnp.mean(h2, axis=0, keepdims=True)
    var = jnp.mean((h2 - mu) ** 2, axis=0, keepdims=True)
    h2 = (h2 - mu) * jax.lax.rsqrt(var + BN_EPS) * g2_ref[...] + be2_ref[...]
    h2 = jnp.maximum(h2, 0.0)

    logits = jnp.dot(h2, w3_ref[...],
                     preferred_element_type=jnp.float32) + b3_ref[...]
    m = jnp.max(logits, axis=1, keepdims=True)
    e = jnp.exp(logits - m)
    out_ref[...] = (e / jnp.sum(e, axis=1, keepdims=True)).astype(out_ref.dtype)


def pack_head_params(params, *, n_cores=None):
    """One-time packing (outside the per-call/jit path).

    * picks (tk, tn) per chip generation,
    * casts W1 to bf16 and pre-blocks it to (ni, nk, tk, tn) so every
      (tk, tn) tile is a contiguous HBM region,
    * reshapes 1-D bias/BN params to (1, H) for clean in-kernel broadcasting.
    """
    w1, b1, g1, be1, w2, b2, g2, be2, w3, b3 = params
    feat, h1 = w1.shape
    h2, out = w2.shape[1], w3.shape[1]
    if n_cores is None:
        n_cores = _tensorcores_per_chip()

    # H1 split only buys anything with 2 TensorCores (v7x); single-TC chips
    # keep tn = H1 (fewer grid steps, longer contiguous DMA rows).
    tn = h1
    if n_cores >= 2 and h1 >= 256 and (h1 // 2) % 128 == 0:
        tn = h1 // 2

    # Largest K tile <= 4096 that divides FEAT and keeps one bf16 W1 tile
    # under the budget (double-buffered it must fit VMEM on every generation).
    tk = min(4096, feat)
    while tk > 128 and (feat % tk != 0 or 2 * tk * tn > W1_TILE_BYTES):
        tk //= 2
    assert feat % tk == 0, "feature dim must be divisible by the K tile"
    assert h1 % tn == 0
    ni, nk = h1 // tn, feat // tk

    w1_blocked = (w1.astype(jnp.bfloat16)
                  .reshape(nk, tk, ni, tn)
                  .transpose(2, 0, 1, 3))              # (ni, nk, tk, tn), contiguous tiles
    b1r, g1r, be1r = (p.reshape(1, h1) for p in (b1, g1, be1))
    b2r, g2r, be2r = (p.reshape(1, h2) for p in (b2, g2, be2))
    b3r = b3.reshape(1, out)
    return (w1_blocked, b1r, g1r, be1r, w2, b2r, g2r, be2r, w3, b3r)


def mlp_head(x_bf16, packed):
    """Run one MLP head. x_bf16: (B, FEAT) bf16. `packed` from pack_head_params."""
    w1b, b1r, g1r, be1r, w2, b2r, g2r, be2r, w3, b3r = packed
    B, feat = x_bf16.shape
    ni, nk, tk, tn = w1b.shape
    h1 = ni * tn
    h2 = w2.shape[1]
    out_dim = w3.shape[1]
    assert feat == nk * tk

    # TODO(synk): batch is not padded to the 8/16-sublane width because
    # BatchNorm uses batch statistics (zero-padded rows would corrupt them);
    # implicit vreg padding handles B=2.

    cost = pl.CostEstimate(
        flops=2 * B * feat * h1,
        transcendentals=0,
        bytes_accessed=feat * h1 * 2 + B * feat * 2 + B * h1 * 4)

    # ---- Kernel 1: big Linear + BN1 + ReLU (HBM-bound W1 stream) ----
    h1_act = pl.pallas_call(
        _linear_bn_relu_kernel,
        out_shape=jax.ShapeDtypeStruct((B, h1), jnp.float32),
        grid_spec=pltpu.PrefetchScalarGridSpec(
            num_scalar_prefetch=0,
            grid=(ni, nk),
            in_specs=[
                pl.BlockSpec((B, feat), lambda i, k: (0, 0)),       # x resident
                pl.BlockSpec((None, None, tk, tn),
                             lambda i, k: (i, k, 0, 0)),            # contiguous W1 tile
                pl.BlockSpec((1, tn), lambda i, k: (0, i)),         # b1
                pl.BlockSpec((1, tn), lambda i, k: (0, i)),         # gamma1
                pl.BlockSpec((1, tn), lambda i, k: (0, i)),         # beta1
            ],
            out_specs=pl.BlockSpec((B, tn), lambda i, k: (0, i)),
        ),
        compiler_params=pltpu.CompilerParams(
            dimension_semantics=("parallel", "arbitrary"),
            vmem_limit_bytes=VMEM_LIMIT_BYTES),
        cost_estimate=cost,
    )(x_bf16, w1b, b1r, g1r, be1r)

    # ---- Kernel 2: small Linear2/BN2/ReLU/Linear3/Softmax tail ----
    out = pl.pallas_call(
        _tail_kernel,
        out_shape=jax.ShapeDtypeStruct((B, out_dim), jnp.float32),
        grid_spec=pltpu.PrefetchScalarGridSpec(
            num_scalar_prefetch=0,
            grid=(1,),
            in_specs=[
                pl.BlockSpec((B, h1), lambda i: (0, 0)),
                pl.BlockSpec((h1, h2), lambda i: (0, 0)),
                pl.BlockSpec((1, h2), lambda i: (0, 0)),
                pl.BlockSpec((1, h2), lambda i: (0, 0)),
                pl.BlockSpec((1, h2), lambda i: (0, 0)),
                pl.BlockSpec((h2, out_dim), lambda i: (0, 0)),
                pl.BlockSpec((1, out_dim), lambda i: (0, 0)),
            ],
            out_specs=pl.BlockSpec((B, out_dim), lambda i: (0, 0)),
        ),
        compiler_params=pltpu.CompilerParams(
            dimension_semantics=("arbitrary",),
            vmem_limit_bytes=VMEM_LIMIT_BYTES),
    )(h1_act, w2, b2r, g2r, be2r, w3, b3r)

    return out


def init_head_params(key, feat, h1, h2, out):
    """Deterministic synthetic init. Weights stored as (in, out), f32."""
    ks = jax.random.split(key, 6)
    w1 = jax.random.normal(ks[0], (feat, h1), jnp.float32) * (1.0 / jnp.sqrt(feat))
    b1 = jax.random.normal(ks[1], (h1,), jnp.float32) * 0.01
    w2 = jax.random.normal(ks[2], (h1, h2), jnp.float32) * (1.0 / jnp.sqrt(h1))
    b2 = jax.random.normal(ks[3], (h2,), jnp.float32) * 0.01
    w3 = jax.random.normal(ks[4], (h2, out), jnp.float32) * (1.0 / jnp.sqrt(h2))
    b3 = jax.random.normal(ks[5], (out,), jnp.float32) * 0.01
    # BatchNorm affine params at PyTorch defaults: gamma=1, beta=0.
    g1, be1 = jnp.ones((h1,), jnp.float32), jnp.zeros((h1,), jnp.float32)
    g2, be2 = jnp.ones((h2,), jnp.float32), jnp.zeros((h2,), jnp.float32)
    return (w1, b1, g1, be1, w2, b2, g2, be2, w3, b3)


def dann2_forward(x, lmbda, label_params, domain_params):
    """Forward pass of DANN_2.

    x: (B, C, H, W) NCHW. label_params/domain_params: outputs of
    pack_head_params. Returns (label_output (B, num_classes),
    domain_output (B, 1)).
    """
    # TODO(synk): `model_layers` (feature extractor) is an external argument in
    # the original module; identity feature extractor is used here.
    B = x.shape[0]
    x_flat = x.reshape(B, -1)                     # == x.view(-1, feat_dim)
    x_bf16 = x_flat.astype(jnp.bfloat16)          # single tiny cast of x per call

    # GradientReversal.forward is identity (lmbda only affects backward).
    del lmbda
    x_reverse = x_bf16

    label_output = mlp_head(x_bf16, label_params)
    domain_output = mlp_head(x_reverse, domain_params)
    return label_output, domain_output


if __name__ == "__main__":
    # Small shapes: batch=2, channels=4, spatial=16 -> feat = 4*16*16 = 1024
    B, C, H, W = 2, 4, 16, 16
    FEAT = C * H * W
    NUM_CLASSES = 10

    key = jax.random.PRNGKey(0)
    kx, kl, kd = jax.random.split(key, 3)

    x = jax.random.normal(kx, (B, C, H, W), jnp.float32)
    lmbda = 0.5  # unused in forward (gradient reversal is identity fwd)

    # Pack once (cast + pre-block W1, reshape bias/BN params) OUTSIDE jit,
    # then pass packed params as jit arguments -> no per-call conversions.
    label_params = pack_head_params(init_head_params(kl, FEAT, 512, 512, NUM_CLASSES))
    domain_params = pack_head_params(init_head_params(kd, FEAT, 2048, 128, 1))

    fwd = jax.jit(dann2_forward)
    label_out, domain_out = fwd(x, lmbda, label_params, domain_params)
    jax.block_until_ready((label_out, domain_out))

    assert label_out.shape == (B, NUM_CLASSES)
    assert domain_out.shape == (B, 1)
    # Softmax over dim=1: rows sum to 1; domain head (1 logit) is exactly 1.0,
    # matching the PyTorch module (Softmax over a single unit).
    assert jnp.allclose(jnp.sum(label_out, axis=1), 1.0, atol=1e-5)
    assert jnp.allclose(domain_out, 1.0, atol=1e-6)

    print("KERNEL_OK")
</pallas_src>

<mosaic_0001>
module attributes {stable_mosaic.version = 11 : i64} {
  func.func @_linear_bn_relu_kernel(%arg0: i32, %arg1: i32, %arg2: memref<2x1024xbf16, #tpu.memory_space<vmem>>, %arg3: memref<1x1x1024x2048xbf16, #tpu.memory_space<vmem>>, %arg4: memref<1x2048xf32, #tpu.memory_space<vmem>>, %arg5: memref<1x2048xf32, #tpu.memory_space<vmem>>, %arg6: memref<1x2048xf32, #tpu.memory_space<vmem>>, %arg7: memref<2x2048xf32, #tpu.memory_space<vmem>>) attributes {dimension_semantics = [#tpu.dimension_semantics<parallel>, #tpu.dimension_semantics<arbitrary>], iteration_bounds = array<i64: 1, 1>, scalar_prefetch = 0 : i64, scratch_operands = 0 : i64, tpu.core_type = #tpu.core_type<tc>, window_params = [{pipeline_mode = #tpu.pipeline_mode<synchronous>, transform_indices = @transform_0, window_bounds = array<i64: 2, 1024>}, {transform_indices = @transform_1, window_bounds = array<i64: 1, 1, 1024, 2048>}, {transform_indices = @transform_2, window_bounds = array<i64: 1, 2048>}, {transform_indices = @transform_3, window_bounds = array<i64: 1, 2048>}, {transform_indices = @transform_4, window_bounds = array<i64: 1, 2048>}, {transform_indices = @transform_5, window_bounds = array<i64: 2, 2048>}]} {
    %c0_i32 = arith.constant 0 : i32
    %0 = arith.cmpi eq, %arg1, %c0_i32 : i32
    %1 = arith.extui %0 : i1 to i32
    %c0_i32_0 = arith.constant 0 : i32
    %2 = arith.cmpi ne, %1, %c0_i32_0 : i32
    scf.if %2 {
      %cst_11 = arith.constant 0.000000e+00 : f32
      %16 = vector.broadcast %cst_11 : f32 to vector<2x2048xf32>
      %c0_12 = arith.constant 0 : index
      %c0_13 = arith.constant 0 : index
      %17 = vector.load %arg7[%c0_12, %c0_13] : memref<2x2048xf32, #tpu.memory_space<vmem>>, vector<2x2048xf32>
      tpu.vector_store %arg7[%c0_12, %c0_13], %16 {strides = array<i32>} : memref<2x2048xf32, #tpu.memory_space<vmem>>, vector<2x2048xf32>,
    } else {
    }
    %c1024_i32 = arith.constant 1024 : i32
    %3 = arith.muli %arg1, %c1024_i32 : i32
    %4 = tpu.assume_multiple %3, 1024 : i32
    %c0 = arith.constant 0 : index
    %5 = arith.index_cast %4 : i32 to index
    %6 = vector.load %arg2[%c0, %5] : memref<2x1024xbf16, #tpu.memory_space<vmem>>, vector<2x1024xbf16>
    %c0_1 = arith.constant 0 : index
    %c0_2 = arith.constant 0 : index
    %7 = vector.load %arg7[%c0_1, %c0_2] : memref<2x2048xf32, #tpu.memory_space<vmem>>, vector<2x2048xf32>
    %c0_3 = arith.constant 0 : index
    %c0_4 = arith.constant 0 : index
    %c0_5 = arith.constant 0 : index
    %c0_6 = arith.constant 0 : index
    %8 = vector.load %arg3[%c0_3, %c0_4, %c0_5, %c0_6] : memref<1x1x1024x2048xbf16, #tpu.memory_space<vmem>>, vector<1x1x1024x2048xbf16>
    %9 = vector.shape_cast %8 : vector<1x1x1024x2048xbf16> to vector<1024x2048xbf16>
    %cst = arith.constant dense<0.000000e+00> : vector<2x2048xf32>
    %10 = tpu.matmul %6, %9, %cst {dimension_numbers = #tpu.dot_dimension_numbers<[1], [0], [0], [1], [0, 0, 1, 1], [], []>} : vector<2x1024xbf16>, vector<1024x2048xbf16>, vector<2x2048xf32> -> vector<2x2048xf32>
    %11 = arith.addf %7, %10 : vector<2x2048xf32>
    %c0_7 = arith.constant 0 : index
    %c0_8 = arith.constant 0 : index
    %12 = vector.load %arg7[%c0_7, %c0_8] : memref<2x2048xf32, #tpu.memory_space<vmem>>, vector<2x2048xf32>
    tpu.vector_store %arg7[%c0_7, %c0_8], %11 {strides = array<i32>} : memref<2x2048xf32, #tpu.memory_space<vmem>>, vector<2x2048xf32>,
    %c0_i32_9 = arith.constant 0 : i32
    %13 = arith.cmpi eq, %arg1, %c0_i32_9 : i32
    %14 = arith.extui %13 : i1 to i32
    %c0_i32_10 = arith.constant 0 : i32
    %15 = arith.cmpi ne, %14, %c0_i32_10 : i32
    scf.if %15 {
      %c0_11 = arith.constant 0 : index
      %c0_12 = arith.constant 0 : index
      %16 = vector.load %arg7[%c0_11, %c0_12] : memref<2x2048xf32, #tpu.memory_space<vmem>>, vector<2x2048xf32>
      %c0_13 = arith.constant 0 : index
      %c0_14 = arith.constant 0 : index
      %17 = vector.load %arg4[%c0_13, %c0_14] : memref<1x2048xf32, #tpu.memory_space<vmem>>, vector<1x2048xf32>
      %18 = vector.broadcast %17 : vector<1x2048xf32> to vector<2x2048xf32>
      %19 = arith.addf %16, %18 : vector<2x2048xf32>
      %cst_15 = arith.constant dense<0.000000e+00> : vector<2048xf32>
      %20 = vector.multi_reduction <add>, %19, %cst_15 [0] : vector<2x2048xf32> to vector<2048xf32>
      %21 = vector.shape_cast %20 : vector<2048xf32> to vector<1x2048xf32>
      %cst_16 = arith.constant 2.000000e+00 : f32
      %22 = vector.broadcast %cst_16 : f32 to vector<1x2048xf32>
      %23 = arith.divf %21, %22 : vector<1x2048xf32>
      %24 = vector.broadcast %23 : vector<1x2048xf32> to vector<2x2048xf32>
      %25 = arith.subf %19, %24 : vector<2x2048xf32>
      %26 = arith.mulf %25, %25 : vector<2x2048xf32>
      %cst_17 = arith.constant dense<0.000000e+00> : vector<2048xf32>
      %27 = vector.multi_reduction <add>, %26, %cst_17 [0] : vector<2x2048xf32> to vector<2048xf32>
      %28 = vector.shape_cast %27 : vector<2048xf32> to vector<1x2048xf32>
      %cst_18 = arith.constant 2.000000e+00 : f32
      %29 = vector.broadcast %cst_18 : f32 to vector<1x2048xf32>
      %30 = arith.divf %28, %29 : vector<1x2048xf32>
      %31 = vector.broadcast %23 : vector<1x2048xf32> to vector<2x2048xf32>
      %32 = arith.subf %19, %31 : vector<2x2048xf32>
      %cst_19 = arith.constant 9.99999974E-6 : f32
      %33 = vector.broadcast %cst_19 : f32 to vector<1x2048xf32>
      %34 = arith.addf %30, %33 : vector<1x2048xf32>
      %35 = math.rsqrt %34 : vector<1x2048xf32>
      %36 = vector.broadcast %35 : vector<1x2048xf32> to vector<2x2048xf32>
      %37 = arith.mulf %32, %36 : vector<2x2048xf32>
      %c0_20 = arith.constant 0 : index
      %c0_21 = arith.constant 0 : index
      %38 = vector.load %arg5[%c0_20, %c0_21] : memref<1x2048xf32, #tpu.memory_space<vmem>>, vector<1x2048xf32>
      %39 = vector.broadcast %38 : vector<1x2048xf32> to vector<2x2048xf32>
      %40 = arith.mulf %37, %39 : vector<2x2048xf32>
      %c0_22 = arith.constant 0 : index
      %c0_23 = arith.constant 0 : index
      %41 = vector.load %arg6[%c0_22, %c0_23] : memref<1x2048xf32, #tpu.memory_space<vmem>>, vector<1x2048xf32>
      %42 = vector.broadcast %41 : vector<1x2048xf32> to vector<2x2048xf32>
      %43 = arith.addf %40, %42 : vector<2x2048xf32>
      %cst_24 = arith.constant 0.000000e+00 : f32
      %44 = vector.broadcast %cst_24 : f32 to vector<2x2048xf32>
      %45 = arith.maximumf %43, %44 : vector<2x2048xf32>
      %c0_25 = arith.constant 0 : index
      %c0_26 = arith.constant 0 : index
      %46 = vector.load %arg7[%c0_25, %c0_26] : memref<2x2048xf32, #tpu.memory_space<vmem>>, vector<2x2048xf32>
      tpu.vector_store %arg7[%c0_25, %c0_26], %45 {strides = array<i32>} : memref<2x2048xf32, #tpu.memory_space<vmem>>, vector<2x2048xf32>,
    } else {
    }
    return
  }
  func.func @transform_0(%arg0: i32, %arg1: i32) -> (i32, i32) {
    %c0_i32 = arith.constant 0 : i32
    %c0_i32_0 = arith.constant 0 : i32
    %c0_i32_1 = arith.constant 0 : i32
    return %c0_i32, %c0_i32_0 : i32, i32
  }
  func.func @transform_1(%arg0: i32, %arg1: i32) -> (i32, i32, i32, i32) {
    %c0_i32 = arith.constant 0 : i32
    %c0_i32_0 = arith.constant 0 : i32
    %c0_i32_1 = arith.constant 0 : i32
    return %arg0, %arg1, %c0_i32, %c0_i32_0 : i32, i32, i32, i32
  }
  func.func @transform_2(%arg0: i32, %arg1: i32) -> (i32, i32) {
    %c0_i32 = arith.constant 0 : i32
    %c0_i32_0 = arith.constant 0 : i32
    return %c0_i32, %arg0 : i32, i32
  }
  func.func @transform_3(%arg0: i32, %arg1: i32) -> (i32, i32) {
    %c0_i32 = arith.constant 0 : i32
    %c0_i32_0 = arith.constant 0 : i32
    return %c0_i32, %arg0 : i32, i32
  }
  func.func @transform_4(%arg0: i32, %arg1: i32) -> (i32, i32) {
    %c0_i32 = arith.constant 0 : i32
    %c0_i32_0 = arith.constant 0 : i32
    return %c0_i32, %arg0 : i32, i32
  }
  func.func @transform_5(%arg0: i32, %arg1: i32) -> (i32, i32) {
    %c0_i32 = arith.constant 0 : i32
    %c0_i32_0 = arith.constant 0 : i32
    return %c0_i32, %arg0 : i32, i32
  }
}

module attributes {stable_mosaic.version = 11 : i64} {
  func.func @_linear_bn_relu_kernel(%arg0: i32, %arg1: i32, %arg2: memref<2x1024xbf16, #tpu.memory_space<vmem>>, %arg3: memref<1x1x1024x512xbf16, #tpu.memory_space<vmem>>, %arg4: memref<1x512xf32, #tpu.memory_space<vmem>>, %arg5: memref<1x512xf32, #tpu.memory_space<vmem>>, %arg6: memref<1x512xf32, #tpu.memory_space<vmem>>, %arg7: memref<2x512xf32, #tpu.memory_space<vmem>>) attributes {dimension_semantics = [#tpu.dimension_semantics<parallel>, #tpu.dimension_semantics<arbitrary>], iteration_bounds = array<i64: 1, 1>, scalar_prefetch = 0 : i64, scratch_operands = 0 : i64, tpu.core_type = #tpu.core_type<tc>, window_params = [{pipeline_mode = #tpu.pipeline_mode<synchronous>, transform_indices = @transform_0, window_bounds = array<i64: 2, 1024>}, {transform_indices = @transform_1, window_bounds = array<i64: 1, 1, 1024, 512>}, {transform_indices = @transform_2, window_bounds = array<i64: 1, 512>}, {transform_indices = @transform_3, window_bounds = array<i64: 1, 512>}, {transform_indices = @transform_4, window_bounds = array<i64: 1, 512>}, {transform_indices = @transform_5, window_bounds = array<i64: 2, 512>}]} {
    %c0_i32 = arith.constant 0 : i32
    %0 = arith.cmpi eq, %arg1, %c0_i32 : i32
    %1 = arith.extui %0 : i1 to i32
    %c0_i32_0 = arith.constant 0 : i32
    %2 = arith.cmpi ne, %1, %c0_i32_0 : i32
    scf.if %2 {
      %cst_11 = arith.constant 0.000000e+00 : f32
      %16 = vector.broadcast %cst_11 : f32 to vector<2x512xf32>
      %c0_12 = arith.constant 0 : index
      %c0_13 = arith.constant 0 : index
      %17 = vector.load %arg7[%c0_12, %c0_13] : memref<2x512xf32, #tpu.memory_space<vmem>>, vector<2x512xf32>
      tpu.vector_store %arg7[%c0_12, %c0_13], %16 {strides = array<i32>} : memref<2x512xf32, #tpu.memory_space<vmem>>, vector<2x512xf32>,
    } else {
    }
    %c1024_i32 = arith.constant 1024 : i32
    %3 = arith.muli %arg1, %c1024_i32 : i32
    %4 = tpu.assume_multiple %3, 1024 : i32
    %c0 = arith.constant 0 : index
    %5 = arith.index_cast %4 : i32 to index
    %6 = vector.load %arg2[%c0, %5] : memref<2x1024xbf16, #tpu.memory_space<vmem>>, vector<2x1024xbf16>
    %c0_1 = arith.constant 0 : index
    %c0_2 = arith.constant 0 : index
    %7 = vector.load %arg7[%c0_1, %c0_2] : memref<2x512xf32, #tpu.memory_space<vmem>>, vector<2x512xf32>
    %c0_3 = arith.constant 0 : index
    %c0_4 = arith.constant 0 : index
    %c0_5 = arith.constant 0 : index
    %c0_6 = arith.constant 0 : index
    %8 = vector.load %arg3[%c0_3, %c0_4, %c0_5, %c0_6] : memref<1x1x1024x512xbf16, #tpu.memory_space<vmem>>, vector<1x1x1024x512xbf16>
    %9 = vector.shape_cast %8 : vector<1x1x1024x512xbf16> to vector<1024x512xbf16>
    %cst = arith.constant dense<0.000000e+00> : vector<2x512xf32>
    %10 = tpu.matmul %6, %9, %cst {dimension_numbers = #tpu.dot_dimension_numbers<[1], [0], [0], [1], [0, 0, 1, 1], [], []>} : vector<2x1024xbf16>, vector<1024x512xbf16>, vector<2x512xf32> -> vector<2x512xf32>
    %11 = arith.addf %7, %10 : vector<2x512xf32>
    %c0_7 = arith.constant 0 : index
    %c0_8 = arith.constant 0 : index
    %12 = vector.load %arg7[%c0_7, %c0_8] : memref<2x512xf32, #tpu.memory_space<vmem>>, vector<2x512xf32>
    tpu.vector_store %arg7[%c0_7, %c0_8], %11 {strides = array<i32>} : memref<2x512xf32, #tpu.memory_space<vmem>>, vector<2x512xf32>,
    %c0_i32_9 = arith.constant 0 : i32
    %13 = arith.cmpi eq, %arg1, %c0_i32_9 : i32
    %14 = arith.extui %13 : i1 to i32
    %c0_i32_10 = arith.constant 0 : i32
    %15 = arith.cmpi ne, %14, %c0_i32_10 : i32
    scf.if %15 {
      %c0_11 = arith.constant 0 : index
      %c0_12 = arith.constant 0 : index
      %16 = vector.load %arg7[%c0_11, %c0_12] : memref<2x512xf32, #tpu.memory_space<vmem>>, vector<2x512xf32>
      %c0_13 = arith.constant 0 : index
      %c0_14 = arith.constant 0 : index
      %17 = vector.load %arg4[%c0_13, %c0_14] : memref<1x512xf32, #tpu.memory_space<vmem>>, vector<1x512xf32>
      %18 = vector.broadcast %17 : vector<1x512xf32> to vector<2x512xf32>
      %19 = arith.addf %16, %18 : vector<2x512xf32>
      %cst_15 = arith.constant dense<0.000000e+00> : vector<512xf32>
      %20 = vector.multi_reduction <add>, %19, %cst_15 [0] : vector<2x512xf32> to vector<512xf32>
      %21 = vector.shape_cast %20 : vector<512xf32> to vector<1x512xf32>
      %cst_16 = arith.constant 2.000000e+00 : f32
      %22 = vector.broadcast %cst_16 : f32 to vector<1x512xf32>
      %23 = arith.divf %21, %22 : vector<1x512xf32>
      %24 = vector.broadcast %23 : vector<1x512xf32> to vector<2x512xf32>
      %25 = arith.subf %19, %24 : vector<2x512xf32>
      %26 = arith.mulf %25, %25 : vector<2x512xf32>
      %cst_17 = arith.constant dense<0.000000e+00> : vector<512xf32>
      %27 = vector.multi_reduction <add>, %26, %cst_17 [0] : vector<2x512xf32> to vector<512xf32>
      %28 = vector.shape_cast %27 : vector<512xf32> to vector<1x512xf32>
      %cst_18 = arith.constant 2.000000e+00 : f32
      %29 = vector.broadcast %cst_18 : f32 to vector<1x512xf32>
      %30 = arith.divf %28, %29 : vector<1x512xf32>
      %31 = vector.broadcast %23 : vector<1x512xf32> to vector<2x512xf32>
      %32 = arith.subf %19, %31 : vector<2x512xf32>
      %cst_19 = arith.constant 9.99999974E-6 : f32
      %33 = vector.broadcast %cst_19 : f32 to vector<1x512xf32>
      %34 = arith.addf %30, %33 : vector<1x512xf32>
      %35 = math.rsqrt %34 : vector<1x512xf32>
      %36 = vector.broadcast %35 : vector<1x512xf32> to vector<2x512xf32>
      %37 = arith.mulf %32, %36 : vector<2x512xf32>
      %c0_20 = arith.constant 0 : index
      %c0_21 = arith.constant 0 : index
      %38 = vector.load %arg5[%c0_20, %c0_21] : memref<1x512xf32, #tpu.memory_space<vmem>>, vector<1x512xf32>
      %39 = vector.broadcast %38 : vector<1x512xf32> to vector<2x512xf32>
      %40 = arith.mulf %37, %39 : vector<2x512xf32>
      %c0_22 = arith.constant 0 : index
      %c0_23 = arith.constant 0 : index
      %41 = vector.load %arg6[%c0_22, %c0_23] : memref<1x512xf32, #tpu.memory_space<vmem>>, vector<1x512xf32>
      %42 = vector.broadcast %41 : vector<1x512xf32> to vector<2x512xf32>
      %43 = arith.addf %40, %42 : vector<2x512xf32>
      %cst_24 = arith.constant 0.000000e+00 : f32
      %44 = vector.broadcast %cst_24 : f32 to vector<2x512xf32>
      %45 = arith.maximumf %43, %44 : vector<2x512xf32>
      %c0_25 = arith.constant 0 : index
      %c0_26 = arith.constant 0 : index
      %46 = vector.load %arg7[%c0_25, %c0_26] : memref<2x512xf32, #tpu.memory_space<vmem>>, vector<2x512xf32>
      tpu.vector_store %arg7[%c0_25, %c0_26], %45 {strides = array<i32>} : memref<2x512xf32, #tpu.memory_space<vmem>>, vector<2x512xf32>,
    } else {
    }
    return
  }
  func.func @transform_0(%arg0: i32, %arg1: i32) -> (i32, i32) {
    %c0_i32 = arith.constant 0 : i32
    %c0_i32_0 = arith.constant 0 : i32
    %c0_i32_1 = arith.constant 0 : i32
    return %c0_i32, %c0_i32_0 : i32, i32
  }
  func.func @transform_1(%arg0: i32, %arg1: i32) -> (i32, i32, i32, i32) {
    %c0_i32 = arith.constant 0 : i32
    %c0_i32_0 = arith.constant 0 : i32
    %c0_i32_1 = arith.constant 0 : i32
    return %arg0, %arg1, %c0_i32, %c0_i32_0 : i32, i32, i32, i32
  }
  func.func @transform_2(%arg0: i32, %arg1: i32) -> (i32, i32) {
    %c0_i32 = arith.constant 0 : i32
    %c0_i32_0 = arith.constant 0 : i32
    return %c0_i32, %arg0 : i32, i32
  }
  func.func @transform_3(%arg0: i32, %arg1: i32) -> (i32, i32) {
    %c0_i32 = arith.constant 0 : i32
    %c0_i32_0 = arith.constant 0 : i32
    return %c0_i32, %arg0 : i32, i32
  }
  func.func @transform_4(%arg0: i32, %arg1: i32) -> (i32, i32) {
    %c0_i32 = arith.constant 0 : i32
    %c0_i32_0 = arith.constant 0 : i32
    return %c0_i32, %arg0 : i32, i32
  }
  func.func @transform_5(%arg0: i32, %arg1: i32) -> (i32, i32) {
    %c0_i32 = arith.constant 0 : i32
    %c0_i32_0 = arith.constant 0 : i32
    return %c0_i32, %arg0 : i32, i32
  }
}

module attributes {stable_mosaic.version = 11 : i64} {
  func.func @_tail_kernel(%arg0: i32, %arg1: memref<2x2048xf32, #tpu.memory_space<vmem>>, %arg2: memref<2048x128xf32, #tpu.memory_space<vmem>>, %arg3: memref<1x128xf32, #tpu.memory_space<vmem>>, %arg4: memref<1x128xf32, #tpu.memory_space<vmem>>, %arg5: memref<1x128xf32, #tpu.memory_space<vmem>>, %arg6: memref<128x1xf32, #tpu.memory_space<vmem>>, %arg7: memref<1x1xf32, #tpu.memory_space<vmem>>, %arg8: memref<2x1xf32, #tpu.memory_space<vmem>>) attributes {dimension_semantics = [#tpu.dimension_semantics<arbitrary>], iteration_bounds = array<i64: 1>, scalar_prefetch = 0 : i64, scratch_operands = 0 : i64, tpu.core_type = #tpu.core_type<tc>, window_params = [{pipeline_mode = #tpu.pipeline_mode<synchronous>, transform_indices = @transform_0, window_bounds = array<i64: 2, 2048>}, {pipeline_mode = #tpu.pipeline_mode<synchronous>, transform_indices = @transform_1, window_bounds = array<i64: 2048, 128>}, {pipeline_mode = #tpu.pipeline_mode<synchronous>, transform_indices = @transform_2, window_bounds = array<i64: 1, 128>}, {pipeline_mode = #tpu.pipeline_mode<synchronous>, transform_indices = @transform_3, window_bounds = array<i64: 1, 128>}, {pipeline_mode = #tpu.pipeline_mode<synchronous>, transform_indices = @transform_4, window_bounds = array<i64: 1, 128>}, {pipeline_mode = #tpu.pipeline_mode<synchronous>, transform_indices = @transform_5, window_bounds = array<i64: 128, 1>}, {pipeline_mode = #tpu.pipeline_mode<synchronous>, transform_indices = @transform_6, window_bounds = array<i64: 1, 1>}, {pipeline_mode = #tpu.pipeline_mode<synchronous>, transform_indices = @transform_7, window_bounds = array<i64: 2, 1>}]} {
    %c0 = arith.constant 0 : index
    %c0_0 = arith.constant 0 : index
    %0 = vector.load %arg1[%c0, %c0_0] : memref<2x2048xf32, #tpu.memory_space<vmem>>, vector<2x2048xf32>
    %c0_1 = arith.constant 0 : index
    %c0_2 = arith.constant 0 : index
    %1 = vector.load %arg2[%c0_1, %c0_2] : memref<2048x128xf32, #tpu.memory_space<vmem>>, vector<2048x128xf32>
    %cst = arith.constant dense<0.000000e+00> : vector<2x128xf32>
    %2 = tpu.matmul %0, %1, %cst {dimension_numbers = #tpu.dot_dimension_numbers<[1], [0], [0], [1], [0, 0, 1, 1], [], []>} : vector<2x2048xf32>, vector<2048x128xf32>, vector<2x128xf32> -> vector<2x128xf32>
    %c0_3 = arith.constant 0 : index
    %c0_4 = arith.constant 0 : index
    %3 = vector.load %arg3[%c0_3, %c0_4] : memref<1x128xf32, #tpu.memory_space<vmem>>, vector<1x128xf32>
    %4 = vector.broadcast %3 : vector<1x128xf32> to vector<2x128xf32>
    %5 = arith.addf %2, %4 : vector<2x128xf32>
    %cst_5 = arith.constant dense<0.000000e+00> : vector<128xf32>
    %6 = vector.multi_reduction <add>, %5, %cst_5 [0] : vector<2x128xf32> to vector<128xf32>
    %7 = vector.shape_cast %6 : vector<128xf32> to vector<1x128xf32>
    %cst_6 = arith.constant 2.000000e+00 : f32
    %8 = vector.broadcast %cst_6 : f32 to vector<1x128xf32>
    %9 = arith.divf %7, %8 : vector<1x128xf32>
    %10 = vector.broadcast %9 : vector<1x128xf32> to vector<2x128xf32>
    %11 = arith.subf %5, %10 : vector<2x128xf32>
    %12 = arith.mulf %11, %11 : vector<2x128xf32>
    %cst_7 = arith.constant dense<0.000000e+00> : vector<128xf32>
    %13 = vector.multi_reduction <add>, %12, %cst_7 [0] : vector<2x128xf32> to vector<128xf32>
    %14 = vector.shape_cast %13 : vector<128xf32> to vector<1x128xf32>
    %cst_8 = arith.constant 2.000000e+00 : f32
    %15 = vector.broadcast %cst_8 : f32 to vector<1x128xf32>
    %16 = arith.divf %14, %15 : vector<1x128xf32>
    %17 = vector.broadcast %9 : vector<1x128xf32> to vector<2x128xf32>
    %18 = arith.subf %5, %17 : vector<2x128xf32>
    %cst_9 = arith.constant 9.99999974E-6 : f32
    %19 = vector.broadcast %cst_9 : f32 to vector<1x128xf32>
    %20 = arith.addf %16, %19 : vector<1x128xf32>
    %21 = math.rsqrt %20 : vector<1x128xf32>
    %22 = vector.broadcast %21 : vector<1x128xf32> to vector<2x128xf32>
    %23 = arith.mulf %18, %22 : vector<2x128xf32>
    %c0_10 = arith.constant 0 : index
    %c0_11 = arith.constant 0 : index
    %24 = vector.load %arg4[%c0_10, %c0_11] : memref<1x128xf32, #tpu.memory_space<vmem>>, vector<1x128xf32>
    %25 = vector.broadcast %24 : vector<1x128xf32> to vector<2x128xf32>
    %26 = arith.mulf %23, %25 : vector<2x128xf32>
    %c0_12 = arith.constant 0 : index
    %c0_13 = arith.constant 0 : index
    %27 = vector.load %arg5[%c0_12, %c0_13] : memref<1x128xf32, #tpu.memory_space<vmem>>, vector<1x128xf32>
    %28 = vector.broadcast %27 : vector<1x128xf32> to vector<2x128xf32>
    %29 = arith.addf %26, %28 : vector<2x128xf32>
    %cst_14 = arith.constant 0.000000e+00 : f32
    %30 = vector.broadcast %cst_14 : f32 to vector<2x128xf32>
    %31 = arith.maximumf %29, %30 : vector<2x128xf32>
    %c0_15 = arith.constant 0 : index
    %c0_16 = arith.constant 0 : index
    %32 = vector.load %arg6[%c0_15, %c0_16] : memref<128x1xf32, #tpu.memory_space<vmem>>, vector<128x1xf32>
    %cst_17 = arith.constant dense<0.000000e+00> : vector<2x1xf32>
    %33 = tpu.matmul %31, %32, %cst_17 {dimension_numbers = #tpu.dot_dimension_numbers<[1], [0], [0], [1], [0, 0, 1, 1], [], []>} : vector<2x128xf32>, vector<128x1xf32>, vector<2x1xf32> -> vector<2x1xf32>
    %c0_18 = arith.constant 0 : index
    %c0_19 = arith.constant 0 : index
    %34 = vector.load %arg7[%c0_18, %c0_19] : memref<1x1xf32, #tpu.memory_space<vmem>>, vector<1x1xf32>
    %35 = vector.broadcast %34 : vector<1x1xf32> to vector<2x1xf32>
    %36 = arith.addf %33, %35 : vector<2x1xf32>
    %cst_20 = arith.constant dense<0xFF800000> : vector<2xf32>
    %37 = vector.multi_reduction <maximumf>, %36, %cst_20 [1] : vector<2x1xf32> to vector<2xf32>
    %38 = vector.shape_cast %37 : vector<2xf32> to vector<2x1xf32>
    %39 = arith.subf %36, %38 : vector<2x1xf32>
    %40 = math.exp %39 : vector<2x1xf32>
    %cst_21 = arith.constant dense<0.000000e+00> : vector<2xf32>
    %41 = vector.multi_reduction <add>, %40, %cst_21 [1] : vector<2x1xf32> to vector<2xf32>
    %42 = vector.shape_cast %41 : vector<2xf32> to vector<2x1xf32>
    %43 = arith.divf %40, %42 : vector<2x1xf32>
    %c0_22 = arith.constant 0 : index
    %c0_23 = arith.constant 0 : index
    %44 = vector.load %arg8[%c0_22, %c0_23] : memref<2x1xf32, #tpu.memory_space<vmem>>, vector<2x1xf32>
    tpu.vector_store %arg8[%c0_22, %c0_23], %43 {strides = array<i32>} : memref<2x1xf32, #tpu.memory_space<vmem>>, vector<2x1xf32>,
    return
  }
  func.func @transform_0(%arg0: i32) -> (i32, i32) {
    %c0_i32 = arith.constant 0 : i32
    %c0_i32_0 = arith.constant 0 : i32
    %c0_i32_1 = arith.constant 0 : i32
    return %c0_i32, %c0_i32_0 : i32, i32
  }
  func.func @transform_1(%arg0: i32) -> (i32, i32) {
    %c0_i32 = arith.constant 0 : i32
    %c0_i32_0 = arith.constant 0 : i32
    %c0_i32_1 = arith.constant 0 : i32
    return %c0_i32, %c0_i32_0 : i32, i32
  }
  func.func @transform_2(%arg0: i32) -> (i32, i32) {
    %c0_i32 = arith.constant 0 : i32
    %c0_i32_0 = arith.constant 0 : i32
    %c0_i32_1 = arith.constant 0 : i32
    return %c0_i32, %c0_i32_0 : i32, i32
  }
  func.func @transform_3(%arg0: i32) -> (i32, i32) {
    %c0_i32 = arith.constant 0 : i32
    %c0_i32_0 = arith.constant 0 : i32
    %c0_i32_1 = arith.constant 0 : i32
    return %c0_i32, %c0_i32_0 : i32, i32
  }
  func.func @transform_4(%arg0: i32) -> (i32, i32) {
    %c0_i32 = arith.constant 0 : i32
    %c0_i32_0 = arith.constant 0 : i32
    %c0_i32_1 = arith.constant 0 : i32
    return %c0_i32, %c0_i32_0 : i32, i32
  }
  func.func @transform_5(%arg0: i32) -> (i32, i32) {
    %c0_i32 = arith.constant 0 : i32
    %c0_i32_0 = arith.constant 0 : i32
    %c0_i32_1 = arith.constant 0 : i32
    return %c0_i32, %c0_i32_0 : i32, i32
  }
  func.func @transform_6(%arg0: i32) -> (i32, i32) {
    %c0_i32 = arith.constant 0 : i32
    %c0_i32_0 = arith.constant 0 : i32
    %c0_i32_1 = arith.constant 0 : i32
    return %c0_i32, %c0_i32_0 : i32, i32
  }
  func.func @transform_7(%arg0: i32) -> (i32, i32) {
    %c0_i32 = arith.constant 0 : i32
    %c0_i32_0 = arith.constant 0 : i32
    %c0_i32_1 = arith.constant 0 : i32
    return %c0_i32, %c0_i32_0 : i32, i32
  }
}

module attributes {stable_mosaic.version = 11 : i64} {
  func.func @_tail_kernel(%arg0: i32, %arg1: memref<2x512xf32, #tpu.memory_space<vmem>>, %arg2: memref<512x512xf32, #tpu.memory_space<vmem>>, %arg3: memref<1x512xf32, #tpu.memory_space<vmem>>, %arg4: memref<1x512xf32, #tpu.memory_space<vmem>>, %arg5: memref<1x512xf32, #tpu.memory_space<vmem>>, %arg6: memref<512x10xf32, #tpu.memory_space<vmem>>, %arg7: memref<1x10xf32, #tpu.memory_space<vmem>>, %arg8: memref<2x10xf32, #tpu.memory_space<vmem>>) attributes {dimension_semantics = [#tpu.dimension_semantics<arbitrary>], iteration_bounds = array<i64: 1>, scalar_prefetch = 0 : i64, scratch_operands = 0 : i64, tpu.core_type = #tpu.core_type<tc>, window_params = [{pipeline_mode = #tpu.pipeline_mode<synchronous>, transform_indices = @transform_0, window_bounds = array<i64: 2, 512>}, {pipeline_mode = #tpu.pipeline_mode<synchronous>, transform_indices = @transform_1, window_bounds = array<i64: 512, 512>}, {pipeline_mode = #tpu.pipeline_mode<synchronous>, transform_indices = @transform_2, window_bounds = array<i64: 1, 512>}, {pipeline_mode = #tpu.pipeline_mode<synchronous>, transform_indices = @transform_3, window_bounds = array<i64: 1, 512>}, {pipeline_mode = #tpu.pipeline_mode<synchronous>, transform_indices = @transform_4, window_bounds = array<i64: 1, 512>}, {pipeline_mode = #tpu.pipeline_mode<synchronous>, transform_indices = @transform_5, window_bounds = array<i64: 512, 10>}, {pipeline_mode = #tpu.pipeline_mode<synchronous>, transform_indices = @transform_6, window_bounds = array<i64: 1, 10>}, {pipeline_mode = #tpu.pipeline_mode<synchronous>, transform_indices = @transform_7, window_bounds = array<i64: 2, 10>}]} {
    %c0 = arith.constant 0 : index
    %c0_0 = arith.constant 0 : index
    %0 = vector.load %arg1[%c0, %c0_0] : memref<2x512xf32, #tpu.memory_space<vmem>>, vector<2x512xf32>
    %c0_1 = arith.constant 0 : index
    %c0_2 = arith.constant 0 : index
    %1 = vector.load %arg2[%c0_1, %c0_2] : memref<512x512xf32, #tpu.memory_space<vmem>>, vector<512x512xf32>
    %cst = arith.constant dense<0.000000e+00> : vector<2x512xf32>
    %2 = tpu.matmul %0, %1, %cst {dimension_numbers = #tpu.dot_dimension_numbers<[1], [0], [0], [1], [0, 0, 1, 1], [], []>} : vector<2x512xf32>, vector<512x512xf32>, vector<2x512xf32> -> vector<2x512xf32>
    %c0_3 = arith.constant 0 : index
    %c0_4 = arith.constant 0 : index
    %3 = vector.load %arg3[%c0_3, %c0_4] : memref<1x512xf32, #tpu.memory_space<vmem>>, vector<1x512xf32>
    %4 = vector.broadcast %3 : vector<1x512xf32> to vector<2x512xf32>
    %5 = arith.addf %2, %4 : vector<2x512xf32>
    %cst_5 = arith.constant dense<0.000000e+00> : vector<512xf32>
    %6 = vector.multi_reduction <add>, %5, %cst_5 [0] : vector<2x512xf32> to vector<512xf32>
    %7 = vector.shape_cast %6 : vector<512xf32> to vector<1x512xf32>
    %cst_6 = arith.constant 2.000000e+00 : f32
    %8 = vector.broadcast %cst_6 : f32 to vector<1x512xf32>
    %9 = arith.divf %7, %8 : vector<1x512xf32>
    %10 = vector.broadcast %9 : vector<1x512xf32> to vector<2x512xf32>
    %11 = arith.subf %5, %10 : vector<2x512xf32>
    %12 = arith.mulf %11, %11 : vector<2x512xf32>
    %cst_7 = arith.constant dense<0.000000e+00> : vector<512xf32>
    %13 = vector.multi_reduction <add>, %12, %cst_7 [0] : vector<2x512xf32> to vector<512xf32>
    %14 = vector.shape_cast %13 : vector<512xf32> to vector<1x512xf32>
    %cst_8 = arith.constant 2.000000e+00 : f32
    %15 = vector.broadcast %cst_8 : f32 to vector<1x512xf32>
    %16 = arith.divf %14, %15 : vector<1x512xf32>
    %17 = vector.broadcast %9 : vector<1x512xf32> to vector<2x512xf32>
    %18 = arith.subf %5, %17 : vector<2x512xf32>
    %cst_9 = arith.constant 9.99999974E-6 : f32
    %19 = vector.broadcast %cst_9 : f32 to vector<1x512xf32>
    %20 = arith.addf %16, %19 : vector<1x512xf32>
    %21 = math.rsqrt %20 : vector<1x512xf32>
    %22 = vector.broadcast %21 : vector<1x512xf32> to vector<2x512xf32>
    %23 = arith.mulf %18, %22 : vector<2x512xf32>
    %c0_10 = arith.constant 0 : index
    %c0_11 = arith.constant 0 : index
    %24 = vector.load %arg4[%c0_10, %c0_11] : memref<1x512xf32, #tpu.memory_space<vmem>>, vector<1x512xf32>
    %25 = vector.broadcast %24 : vector<1x512xf32> to vector<2x512xf32>
    %26 = arith.mulf %23, %25 : vector<2x512xf32>
    %c0_12 = arith.constant 0 : index
    %c0_13 = arith.constant 0 : index
    %27 = vector.load %arg5[%c0_12, %c0_13] : memref<1x512xf32, #tpu.memory_space<vmem>>, vector<1x512xf32>
    %28 = vector.broadcast %27 : vector<1x512xf32> to vector<2x512xf32>
    %29 = arith.addf %26, %28 : vector<2x512xf32>
    %cst_14 = arith.constant 0.000000e+00 : f32
    %30 = vector.broadcast %cst_14 : f32 to vector<2x512xf32>
    %31 = arith.maximumf %29, %30 : vector<2x512xf32>
    %c0_15 = arith.constant 0 : index
    %c0_16 = arith.constant 0 : index
    %32 = vector.load %arg6[%c0_15, %c0_16] : memref<512x10xf32, #tpu.memory_space<vmem>>, vector<512x10xf32>
    %cst_17 = arith.constant dense<0.000000e+00> : vector<2x10xf32>
    %33 = tpu.matmul %31, %32, %cst_17 {dimension_numbers = #tpu.dot_dimension_numbers<[1], [0], [0], [1], [0, 0, 1, 1], [], []>} : vector<2x512xf32>, vector<512x10xf32>, vector<2x10xf32> -> vector<2x10xf32>
    %c0_18 = arith.constant 0 : index
    %c0_19 = arith.constant 0 : index
    %34 = vector.load %arg7[%c0_18, %c0_19] : memref<1x10xf32, #tpu.memory_space<vmem>>, vector<1x10xf32>
    %35 = vector.broadcast %34 : vector<1x10xf32> to vector<2x10xf32>
    %36 = arith.addf %33, %35 : vector<2x10xf32>
    %cst_20 = arith.constant dense<0xFF800000> : vector<2xf32>
    %37 = vector.multi_reduction <maximumf>, %36, %cst_20 [1] : vector<2x10xf32> to vector<2xf32>
    %38 = vector.shape_cast %37 : vector<2xf32> to vector<2x1xf32>
    %39 = vector.broadcast %38 : vector<2x1xf32> to vector<2x10xf32>
    %40 = arith.subf %36, %39 : vector<2x10xf32>
    %41 = math.exp %40 : vector<2x10xf32>
    %cst_21 = arith.constant dense<0.000000e+00> : vector<2xf32>
    %42 = vector.multi_reduction <add>, %41, %cst_21 [1] : vector<2x10xf32> to vector<2xf32>
    %43 = vector.shape_cast %42 : vector<2xf32> to vector<2x1xf32>
    %44 = vector.broadcast %43 : vector<2x1xf32> to vector<2x10xf32>
    %45 = arith.divf %41, %44 : vector<2x10xf32>
    %c0_22 = arith.constant 0 : index
    %c0_23 = arith.constant 0 : index
    %46 = vector.load %arg8[%c0_22, %c0_23] : memref<2x10xf32, #tpu.memory_space<vmem>>, vector<2x10xf32>
    tpu.vector_store %arg8[%c0_22, %c0_23], %45 {strides = array<i32>} : memref<2x10xf32, #tpu.memory_space<vmem>>, vector<2x10xf32>,
    return
  }
  func.func @transform_0(%arg0: i32) -> (i32, i32) {
    %c0_i32 = arith.constant 0 : i32
    %c0_i32_0 = arith.constant 0 : i32
    %c0_i32_1 = arith.constant 0 : i32
    return %c0_i32, %c0_i32_0 : i32, i32
  }
  func.func @transform_1(%arg0: i32) -> (i32, i32) {
    %c0_i32 = arith.constant 0 : i32
    %c0_i32_0 = arith.constant 0 : i32
    %c0_i32_1 = arith.constant 0 : i32
    return %c0_i32, %c0_i32_0 : i32, i32
  }
  func.func @transform_2(%arg0: i32) -> (i32, i32) {
    %c0_i32 = arith.constant 0 : i32
    %c0_i32_0 = arith.constant 0 : i32
    %c0_i32_1 = arith.constant 0 : i32
    return %c0_i32, %c0_i32_0 : i32, i32
  }
  func.func @transform_3(%arg0: i32) -> (i32, i32) {
    %c0_i32 = arith.constant 0 : i32
    %c0_i32_0 = arith.constant 0 : i32
    %c0_i32_1 = arith.constant 0 : i32
    return %c0_i32, %c0_i32_0 : i32, i32
  }
  func.func @transform_4(%arg0: i32) -> (i32, i32) {
    %c0_i32 = arith.constant 0 : i32
    %c0_i32_0 = arith.constant 0 : i32
    %c0_i32_1 = arith.constant 0 : i32
    return %c0_i32, %c0_i32_0 : i32, i32
  }
  func.func @transform_5(%arg0: i32) -> (i32, i32) {
    %c0_i32 = arith.constant 0 : i32
    %c0_i32_0 = arith.constant 0 : i32
    %c0_i32_1 = arith.constant 0 : i32
    return %c0_i32, %c0_i32_0 : i32, i32
  }
  func.func @transform_6(%arg0: i32) -> (i32, i32) {
    %c0_i32 = arith.constant 0 : i32
    %c0_i32_0 = arith.constant 0 : i32
    %c0_i32_1 = arith.constant 0 : i32
    return %c0_i32, %c0_i32_0 : i32, i32
  }
  func.func @transform_7(%arg0: i32) -> (i32, i32) {
    %c0_i32 = arith.constant 0 : i32
    %c0_i32_0 = arith.constant 0 : i32
    %c0_i32_1 = arith.constant 0 : i32
    return %c0_i32, %c0_i32_0 : i32, i32
  }
}

</mosaic_0001>

<llo_original>
// kernel: dann2_forward.7
$region0: #{dann2_forward.7}
  #allocation0 [shape = 'u32[]', space=smem, size = 0x4, offset = 0x4, fixed_abs, tag = 'smem constant byte address 0x4 - core index']
  #allocation1 [shape = 'u32[72,128]{1,0:T(1,128)}', space=vmem, size = 0x9000, scoped, tag = 'internal scratch']
  #allocation2 [shape = 'f32[1,1]{1,0:T(1,128)S(1)}', space=vmem, size = 0x200, scoped, tag = 'scoped memory for dann2_forward.7']
  %s0 = inlined_call_operand.vmem [shape: f32[2,2048], index: 0, kind: input, shape index: {}]
  %s1 = inlined_call_operand.vmem [shape: f32[2048,128], index: 1, kind: input, shape index: {}]
  %s2 = inlined_call_operand.vmem [shape: f32[1,128], index: 2, kind: input, shape index: {}]
  %s3 = inlined_call_operand.vmem [shape: f32[1,128], index: 3, kind: input, shape index: {}]
  %s4 = inlined_call_operand.vmem [shape: f32[1,128], index: 4, kind: input, shape index: {}]
  %s5 = inlined_call_operand.vmem [shape: f32[128,1], index: 5, kind: input, shape index: {}]
  %s6 = inlined_call_operand.<no memory space> [shape: f32[1,1], index: 6, kind: input, shape index: {}]
  %s7 = inlined_call_operand.vmem [shape: f32[2,1], index: 7, kind: output, shape index: {}]
  %s8 = sld [smem:[#allocation0]]
  $region38: #{dann2_forward.7} parent=0
    _
  %s10 = ssub.s32 1, %s8
  %s11 = scalar_select 0, %s10, %s8
  %v12 = vstv %s6
  %13 = vst [vmem:[#allocation2] sm:$0x1] %v12
  // Predicated region
  $region2: #{dann2_forward.7} parent=0 // pred_check
    _
  $region3: #{dann2_forward.7} parent=0 // pred_check_branch
    %15 = sbr.rel (0) target = $region5
  $region4: #{dann2_forward.7} parent=0 // pred_region
    _
  $region5: #{dann2_forward.7} parent=0 // pred_fallthru
    _
  // Predicated region
  $region6: #{dann2_forward.7} parent=0 // pred_check
    _
  $region7: #{dann2_forward.7} parent=0 // pred_check_branch
    %17 = sbr.rel (0) target = $region9
  $region8: #{dann2_forward.7} parent=0 // pred_region
    _
  $region9: #{dann2_forward.7} parent=0 // pred_fallthru
    _
  // Predicated region
  $region10: #{dann2_forward.7} parent=0 // pred_check
    _
  $region11: #{dann2_forward.7} parent=0 // pred_check_branch
    %19 = sbr.rel (0) target = $region13
  $region12: #{dann2_forward.7} parent=0 // pred_region
    _
  $region13: #{dann2_forward.7} parent=0 // pred_fallthru
    _
  // Predicated region
  $region14: #{dann2_forward.7} parent=0 // pred_check
    _
  $region15: #{dann2_forward.7} parent=0 // pred_check_branch
    %21 = sbr.rel (0) target = $region17
  $region16: #{dann2_forward.7} parent=0 // pred_region
    _
  $region17: #{dann2_forward.7} parent=0 // pred_fallthru
    _
  // Predicated region
  $region18: #{dann2_forward.7} parent=0 // pred_check
    _
  $region19: #{dann2_forward.7} parent=0 // pred_check_branch
    %23 = sbr.rel (0) target = $region21
  $region20: #{dann2_forward.7} parent=0 // pred_region
    _
  $region21: #{dann2_forward.7} parent=0 // pred_fallthru
    _
  // Predicated region
  $region22: #{dann2_forward.7} parent=0 // pred_check
    _
  $region23: #{dann2_forward.7} parent=0 // pred_check_branch
    %25 = sbr.rel (0) target = $region25
  $region24: #{dann2_forward.7} parent=0 // pred_region
    _
  $region25: #{dann2_forward.7} parent=0 // pred_fallthru
    _
  // Predicated region
  $region26: #{dann2_forward.7} parent=0 // pred_check
    _
  $region27: #{dann2_forward.7} parent=0 // pred_check_branch
    %27 = sbr.rel (0) target = $region29
  $region28: #{dann2_forward.7} parent=0 // pred_region
    _
  $region29: #{dann2_forward.7} parent=0 // pred_fallthru
    _
  %v28 = vld [vmem:[%s0] sm:$0xff]
  %v29 = vld [vmem:[%s0 + $0x8] sm:$0xff]
  %v30 = vld [vmem:[%s0 + $0x10] sm:$0xff]
  %v31 = vld [vmem:[%s0 + $0x18] sm:$0xff]
  %v32 = vld [vmem:[%s1] sm:$0xff]
  %v33 = vld [vmem:[%s1 + $0x8] sm:$0xff]
  %v34 = vld [vmem:[%s1 + $0x10] sm:$0xff]
  %v35 = vld [vmem:[%s1 + $0x18] sm:$0xff]
  %v36 = vld [vmem:[%s1 + $0x20] sm:$0xff]
  %v37 = vld [vmem:[%s1 + $0x28] sm:$0xff]
  %v38 = vld [vmem:[%s1 + $0x30] sm:$0xff]
  %v39 = vld [vmem:[%s1 + $0x38] sm:$0xff]
  %v40 = vld [vmem:[%s1 + $0x40] sm:$0xff]
  %v41 = vld [vmem:[%s1 + $0x48] sm:$0xff]
  %v42 = vld [vmem:[%s1 + $0x50] sm:$0xff]
  %v43 = vld [vmem:[%s1 + $0x58] sm:$0xff]
  %v44 = vld [vmem:[%s1 + $0x60] sm:$0xff]
  %v45 = vld [vmem:[%s1 + $0x68] sm:$0xff]
  %v46 = vld [vmem:[%s1 + $0x70] sm:$0xff]
  %v47 = vld [vmem:[%s1 + $0x78] sm:$0xff]
  %v48 = vld [vmem:[%s1 + $0x80] sm:$0xff]
  %v49 = vld [vmem:[%s1 + $0x88] sm:$0xff]
  %v50 = vld [vmem:[%s1 + $0x90] sm:$0xff]
  %v51 = vld [vmem:[%s1 + $0x98] sm:$0xff]
  %v52 = vld [vmem:[%s1 + $0xa0] sm:$0xff]
  %v53 = vld [vmem:[%s1 + $0xa8] sm:$0xff]
  %v54 = vld [vmem:[%s1 + $0xb0] sm:$0xff]
  %v55 = vld [vmem:[%s1 + $0xb8] sm:$0xff]
  %v56 = vld [vmem:[%s1 + $0xc0] sm:$0xff]
  %v57 = vld [vmem:[%s1 + $0xc8] sm:$0xff]
  %v58 = vld [vmem:[%s1 + $0xd0] sm:$0xff]
  %v59 = vld [vmem:[%s1 + $0xd8] sm:$0xff]
  %v60 = vld [vmem:[%s1 + $0xe0] sm:$0xff]
  %v61 = vld [vmem:[%s1 + $0xe8] sm:$0xff]
  %v62 = vld [vmem:[%s1 + $0xf0] sm:$0xff]
  %v63 = vld [vmem:[%s1 + $0xf8] sm:$0xff]
  %v64 = vld [vmem:[%s1 + $0x100] sm:$0xff]
  %v65 = vld [vmem:[%s1 + $0x108] sm:$0xff]
  %v66 = vld [vmem:[%s1 + $0x110] sm:$0xff]
  %v67 = vld [vmem:[%s1 + $0x118] sm:$0xff]
  %v68 = vld [vmem:[%s1 + $0x120] sm:$0xff]
  %v69 = vld [vmem:[%s1 + $0x128] sm:$0xff]
  %v70 = vld [vmem:[%s1 + $0x130] sm:$0xff]
  %v71 = vld [vmem:[%s1 + $0x138] sm:$0xff]
  %v72 = vld [vmem:[%s1 + $0x140] sm:$0xff]
  %v73 = vld [vmem:[%s1 + $0x148] sm:$0xff]
  %v74 = vld [vmem:[%s1 + $0x150] sm:$0xff]
  %v75 = vld [vmem:[%s1 + $0x158] sm:$0xff]
  %v76 = vld [vmem:[%s1 + $0x160] sm:$0xff]
  %v77 = vld [vmem:[%s1 + $0x168] sm:$0xff]
  %v78 = vld [vmem:[%s1 + $0x170] sm:$0xff]
  %v79 = vld [vmem:[%s1 + $0x178] sm:$0xff]
  %v80 = vld [vmem:[%s1 + $0x180] sm:$0xff]
  %v81 = vld [vmem:[%s1 + $0x188] sm:$0xff]
  %v82 = vld [vmem:[%s1 + $0x190] sm:$0xff]
  %v83 = vld [vmem:[%s1 + $0x198] sm:$0xff]
  %v84 = vld [vmem:[%s1 + $0x1a0] sm:$0xff]
  %v85 = vld [vmem:[%s1 + $0x1a8] sm:$0xff]
  %v86 = vld [vmem:[%s1 + $0x1b0] sm:$0xff]
  %v87 = vld [vmem:[%s1 + $0x1b8] sm:$0xff]
  %v88 = vld [vmem:[%s1 + $0x1c0] sm:$0xff]
  %v89 = vld [vmem:[%s1 + $0x1c8] sm:$0xff]
  %v90 = vld [vmem:[%s1 + $0x1d0] sm:$0xff]
  %v91 = vld [vmem:[%s1 + $0x1d8] sm:$0xff]
  %v92 = vld [vmem:[%s1 + $0x1e0] sm:$0xff]
  %v93 = vld [vmem:[%s1 + $0x1e8] sm:$0xff]
  %v94 = vld [vmem:[%s1 + $0x1f0] sm:$0xff]
  %v95 = vld [vmem:[%s1 + $0x1f8] sm:$0xff]
  %v96 = vld [vmem:[%s1 + $0x200] sm:$0xff]
  %v97 = vld [vmem:[%s1 + $0x208] sm:$0xff]
  %v98 = vld [vmem:[%s1 + $0x210] sm:$0xff]
  %v99 = vld [vmem:[%s1 + $0x218] sm:$0xff]
  %v100 = vld [vmem:[%s1 + $0x220] sm:$0xff]
  %v101 = vld [vmem:[%s1 + $0x228] sm:$0xff]
  %v102 = vld [vmem:[%s1 + $0x230] sm:$0xff]
  %v103 = vld [vmem:[%s1 + $0x238] sm:$0xff]
  %v104 = vld [vmem:[%s1 + $0x240] sm:$0xff]
  %v105 = vld [vmem:[%s1 + $0x248] sm:$0xff]
  %v106 = vld [vmem:[%s1 + $0x250] sm:$0xff]
  %v107 = vld [vmem:[%s1 + $0x258] sm:$0xff]
  %v108 = vld [vmem:[%s1 + $0x260] sm:$0xff]
  %v109 = vld [vmem:[%s1 + $0x268] sm:$0xff]
  %v110 = vld [vmem:[%s1 + $0x270] sm:$0xff]
  %v111 = vld [vmem:[%s1 + $0x278] sm:$0xff]
  %v112 = vld [vmem:[%s1 + $0x280] sm:$0xff]
  %v113 = vld [vmem:[%s1 + $0x288] sm:$0xff]
  %v114 = vld [vmem:[%s1 + $0x290] sm:$0xff]
  %v115 = vld [vmem:[%s1 + $0x298] sm:$0xff]
  %v116 = vld [vmem:[%s1 + $0x2a0] sm:$0xff]
  %v117 = vld [vmem:[%s1 + $0x2a8] sm:$0xff]
  %v118 = vld [vmem:[%s1 + $0x2b0] sm:$0xff]
  %v119 = vld [vmem:[%s1 + $0x2b8] sm:$0xff]
  %v120 = vld [vmem:[%s1 + $0x2c0] sm:$0xff]
  %v121 = vld [vmem:[%s1 + $0x2c8] sm:$0xff]
  %v122 = vld [vmem:[%s1 + $0x2d0] sm:$0xff]
  %v123 = vld [vmem:[%s1 + $0x2d8] sm:$0xff]
  %v124 = vld [vmem:[%s1 + $0x2e0] sm:$0xff]
  %v125 = vld [vmem:[%s1 + $0x2e8] sm:$0xff]
  %v126 = vld [vmem:[%s1 + $0x2f0] sm:$0xff]
  %v127 = vld [vmem:[%s1 + $0x2f8] sm:$0xff]
  %v128 = vld [vmem:[%s1 + $0x300] sm:$0xff]
  %v129 = vld [vmem:[%s1 + $0x308] sm:$0xff]
  %v130 = vld [vmem:[%s1 + $0x310] sm:$0xff]
  %v131 = vld [vmem:[%s1 + $0x318] sm:$0xff]
  %v132 = vld [vmem:[%s1 + $0x320] sm:$0xff]
  %v133 = vld [vmem:[%s1 + $0x328] sm:$0xff]
  %v134 = vld [vmem:[%s1 + $0x330] sm:$0xff]
  %v135 = vld [vmem:[%s1 + $0x338] sm:$0xff]
  %v136 = vld [vmem:[%s1 + $0x340] sm:$0xff]
  %v137 = vld [vmem:[%s1 + $0x348] sm:$0xff]
  %v138 = vld [vmem:[%s1 + $0x350] sm:$0xff]
  %v139 = vld [vmem:[%s1 + $0x358] sm:$0xff]
  %v140 = vld [vmem:[%s1 + $0x360] sm:$0xff]
  %v141 = vld [vmem:[%s1 + $0x368] sm:$0xff]
  %v142 = vld [vmem:[%s1 + $0x370] sm:$0xff]
  %v143 = vld [vmem:[%s1 + $0x378] sm:$0xff]
  %v144 = vld [vmem:[%s1 + $0x380] sm:$0xff]
  %v145 = vld [vmem:[%s1 + $0x388] sm:$0xff]
  %v146 = vld [vmem:[%s1 + $0x390] sm:$0xff]
  %v147 = vld [vmem:[%s1 + $0x398] sm:$0xff]
  %v148 = vld [vmem:[%s1 + $0x3a0] sm:$0xff]
  %v149 = vld [vmem:[%s1 + $0x3a8] sm:$0xff]
  %v150 = vld [vmem:[%s1 + $0x3b0] sm:$0xff]
  %v151 = vld [vmem:[%s1 + $0x3b8] sm:$0xff]
  %v152 = vld [vmem:[%s1 + $0x3c0] sm:$0xff]
  %v153 = vld [vmem:[%s1 + $0x3c8] sm:$0xff]
  %v154 = vld [vmem:[%s1 + $0x3d0] sm:$0xff]
  %v155 = vld [vmem:[%s1 + $0x3d8] sm:$0xff]
  %v156 = vld [vmem:[%s1 + $0x3e0] sm:$0xff]
  %v157 = vld [vmem:[%s1 + $0x3e8] sm:$0xff]
  %v158 = vld [vmem:[%s1 + $0x3f0] sm:$0xff]
  %v159 = vld [vmem:[%s1 + $0x3f8] sm:$0xff]
  %v160 = vld [vmem:[%s1 + $0x400] sm:$0xff]
  %v161 = vld [vmem:[%s1 + $0x408] sm:$0xff]
  %v162 = vld [vmem:[%s1 + $0x410] sm:$0xff]
  %v163 = vld [vmem:[%s1 + $0x418] sm:$0xff]
  %v164 = vld [vmem:[%s1 + $0x420] sm:$0xff]
  %v165 = vld [vmem:[%s1 + $0x428] sm:$0xff]
  %v166 = vld [vmem:[%s1 + $0x430] sm:$0xff]
  %v167 = vld [vmem:[%s1 + $0x438] sm:$0xff]
  %v168 = vld [vmem:[%s1 + $0x440] sm:$0xff]
  %v169 = vld [vmem:[%s1 + $0x448] sm:$0xff]
  %v170 = vld [vmem:[%s1 + $0x450] sm:$0xff]
  %v171 = vld [vmem:[%s1 + $0x458] sm:$0xff]
  %v172 = vld [vmem:[%s1 + $0x460] sm:$0xff]
  %v173 = vld [vmem:[%s1 + $0x468] sm:$0xff]
  %v174 = vld [vmem:[%s1 + $0x470] sm:$0xff]
  %v175 = vld [vmem:[%s1 + $0x478] sm:$0xff]
  %v176 = vld [vmem:[%s1 + $0x480] sm:$0xff]
  %v177 = vld [vmem:[%s1 + $0x488] sm:$0xff]
  %v178 = vld [vmem:[%s1 + $0x490] sm:$0xff]
  %v179 = vld [vmem:[%s1 + $0x498] sm:$0xff]
  %v180 = vld [vmem:[%s1 + $0x4a0] sm:$0xff]
  %v181 = vld [vmem:[%s1 + $0x4a8] sm:$0xff]
  %v182 = vld [vmem:[%s1 + $0x4b0] sm:$0xff]
  %v183 = vld [vmem:[%s1 + $0x4b8] sm:$0xff]
  %v184 = vld [vmem:[%s1 + $0x4c0] sm:$0xff]
  %v185 = vld [vmem:[%s1 + $0x4c8] sm:$0xff]
  %v186 = vld [vmem:[%s1 + $0x4d0] sm:$0xff]
  %v187 = vld [vmem:[%s1 + $0x4d8] sm:$0xff]
  %v188 = vld [vmem:[%s1 + $0x4e0] sm:$0xff]
  %v189 = vld [vmem:[%s1 + $0x4e8] sm:$0xff]
  %v190 = vld [vmem:[%s1 + $0x4f0] sm:$0xff]
  %v191 = vld [vmem:[%s1 + $0x4f8] sm:$0xff]
  %v192 = vld [vmem:[%s1 + $0x500] sm:$0xff]
  %v193 = vld [vmem:[%s1 + $0x508] sm:$0xff]
  %v194 = vld [vmem:[%s1 + $0x510] sm:$0xff]
  %v195 = vld [vmem:[%s1 + $0x518] sm:$0xff]
  %v196 = vld [vmem:[%s1 + $0x520] sm:$0xff]
  %v197 = vld [vmem:[%s1 + $0x528] sm:$0xff]
  %v198 = vld [vmem:[%s1 + $0x530] sm:$0xff]
  %v199 = vld [vmem:[%s1 + $0x538] sm:$0xff]
  %v200 = vld [vmem:[%s1 + $0x540] sm:$0xff]
  %v201 = vld [vmem:[%s1 + $0x548] sm:$0xff]
  %v202 = vld [vmem:[%s1 + $0x550] sm:$0xff]
  %v203 = vld [vmem:[%s1 + $0x558] sm:$0xff]
  %v204 = vld [vmem:[%s1 + $0x560] sm:$0xff]
  %v205 = vld [vmem:[%s1 + $0x568] sm:$0xff]
  %v206 = vld [vmem:[%s1 + $0x570] sm:$0xff]
  %v207 = vld [vmem:[%s1 + $0x578] sm:$0xff]
  %v208 = vld [vmem:[%s1 + $0x580] sm:$0xff]
  %v209 = vld [vmem:[%s1 + $0x588] sm:$0xff]
  %v210 = vld [vmem:[%s1 + $0x590] sm:$0xff]
  %v211 = vld [vmem:[%s1 + $0x598] sm:$0xff]
  %v212 = vld [vmem:[%s1 + $0x5a0] sm:$0xff]
  %v213 = vld [vmem:[%s1 + $0x5a8] sm:$0xff]
  %v214 = vld [vmem:[%s1 + $0x5b0] sm:$0xff]
  %v215 = vld [vmem:[%s1 + $0x5b8] sm:$0xff]
  %v216 = vld [vmem:[%s1 + $0x5c0] sm:$0xff]
  %v217 = vld [vmem:[%s1 + $0x5c8] sm:$0xff]
  %v218 = vld [vmem:[%s1 + $0x5d0] sm:$0xff]
  %v219 = vld [vmem:[%s1 + $0x5d8] sm:$0xff]
  %v220 = vld [vmem:[%s1 + $0x5e0] sm:$0xff]
  %v221 = vld [vmem:[%s1 + $0x5e8] sm:$0xff]
  %v222 = vld [vmem:[%s1 + $0x5f0] sm:$0xff]
  %v223 = vld [vmem:[%s1 + $0x5f8] sm:$0xff]
  %v224 = vld [vmem:[%s1 + $0x600] sm:$0xff]
  %v225 = vld [vmem:[%s1 + $0x608] sm:$0xff]
  %v226 = vld [vmem:[%s1 + $0x610] sm:$0xff]
  %v227 = vld [vmem:[%s1 + $0x618] sm:$0xff]
  %v228 = vld [vmem:[%s1 + $0x620] sm:$0xff]
  %v229 = vld [vmem:[%s1 + $0x628] sm:$0xff]
  %v230 = vld [vmem:[%s1 + $0x630] sm:$0xff]
  %v231 = vld [vmem:[%s1 + $0x638] sm:$0xff]
  %v232 = vld [vmem:[%s1 + $0x640] sm:$0xff]
  %v233 = vld [vmem:[%s1 + $0x648] sm:$0xff]
  %v234 = vld [vmem:[%s1 + $0x650] sm:$0xff]
  %v235 = vld [vmem:[%s1 + $0x658] sm:$0xff]
  %v236 = vld [vmem:[%s1 + $0x660] sm:$0xff]
  %v237 = vld [vmem:[%s1 + $0x668] sm:$0xff]
  %v238 = vld [vmem:[%s1 + $0x670] sm:$0xff]
  %v239 = vld [vmem:[%s1 + $0x678] sm:$0xff]
  %v240 = vld [vmem:[%s1 + $0x680] sm:$0xff]
  %v241 = vld [vmem:[%s1 + $0x688] sm:$0xff]
  %v242 = vld [vmem:[%s1 + $0x690] sm:$0xff]
  %v243 = vld [vmem:[%s1 + $0x698] sm:$0xff]
  %v244 = vld [vmem:[%s1 + $0x6a0] sm:$0xff]
  %v245 = vld [vmem:[%s1 + $0x6a8] sm:$0xff]
  %v246 = vld [vmem:[%s1 + $0x6b0] sm:$0xff]
  %v247 = vld [vmem:[%s1 + $0x6b8] sm:$0xff]
  %v248 = vld [vmem:[%s1 + $0x6c0] sm:$0xff]
  %v249 = vld [vmem:[%s1 + $0x6c8] sm:$0xff]
  %v250 = vld [vmem:[%s1 + $0x6d0] sm:$0xff]
  %v251 = vld [vmem:[%s1 + $0x6d8] sm:$0xff]
  %v252 = vld [vmem:[%s1 + $0x6e0] sm:$0xff]
  %v253 = vld [vmem:[%s1 + $0x6e8] sm:$0xff]
  %v254 = vld [vmem:[%s1 + $0x6f0] sm:$0xff]
  %v255 = vld [vmem:[%s1 + $0x6f8] sm:$0xff]
  %v256 = vld [vmem:[%s1 + $0x700] sm:$0xff]
  %v257 = vld [vmem:[%s1 + $0x708] sm:$0xff]
  %v258 = vld [vmem:[%s1 + $0x710] sm:$0xff]
  %v259 = vld [vmem:[%s1 + $0x718] sm:$0xff]
  %v260 = vld [vmem:[%s1 + $0x720] sm:$0xff]
  %v261 = vld [vmem:[%s1 + $0x728] sm:$0xff]
  %v262 = vld [vmem:[%s1 + $0x730] sm:$0xff]
  %v263 = vld [vmem:[%s1 + $0x738] sm:$0xff]
  %v264 = vld [vmem:[%s1 + $0x740] sm:$0xff]
  %v265 = vld [vmem:[%s1 + $0x748] sm:$0xff]
  %v266 = vld [vmem:[%s1 + $0x750] sm:$0xff]
  %v267 = vld [vmem:[%s1 + $0x758] sm:$0xff]
  %v268 = vld [vmem:[%s1 + $0x760] sm:$0xff]
  %v269 = vld [vmem:[%s1 + $0x768] sm:$0xff]
  %v270 = vld [vmem:[%s1 + $0x770] sm:$0xff]
  %v271 = vld [vmem:[%s1 + $0x778] sm:$0xff]
  %v272 = vld [vmem:[%s1 + $0x780] sm:$0xff]
  %v273 = vld [vmem:[%s1 + $0x788] sm:$0xff]
  %v274 = vld [vmem:[%s1 + $0x790] sm:$0xff]
  %v275 = vld [vmem:[%s1 + $0x798] sm:$0xff]
  %v276 = vld [vmem:[%s1 + $0x7a0] sm:$0xff]
  %v277 = vld [vmem:[%s1 + $0x7a8] sm:$0xff]
  %v278 = vld [vmem:[%s1 + $0x7b0] sm:$0xff]
  %v279 = vld [vmem:[%s1 + $0x7b8] sm:$0xff]
  %v280 = vld [vmem:[%s1 + $0x7c0] sm:$0xff]
  %v281 = vld [vmem:[%s1 + $0x7c8] sm:$0xff]
  %v282 = vld [vmem:[%s1 + $0x7d0] sm:$0xff]
  %v283 = vld [vmem:[%s1 + $0x7d8] sm:$0xff]
  %v284 = vld [vmem:[%s1 + $0x7e0] sm:$0xff]
  %v285 = vld [vmem:[%s1 + $0x7e8] sm:$0xff]
  %v286 = vld [vmem:[%s1 + $0x7f0] sm:$0xff]
  %v287 = vld [vmem:[%s1 + $0x7f8] sm:$0xff]
  %v288 = vld [vmem:[%s2] sm:$0x1]
  %v290 = vperm.slane %v288, 0
  %296 = vst [vmem:[#allocation1] ss:$4 sm:$0xff] %v28
  %s297 = scalar_lea.vmem [#allocation1], 32
  %298 = vst [vmem:[%s297] ss:$4 sm:$0xff] %v29
  %v299 = vld.sshfl [vmem:[#allocation1] sm:$0xff pattern:$0x73625140]
  %v300 = vld.sshfl [vmem:[#allocation1 + $0x8] sm:$0xff pattern:$0x73625140]
  %v301 = vld.sshfl [vmem:[#allocation1 + $0x10] sm:$0xff pattern:$0x73625140]
  %v302 = vld.sshfl [vmem:[#allocation1 + $0x18] sm:$0xff pattern:$0x73625140]
  %v303 = vld.sshfl [vmem:[#allocation1 + $0x20] sm:$0xff pattern:$0x73625140]
  %v304 = vld.sshfl [vmem:[#allocation1 + $0x28] sm:$0xff pattern:$0x73625140]
  %v305 = vld.sshfl [vmem:[#allocation1 + $0x30] sm:$0xff pattern:$0x73625140]
  %v306 = vld.sshfl [vmem:[#allocation1 + $0x38] sm:$0xff pattern:$0x73625140]
  %307 = vst [vmem:[#allocation1] ss:$4 sm:$0xff] %v30
  %308 = vst [vmem:[%s297] ss:$4 sm:$0xff] %v31
  %v309 = vld.sshfl [vmem:[#allocation1] sm:$0xff pattern:$0x73625140]
  %v310 = vld.sshfl [vmem:[#allocation1 + $0x8] sm:$0xff pattern:$0x73625140]
  %v311 = vld.sshfl [vmem:[#allocation1 + $0x10] sm:$0xff pattern:$0x73625140]
  %v312 = vld.sshfl [vmem:[#allocation1 + $0x18] sm:$0xff pattern:$0x73625140]
  %v313 = vld.sshfl [vmem:[#allocation1 + $0x20] sm:$0xff pattern:$0x73625140]
  %v314 = vld.sshfl [vmem:[#allocation1 + $0x28] sm:$0xff pattern:$0x73625140]
  %v315 = vld.sshfl [vmem:[#allocation1 + $0x30] sm:$0xff pattern:$0x73625140]
  %v316 = vld.sshfl [vmem:[#allocation1 + $0x38] sm:$0xff pattern:$0x73625140]
  %333 = vmatpush.msra.mxu0 %v47
  %334 = vmatpush.msra.mxu0 %v46
  %335 = vmatpush.msra.mxu0 %v45
  %336 = vmatpush.msra.mxu0 %v44
  %337 = vmatpush.msra.mxu0 %v43
  %338 = vmatpush.msra.mxu0 %v42
  %339 = vmatpush.msra.mxu0 %v41
  %340 = vmatpush.msra.mxu0 %v40
  %341 = vmatpush.msra.mxu0 %v39
  %342 = vmatpush.msra.mxu0 %v38
  %343 = vmatpush.msra.mxu0 %v37
  %344 = vmatpush.msra.mxu0 %v36
  %345 = vmatpush.msra.mxu0 %v35
  %346 = vmatpush.msra.mxu0 %v34
  %347 = vmatpush.msra.mxu0 %v33
  %348 = vmatpush.msra.mxu0 %v32
  %349 = vmatmul.f32.gmra.mxu0 %v299
  %v350 = vpop.f32.mrf.mxu0
  %v351 = vadd.f32 %v290, %v350
  %352 = vdwg.mxu0
  %353 = vmatpush.msra.mxu0 %v63
  %354 = vmatpush.msra.mxu0 %v62
  %355 = vmatpush.msra.mxu0 %v61
  %356 = vmatpush.msra.mxu0 %v60
  %357 = vmatpush.msra.mxu0 %v59
  %358 = vmatpush.msra.mxu0 %v58
  %359 = vmatpush.msra.mxu0 %v57
  %360 = vmatpush.msra.mxu0 %v56
  %361 = vmatpush.msra.mxu0 %v55
  %362 = vmatpush.msra.mxu0 %v54
  %363 = vmatpush.msra.mxu0 %v53
  %364 = vmatpush.msra.mxu0 %v52
  %365 = vmatpush.msra.mxu0 %v51
  %366 = vmatpush.msra.mxu0 %v50
  %367 = vmatpush.msra.mxu0 %v49
  %368 = vmatpush.msra.mxu0 %v48
  %369 = vmatmul.f32.gmra.mxu0 %v300
  %v370 = vpop.f32.mrf.mxu0
  %v371 = vadd.f32 %v351, %v370
  %372 = vdwg.mxu0
  %373 = vmatpush.msra.mxu0 %v79
  %374 = vmatpush.msra.mxu0 %v78
  %375 = vmatpush.msra.mxu0 %v77
  %376 = vmatpush.msra.mxu0 %v76
  %377 = vmatpush.msra.mxu0 %v75
  %378 = vmatpush.msra.mxu0 %v74
  %379 = vmatpush.msra.mxu0 %v73
  %380 = vmatpush.msra.mxu0 %v72
  %381 = vmatpush.msra.mxu0 %v71
  %382 = vmatpush.msra.mxu0 %v70
  %383 = vmatpush.msra.mxu0 %v69
  %384 = vmatpush.msra.mxu0 %v68
  %385 = vmatpush.msra.mxu0 %v67
  %386 = vmatpush.msra.mxu0 %v66
  %387 = vmatpush.msra.mxu0 %v65
  %388 = vmatpush.msra.mxu0 %v64
  %389 = vmatmul.f32.gmra.mxu0 %v301
  %v390 = vpop.f32.mrf.mxu0
  %v391 = vadd.f32 %v371, %v390
  %392 = vdwg.mxu0
  %393 = vmatpush.msra.mxu0 %v95
  %394 = vmatpush.msra.mxu0 %v94
  %395 = vmatpush.msra.mxu0 %v93
  %396 = vmatpush.msra.mxu0 %v92
  %397 = vmatpush.msra.mxu0 %v91
  %398 = vmatpush.msra.mxu0 %v90
  %399 = vmatpush.msra.mxu0 %v89
  %400 = vmatpush.msra.mxu0 %v88
  %401 = vmatpush.msra.mxu0 %v87
  %402 = vmatpush.msra.mxu0 %v86
  %403 = vmatpush.msra.mxu0 %v85
  %404 = vmatpush.msra.mxu0 %v84
  %405 = vmatpush.msra.mxu0 %v83
  %406 = vmatpush.msra.mxu0 %v82
  %407 = vmatpush.msra.mxu0 %v81
  %408 = vmatpush.msra.mxu0 %v80
  %409 = vmatmul.f32.gmra.mxu0 %v302
  %v410 = vpop.f32.mrf.mxu0
  %v411 = vadd.f32 %v391, %v410
  %412 = vdwg.mxu0
  %413 = vmatpush.msra.mxu0 %v111
  %414 = vmatpush.msra.mxu0 %v110
  %415 = vmatpush.msra.mxu0 %v109
  %416 = vmatpush.msra.mxu0 %v108
  %417 = vmatpush.msra.mxu0 %v107
  %418 = vmatpush.msra.mxu0 %v106
  %419 = vmatpush.msra.mxu0 %v105
  %420 = vmatpush.msra.mxu0 %v104
  %421 = vmatpush.msra.mxu0 %v103
  %422 = vmatpush.msra.mxu0 %v102
  %423 = vmatpush.msra.mxu0 %v101
  %424 = vmatpush.msra.mxu0 %v100
  %425 = vmatpush.msra.mxu0 %v99
  %426 = vmatpush.msra.mxu0 %v98
  %427 = vmatpush.msra.mxu0 %v97
  %428 = vmatpush.msra.mxu0 %v96
  %429 = vmatmul.f32.gmra.mxu0 %v303
  %v430 = vpop.f32.mrf.mxu0
  %v431 = vadd.f32 %v411, %v430
  %432 = vdwg.mxu0
  %433 = vmatpush.msra.mxu0 %v127
  %434 = vmatpush.msra.mxu0 %v126
  %435 = vmatpush.msra.mxu0 %v125
  %436 = vmatpush.msra.mxu0 %v124
  %437 = vmatpush.msra.mxu0 %v123
  %438 = vmatpush.msra.mxu0 %v122
  %439 = vmatpush.msra.mxu0 %v121
  %440 = vmatpush.msra.mxu0 %v120
  %441 = vmatpush.msra.mxu0 %v119
  %442 = vmatpush.msra.mxu0 %v118
  %443 = vmatpush.msra.mxu0 %v117
  %444 = vmatpush.msra.mxu0 %v116
  %445 = vmatpush.msra.mxu0 %v115
  %446 = vmatpush.msra.mxu0 %v114
  %447 = vmatpush.msra.mxu0 %v113
  %448 = vmatpush.msra.mxu0 %v112
  %449 = vmatmul.f32.gmra.mxu0 %v304
  %v450 = vpop.f32.mrf.mxu0
  %v451 = vadd.f32 %v431, %v450
  %452 = vdwg.mxu0
  %453 = vmatpush.msra.mxu0 %v143
  %454 = vmatpush.msra.mxu0 %v142
  %455 = vmatpush.msra.mxu0 %v141
  %456 = vmatpush.msra.mxu0 %v140
  %457 = vmatpush.msra.mxu0 %v139
  %458 = vmatpush.msra.mxu0 %v138
  %459 = vmatpush.msra.mxu0 %v137
  %460 = vmatpush.msra.mxu0 %v136
  %461 = vmatpush.msra.mxu0 %v135
  %462 = vmatpush.msra.mxu0 %v134
  %463 = vmatpush.msra.mxu0 %v133
  %464 = vmatpush.msra.mxu0 %v132
  %465 = vmatpush.msra.mxu0 %v131
  %466 = vmatpush.msra.mxu0 %v130
  %467 = vmatpush.msra.mxu0 %v129
  %468 = vmatpush.msra.mxu0 %v128
  %469 = vmatmul.f32.gmra.mxu0 %v305
  %v470 = vpop.f32.mrf.mxu0
  %v471 = vadd.f32 %v451, %v470
  %472 = vdwg.mxu0
  %473 = vmatpush.msra.mxu0 %v159
  %474 = vmatpush.msra.mxu0 %v158
  %475 = vmatpush.msra.mxu0 %v157
  %476 = vmatpush.msra.mxu0 %v156
  %477 = vmatpush.msra.mxu0 %v155
  %478 = vmatpush.msra.mxu0 %v154
  %479 = vmatpush.msra.mxu0 %v153
  %480 = vmatpush.msra.mxu0 %v152
  %481 = vmatpush.msra.mxu0 %v151
  %482 = vmatpush.msra.mxu0 %v150
  %483 = vmatpush.msra.mxu0 %v149
  %484 = vmatpush.msra.mxu0 %v148
  %485 = vmatpush.msra.mxu0 %v147
  %486 = vmatpush.msra.mxu0 %v146
  %487 = vmatpush.msra.mxu0 %v145
  %488 = vmatpush.msra.mxu0 %v144
  %489 = vmatmul.f32.gmra.mxu0 %v306
  %v490 = vpop.f32.mrf.mxu0
  %v491 = vadd.f32 %v471, %v490
  %492 = vdwg.mxu0
  %493 = vmatpush.msra.mxu0 %v175
  %494 = vmatpush.msra.mxu0 %v174
  %495 = vmatpush.msra.mxu0 %v173
  %496 = vmatpush.msra.mxu0 %v172
  %497 = vmatpush.msra.mxu0 %v171
  %498 = vmatpush.msra.mxu0 %v170
  %499 = vmatpush.msra.mxu0 %v169
  %500 = vmatpush.msra.mxu0 %v168
  %501 = vmatpush.msra.mxu0 %v167
  %502 = vmatpush.msra.mxu0 %v166
  %503 = vmatpush.msra.mxu0 %v165
  %504 = vmatpush.msra.mxu0 %v164
  %505 = vmatpush.msra.mxu0 %v163
  %506 = vmatpush.msra.mxu0 %v162
  %507 = vmatpush.msra.mxu0 %v161
  %508 = vmatpush.msra.mxu0 %v160
  %509 = vmatmul.f32.gmra.mxu0 %v309
  %v510 = vpop.f32.mrf.mxu0
  %v511 = vadd.f32 %v491, %v510
  %512 = vdwg.mxu0
  %513 = vmatpush.msra.mxu0 %v191
  %514 = vmatpush.msra.mxu0 %v190
  %515 = vmatpush.msra.mxu0 %v189
  %516 = vmatpush.msra.mxu0 %v188
  %517 = vmatpush.msra.mxu0 %v187
  %518 = vmatpush.msra.mxu0 %v186
  %519 = vmatpush.msra.mxu0 %v185
  %520 = vmatpush.msra.mxu0 %v184
  %521 = vmatpush.msra.mxu0 %v183
  %522 = vmatpush.msra.mxu0 %v182
  %523 = vmatpush.msra.mxu0 %v181
  %524 = vmatpush.msra.mxu0 %v180
  %525 = vmatpush.msra.mxu0 %v179
  %526 = vmatpush.msra.mxu0 %v178
  %527 = vmatpush.msra.mxu0 %v177
  %528 = vmatpush.msra.mxu0 %v176
  %529 = vmatmul.f32.gmra.mxu0 %v310
  %v530 = vpop.f32.mrf.mxu0
  %v531 = vadd.f32 %v511, %v530
  %532 = vdwg.mxu0
  %533 = vmatpush.msra.mxu0 %v207
  %534 = vmatpush.msra.mxu0 %v206
  %535 = vmatpush.msra.mxu0 %v205
  %536 = vmatpush.msra.mxu0 %v204
  %537 = vmatpush.msra.mxu0 %v203
  %538 = vmatpush.msra.mxu0 %v202
  %539 = vmatpush.msra.mxu0 %v201
  %540 = vmatpush.msra.mxu0 %v200
  %541 = vmatpush.msra.mxu0 %v199
  %542 = vmatpush.msra.mxu0 %v198
  %543 = vmatpush.msra.mxu0 %v197
  %544 = vmatpush.msra.mxu0 %v196
  %545 = vmatpush.msra.mxu0 %v195
  %546 = vmatpush.msra.mxu0 %v194
  %547 = vmatpush.msra.mxu0 %v193
  %548 = vmatpush.msra.mxu0 %v192
  %549 = vmatmul.f32.gmra.mxu0 %v311
  %v550 = vpop.f32.mrf.mxu0
  %v551 = vadd.f32 %v531, %v550
  %552 = vdwg.mxu0
  %553 = vmatpush.msra.mxu0 %v223
  %554 = vmatpush.msra.mxu0 %v222
  %555 = vmatpush.msra.mxu0 %v221
  %556 = vmatpush.msra.mxu0 %v220
  %557 = vmatpush.msra.mxu0 %v219
  %558 = vmatpush.msra.mxu0 %v218
  %559 = vmatpush.msra.mxu0 %v217
  %560 = vmatpush.msra.mxu0 %v216
  %561 = vmatpush.msra.mxu0 %v215
  %562 = vmatpush.msra.mxu0 %v214
  %563 = vmatpush.msra.mxu0 %v213
  %564 = vmatpush.msra.mxu0 %v212
  %565 = vmatpush.msra.mxu0 %v211
  %566 = vmatpush.msra.mxu0 %v210
  %567 = vmatpush.msra.mxu0 %v209
  %568 = vmatpush.msra.mxu0 %v208
  %569 = vmatmul.f32.gmra.mxu0 %v312
  %v570 = vpop.f32.mrf.mxu0
  %v571 = vadd.f32 %v551, %v570
  %572 = vdwg.mxu0
  %573 = vmatpush.msra.mxu0 %v239
  %574 = vmatpush.msra.mxu0 %v238
  %575 = vmatpush.msra.mxu0 %v237
  %576 = vmatpush.msra.mxu0 %v236
  %577 = vmatpush.msra.mxu0 %v235
  %578 = vmatpush.msra.mxu0 %v234
  %579 = vmatpush.msra.mxu0 %v233
  %580 = vmatpush.msra.mxu0 %v232
  %581 = vmatpush.msra.mxu0 %v231
  %582 = vmatpush.msra.mxu0 %v230
  %583 = vmatpush.msra.mxu0 %v229
  %584 = vmatpush.msra.mxu0 %v228
  %585 = vmatpush.msra.mxu0 %v227
  %586 = vmatpush.msra.mxu0 %v226
  %587 = vmatpush.msra.mxu0 %v225
  %588 = vmatpush.msra.mxu0 %v224
  %589 = vmatmul.f32.gmra.mxu0 %v313
  %v590 = vpop.f32.mrf.mxu0
  %v591 = vadd.f32 %v571, %v590
  %592 = vdwg.mxu0
  %593 = vmatpush.msra.mxu0 %v255
  %594 = vmatpush.msra.mxu0 %v254
  %595 = vmatpush.msra.mxu0 %v253
  %596 = vmatpush.msra.mxu0 %v252
  %597 = vmatpush.msra.mxu0 %v251
  %598 = vmatpush.msra.mxu0 %v250
  %599 = vmatpush.msra.mxu0 %v249
  %600 = vmatpush.msra.mxu0 %v248
  %601 = vmatpush.msra.mxu0 %v247
  %602 = vmatpush.msra.mxu0 %v246
  %603 = vmatpush.msra.mxu0 %v245
  %604 = vmatpush.msra.mxu0 %v244
  %605 = vmatpush.msra.mxu0 %v243
  %606 = vmatpush.msra.mxu0 %v242
  %607 = vmatpush.msra.mxu0 %v241
  %608 = vmatpush.msra.mxu0 %v240
  %609 = vmatmul.f32.gmra.mxu0 %v314
  %v610 = vpop.f32.mrf.mxu0
  %v611 = vadd.f32 %v591, %v610
  %612 = vdwg.mxu0
  %613 = vmatpush.msra.mxu0 %v271
  %614 = vmatpush.msra.mxu0 %v270
  %615 = vmatpush.msra.mxu0 %v269
  %616 = vmatpush.msra.mxu0 %v268
  %617 = vmatpush.msra.mxu0 %v267
  %618 = vmatpush.msra.mxu0 %v266
  %619 = vmatpush.msra.mxu0 %v265
  %620 = vmatpush.msra.mxu0 %v264
  %621 = vmatpush.msra.mxu0 %v263
  %622 = vmatpush.msra.mxu0 %v262
  %623 = vmatpush.msra.mxu0 %v261
  %624 = vmatpush.msra.mxu0 %v260
  %625 = vmatpush.msra.mxu0 %v259
  %626 = vmatpush.msra.mxu0 %v258
  %627 = vmatpush.msra.mxu0 %v257
  %628 = vmatpush.msra.mxu0 %v256
  %629 = vmatmul.f32.gmra.mxu0 %v315
  %v630 = vpop.f32.mrf.mxu0
  %v631 = vadd.f32 %v611, %v630
  %632 = vdwg.mxu0
  %633 = vmatpush.msra.mxu0 %v287
  %634 = vmatpush.msra.mxu0 %v286
  %635 = vmatpush.msra.mxu0 %v285
  %636 = vmatpush.msra.mxu0 %v284
  %637 = vmatpush.msra.mxu0 %v283
  %638 = vmatpush.msra.mxu0 %v282
  %639 = vmatpush.msra.mxu0 %v281
  %640 = vmatpush.msra.mxu0 %v280
  %641 = vmatpush.msra.mxu0 %v279
  %642 = vmatpush.msra.mxu0 %v278
  %643 = vmatpush.msra.mxu0 %v277
  %644 = vmatpush.msra.mxu0 %v276
  %645 = vmatpush.msra.mxu0 %v275
  %646 = vmatpush.msra.mxu0 %v274
  %647 = vmatpush.msra.mxu0 %v273
  %648 = vmatpush.msra.mxu0 %v272
  %649 = vmatmul.f32.gmra.mxu0 %v316
  %v650 = vpop.f32.mrf.mxu0
  %v651 = vadd.f32 %v631, %v650
  %652 = vdwg.mxu0
  %vm653 = vcmask 1041408
  %v654 = vsel %vm653, %v651, 0.0
  %v655 = vrot.slane %v654, 4
  %v656 = vadd.f32 %v654, %v655
  %v657 = vrot.slane %v656, 2
  %v658 = vadd.f32 %v656, %v657
  %v659 = vrot.slane %v658, 1
  %v660 = vadd.f32 %v658, %v659
  %v661 = vrcp.pop 2.0
  %v662 = vmul.f32 2.0, %v661
  %v663 = vsub.f32 1.0, %v662
  %v664 = vmul.f32 %v661, %v663
  %v665 = vadd.f32 %v661, %v664
  %vm666 = vweird.f32 %v661
  %v667 = vsel %vm666, %v661, %v665
  %v668 = vmul.f32 %v660, %v667
  %v669 = vsub.f32 %v651, %v668
  %v670 = vmul.f32 %v669, %v669
  %v671 = vsel %vm653, %v670, 0.0
  %v672 = vrot.slane %v671, 4
  %v673 = vadd.f32 %v671, %v672
  %v674 = vrot.slane %v673, 2
  %v675 = vadd.f32 %v673, %v674
  %v676 = vrot.slane %v675, 1
  %v677 = vadd.f32 %v675, %v676
  %v678 = vmul.f32 %v677, %v667
  %v679 = vadd.f32 %v678, 1e-05
  %v680 = vrsqrt.pop %v679
  %v681 = vmul.f32 %v680, %v679
  %v682 = vmul.f32 %v681, %v680
  %v683 = vmul.f32 0.5, %v682
  %v684 = vsub.f32 1.5, %v683
  %v685 = vmul.f32 %v680, %v684
  %vm686 = vweird.f32 %v679
  %vm687 = vweird.f32 %v680
  %vm688 = vmor %vm686, %vm687
  %v689 = vsel %vm688, %v680, %v685
  %v690 = vmul.f32 %v669, %v689
  %v691 = vld [vmem:[%s3] sm:$0x1]
  %v693 = vperm.slane %v691, 0
  %v695 = vmul.f32 %v690, %v693
  %v696 = vld [vmem:[%s4] sm:$0x1]
  %v698 = vperm.slane %v696, 0
  %v700 = vadd.f32 %v695, %v698
  %v701 = vmax.f32 %v700, 0.0
  %v702 = vld [vmem:[%s5] sm:$0xff]
  %v703 = vld [vmem:[%s5 + $0x8] sm:$0xff]
  %v704 = vld [vmem:[%s5 + $0x10] sm:$0xff]
  %v705 = vld [vmem:[%s5 + $0x18] sm:$0xff]
  %v706 = vld [vmem:[%s5 + $0x20] sm:$0xff]
  %v707 = vld [vmem:[%s5 + $0x28] sm:$0xff]
  %v708 = vld [vmem:[%s5 + $0x30] sm:$0xff]
  %v709 = vld [vmem:[%s5 + $0x38] sm:$0xff]
  %v710 = vld [vmem:[%s5 + $0x40] sm:$0xff]
  %v711 = vld [vmem:[%s5 + $0x48] sm:$0xff]
  %v712 = vld [vmem:[%s5 + $0x50] sm:$0xff]
  %v713 = vld [vmem:[%s5 + $0x58] sm:$0xff]
  %v714 = vld [vmem:[%s5 + $0x60] sm:$0xff]
  %v715 = vld [vmem:[%s5 + $0x68] sm:$0xff]
  %v716 = vld [vmem:[%s5 + $0x70] sm:$0xff]
  %v717 = vld [vmem:[%s5 + $0x78] sm:$0xff]
  %v718 = vld [vmem:[#allocation2] sm:$0x1]
  %v720 = vperm.slane %v718, 0
  %722 = vmatpush.msra.mxu0 %v717
  %723 = vmatpush.msra.mxu0 %v716
  %724 = vmatpush.msra.mxu0 %v715
  %725 = vmatpush.msra.mxu0 %v714
  %726 = vmatpush.msra.mxu0 %v713
  %727 = vmatpush.msra.mxu0 %v712
  %728 = vmatpush.msra.mxu0 %v711
  %729 = vmatpush.msra.mxu0 %v710
  %730 = vmatpush.msra.mxu0 %v709
  %731 = vmatpush.msra.mxu0 %v708
  %732 = vmatpush.msra.mxu0 %v707
  %733 = vmatpush.msra.mxu0 %v706
  %734 = vmatpush.msra.mxu0 %v705
  %735 = vmatpush.msra.mxu0 %v704
  %736 = vmatpush.msra.mxu0 %v703
  %737 = vmatpush.msra.mxu0 %v702
  %738 = vmatmul.f32.gmra.mxu0 %v701
  %v739 = vpop.f32.mrf.mxu0
  %v740 = vadd.f32 %v720, %v739
  %741 = vdwg.mxu0
  %v742 = vsub.f32 %v740, %v740
  %v743 = vmul.f32 %v742, 1.442695
  %v744 = vpow.pop %v743
  %v745 = vadd.f32 %v744, 0.0
  %v746 = vrcp.pop %v745
  %v747 = vmul.f32 %v745, %v746
  %v748 = vsub.f32 1.0, %v747
  %v749 = vmul.f32 %v746, %v748
  %v750 = vadd.f32 %v746, %v749
  %vm751 = vweird.f32 %v745
  %vm752 = vweird.f32 %v746
  %vm753 = vmor %vm751, %vm752
  %v754 = vsel %vm753, %v746, %v750
  %v755 = vand.u32 2147483647, %v745
  %vm756 = vcmp.eq.f32.partialorder %v755, 8.507059e+37
  %v757 = vand.u32 %v745, 2147483648
  %v758 = vor.u32 1.1754944e-38, %v757
  %v759 = vsel %vm756, %v758, %v754
  %v760 = vmul.f32 %v744, %v759
  %vm761 = vcmask 1024
  %762 = vst.msk [vmem:[%s7] sm:$0x3] %vm761, %v760
  // Predicated region
  $region30: #{dann2_forward.7} parent=0 // pred_check
    _
  $region31: #{dann2_forward.7} parent=0 // pred_check_branch
    %764 = sbr.rel (0) target = $region33
  $region32: #{dann2_forward.7} parent=0 // pred_region
    _
  $region33: #{dann2_forward.7} parent=0 // pred_fallthru
    _
  // Predicated region
  $region34: #{dann2_forward.7} parent=0 // pred_check
    _
  $region35: #{dann2_forward.7} parent=0 // pred_check_branch
    %766 = sbr.rel (0) target = $region37
  $region36: #{dann2_forward.7} parent=0 // pred_region
    _
  $region37: #{dann2_forward.7} parent=0 // pred_fallthru
    _

// kernel: dann2_forward.5
$region0: #{dann2_forward.5}
  #allocation0 [shape = 'u32[]', space=smem, size = 0x4, offset = 0x4, fixed_abs, tag = 'smem constant byte address 0x4 - core index']
  #allocation1 [shape = 'u32[72,128]{1,0:T(1,128)}', space=vmem, size = 0x9000, scoped, tag = 'internal scratch']
  %s0 = inlined_call_operand.vmem [shape: f32[2,512], index: 0, kind: input, shape index: {}]
  %s1 = inlined_call_operand.vmem [shape: f32[512,512], index: 1, kind: input, shape index: {}]
  %s2 = inlined_call_operand.vmem [shape: f32[1,512], index: 2, kind: input, shape index: {}]
  %s3 = inlined_call_operand.vmem [shape: f32[1,512], index: 3, kind: input, shape index: {}]
  %s4 = inlined_call_operand.vmem [shape: f32[1,512], index: 4, kind: input, shape index: {}]
  %s5 = inlined_call_operand.vmem [shape: f32[512,10], index: 5, kind: input, shape index: {}]
  %s6 = inlined_call_operand.vmem [shape: f32[1,10], index: 6, kind: input, shape index: {}]
  %s7 = inlined_call_operand.hbm [shape: f32[2,10], index: 7, kind: output, shape index: {}]
  %s8 = sld [smem:[#allocation0]]
  $region38: #{dann2_forward.5} parent=0
    _
  %s10 = ssub.s32 1, %s8
  %s11 = scalar_select 0, %s10, %s8
  $region1: #{dann2_forward.5} parent=0
    #allocation2 [shape = 'u8[1024]{0}', space=vmem, size = 0x400, scoped, tag = 'output window, operand 0, single buffered']
    #allocation3 [shape = 's32[1]{0}', space=sflag, size = 0x4, scoped, tag = 'scoped memory for dann2_forward.5']
    %12 = vsyncpa [#allocation3], 0
    // Predicated region
    $region2: #{dann2_forward.5} parent=1 // pred_check
      _
    $region3: #{dann2_forward.5} parent=1 // pred_check_branch
      %14 = sbr.rel (0) target = $region5
    $region4: #{dann2_forward.5} parent=1 // pred_region
      _
    $region5: #{dann2_forward.5} parent=1 // pred_fallthru
      _
    // Predicated region
    $region6: #{dann2_forward.5} parent=1 // pred_check
      _
    $region7: #{dann2_forward.5} parent=1 // pred_check_branch
      %16 = sbr.rel (0) target = $region9
    $region8: #{dann2_forward.5} parent=1 // pred_region
      _
    $region9: #{dann2_forward.5} parent=1 // pred_fallthru
      _
    // Predicated region
    $region10: #{dann2_forward.5} parent=1 // pred_check
      _
    $region11: #{dann2_forward.5} parent=1 // pred_check_branch
      %18 = sbr.rel (0) target = $region13
    $region12: #{dann2_forward.5} parent=1 // pred_region
      _
    $region13: #{dann2_forward.5} parent=1 // pred_fallthru
      _
    // Predicated region
    $region14: #{dann2_forward.5} parent=1 // pred_check
      _
    $region15: #{dann2_forward.5} parent=1 // pred_check_branch
      %20 = sbr.rel (0) target = $region17
    $region16: #{dann2_forward.5} parent=1 // pred_region
      _
    $region17: #{dann2_forward.5} parent=1 // pred_fallthru
      _
    // Predicated region
    $region18: #{dann2_forward.5} parent=1 // pred_check
      _
    $region19: #{dann2_forward.5} parent=1 // pred_check_branch
      %22 = sbr.rel (0) target = $region21
    $region20: #{dann2_forward.5} parent=1 // pred_region
      _
    $region21: #{dann2_forward.5} parent=1 // pred_fallthru
      _
    // Predicated region
    $region22: #{dann2_forward.5} parent=1 // pred_check
      _
    $region23: #{dann2_forward.5} parent=1 // pred_check_branch
      %24 = sbr.rel (0) target = $region25
    $region24: #{dann2_forward.5} parent=1 // pred_region
      _
    $region25: #{dann2_forward.5} parent=1 // pred_fallthru
      _
    // Predicated region
    $region26: #{dann2_forward.5} parent=1 // pred_check
      _
    $region27: #{dann2_forward.5} parent=1 // pred_check_branch
      %26 = sbr.rel (0) target = $region29
    $region28: #{dann2_forward.5} parent=1 // pred_region
      _
    $region29: #{dann2_forward.5} parent=1 // pred_fallthru
      _
    %v27 = vld [vmem:[%s0] sm:$0xff]
    %v28 = vld [vmem:[%s1] sm:$0xff]
    %v29 = vld [vmem:[%s1 + $0x8] sm:$0xff]
    %v30 = vld [vmem:[%s1 + $0x10] sm:$0xff]
    %v31 = vld [vmem:[%s1 + $0x18] sm:$0xff]
    %v32 = vld [vmem:[%s1 + $0x20] sm:$0xff]
    %v33 = vld [vmem:[%s1 + $0x28] sm:$0xff]
    %v34 = vld [vmem:[%s1 + $0x30] sm:$0xff]
    %v35 = vld [vmem:[%s1 + $0x38] sm:$0xff]
    %v36 = vld [vmem:[%s1 + $0x40] sm:$0xff]
    %v37 = vld [vmem:[%s1 + $0x48] sm:$0xff]
    %v38 = vld [vmem:[%s1 + $0x50] sm:$0xff]
    %v39 = vld [vmem:[%s1 + $0x58] sm:$0xff]
    %v40 = vld [vmem:[%s1 + $0x60] sm:$0xff]
    %v41 = vld [vmem:[%s1 + $0x68] sm:$0xff]
    %v42 = vld [vmem:[%s1 + $0x70] sm:$0xff]
    %v43 = vld [vmem:[%s1 + $0x78] sm:$0xff]
    %v44 = vld [vmem:[%s1 + $0x80] sm:$0xff]
    %v45 = vld [vmem:[%s1 + $0x88] sm:$0xff]
    %v46 = vld [vmem:[%s1 + $0x90] sm:$0xff]
    %v47 = vld [vmem:[%s1 + $0x98] sm:$0xff]
    %v48 = vld [vmem:[%s1 + $0xa0] sm:$0xff]
    %v49 = vld [vmem:[%s1 + $0xa8] sm:$0xff]
    %v50 = vld [vmem:[%s1 + $0xb0] sm:$0xff]
    %v51 = vld [vmem:[%s1 + $0xb8] sm:$0xff]
    %v52 = vld [vmem:[%s1 + $0xc0] sm:$0xff]
    %v53 = vld [vmem:[%s1 + $0xc8] sm:$0xff]
    %v54 = vld [vmem:[%s1 + $0xd0] sm:$0xff]
    %v55 = vld [vmem:[%s1 + $0xd8] sm:$0xff]
    %v56 = vld [vmem:[%s1 + $0xe0] sm:$0xff]
    %v57 = vld [vmem:[%s1 + $0xe8] sm:$0xff]
    %v58 = vld [vmem:[%s1 + $0xf0] sm:$0xff]
    %v59 = vld [vmem:[%s1 + $0xf8] sm:$0xff]
    %v60 = vld [vmem:[%s1 + $0x100] sm:$0xff]
    %v61 = vld [vmem:[%s1 + $0x108] sm:$0xff]
    %v62 = vld [vmem:[%s1 + $0x110] sm:$0xff]
    %v63 = vld [vmem:[%s1 + $0x118] sm:$0xff]
    %v64 = vld [vmem:[%s1 + $0x120] sm:$0xff]
    %v65 = vld [vmem:[%s1 + $0x128] sm:$0xff]
    %v66 = vld [vmem:[%s1 + $0x130] sm:$0xff]
    %v67 = vld [vmem:[%s1 + $0x138] sm:$0xff]
    %v68 = vld [vmem:[%s1 + $0x140] sm:$0xff]
    %v69 = vld [vmem:[%s1 + $0x148] sm:$0xff]
    %v70 = vld [vmem:[%s1 + $0x150] sm:$0xff]
    %v71 = vld [vmem:[%s1 + $0x158] sm:$0xff]
    %v72 = vld [vmem:[%s1 + $0x160] sm:$0xff]
    %v73 = vld [vmem:[%s1 + $0x168] sm:$0xff]
    %v74 = vld [vmem:[%s1 + $0x170] sm:$0xff]
    %v75 = vld [vmem:[%s1 + $0x178] sm:$0xff]
    %v76 = vld [vmem:[%s1 + $0x180] sm:$0xff]
    %v77 = vld [vmem:[%s1 + $0x188] sm:$0xff]
    %v78 = vld [vmem:[%s1 + $0x190] sm:$0xff]
    %v79 = vld [vmem:[%s1 + $0x198] sm:$0xff]
    %v80 = vld [vmem:[%s1 + $0x1a0] sm:$0xff]
    %v81 = vld [vmem:[%s1 + $0x1a8] sm:$0xff]
    %v82 = vld [vmem:[%s1 + $0x1b0] sm:$0xff]
    %v83 = vld [vmem:[%s1 + $0x1b8] sm:$0xff]
    %v84 = vld [vmem:[%s1 + $0x1c0] sm:$0xff]
    %v85 = vld [vmem:[%s1 + $0x1c8] sm:$0xff]
    %v86 = vld [vmem:[%s1 + $0x1d0] sm:$0xff]
    %v87 = vld [vmem:[%s1 + $0x1d8] sm:$0xff]
    %v88 = vld [vmem:[%s1 + $0x1e0] sm:$0xff]
    %v89 = vld [vmem:[%s1 + $0x1e8] sm:$0xff]
    %v90 = vld [vmem:[%s1 + $0x1f0] sm:$0xff]
    %v91 = vld [vmem:[%s1 + $0x1f8] sm:$0xff]
    %v92 = vld [vmem:[%s1 + $0x200] sm:$0xff]
    %v93 = vld [vmem:[%s1 + $0x208] sm:$0xff]
    %v94 = vld [vmem:[%s1 + $0x210] sm:$0xff]
    %v95 = vld [vmem:[%s1 + $0x218] sm:$0xff]
    %v96 = vld [vmem:[%s1 + $0x220] sm:$0xff]
    %v97 = vld [vmem:[%s1 + $0x228] sm:$0xff]
    %v98 = vld [vmem:[%s1 + $0x230] sm:$0xff]
    %v99 = vld [vmem:[%s1 + $0x238] sm:$0xff]
    %v100 = vld [vmem:[%s1 + $0x240] sm:$0xff]
    %v101 = vld [vmem:[%s1 + $0x248] sm:$0xff]
    %v102 = vld [vmem:[%s1 + $0x250] sm:$0xff]
    %v103 = vld [vmem:[%s1 + $0x258] sm:$0xff]
    %v104 = vld [vmem:[%s1 + $0x260] sm:$0xff]
    %v105 = vld [vmem:[%s1 + $0x268] sm:$0xff]
    %v106 = vld [vmem:[%s1 + $0x270] sm:$0xff]
    %v107 = vld [vmem:[%s1 + $0x278] sm:$0xff]
    %v108 = vld [vmem:[%s1 + $0x280] sm:$0xff]
    %v109 = vld [vmem:[%s1 + $0x288] sm:$0xff]
    %v110 = vld [vmem:[%s1 + $0x290] sm:$0xff]
    %v111 = vld [vmem:[%s1 + $0x298] sm:$0xff]
    %v112 = vld [vmem:[%s1 + $0x2a0] sm:$0xff]
    %v113 = vld [vmem:[%s1 + $0x2a8] sm:$0xff]
    %v114 = vld [vmem:[%s1 + $0x2b0] sm:$0xff]
    %v115 = vld [vmem:[%s1 + $0x2b8] sm:$0xff]
    %v116 = vld [vmem:[%s1 + $0x2c0] sm:$0xff]
    %v117 = vld [vmem:[%s1 + $0x2c8] sm:$0xff]
    %v118 = vld [vmem:[%s1 + $0x2d0] sm:$0xff]
    %v119 = vld [vmem:[%s1 + $0x2d8] sm:$0xff]
    %v120 = vld [vmem:[%s1 + $0x2e0] sm:$0xff]
    %v121 = vld [vmem:[%s1 + $0x2e8] sm:$0xff]
    %v122 = vld [vmem:[%s1 + $0x2f0] sm:$0xff]
    %v123 = vld [vmem:[%s1 + $0x2f8] sm:$0xff]
    %v124 = vld [vmem:[%s1 + $0x300] sm:$0xff]
    %v125 = vld [vmem:[%s1 + $0x308] sm:$0xff]
    %v126 = vld [vmem:[%s1 + $0x310] sm:$0xff]
    %v127 = vld [vmem:[%s1 + $0x318] sm:$0xff]
    %v128 = vld [vmem:[%s1 + $0x320] sm:$0xff]
    %v129 = vld [vmem:[%s1 + $0x328] sm:$0xff]
    %v130 = vld [vmem:[%s1 + $0x330] sm:$0xff]
    %v131 = vld [vmem:[%s1 + $0x338] sm:$0xff]
    %v132 = vld [vmem:[%s1 + $0x340] sm:$0xff]
    %v133 = vld [vmem:[%s1 + $0x348] sm:$0xff]
    %v134 = vld [vmem:[%s1 + $0x350] sm:$0xff]
    %v135 = vld [vmem:[%s1 + $0x358] sm:$0xff]
    %v136 = vld [vmem:[%s1 + $0x360] sm:$0xff]
    %v137 = vld [vmem:[%s1 + $0x368] sm:$0xff]
    %v138 = vld [vmem:[%s1 + $0x370] sm:$0xff]
    %v139 = vld [vmem:[%s1 + $0x378] sm:$0xff]
    %v140 = vld [vmem:[%s1 + $0x380] sm:$0xff]
    %v141 = vld [vmem:[%s1 + $0x388] sm:$0xff]
    %v142 = vld [vmem:[%s1 + $0x390] sm:$0xff]
    %v143 = vld [vmem:[%s1 + $0x398] sm:$0xff]
    %v144 = vld [vmem:[%s1 + $0x3a0] sm:$0xff]
    %v145 = vld [vmem:[%s1 + $0x3a8] sm:$0xff]
    %v146 = vld [vmem:[%s1 + $0x3b0] sm:$0xff]
    %v147 = vld [vmem:[%s1 + $0x3b8] sm:$0xff]
    %v148 = vld [vmem:[%s1 + $0x3c0] sm:$0xff]
    %v149 = vld [vmem:[%s1 + $0x3c8] sm:$0xff]
    %v150 = vld [vmem:[%s1 + $0x3d0] sm:$0xff]
    %v151 = vld [vmem:[%s1 + $0x3d8] sm:$0xff]
    %v152 = vld [vmem:[%s1 + $0x3e0] sm:$0xff]
    %v153 = vld [vmem:[%s1 + $0x3e8] sm:$0xff]
    %v154 = vld [vmem:[%s1 + $0x3f0] sm:$0xff]
    %v155 = vld [vmem:[%s1 + $0x3f8] sm:$0xff]
    %v156 = vld [vmem:[%s1 + $0x400] sm:$0xff]
    %v157 = vld [vmem:[%s1 + $0x408] sm:$0xff]
    %v158 = vld [vmem:[%s1 + $0x410] sm:$0xff]
    %v159 = vld [vmem:[%s1 + $0x418] sm:$0xff]
    %v160 = vld [vmem:[%s1 + $0x420] sm:$0xff]
    %v161 = vld [vmem:[%s1 + $0x428] sm:$0xff]
    %v162 = vld [vmem:[%s1 + $0x430] sm:$0xff]
    %v163 = vld [vmem:[%s1 + $0x438] sm:$0xff]
    %v164 = vld [vmem:[%s1 + $0x440] sm:$0xff]
    %v165 = vld [vmem:[%s1 + $0x448] sm:$0xff]
    %v166 = vld [vmem:[%s1 + $0x450] sm:$0xff]
    %v167 = vld [vmem:[%s1 + $0x458] sm:$0xff]
    %v168 = vld [vmem:[%s1 + $0x460] sm:$0xff]
    %v169 = vld [vmem:[%s1 + $0x468] sm:$0xff]
    %v170 = vld [vmem:[%s1 + $0x470] sm:$0xff]
    %v171 = vld [vmem:[%s1 + $0x478] sm:$0xff]
    %v172 = vld [vmem:[%s1 + $0x480] sm:$0xff]
    %v173 = vld [vmem:[%s1 + $0x488] sm:$0xff]
    %v174 = vld [vmem:[%s1 + $0x490] sm:$0xff]
    %v175 = vld [vmem:[%s1 + $0x498] sm:$0xff]
    %v176 = vld [vmem:[%s1 + $0x4a0] sm:$0xff]
    %v177 = vld [vmem:[%s1 + $0x4a8] sm:$0xff]
    %v178 = vld [vmem:[%s1 + $0x4b0] sm:$0xff]
    %v179 = vld [vmem:[%s1 + $0x4b8] sm:$0xff]
    %v180 = vld [vmem:[%s1 + $0x4c0] sm:$0xff]
    %v181 = vld [vmem:[%s1 + $0x4c8] sm:$0xff]
    %v182 = vld [vmem:[%s1 + $0x4d0] sm:$0xff]
    %v183 = vld [vmem:[%s1 + $0x4d8] sm:$0xff]
    %v184 = vld [vmem:[%s1 + $0x4e0] sm:$0xff]
    %v185 = vld [vmem:[%s1 + $0x4e8] sm:$0xff]
    %v186 = vld [vmem:[%s1 + $0x4f0] sm:$0xff]
    %v187 = vld [vmem:[%s1 + $0x4f8] sm:$0xff]
    %v188 = vld [vmem:[%s1 + $0x500] sm:$0xff]
    %v189 = vld [vmem:[%s1 + $0x508] sm:$0xff]
    %v190 = vld [vmem:[%s1 + $0x510] sm:$0xff]
    %v191 = vld [vmem:[%s1 + $0x518] sm:$0xff]
    %v192 = vld [vmem:[%s1 + $0x520] sm:$0xff]
    %v193 = vld [vmem:[%s1 + $0x528] sm:$0xff]
    %v194 = vld [vmem:[%s1 + $0x530] sm:$0xff]
    %v195 = vld [vmem:[%s1 + $0x538] sm:$0xff]
    %v196 = vld [vmem:[%s1 + $0x540] sm:$0xff]
    %v197 = vld [vmem:[%s1 + $0x548] sm:$0xff]
    %v198 = vld [vmem:[%s1 + $0x550] sm:$0xff]
    %v199 = vld [vmem:[%s1 + $0x558] sm:$0xff]
    %v200 = vld [vmem:[%s1 + $0x560] sm:$0xff]
    %v201 = vld [vmem:[%s1 + $0x568] sm:$0xff]
    %v202 = vld [vmem:[%s1 + $0x570] sm:$0xff]
    %v203 = vld [vmem:[%s1 + $0x578] sm:$0xff]
    %v204 = vld [vmem:[%s1 + $0x580] sm:$0xff]
    %v205 = vld [vmem:[%s1 + $0x588] sm:$0xff]
    %v206 = vld [vmem:[%s1 + $0x590] sm:$0xff]
    %v207 = vld [vmem:[%s1 + $0x598] sm:$0xff]
    %v208 = vld [vmem:[%s1 + $0x5a0] sm:$0xff]
    %v209 = vld [vmem:[%s1 + $0x5a8] sm:$0xff]
    %v210 = vld [vmem:[%s1 + $0x5b0] sm:$0xff]
    %v211 = vld [vmem:[%s1 + $0x5b8] sm:$0xff]
    %v212 = vld [vmem:[%s1 + $0x5c0] sm:$0xff]
    %v213 = vld [vmem:[%s1 + $0x5c8] sm:$0xff]
    %v214 = vld [vmem:[%s1 + $0x5d0] sm:$0xff]
    %v215 = vld [vmem:[%s1 + $0x5d8] sm:$0xff]
    %v216 = vld [vmem:[%s1 + $0x5e0] sm:$0xff]
    %v217 = vld [vmem:[%s1 + $0x5e8] sm:$0xff]
    %v218 = vld [vmem:[%s1 + $0x5f0] sm:$0xff]
    %v219 = vld [vmem:[%s1 + $0x5f8] sm:$0xff]
    %v220 = vld [vmem:[%s1 + $0x600] sm:$0xff]
    %v221 = vld [vmem:[%s1 + $0x608] sm:$0xff]
    %v222 = vld [vmem:[%s1 + $0x610] sm:$0xff]
    %v223 = vld [vmem:[%s1 + $0x618] sm:$0xff]
    %v224 = vld [vmem:[%s1 + $0x620] sm:$0xff]
    %v225 = vld [vmem:[%s1 + $0x628] sm:$0xff]
    %v226 = vld [vmem:[%s1 + $0x630] sm:$0xff]
    %v227 = vld [vmem:[%s1 + $0x638] sm:$0xff]
    %v228 = vld [vmem:[%s1 + $0x640] sm:$0xff]
    %v229 = vld [vmem:[%s1 + $0x648] sm:$0xff]
    %v230 = vld [vmem:[%s1 + $0x650] sm:$0xff]
    %v231 = vld [vmem:[%s1 + $0x658] sm:$0xff]
    %v232 = vld [vmem:[%s1 + $0x660] sm:$0xff]
    %v233 = vld [vmem:[%s1 + $0x668] sm:$0xff]
    %v234 = vld [vmem:[%s1 + $0x670] sm:$0xff]
    %v235 = vld [vmem:[%s1 + $0x678] sm:$0xff]
    %v236 = vld [vmem:[%s1 + $0x680] sm:$0xff]
    %v237 = vld [vmem:[%s1 + $0x688] sm:$0xff]
    %v238 = vld [vmem:[%s1 + $0x690] sm:$0xff]
    %v239 = vld [vmem:[%s1 + $0x698] sm:$0xff]
    %v240 = vld [vmem:[%s1 + $0x6a0] sm:$0xff]
    %v241 = vld [vmem:[%s1 + $0x6a8] sm:$0xff]
    %v242 = vld [vmem:[%s1 + $0x6b0] sm:$0xff]
    %v243 = vld [vmem:[%s1 + $0x6b8] sm:$0xff]
    %v244 = vld [vmem:[%s1 + $0x6c0] sm:$0xff]
    %v245 = vld [vmem:[%s1 + $0x6c8] sm:$0xff]
    %v246 = vld [vmem:[%s1 + $0x6d0] sm:$0xff]
    %v247 = vld [vmem:[%s1 + $0x6d8] sm:$0xff]
    %v248 = vld [vmem:[%s1 + $0x6e0] sm:$0xff]
    %v249 = vld [vmem:[%s1 + $0x6e8] sm:$0xff]
    %v250 = vld [vmem:[%s1 + $0x6f0] sm:$0xff]
    %v251 = vld [vmem:[%s1 + $0x6f8] sm:$0xff]
    %v252 = vld [vmem:[%s1 + $0x700] sm:$0xff]
    %v253 = vld [vmem:[%s1 + $0x708] sm:$0xff]
    %v254 = vld [vmem:[%s1 + $0x710] sm:$0xff]
    %v255 = vld [vmem:[%s1 + $0x718] sm:$0xff]
    %v256 = vld [vmem:[%s1 + $0x720] sm:$0xff]
    %v257 = vld [vmem:[%s1 + $0x728] sm:$0xff]
    %v258 = vld [vmem:[%s1 + $0x730] sm:$0xff]
    %v259 = vld [vmem:[%s1 + $0x738] sm:$0xff]
    %v260 = vld [vmem:[%s1 + $0x740] sm:$0xff]
    %v261 = vld [vmem:[%s1 + $0x748] sm:$0xff]
    %v262 = vld [vmem:[%s1 + $0x750] sm:$0xff]
    %v263 = vld [vmem:[%s1 + $0x758] sm:$0xff]
    %v264 = vld [vmem:[%s1 + $0x760] sm:$0xff]
    %v265 = vld [vmem:[%s1 + $0x768] sm:$0xff]
    %v266 = vld [vmem:[%s1 + $0x770] sm:$0xff]
    %v267 = vld [vmem:[%s1 + $0x778] sm:$0xff]
    %v268 = vld [vmem:[%s1 + $0x780] sm:$0xff]
    %v269 = vld [vmem:[%s1 + $0x788] sm:$0xff]
    %v270 = vld [vmem:[%s1 + $0x790] sm:$0xff]
    %v271 = vld [vmem:[%s1 + $0x798] sm:$0xff]
    %v272 = vld [vmem:[%s1 + $0x7a0] sm:$0xff]
    %v273 = vld [vmem:[%s1 + $0x7a8] sm:$0xff]
    %v274 = vld [vmem:[%s1 + $0x7b0] sm:$0xff]
    %v275 = vld [vmem:[%s1 + $0x7b8] sm:$0xff]
    %v276 = vld [vmem:[%s1 + $0x7c0] sm:$0xff]
    %v277 = vld [vmem:[%s1 + $0x7c8] sm:$0xff]
    %v278 = vld [vmem:[%s1 + $0x7d0] sm:$0xff]
    %v279 = vld [vmem:[%s1 + $0x7d8] sm:$0xff]
    %v280 = vld [vmem:[%s1 + $0x7e0] sm:$0xff]
    %v281 = vld [vmem:[%s1 + $0x7e8] sm:$0xff]
    %v282 = vld [vmem:[%s1 + $0x7f0] sm:$0xff]
    %v283 = vld [vmem:[%s1 + $0x7f8] sm:$0xff]
    %v284 = vld [vmem:[%s2] sm:$0xf]
    %v286 = vperm.slane %v284, 0
    %v287 = vperm.slane %v284, 1
    %v288 = vperm.slane %v284, 2
    %v289 = vperm.slane %v284, 3
    %295 = vst [vmem:[#allocation1] ss:$4 sm:$0xff] %v27
    %v296 = vld.sshfl [vmem:[#allocation1] sm:$0xff pattern:$0x73625140]
    %v297 = vld.sshfl [vmem:[#allocation1 + $0x8] sm:$0xff pattern:$0x73625140]
    %v298 = vld.sshfl [vmem:[#allocation1 + $0x10] sm:$0xff pattern:$0x73625140]
    %v299 = vld.sshfl [vmem:[#allocation1 + $0x18] sm:$0xff pattern:$0x73625140]
    %304 = vmatpush.msra.mxu0 %v88
    %305 = vmatpush.msra.mxu0 %v84
    %306 = vmatpush.msra.mxu0 %v80
    %307 = vmatpush.msra.mxu0 %v76
    %308 = vmatpush.msra.mxu0 %v72
    %309 = vmatpush.msra.mxu0 %v68
    %310 = vmatpush.msra.mxu0 %v64
    %311 = vmatpush.msra.mxu0 %v60
    %312 = vmatpush.msra.mxu0 %v56
    %313 = vmatpush.msra.mxu0 %v52
    %314 = vmatpush.msra.mxu0 %v48
    %315 = vmatpush.msra.mxu0 %v44
    %316 = vmatpush.msra.mxu0 %v40
    %317 = vmatpush.msra.mxu0 %v36
    %318 = vmatpush.msra.mxu0 %v32
    %319 = vmatpush.msra.mxu0 %v28
    %320 = vmatmul.f32.gmra.mxu0 %v296
    %v321 = vpop.f32.mrf.mxu0
    %v322 = vadd.f32 %v286, %v321
    %323 = vdwg.mxu0
    %324 = vmatpush.msra.mxu0 %v152
    %325 = vmatpush.msra.mxu0 %v148
    %326 = vmatpush.msra.mxu0 %v144
    %327 = vmatpush.msra.mxu0 %v140
    %328 = vmatpush.msra.mxu0 %v136
    %329 = vmatpush.msra.mxu0 %v132
    %330 = vmatpush.msra.mxu0 %v128
    %331 = vmatpush.msra.mxu0 %v124
    %332 = vmatpush.msra.mxu0 %v120
    %333 = vmatpush.msra.mxu0 %v116
    %334 = vmatpush.msra.mxu0 %v112
    %335 = vmatpush.msra.mxu0 %v108
    %336 = vmatpush.msra.mxu0 %v104
    %337 = vmatpush.msra.mxu0 %v100
    %338 = vmatpush.msra.mxu0 %v96
    %339 = vmatpush.msra.mxu0 %v92
    %340 = vmatmul.f32.gmra.mxu0 %v297
    %v341 = vpop.f32.mrf.mxu0
    %v342 = vadd.f32 %v322, %v341
    %343 = vdwg.mxu0
    %344 = vmatpush.msra.mxu0 %v216
    %345 = vmatpush.msra.mxu0 %v212
    %346 = vmatpush.msra.mxu0 %v208
    %347 = vmatpush.msra.mxu0 %v204
    %348 = vmatpush.msra.mxu0 %v200
    %349 = vmatpush.msra.mxu0 %v196
    %350 = vmatpush.msra.mxu0 %v192
    %351 = vmatpush.msra.mxu0 %v188
    %352 = vmatpush.msra.mxu0 %v184
    %353 = vmatpush.msra.mxu0 %v180
    %354 = vmatpush.msra.mxu0 %v176
    %355 = vmatpush.msra.mxu0 %v172
    %356 = vmatpush.msra.mxu0 %v168
    %357 = vmatpush.msra.mxu0 %v164
    %358 = vmatpush.msra.mxu0 %v160
    %359 = vmatpush.msra.mxu0 %v156
    %360 = vmatmul.f32.gmra.mxu0 %v298
    %v361 = vpop.f32.mrf.mxu0
    %v362 = vadd.f32 %v342, %v361
    %363 = vdwg.mxu0
    %364 = vmatpush.msra.mxu0 %v280
    %365 = vmatpush.msra.mxu0 %v276
    %366 = vmatpush.msra.mxu0 %v272
    %367 = vmatpush.msra.mxu0 %v268
    %368 = vmatpush.msra.mxu0 %v264
    %369 = vmatpush.msra.mxu0 %v260
    %370 = vmatpush.msra.mxu0 %v256
    %371 = vmatpush.msra.mxu0 %v252
    %372 = vmatpush.msra.mxu0 %v248
    %373 = vmatpush.msra.mxu0 %v244
    %374 = vmatpush.msra.mxu0 %v240
    %375 = vmatpush.msra.mxu0 %v236
    %376 = vmatpush.msra.mxu0 %v232
    %377 = vmatpush.msra.mxu0 %v228
    %378 = vmatpush.msra.mxu0 %v224
    %379 = vmatpush.msra.mxu0 %v220
    %380 = vmatmul.f32.gmra.mxu0 %v299
    %v381 = vpop.f32.mrf.mxu0
    %v382 = vadd.f32 %v362, %v381
    %383 = vdwg.mxu0
    %384 = vmatpush.msra.mxu0 %v89
    %385 = vmatpush.msra.mxu0 %v85
    %386 = vmatpush.msra.mxu0 %v81
    %387 = vmatpush.msra.mxu0 %v77
    %388 = vmatpush.msra.mxu0 %v73
    %389 = vmatpush.msra.mxu0 %v69
    %390 = vmatpush.msra.mxu0 %v65
    %391 = vmatpush.msra.mxu0 %v61
    %392 = vmatpush.msra.mxu0 %v57
    %393 = vmatpush.msra.mxu0 %v53
    %394 = vmatpush.msra.mxu0 %v49
    %395 = vmatpush.msra.mxu0 %v45
    %396 = vmatpush.msra.mxu0 %v41
    %397 = vmatpush.msra.mxu0 %v37
    %398 = vmatpush.msra.mxu0 %v33
    %399 = vmatpush.msra.mxu0 %v29
    %400 = vmatmul.f32.gmra.mxu0 %v296
    %v401 = vpop.f32.mrf.mxu0
    %v402 = vadd.f32 %v287, %v401
    %403 = vdwg.mxu0
    %404 = vmatpush.msra.mxu0 %v153
    %405 = vmatpush.msra.mxu0 %v149
    %406 = vmatpush.msra.mxu0 %v145
    %407 = vmatpush.msra.mxu0 %v141
    %408 = vmatpush.msra.mxu0 %v137
    %409 = vmatpush.msra.mxu0 %v133
    %410 = vmatpush.msra.mxu0 %v129
    %411 = vmatpush.msra.mxu0 %v125
    %412 = vmatpush.msra.mxu0 %v121
    %413 = vmatpush.msra.mxu0 %v117
    %414 = vmatpush.msra.mxu0 %v113
    %415 = vmatpush.msra.mxu0 %v109
    %416 = vmatpush.msra.mxu0 %v105
    %417 = vmatpush.msra.mxu0 %v101
    %418 = vmatpush.msra.mxu0 %v97
    %419 = vmatpush.msra.mxu0 %v93
    %420 = vmatmul.f32.gmra.mxu0 %v297
    %v421 = vpop.f32.mrf.mxu0
    %v422 = vadd.f32 %v402, %v421
    %423 = vdwg.mxu0
    %424 = vmatpush.msra.mxu0 %v217
    %425 = vmatpush.msra.mxu0 %v213
    %426 = vmatpush.msra.mxu0 %v209
    %427 = vmatpush.msra.mxu0 %v205
    %428 = vmatpush.msra.mxu0 %v201
    %429 = vmatpush.msra.mxu0 %v197
    %430 = vmatpush.msra.mxu0 %v193
    %431 = vmatpush.msra.mxu0 %v189
    %432 = vmatpush.msra.mxu0 %v185
    %433 = vmatpush.msra.mxu0 %v181
    %434 = vmatpush.msra.mxu0 %v177
    %435 = vmatpush.msra.mxu0 %v173
    %436 = vmatpush.msra.mxu0 %v169
    %437 = vmatpush.msra.mxu0 %v165
    %438 = vmatpush.msra.mxu0 %v161
    %439 = vmatpush.msra.mxu0 %v157
    %440 = vmatmul.f32.gmra.mxu0 %v298
    %v441 = vpop.f32.mrf.mxu0
    %v442 = vadd.f32 %v422, %v441
    %443 = vdwg.mxu0
    %444 = vmatpush.msra.mxu0 %v281
    %445 = vmatpush.msra.mxu0 %v277
    %446 = vmatpush.msra.mxu0 %v273
    %447 = vmatpush.msra.mxu0 %v269
    %448 = vmatpush.msra.mxu0 %v265
    %449 = vmatpush.msra.mxu0 %v261
    %450 = vmatpush.msra.mxu0 %v257
    %451 = vmatpush.msra.mxu0 %v253
    %452 = vmatpush.msra.mxu0 %v249
    %453 = vmatpush.msra.mxu0 %v245
    %454 = vmatpush.msra.mxu0 %v241
    %455 = vmatpush.msra.mxu0 %v237
    %456 = vmatpush.msra.mxu0 %v233
    %457 = vmatpush.msra.mxu0 %v229
    %458 = vmatpush.msra.mxu0 %v225
    %459 = vmatpush.msra.mxu0 %v221
    %460 = vmatmul.f32.gmra.mxu0 %v299
    %v461 = vpop.f32.mrf.mxu0
    %v462 = vadd.f32 %v442, %v461
    %463 = vdwg.mxu0
    %464 = vmatpush.msra.mxu0 %v90
    %465 = vmatpush.msra.mxu0 %v86
    %466 = vmatpush.msra.mxu0 %v82
    %467 = vmatpush.msra.mxu0 %v78
    %468 = vmatpush.msra.mxu0 %v74
    %469 = vmatpush.msra.mxu0 %v70
    %470 = vmatpush.msra.mxu0 %v66
    %471 = vmatpush.msra.mxu0 %v62
    %472 = vmatpush.msra.mxu0 %v58
    %473 = vmatpush.msra.mxu0 %v54
    %474 = vmatpush.msra.mxu0 %v50
    %475 = vmatpush.msra.mxu0 %v46
    %476 = vmatpush.msra.mxu0 %v42
    %477 = vmatpush.msra.mxu0 %v38
    %478 = vmatpush.msra.mxu0 %v34
    %479 = vmatpush.msra.mxu0 %v30
    %480 = vmatmul.f32.gmra.mxu0 %v296
    %v481 = vpop.f32.mrf.mxu0
    %v482 = vadd.f32 %v288, %v481
    %483 = vdwg.mxu0
    %484 = vmatpush.msra.mxu0 %v154
    %485 = vmatpush.msra.mxu0 %v150
    %486 = vmatpush.msra.mxu0 %v146
    %487 = vmatpush.msra.mxu0 %v142
    %488 = vmatpush.msra.mxu0 %v138
    %489 = vmatpush.msra.mxu0 %v134
    %490 = vmatpush.msra.mxu0 %v130
    %491 = vmatpush.msra.mxu0 %v126
    %492 = vmatpush.msra.mxu0 %v122
    %493 = vmatpush.msra.mxu0 %v118
    %494 = vmatpush.msra.mxu0 %v114
    %495 = vmatpush.msra.mxu0 %v110
    %496 = vmatpush.msra.mxu0 %v106
    %497 = vmatpush.msra.mxu0 %v102
    %498 = vmatpush.msra.mxu0 %v98
    %499 = vmatpush.msra.mxu0 %v94
    %500 = vmatmul.f32.gmra.mxu0 %v297
    %v501 = vpop.f32.mrf.mxu0
    %v502 = vadd.f32 %v482, %v501
    %503 = vdwg.mxu0
    %504 = vmatpush.msra.mxu0 %v218
    %505 = vmatpush.msra.mxu0 %v214
    %506 = vmatpush.msra.mxu0 %v210
    %507 = vmatpush.msra.mxu0 %v206
    %508 = vmatpush.msra.mxu0 %v202
    %509 = vmatpush.msra.mxu0 %v198
    %510 = vmatpush.msra.mxu0 %v194
    %511 = vmatpush.msra.mxu0 %v190
    %512 = vmatpush.msra.mxu0 %v186
    %513 = vmatpush.msra.mxu0 %v182
    %514 = vmatpush.msra.mxu0 %v178
    %515 = vmatpush.msra.mxu0 %v174
    %516 = vmatpush.msra.mxu0 %v170
    %517 = vmatpush.msra.mxu0 %v166
    %518 = vmatpush.msra.mxu0 %v162
    %519 = vmatpush.msra.mxu0 %v158
    %520 = vmatmul.f32.gmra.mxu0 %v298
    %v521 = vpop.f32.mrf.mxu0
    %v522 = vadd.f32 %v502, %v521
    %523 = vdwg.mxu0
    %524 = vmatpush.msra.mxu0 %v282
    %525 = vmatpush.msra.mxu0 %v278
    %526 = vmatpush.msra.mxu0 %v274
    %527 = vmatpush.msra.mxu0 %v270
    %528 = vmatpush.msra.mxu0 %v266
    %529 = vmatpush.msra.mxu0 %v262
    %530 = vmatpush.msra.mxu0 %v258
    %531 = vmatpush.msra.mxu0 %v254
    %532 = vmatpush.msra.mxu0 %v250
    %533 = vmatpush.msra.mxu0 %v246
    %534 = vmatpush.msra.mxu0 %v242
    %535 = vmatpush.msra.mxu0 %v238
    %536 = vmatpush.msra.mxu0 %v234
    %537 = vmatpush.msra.mxu0 %v230
    %538 = vmatpush.msra.mxu0 %v226
    %539 = vmatpush.msra.mxu0 %v222
    %540 = vmatmul.f32.gmra.mxu0 %v299
    %v541 = vpop.f32.mrf.mxu0
    %v542 = vadd.f32 %v522, %v541
    %543 = vdwg.mxu0
    %544 = vmatpush.msra.mxu0 %v91
    %545 = vmatpush.msra.mxu0 %v87
    %546 = vmatpush.msra.mxu0 %v83
    %547 = vmatpush.msra.mxu0 %v79
    %548 = vmatpush.msra.mxu0 %v75
    %549 = vmatpush.msra.mxu0 %v71
    %550 = vmatpush.msra.mxu0 %v67
    %551 = vmatpush.msra.mxu0 %v63
    %552 = vmatpush.msra.mxu0 %v59
    %553 = vmatpush.msra.mxu0 %v55
    %554 = vmatpush.msra.mxu0 %v51
    %555 = vmatpush.msra.mxu0 %v47
    %556 = vmatpush.msra.mxu0 %v43
    %557 = vmatpush.msra.mxu0 %v39
    %558 = vmatpush.msra.mxu0 %v35
    %559 = vmatpush.msra.mxu0 %v31
    %560 = vmatmul.f32.gmra.mxu0 %v296
    %v561 = vpop.f32.mrf.mxu0
    %v562 = vadd.f32 %v289, %v561
    %563 = vdwg.mxu0
    %564 = vmatpush.msra.mxu0 %v155
    %565 = vmatpush.msra.mxu0 %v151
    %566 = vmatpush.msra.mxu0 %v147
    %567 = vmatpush.msra.mxu0 %v143
    %568 = vmatpush.msra.mxu0 %v139
    %569 = vmatpush.msra.mxu0 %v135
    %570 = vmatpush.msra.mxu0 %v131
    %571 = vmatpush.msra.mxu0 %v127
    %572 = vmatpush.msra.mxu0 %v123
    %573 = vmatpush.msra.mxu0 %v119
    %574 = vmatpush.msra.mxu0 %v115
    %575 = vmatpush.msra.mxu0 %v111
    %576 = vmatpush.msra.mxu0 %v107
    %577 = vmatpush.msra.mxu0 %v103
    %578 = vmatpush.msra.mxu0 %v99
    %579 = vmatpush.msra.mxu0 %v95
    %580 = vmatmul.f32.gmra.mxu0 %v297
    %v581 = vpop.f32.mrf.mxu0
    %v582 = vadd.f32 %v562, %v581
    %583 = vdwg.mxu0
    %584 = vmatpush.msra.mxu0 %v219
    %585 = vmatpush.msra.mxu0 %v215
    %586 = vmatpush.msra.mxu0 %v211
    %587 = vmatpush.msra.mxu0 %v207
    %588 = vmatpush.msra.mxu0 %v203
    %589 = vmatpush.msra.mxu0 %v199
    %590 = vmatpush.msra.mxu0 %v195
    %591 = vmatpush.msra.mxu0 %v191
    %592 = vmatpush.msra.mxu0 %v187
    %593 = vmatpush.msra.mxu0 %v183
    %594 = vmatpush.msra.mxu0 %v179
    %595 = vmatpush.msra.mxu0 %v175
    %596 = vmatpush.msra.mxu0 %v171
    %597 = vmatpush.msra.mxu0 %v167
    %598 = vmatpush.msra.mxu0 %v163
    %599 = vmatpush.msra.mxu0 %v159
    %600 = vmatmul.f32.gmra.mxu0 %v298
    %v601 = vpop.f32.mrf.mxu0
    %v602 = vadd.f32 %v582, %v601
    %603 = vdwg.mxu0
    %604 = vmatpush.msra.mxu0 %v283
    %605 = vmatpush.msra.mxu0 %v279
    %606 = vmatpush.msra.mxu0 %v275
    %607 = vmatpush.msra.mxu0 %v271
    %608 = vmatpush.msra.mxu0 %v267
    %609 = vmatpush.msra.mxu0 %v263
    %610 = vmatpush.msra.mxu0 %v259
    %611 = vmatpush.msra.mxu0 %v255
    %612 = vmatpush.msra.mxu0 %v251
    %613 = vmatpush.msra.mxu0 %v247
    %614 = vmatpush.msra.mxu0 %v243
    %615 = vmatpush.msra.mxu0 %v239
    %616 = vmatpush.msra.mxu0 %v235
    %617 = vmatpush.msra.mxu0 %v231
    %618 = vmatpush.msra.mxu0 %v227
    %619 = vmatpush.msra.mxu0 %v223
    %620 = vmatmul.f32.gmra.mxu0 %v299
    %v621 = vpop.f32.mrf.mxu0
    %v622 = vadd.f32 %v602, %v621
    %623 = vdwg.mxu0
    %vm624 = vcmask 1041408
    %v625 = vsel %vm624, %v382, 0.0
    %v626 = vrot.slane %v625, 4
    %v627 = vadd.f32 %v625, %v626
    %v628 = vrot.slane %v627, 2
    %v629 = vadd.f32 %v627, %v628
    %v630 = vrot.slane %v629, 1
    %v631 = vadd.f32 %v629, %v630
    %v632 = vsel %vm624, %v462, 0.0
    %v633 = vrot.slane %v632, 4
    %v634 = vadd.f32 %v632, %v633
    %v635 = vrot.slane %v634, 2
    %v636 = vadd.f32 %v634, %v635
    %v637 = vrot.slane %v636, 1
    %v638 = vadd.f32 %v636, %v637
    %v639 = vsel %vm624, %v542, 0.0
    %v640 = vrot.slane %v639, 4
    %v641 = vadd.f32 %v639, %v640
    %v642 = vrot.slane %v641, 2
    %v643 = vadd.f32 %v641, %v642
    %v644 = vrot.slane %v643, 1
    %v645 = vadd.f32 %v643, %v644
    %v646 = vsel %vm624, %v622, 0.0
    %v647 = vrot.slane %v646, 4
    %v648 = vadd.f32 %v646, %v647
    %v649 = vrot.slane %v648, 2
    %v650 = vadd.f32 %v648, %v649
    %v651 = vrot.slane %v650, 1
    %v652 = vadd.f32 %v650, %v651
    %v653 = vrcp.pop 2.0
    %v654 = vmul.f32 2.0, %v653
    %v655 = vsub.f32 1.0, %v654
    %v656 = vmul.f32 %v653, %v655
    %v657 = vadd.f32 %v653, %v656
    %vm658 = vweird.f32 %v653
    %v659 = vsel %vm658, %v653, %v657
    %v660 = vmul.f32 %v631, %v659
    %v661 = vmul.f32 %v638, %v659
    %v662 = vmul.f32 %v645, %v659
    %v663 = vmul.f32 %v652, %v659
    %v664 = vsub.f32 %v382, %v660
    %v665 = vsub.f32 %v462, %v661
    %v666 = vsub.f32 %v542, %v662
    %v667 = vsub.f32 %v622, %v663
    %v668 = vmul.f32 %v664, %v664
    %v669 = vmul.f32 %v665, %v665
    %v670 = vmul.f32 %v666, %v666
    %v671 = vmul.f32 %v667, %v667
    %v672 = vsel %vm624, %v668, 0.0
    %v673 = vrot.slane %v672, 4
    %v674 = vadd.f32 %v672, %v673
    %v675 = vrot.slane %v674, 2
    %v676 = vadd.f32 %v674, %v675
    %v677 = vrot.slane %v676, 1
    %v678 = vadd.f32 %v676, %v677
    %v679 = vsel %vm624, %v669, 0.0
    %v680 = vrot.slane %v679, 4
    %v681 = vadd.f32 %v679, %v680
    %v682 = vrot.slane %v681, 2
    %v683 = vadd.f32 %v681, %v682
    %v684 = vrot.slane %v683, 1
    %v685 = vadd.f32 %v683, %v684
    %v686 = vsel %vm624, %v670, 0.0
    %v687 = vrot.slane %v686, 4
    %v688 = vadd.f32 %v686, %v687
    %v689 = vrot.slane %v688, 2
    %v690 = vadd.f32 %v688, %v689
    %v691 = vrot.slane %v690, 1
    %v692 = vadd.f32 %v690, %v691
    %v693 = vsel %vm624, %v671, 0.0
    %v694 = vrot.slane %v693, 4
    %v695 = vadd.f32 %v693, %v694
    %v696 = vrot.slane %v695, 2
    %v697 = vadd.f32 %v695, %v696
    %v698 = vrot.slane %v697, 1
    %v699 = vadd.f32 %v697, %v698
    %v700 = vmul.f32 %v678, %v659
    %v701 = vmul.f32 %v685, %v659
    %v702 = vmul.f32 %v692, %v659
    %v703 = vmul.f32 %v699, %v659
    %v704 = vadd.f32 %v700, 1e-05
    %v705 = vadd.f32 %v701, 1e-05
    %v706 = vadd.f32 %v702, 1e-05
    %v707 = vadd.f32 %v703, 1e-05
    %v708 = vrsqrt.pop %v704
    %v709 = vmul.f32 %v708, %v704
    %v710 = vmul.f32 %v709, %v708
    %v711 = vmul.f32 0.5, %v710
    %v712 = vsub.f32 1.5, %v711
    %v713 = vmul.f32 %v708, %v712
    %vm714 = vweird.f32 %v704
    %vm715 = vweird.f32 %v708
    %vm716 = vmor %vm714, %vm715
    %v717 = vsel %vm716, %v708, %v713
    %v718 = vrsqrt.pop %v705
    %v719 = vmul.f32 %v718, %v705
    %v720 = vmul.f32 %v719, %v718
    %v721 = vmul.f32 0.5, %v720
    %v722 = vsub.f32 1.5, %v721
    %v723 = vmul.f32 %v718, %v722
    %vm724 = vweird.f32 %v705
    %vm725 = vweird.f32 %v718
    %vm726 = vmor %vm724, %vm725
    %v727 = vsel %vm726, %v718, %v723
    %v728 = vrsqrt.pop %v706
    %v729 = vmul.f32 %v728, %v706
    %v730 = vmul.f32 %v729, %v728
    %v731 = vmul.f32 0.5, %v730
    %v732 = vsub.f32 1.5, %v731
    %v733 = vmul.f32 %v728, %v732
    %vm734 = vweird.f32 %v706
    %vm735 = vweird.f32 %v728
    %vm736 = vmor %vm734, %vm735
    %v737 = vsel %vm736, %v728, %v733
    %v738 = vrsqrt.pop %v707
    %v739 = vmul.f32 %v738, %v707
    %v740 = vmul.f32 %v739, %v738
    %v741 = vmul.f32 0.5, %v740
    %v742 = vsub.f32 1.5, %v741
    %v743 = vmul.f32 %v738, %v742
    %vm744 = vweird.f32 %v707
    %vm745 = vweird.f32 %v738
    %vm746 = vmor %vm744, %vm745
    %v747 = vsel %vm746, %v738, %v743
    %v748 = vmul.f32 %v664, %v717
    %v749 = vmul.f32 %v665, %v727
    %v750 = vmul.f32 %v666, %v737
    %v751 = vmul.f32 %v667, %v747
    %v752 = vld [vmem:[%s3] sm:$0xf]
    %v754 = vperm.slane %v752, 0
    %v755 = vperm.slane %v752, 1
    %v756 = vperm.slane %v752, 2
    %v757 = vperm.slane %v752, 3
    %v762 = vmul.f32 %v748, %v754
    %v763 = vmul.f32 %v749, %v755
    %v764 = vmul.f32 %v750, %v756
    %v765 = vmul.f32 %v751, %v757
    %v766 = vld [vmem:[%s4] sm:$0xf]
    %v768 = vperm.slane %v766, 0
    %v769 = vperm.slane %v766, 1
    %v770 = vperm.slane %v766, 2
    %v771 = vperm.slane %v766, 3
    %v776 = vadd.f32 %v762, %v768
    %v777 = vadd.f32 %v763, %v769
    %v778 = vadd.f32 %v764, %v770
    %v779 = vadd.f32 %v765, %v771
    %v780 = vmax.f32 %v776, 0.0
    %v781 = vmax.f32 %v777, 0.0
    %v782 = vmax.f32 %v778, 0.0
    %v783 = vmax.f32 %v779, 0.0
    %v784 = vld [vmem:[%s5] sm:$0xff]
    %v785 = vld [vmem:[%s5 + $0x8] sm:$0xff]
    %v786 = vld [vmem:[%s5 + $0x10] sm:$0xff]
    %v787 = vld [vmem:[%s5 + $0x18] sm:$0xff]
    %v788 = vld [vmem:[%s5 + $0x20] sm:$0xff]
    %v789 = vld [vmem:[%s5 + $0x28] sm:$0xff]
    %v790 = vld [vmem:[%s5 + $0x30] sm:$0xff]
    %v791 = vld [vmem:[%s5 + $0x38] sm:$0xff]
    %v792 = vld [vmem:[%s5 + $0x40] sm:$0xff]
    %v793 = vld [vmem:[%s5 + $0x48] sm:$0xff]
    %v794 = vld [vmem:[%s5 + $0x50] sm:$0xff]
    %v795 = vld [vmem:[%s5 + $0x58] sm:$0xff]
    %v796 = vld [vmem:[%s5 + $0x60] sm:$0xff]
    %v797 = vld [vmem:[%s5 + $0x68] sm:$0xff]
    %v798 = vld [vmem:[%s5 + $0x70] sm:$0xff]
    %v799 = vld [vmem:[%s5 + $0x78] sm:$0xff]
    %v800 = vld [vmem:[%s5 + $0x80] sm:$0xff]
    %v801 = vld [vmem:[%s5 + $0x88] sm:$0xff]
    %v802 = vld [vmem:[%s5 + $0x90] sm:$0xff]
    %v803 = vld [vmem:[%s5 + $0x98] sm:$0xff]
    %v804 = vld [vmem:[%s5 + $0xa0] sm:$0xff]
    %v805 = vld [vmem:[%s5 + $0xa8] sm:$0xff]
    %v806 = vld [vmem:[%s5 + $0xb0] sm:$0xff]
    %v807 = vld [vmem:[%s5 + $0xb8] sm:$0xff]
    %v808 = vld [vmem:[%s5 + $0xc0] sm:$0xff]
    %v809 = vld [vmem:[%s5 + $0xc8] sm:$0xff]
    %v810 = vld [vmem:[%s5 + $0xd0] sm:$0xff]
    %v811 = vld [vmem:[%s5 + $0xd8] sm:$0xff]
    %v812 = vld [vmem:[%s5 + $0xe0] sm:$0xff]
    %v813 = vld [vmem:[%s5 + $0xe8] sm:$0xff]
    %v814 = vld [vmem:[%s5 + $0xf0] sm:$0xff]
    %v815 = vld [vmem:[%s5 + $0xf8] sm:$0xff]
    %v816 = vld [vmem:[%s5 + $0x100] sm:$0xff]
    %v817 = vld [vmem:[%s5 + $0x108] sm:$0xff]
    %v818 = vld [vmem:[%s5 + $0x110] sm:$0xff]
    %v819 = vld [vmem:[%s5 + $0x118] sm:$0xff]
    %v820 = vld [vmem:[%s5 + $0x120] sm:$0xff]
    %v821 = vld [vmem:[%s5 + $0x128] sm:$0xff]
    %v822 = vld [vmem:[%s5 + $0x130] sm:$0xff]
    %v823 = vld [vmem:[%s5 + $0x138] sm:$0xff]
    %v824 = vld [vmem:[%s5 + $0x140] sm:$0xff]
    %v825 = vld [vmem:[%s5 + $0x148] sm:$0xff]
    %v826 = vld [vmem:[%s5 + $0x150] sm:$0xff]
    %v827 = vld [vmem:[%s5 + $0x158] sm:$0xff]
    %v828 = vld [vmem:[%s5 + $0x160] sm:$0xff]
    %v829 = vld [vmem:[%s5 + $0x168] sm:$0xff]
    %v830 = vld [vmem:[%s5 + $0x170] sm:$0xff]
    %v831 = vld [vmem:[%s5 + $0x178] sm:$0xff]
    %v832 = vld [vmem:[%s5 + $0x180] sm:$0xff]
    %v833 = vld [vmem:[%s5 + $0x188] sm:$0xff]
    %v834 = vld [vmem:[%s5 + $0x190] sm:$0xff]
    %v835 = vld [vmem:[%s5 + $0x198] sm:$0xff]
    %v836 = vld [vmem:[%s5 + $0x1a0] sm:$0xff]
    %v837 = vld [vmem:[%s5 + $0x1a8] sm:$0xff]
    %v838 = vld [vmem:[%s5 + $0x1b0] sm:$0xff]
    %v839 = vld [vmem:[%s5 + $0x1b8] sm:$0xff]
    %v840 = vld [vmem:[%s5 + $0x1c0] sm:$0xff]
    %v841 = vld [vmem:[%s5 + $0x1c8] sm:$0xff]
    %v842 = vld [vmem:[%s5 + $0x1d0] sm:$0xff]
    %v843 = vld [vmem:[%s5 + $0x1d8] sm:$0xff]
    %v844 = vld [vmem:[%s5 + $0x1e0] sm:$0xff]
    %v845 = vld [vmem:[%s5 + $0x1e8] sm:$0xff]
    %v846 = vld [vmem:[%s5 + $0x1f0] sm:$0xff]
    %v847 = vld [vmem:[%s5 + $0x1f8] sm:$0xff]
    %v848 = vld [vmem:[%s6] sm:$0x1]
    %v850 = vperm.slane %v848, 0
    %852 = vmatpush.msra.mxu0 %v799
    %853 = vmatpush.msra.mxu0 %v798
    %854 = vmatpush.msra.mxu0 %v797
    %855 = vmatpush.msra.mxu0 %v796
    %856 = vmatpush.msra.mxu0 %v795
    %857 = vmatpush.msra.mxu0 %v794
    %858 = vmatpush.msra.mxu0 %v793
    %859 = vmatpush.msra.mxu0 %v792
    %860 = vmatpush.msra.mxu0 %v791
    %861 = vmatpush.msra.mxu0 %v790
    %862 = vmatpush.msra.mxu0 %v789
    %863 = vmatpush.msra.mxu0 %v788
    %864 = vmatpush.msra.mxu0 %v787
    %865 = vmatpush.msra.mxu0 %v786
    %866 = vmatpush.msra.mxu0 %v785
    %867 = vmatpush.msra.mxu0 %v784
    %868 = vmatmul.f32.gmra.mxu0 %v780
    %v869 = vpop.f32.mrf.mxu0
    %v870 = vadd.f32 %v850, %v869
    %871 = vdwg.mxu0
    %872 = vmatpush.msra.mxu0 %v815
    %873 = vmatpush.msra.mxu0 %v814
    %874 = vmatpush.msra.mxu0 %v813
    %875 = vmatpush.msra.mxu0 %v812
    %876 = vmatpush.msra.mxu0 %v811
    %877 = vmatpush.msra.mxu0 %v810
    %878 = vmatpush.msra.mxu0 %v809
    %879 = vmatpush.msra.mxu0 %v808
    %880 = vmatpush.msra.mxu0 %v807
    %881 = vmatpush.msra.mxu0 %v806
    %882 = vmatpush.msra.mxu0 %v805
    %883 = vmatpush.msra.mxu0 %v804
    %884 = vmatpush.msra.mxu0 %v803
    %885 = vmatpush.msra.mxu0 %v802
    %886 = vmatpush.msra.mxu0 %v801
    %887 = vmatpush.msra.mxu0 %v800
    %888 = vmatmul.f32.gmra.mxu0 %v781
    %v889 = vpop.f32.mrf.mxu0
    %v890 = vadd.f32 %v870, %v889
    %891 = vdwg.mxu0
    %892 = vmatpush.msra.mxu0 %v831
    %893 = vmatpush.msra.mxu0 %v830
    %894 = vmatpush.msra.mxu0 %v829
    %895 = vmatpush.msra.mxu0 %v828
    %896 = vmatpush.msra.mxu0 %v827
    %897 = vmatpush.msra.mxu0 %v826
    %898 = vmatpush.msra.mxu0 %v825
    %899 = vmatpush.msra.mxu0 %v824
    %900 = vmatpush.msra.mxu0 %v823
    %901 = vmatpush.msra.mxu0 %v822
    %902 = vmatpush.msra.mxu0 %v821
    %903 = vmatpush.msra.mxu0 %v820
    %904 = vmatpush.msra.mxu0 %v819
    %905 = vmatpush.msra.mxu0 %v818
    %906 = vmatpush.msra.mxu0 %v817
    %907 = vmatpush.msra.mxu0 %v816
    %908 = vmatmul.f32.gmra.mxu0 %v782
    %v909 = vpop.f32.mrf.mxu0
    %v910 = vadd.f32 %v890, %v909
    %911 = vdwg.mxu0
    %912 = vmatpush.msra.mxu0 %v847
    %913 = vmatpush.msra.mxu0 %v846
    %914 = vmatpush.msra.mxu0 %v845
    %915 = vmatpush.msra.mxu0 %v844
    %916 = vmatpush.msra.mxu0 %v843
    %917 = vmatpush.msra.mxu0 %v842
    %918 = vmatpush.msra.mxu0 %v841
    %919 = vmatpush.msra.mxu0 %v840
    %920 = vmatpush.msra.mxu0 %v839
    %921 = vmatpush.msra.mxu0 %v838
    %922 = vmatpush.msra.mxu0 %v837
    %923 = vmatpush.msra.mxu0 %v836
    %924 = vmatpush.msra.mxu0 %v835
    %925 = vmatpush.msra.mxu0 %v834
    %926 = vmatpush.msra.mxu0 %v833
    %927 = vmatpush.msra.mxu0 %v832
    %928 = vmatmul.f32.gmra.mxu0 %v783
    %v929 = vpop.f32.mrf.mxu0
    %v930 = vadd.f32 %v910, %v929
    %931 = vdwg.mxu0
    %vm932 = vcmask 74752
    %v933 = vsel %vm932, %v930, -inf
    %934 = vmax.xlane.f32.xlu0 %v933
    %v935 = vpop.xlane.xlu0 %934
    %v936 = vsub.f32 %v930, %v935
    %v937 = vmul.f32 %v936, 1.442695
    %v938 = vpow.pop %v937
    %v939 = vsel %vm932, %v938, 0.0
    %940 = vadd.xlane.f32.xlu0 %v939
    %v941 = vpop.xlane.xlu0 %940
    %v942 = vrcp.pop %v941
    %v943 = vmul.f32 %v941, %v942
    %v944 = vsub.f32 1.0, %v943
    %v945 = vmul.f32 %v942, %v944
    %v946 = vadd.f32 %v942, %v945
    %vm947 = vweird.f32 %v941
    %vm948 = vweird.f32 %v942
    %vm949 = vmor %vm947, %vm948
    %v950 = vsel %vm949, %v942, %v946
    %v951 = vand.u32 2147483647, %v941
    %vm952 = vcmp.eq.f32.partialorder %v951, 8.507059e+37
    %v953 = vand.u32 %v941, 2147483648
    %v954 = vor.u32 1.1754944e-38, %v953
    %v955 = vsel %vm952, %v954, %v950
    %v956 = vmul.f32 %v938, %v955
    %957 = vst.msk [vmem:[#allocation2] sm:$0x3] %vm932, %v956
    // Predicated region
    $region30: #{dann2_forward.5} parent=1 // pred_check
      _
    $region31: #{dann2_forward.5} parent=1 // pred_check_branch
      %959 = sbr.rel (0) target = $region33
    $region32: #{dann2_forward.5} parent=1 // pred_region
      %961 = vsyncadd [#allocation3], 0
      %s963 = sshll.u32 [#allocation2], 4
      %s964 = int_to_ptr.vmem [resolvable:$true] %s963
      %s965 = sshll.u32 %s7, 4
      %s966 = int_to_ptr.hbm [resolvable:$true] %s965
      %968 = dma.vmem_to_hbm [thread:$0]  %s964, 32, %s966, [#allocation3]
    $region33: #{dann2_forward.5} parent=1 // pred_fallthru
      _
    // Predicated region
    $region34: #{dann2_forward.5} parent=1 // pred_check
      _
    $region35: #{dann2_forward.5} parent=1 // pred_check_branch
      %970 = sbr.rel (0) target = $region37
    $region36: #{dann2_forward.5} parent=1 // pred_region
      %972 = dma.done [#allocation3], 32
    $region37: #{dann2_forward.5} parent=1 // pred_fallthru
      _
    %973 = vsyncpa [#allocation3], 1

// kernel: dann2_forward.4
$region0: #{dann2_forward.4}
  #allocation0 [shape = 'u32[]', space=smem, size = 0x4, offset = 0x4, fixed_abs, tag = 'smem constant byte address 0x4 - core index']
  #allocation1 [shape = 'u32[72,128]{1,0:T(1,128)}', space=vmem, size = 0x9000, scoped, tag = 'internal scratch']
  %s0 = inlined_call_operand.vmem [shape: bf16[2,1024], index: 0, kind: input, shape index: {}]
  %s1 = inlined_call_operand.hbm [shape: bf16[1,1,1024,512], index: 1, kind: input, shape index: {}]
  %s2 = inlined_call_operand.hbm [shape: f32[1,512], index: 2, kind: input, shape index: {}]
  %s3 = inlined_call_operand.hbm [shape: f32[1,512], index: 3, kind: input, shape index: {}]
  %s4 = inlined_call_operand.hbm [shape: f32[1,512], index: 4, kind: input, shape index: {}]
  %s5 = inlined_call_operand.vmem [shape: f32[2,512], index: 5, kind: output, shape index: {}]
  %s6 = sld [smem:[#allocation0]]
  $region54: #{dann2_forward.4} parent=0
    _
  %s8 = ssub.s32 1, %s6
  %s9 = scalar_select 0, %s8, %s6
  $region1: #{dann2_forward.4} parent=0
    #allocation2 [shape = 'u8[1048576]{0}', space=vmem, size = 0x100000, scoped, tag = 'input window, operand 1, single buffered']
    #allocation3 [shape = 's32[1]{0}', space=sflag, size = 0x4, scoped, tag = 'scoped memory for dann2_forward.4']
    #allocation4 [shape = 'u8[2048]{0}', space=vmem, size = 0x800, scoped, tag = 'input window, operand 2, single buffered']
    #allocation5 [shape = 's32[1]{0}', space=sflag, size = 0x4, scoped, tag = 'scoped memory for dann2_forward.4']
    #allocation6 [shape = 'u8[2048]{0}', space=vmem, size = 0x800, scoped, tag = 'input window, operand 3, single buffered']
    #allocation7 [shape = 'u8[2048]{0}', space=vmem, size = 0x800, scoped, tag = 'input window, operand 4, single buffered']
    #allocation8 [shape = 's32[1]{0}', space=sflag, size = 0x4, scoped, tag = 'scoped memory for dann2_forward.4']
    %10 = vsyncpa [#allocation3], 0
    %11 = vsyncpa [#allocation5], 0
    %12 = vsyncpa [#allocation8], 0
    // Predicated region
    $region2: #{dann2_forward.4} parent=1 // pred_check
      _
    $region3: #{dann2_forward.4} parent=1 // pred_check_branch
      %14 = sbr.rel (0) target = $region5
    $region4: #{dann2_forward.4} parent=1 // pred_region
      _
    $region5: #{dann2_forward.4} parent=1 // pred_fallthru
      _
    // Predicated region
    $region6: #{dann2_forward.4} parent=1 // pred_check
      _
    $region7: #{dann2_forward.4} parent=1 // pred_check_branch
      %16 = sbr.rel (0) target = $region9
    $region8: #{dann2_forward.4} parent=1 // pred_region
      %18 = vsyncadd [#allocation3], 0
      %s19 = sshll.u32 %s1, 4
      %s20 = int_to_ptr.hbm [resolvable:$true] %s19
      %s21 = sshll.u32 [#allocation2], 4
      %s22 = int_to_ptr.vmem [resolvable:$true] %s21
      %27 = dma.hbm_to_vmem [thread:$0]  %s20, 32768, %s22, [#allocation3], 256, 256, 16
    $region9: #{dann2_forward.4} parent=1 // pred_fallthru
      _
    // Predicated region
    $region10: #{dann2_forward.4} parent=1 // pred_check
      _
    $region11: #{dann2_forward.4} parent=1 // pred_check_branch
      %29 = sbr.rel (0) target = $region13
    $region12: #{dann2_forward.4} parent=1 // pred_region
      %31 = vsyncadd [#allocation5], 0
      %s33 = sshll.u32 %s2, 4
      %s34 = int_to_ptr.hbm [resolvable:$true] %s33
      %s35 = sshll.u32 [#allocation4], 4
      %s36 = int_to_ptr.vmem [resolvable:$true] %s35
      %38 = dma.hbm_to_vmem [thread:$0]  %s34, 64, %s36, [#allocation5]
    $region13: #{dann2_forward.4} parent=1 // pred_fallthru
      _
    // Predicated region
    $region14: #{dann2_forward.4} parent=1 // pred_check
      _
    $region15: #{dann2_forward.4} parent=1 // pred_check_branch
      %40 = sbr.rel (0) target = $region17
    $region16: #{dann2_forward.4} parent=1 // pred_region
      %42 = vsyncadd [#allocation5], 0
      %s44 = sshll.u32 %s3, 4
      %s45 = int_to_ptr.hbm [resolvable:$true] %s44
      %s46 = sshll.u32 [#allocation6], 4
      %s47 = int_to_ptr.vmem [resolvable:$true] %s46
      %49 = dma.hbm_to_vmem [thread:$0]  %s45, 64, %s47, [#allocation5]
    $region17: #{dann2_forward.4} parent=1 // pred_fallthru
      _
    // Predicated region
    $region18: #{dann2_forward.4} parent=1 // pred_check
      _
    $region19: #{dann2_forward.4} parent=1 // pred_check_branch
      %51 = sbr.rel (0) target = $region21
    $region20: #{dann2_forward.4} parent=1 // pred_region
      %53 = vsyncadd [#allocation8], 0
      %s55 = sshll.u32 %s4, 4
      %s56 = int_to_ptr.hbm [resolvable:$true] %s55
      %s57 = sshll.u32 [#allocation7], 4
      %s58 = int_to_ptr.vmem [resolvable:$true] %s57
      %60 = dma.hbm_to_vmem [thread:$0]  %s56, 64, %s58, [#allocation8]
    $region21: #{dann2_forward.4} parent=1 // pred_fallthru
      _
    // Predicated region
    $region22: #{dann2_forward.4} parent=1 // pred_check
      _
    $region23: #{dann2_forward.4} parent=1 // pred_check_branch
      %62 = sbr.rel (0) target = $region25
    $region24: #{dann2_forward.4} parent=1 // pred_region
      %64 = dma.done [#allocation3], 32768
    $region25: #{dann2_forward.4} parent=1 // pred_fallthru
      _
    // Predicated region
    $region26: #{dann2_forward.4} parent=1 // pred_check
      _
    $region27: #{dann2_forward.4} parent=1 // pred_check_branch
      %66 = sbr.rel (0) target = $region29
    $region28: #{dann2_forward.4} parent=1 // pred_region
      %68 = dma.done [#allocation5], 64
    $region29: #{dann2_forward.4} parent=1 // pred_fallthru
      _
    // Predicated region
    $region30: #{dann2_forward.4} parent=1 // pred_check
      _
    $region31: #{dann2_forward.4} parent=1 // pred_check_branch
      %70 = sbr.rel (0) target = $region33
    $region32: #{dann2_forward.4} parent=1 // pred_region
      %72 = dma.done [#allocation5], 64
    $region33: #{dann2_forward.4} parent=1 // pred_fallthru
      _
    // Predicated region
    $region34: #{dann2_forward.4} parent=1 // pred_check
      _
    $region35: #{dann2_forward.4} parent=1 // pred_check_branch
      %74 = sbr.rel (0) target = $region37
    $region36: #{dann2_forward.4} parent=1 // pred_region
      %76 = dma.done [#allocation8], 64
    $region37: #{dann2_forward.4} parent=1 // pred_fallthru
      _
    %p77 = scmp.eq.s32.totalorder 0, 0
    // Predicated region
    $region38: #{dann2_forward.4} parent=1 // pred_check
      %p78 = pneg %p77
    $region39: #{dann2_forward.4} parent=1 // pred_check_branch
      %80 = sbr.rel (%p78) target = $region41
    $region40: #{dann2_forward.4} parent=1 // pred_region
      %81 = vst [vmem:[%s5] sm:$0xff] 0.0
    $region41: #{dann2_forward.4} parent=1 // pred_fallthru
      _
    %s82 = smul.u32 0, 1024
    %s83 = sshra.s32 %s82, 7
    %s84 = sand.u32 %s82, 127
    %s85 = scalar_lea.vmem %s0, %s83
    %v86 = vld [vmem:[%s85] sm:$0xff]
    %v87 = vld [vmem:[%s5] sm:$0xff]
    %v88 = vld [vmem:[#allocation2] sm:$0xff]
    %v89 = vld [vmem:[#allocation2 + $0x8] sm:$0xff]
    %v90 = vld [vmem:[#allocation2 + $0x10] sm:$0xff]
    %v91 = vld [vmem:[#allocation2 + $0x18] sm:$0xff]
    %v92 = vld [vmem:[#allocation2 + $0x20] sm:$0xff]
    %v93 = vld [vmem:[#allocation2 + $0x28] sm:$0xff]
    %v94 = vld [vmem:[#allocation2 + $0x30] sm:$0xff]
    %v95 = vld [vmem:[#allocation2 + $0x38] sm:$0xff]
    %v96 = vld [vmem:[#allocation2 + $0x40] sm:$0xff]
    %v97 = vld [vmem:[#allocation2 + $0x48] sm:$0xff]
    %v98 = vld [vmem:[#allocation2 + $0x50] sm:$0xff]
    %v99 = vld [vmem:[#allocation2 + $0x58] sm:$0xff]
    %v100 = vld [vmem:[#allocation2 + $0x60] sm:$0xff]
    %v101 = vld [vmem:[#allocation2 + $0x68] sm:$0xff]
    %v102 = vld [vmem:[#allocation2 + $0x70] sm:$0xff]
    %v103 = vld [vmem:[#allocation2 + $0x78] sm:$0xff]
    %v104 = vld [vmem:[#allocation2 + $0x80] sm:$0xff]
    %v105 = vld [vmem:[#allocation2 + $0x88] sm:$0xff]
    %v106 = vld [vmem:[#allocation2 + $0x90] sm:$0xff]
    %v107 = vld [vmem:[#allocation2 + $0x98] sm:$0xff]
    %v108 = vld [vmem:[#allocation2 + $0xa0] sm:$0xff]
    %v109 = vld [vmem:[#allocation2 + $0xa8] sm:$0xff]
    %v110 = vld [vmem:[#allocation2 + $0xb0] sm:$0xff]
    %v111 = vld [vmem:[#allocation2 + $0xb8] sm:$0xff]
    %v112 = vld [vmem:[#allocation2 + $0xc0] sm:$0xff]
    %v113 = vld [vmem:[#allocation2 + $0xc8] sm:$0xff]
    %v114 = vld [vmem:[#allocation2 + $0xd0] sm:$0xff]
    %v115 = vld [vmem:[#allocation2 + $0xd8] sm:$0xff]
    %v116 = vld [vmem:[#allocation2 + $0xe0] sm:$0xff]
    %v117 = vld [vmem:[#allocation2 + $0xe8] sm:$0xff]
    %v118 = vld [vmem:[#allocation2 + $0xf0] sm:$0xff]
    %v119 = vld [vmem:[#allocation2 + $0xf8] sm:$0xff]
    %v120 = vld [vmem:[#allocation2 + $0x100] sm:$0xff]
    %v121 = vld [vmem:[#allocation2 + $0x108] sm:$0xff]
    %v122 = vld [vmem:[#allocation2 + $0x110] sm:$0xff]
    %v123 = vld [vmem:[#allocation2 + $0x118] sm:$0xff]
    %v124 = vld [vmem:[#allocation2 + $0x120] sm:$0xff]
    %v125 = vld [vmem:[#allocation2 + $0x128] sm:$0xff]
    %v126 = vld [vmem:[#allocation2 + $0x130] sm:$0xff]
    %v127 = vld [vmem:[#allocation2 + $0x138] sm:$0xff]
    %v128 = vld [vmem:[#allocation2 + $0x140] sm:$0xff]
    %v129 = vld [vmem:[#allocation2 + $0x148] sm:$0xff]
    %v130 = vld [vmem:[#allocation2 + $0x150] sm:$0xff]
    %v131 = vld [vmem:[#allocation2 + $0x158] sm:$0xff]
    %v132 = vld [vmem:[#allocation2 + $0x160] sm:$0xff]
    %v133 = vld [vmem:[#allocation2 + $0x168] sm:$0xff]
    %v134 = vld [vmem:[#allocation2 + $0x170] sm:$0xff]
    %v135 = vld [vmem:[#allocation2 + $0x178] sm:$0xff]
    %v136 = vld [vmem:[#allocation2 + $0x180] sm:$0xff]
    %v137 = vld [vmem:[#allocation2 + $0x188] sm:$0xff]
    %v138 = vld [vmem:[#allocation2 + $0x190] sm:$0xff]
    %v139 = vld [vmem:[#allocation2 + $0x198] sm:$0xff]
    %v140 = vld [vmem:[#allocation2 + $0x1a0] sm:$0xff]
    %v141 = vld [vmem:[#allocation2 + $0x1a8] sm:$0xff]
    %v142 = vld [vmem:[#allocation2 + $0x1b0] sm:$0xff]
    %v143 = vld [vmem:[#allocation2 + $0x1b8] sm:$0xff]
    %v144 = vld [vmem:[#allocation2 + $0x1c0] sm:$0xff]
    %v145 = vld [vmem:[#allocation2 + $0x1c8] sm:$0xff]
    %v146 = vld [vmem:[#allocation2 + $0x1d0] sm:$0xff]
    %v147 = vld [vmem:[#allocation2 + $0x1d8] sm:$0xff]
    %v148 = vld [vmem:[#allocation2 + $0x1e0] sm:$0xff]
    %v149 = vld [vmem:[#allocation2 + $0x1e8] sm:$0xff]
    %v150 = vld [vmem:[#allocation2 + $0x1f0] sm:$0xff]
    %v151 = vld [vmem:[#allocation2 + $0x1f8] sm:$0xff]
    %v152 = vld [vmem:[#allocation2 + $0x200] sm:$0xff]
    %v153 = vld [vmem:[#allocation2 + $0x208] sm:$0xff]
    %v154 = vld [vmem:[#allocation2 + $0x210] sm:$0xff]
    %v155 = vld [vmem:[#allocation2 + $0x218] sm:$0xff]
    %v156 = vld [vmem:[#allocation2 + $0x220] sm:$0xff]
    %v157 = vld [vmem:[#allocation2 + $0x228] sm:$0xff]
    %v158 = vld [vmem:[#allocation2 + $0x230] sm:$0xff]
    %v159 = vld [vmem:[#allocation2 + $0x238] sm:$0xff]
    %v160 = vld [vmem:[#allocation2 + $0x240] sm:$0xff]
    %v161 = vld [vmem:[#allocation2 + $0x248] sm:$0xff]
    %v162 = vld [vmem:[#allocation2 + $0x250] sm:$0xff]
    %v163 = vld [vmem:[#allocation2 + $0x258] sm:$0xff]
    %v164 = vld [vmem:[#allocation2 + $0x260] sm:$0xff]
    %v165 = vld [vmem:[#allocation2 + $0x268] sm:$0xff]
    %v166 = vld [vmem:[#allocation2 + $0x270] sm:$0xff]
    %v167 = vld [vmem:[#allocation2 + $0x278] sm:$0xff]
    %v168 = vld [vmem:[#allocation2 + $0x280] sm:$0xff]
    %v169 = vld [vmem:[#allocation2 + $0x288] sm:$0xff]
    %v170 = vld [vmem:[#allocation2 + $0x290] sm:$0xff]
    %v171 = vld [vmem:[#allocation2 + $0x298] sm:$0xff]
    %v172 = vld [vmem:[#allocation2 + $0x2a0] sm:$0xff]
    %v173 = vld [vmem:[#allocation2 + $0x2a8] sm:$0xff]
    %v174 = vld [vmem:[#allocation2 + $0x2b0] sm:$0xff]
    %v175 = vld [vmem:[#allocation2 + $0x2b8] sm:$0xff]
    %v176 = vld [vmem:[#allocation2 + $0x2c0] sm:$0xff]
    %v177 = vld [vmem:[#allocation2 + $0x2c8] sm:$0xff]
    %v178 = vld [vmem:[#allocation2 + $0x2d0] sm:$0xff]
    %v179 = vld [vmem:[#allocation2 + $0x2d8] sm:$0xff]
    %v180 = vld [vmem:[#allocation2 + $0x2e0] sm:$0xff]
    %v181 = vld [vmem:[#allocation2 + $0x2e8] sm:$0xff]
    %v182 = vld [vmem:[#allocation2 + $0x2f0] sm:$0xff]
    %v183 = vld [vmem:[#allocation2 + $0x2f8] sm:$0xff]
    %v184 = vld [vmem:[#allocation2 + $0x300] sm:$0xff]
    %v185 = vld [vmem:[#allocation2 + $0x308] sm:$0xff]
    %v186 = vld [vmem:[#allocation2 + $0x310] sm:$0xff]
    %v187 = vld [vmem:[#allocation2 + $0x318] sm:$0xff]
    %v188 = vld [vmem:[#allocation2 + $0x320] sm:$0xff]
    %v189 = vld [vmem:[#allocation2 + $0x328] sm:$0xff]
    %v190 = vld [vmem:[#allocation2 + $0x330] sm:$0xff]
    %v191 = vld [vmem:[#allocation2 + $0x338] sm:$0xff]
    %v192 = vld [vmem:[#allocation2 + $0x340] sm:$0xff]
    %v193 = vld [vmem:[#allocation2 + $0x348] sm:$0xff]
    %v194 = vld [vmem:[#allocation2 + $0x350] sm:$0xff]
    %v195 = vld [vmem:[#allocation2 + $0x358] sm:$0xff]
    %v196 = vld [vmem:[#allocation2 + $0x360] sm:$0xff]
    %v197 = vld [vmem:[#allocation2 + $0x368] sm:$0xff]
    %v198 = vld [vmem:[#allocation2 + $0x370] sm:$0xff]
    %v199 = vld [vmem:[#allocation2 + $0x378] sm:$0xff]
    %v200 = vld [vmem:[#allocation2 + $0x380] sm:$0xff]
    %v201 = vld [vmem:[#allocation2 + $0x388] sm:$0xff]
    %v202 = vld [vmem:[#allocation2 + $0x390] sm:$0xff]
    %v203 = vld [vmem:[#allocation2 + $0x398] sm:$0xff]
    %v204 = vld [vmem:[#allocation2 + $0x3a0] sm:$0xff]
    %v205 = vld [vmem:[#allocation2 + $0x3a8] sm:$0xff]
    %v206 = vld [vmem:[#allocation2 + $0x3b0] sm:$0xff]
    %v207 = vld [vmem:[#allocation2 + $0x3b8] sm:$0xff]
    %v208 = vld [vmem:[#allocation2 + $0x3c0] sm:$0xff]
    %v209 = vld [vmem:[#allocation2 + $0x3c8] sm:$0xff]
    %v210 = vld [vmem:[#allocation2 + $0x3d0] sm:$0xff]
    %v211 = vld [vmem:[#allocation2 + $0x3d8] sm:$0xff]
    %v212 = vld [vmem:[#allocation2 + $0x3e0] sm:$0xff]
    %v213 = vld [vmem:[#allocation2 + $0x3e8] sm:$0xff]
    %v214 = vld [vmem:[#allocation2 + $0x3f0] sm:$0xff]
    %v215 = vld [vmem:[#allocation2 + $0x3f8] sm:$0xff]
    %v216 = vld [vmem:[#allocation2 + $0x400] sm:$0xff]
    %v217 = vld [vmem:[#allocation2 + $0x408] sm:$0xff]
    %v218 = vld [vmem:[#allocation2 + $0x410] sm:$0xff]
    %v219 = vld [vmem:[#allocation2 + $0x418] sm:$0xff]
    %v220 = vld [vmem:[#allocation2 + $0x420] sm:$0xff]
    %v221 = vld [vmem:[#allocation2 + $0x428] sm:$0xff]
    %v222 = vld [vmem:[#allocation2 + $0x430] sm:$0xff]
    %v223 = vld [vmem:[#allocation2 + $0x438] sm:$0xff]
    %v224 = vld [vmem:[#allocation2 + $0x440] sm:$0xff]
    %v225 = vld [vmem:[#allocation2 + $0x448] sm:$0xff]
    %v226 = vld [vmem:[#allocation2 + $0x450] sm:$0xff]
    %v227 = vld [vmem:[#allocation2 + $0x458] sm:$0xff]
    %v228 = vld [vmem:[#allocation2 + $0x460] sm:$0xff]
    %v229 = vld [vmem:[#allocation2 + $0x468] sm:$0xff]
    %v230 = vld [vmem:[#allocation2 + $0x470] sm:$0xff]
    %v231 = vld [vmem:[#allocation2 + $0x478] sm:$0xff]
    %v232 = vld [vmem:[#allocation2 + $0x480] sm:$0xff]
    %v233 = vld [vmem:[#allocation2 + $0x488] sm:$0xff]
    %v234 = vld [vmem:[#allocation2 + $0x490] sm:$0xff]
    %v235 = vld [vmem:[#allocation2 + $0x498] sm:$0xff]
    %v236 = vld [vmem:[#allocation2 + $0x4a0] sm:$0xff]
    %v237 = vld [vmem:[#allocation2 + $0x4a8] sm:$0xff]
    %v238 = vld [vmem:[#allocation2 + $0x4b0] sm:$0xff]
    %v239 = vld [vmem:[#allocation2 + $0x4b8] sm:$0xff]
    %v240 = vld [vmem:[#allocation2 + $0x4c0] sm:$0xff]
    %v241 = vld [vmem:[#allocation2 + $0x4c8] sm:$0xff]
    %v242 = vld [vmem:[#allocation2 + $0x4d0] sm:$0xff]
    %v243 = vld [vmem:[#allocation2 + $0x4d8] sm:$0xff]
    %v244 = vld [vmem:[#allocation2 + $0x4e0] sm:$0xff]
    %v245 = vld [vmem:[#allocation2 + $0x4e8] sm:$0xff]
    %v246 = vld [vmem:[#allocation2 + $0x4f0] sm:$0xff]
    %v247 = vld [vmem:[#allocation2 + $0x4f8] sm:$0xff]
    %v248 = vld [vmem:[#allocation2 + $0x500] sm:$0xff]
    %v249 = vld [vmem:[#allocation2 + $0x508] sm:$0xff]
    %v250 = vld [vmem:[#allocation2 + $0x510] sm:$0xff]
    %v251 = vld [vmem:[#allocation2 + $0x518] sm:$0xff]
    %v252 = vld [vmem:[#allocation2 + $0x520] sm:$0xff]
    %v253 = vld [vmem:[#allocation2 + $0x528] sm:$0xff]
    %v254 = vld [vmem:[#allocation2 + $0x530] sm:$0xff]
    %v255 = vld [vmem:[#allocation2 + $0x538] sm:$0xff]
    %v256 = vld [vmem:[#allocation2 + $0x540] sm:$0xff]
    %v257 = vld [vmem:[#allocation2 + $0x548] sm:$0xff]
    %v258 = vld [vmem:[#allocation2 + $0x550] sm:$0xff]
    %v259 = vld [vmem:[#allocation2 + $0x558] sm:$0xff]
    %v260 = vld [vmem:[#allocation2 + $0x560] sm:$0xff]
    %v261 = vld [vmem:[#allocation2 + $0x568] sm:$0xff]
    %v262 = vld [vmem:[#allocation2 + $0x570] sm:$0xff]
    %v263 = vld [vmem:[#allocation2 + $0x578] sm:$0xff]
    %v264 = vld [vmem:[#allocation2 + $0x580] sm:$0xff]
    %v265 = vld [vmem:[#allocation2 + $0x588] sm:$0xff]
    %v266 = vld [vmem:[#allocation2 + $0x590] sm:$0xff]
    %v267 = vld [vmem:[#allocation2 + $0x598] sm:$0xff]
    %v268 = vld [vmem:[#allocation2 + $0x5a0] sm:$0xff]
    %v269 = vld [vmem:[#allocation2 + $0x5a8] sm:$0xff]
    %v270 = vld [vmem:[#allocation2 + $0x5b0] sm:$0xff]
    %v271 = vld [vmem:[#allocation2 + $0x5b8] sm:$0xff]
    %v272 = vld [vmem:[#allocation2 + $0x5c0] sm:$0xff]
    %v273 = vld [vmem:[#allocation2 + $0x5c8] sm:$0xff]
    %v274 = vld [vmem:[#allocation2 + $0x5d0] sm:$0xff]
    %v275 = vld [vmem:[#allocation2 + $0x5d8] sm:$0xff]
    %v276 = vld [vmem:[#allocation2 + $0x5e0] sm:$0xff]
    %v277 = vld [vmem:[#allocation2 + $0x5e8] sm:$0xff]
    %v278 = vld [vmem:[#allocation2 + $0x5f0] sm:$0xff]
    %v279 = vld [vmem:[#allocation2 + $0x5f8] sm:$0xff]
    %v280 = vld [vmem:[#allocation2 + $0x600] sm:$0xff]
    %v281 = vld [vmem:[#allocation2 + $0x608] sm:$0xff]
    %v282 = vld [vmem:[#allocation2 + $0x610] sm:$0xff]
    %v283 = vld [vmem:[#allocation2 + $0x618] sm:$0xff]
    %v284 = vld [vmem:[#allocation2 + $0x620] sm:$0xff]
    %v285 = vld [vmem:[#allocation2 + $0x628] sm:$0xff]
    %v286 = vld [vmem:[#allocation2 + $0x630] sm:$0xff]
    %v287 = vld [vmem:[#allocation2 + $0x638] sm:$0xff]
    %v288 = vld [vmem:[#allocation2 + $0x640] sm:$0xff]
    %v289 = vld [vmem:[#allocation2 + $0x648] sm:$0xff]
    %v290 = vld [vmem:[#allocation2 + $0x650] sm:$0xff]
    %v291 = vld [vmem:[#allocation2 + $0x658] sm:$0xff]
    %v292 = vld [vmem:[#allocation2 + $0x660] sm:$0xff]
    %v293 = vld [vmem:[#allocation2 + $0x668] sm:$0xff]
    %v294 = vld [vmem:[#allocation2 + $0x670] sm:$0xff]
    %v295 = vld [vmem:[#allocation2 + $0x678] sm:$0xff]
    %v296 = vld [vmem:[#allocation2 + $0x680] sm:$0xff]
    %v297 = vld [vmem:[#allocation2 + $0x688] sm:$0xff]
    %v298 = vld [vmem:[#allocation2 + $0x690] sm:$0xff]
    %v299 = vld [vmem:[#allocation2 + $0x698] sm:$0xff]
    %v300 = vld [vmem:[#allocation2 + $0x6a0] sm:$0xff]
    %v301 = vld [vmem:[#allocation2 + $0x6a8] sm:$0xff]
    %v302 = vld [vmem:[#allocation2 + $0x6b0] sm:$0xff]
    %v303 = vld [vmem:[#allocation2 + $0x6b8] sm:$0xff]
    %v304 = vld [vmem:[#allocation2 + $0x6c0] sm:$0xff]
    %v305 = vld [vmem:[#allocation2 + $0x6c8] sm:$0xff]
    %v306 = vld [vmem:[#allocation2 + $0x6d0] sm:$0xff]
    %v307 = vld [vmem:[#allocation2 + $0x6d8] sm:$0xff]
    %v308 = vld [vmem:[#allocation2 + $0x6e0] sm:$0xff]
    %v309 = vld [vmem:[#allocation2 + $0x6e8] sm:$0xff]
    %v310 = vld [vmem:[#allocation2 + $0x6f0] sm:$0xff]
    %v311 = vld [vmem:[#allocation2 + $0x6f8] sm:$0xff]
    %v312 = vld [vmem:[#allocation2 + $0x700] sm:$0xff]
    %v313 = vld [vmem:[#allocation2 + $0x708] sm:$0xff]
    %v314 = vld [vmem:[#allocation2 + $0x710] sm:$0xff]
    %v315 = vld [vmem:[#allocation2 + $0x718] sm:$0xff]
    %v316 = vld [vmem:[#allocation2 + $0x720] sm:$0xff]
    %v317 = vld [vmem:[#allocation2 + $0x728] sm:$0xff]
    %v318 = vld [vmem:[#allocation2 + $0x730] sm:$0xff]
    %v319 = vld [vmem:[#allocation2 + $0x738] sm:$0xff]
    %v320 = vld [vmem:[#allocation2 + $0x740] sm:$0xff]
    %v321 = vld [vmem:[#allocation2 + $0x748] sm:$0xff]
    %v322 = vld [vmem:[#allocation2 + $0x750] sm:$0xff]
    %v323 = vld [vmem:[#allocation2 + $0x758] sm:$0xff]
    %v324 = vld [vmem:[#allocation2 + $0x760] sm:$0xff]
    %v325 = vld [vmem:[#allocation2 + $0x768] sm:$0xff]
    %v326 = vld [vmem:[#allocation2 + $0x770] sm:$0xff]
    %v327 = vld [vmem:[#allocation2 + $0x778] sm:$0xff]
    %v328 = vld [vmem:[#allocation2 + $0x780] sm:$0xff]
    %v329 = vld [vmem:[#allocation2 + $0x788] sm:$0xff]
    %v330 = vld [vmem:[#allocation2 + $0x790] sm:$0xff]
    %v331 = vld [vmem:[#allocation2 + $0x798] sm:$0xff]
    %v332 = vld [vmem:[#allocation2 + $0x7a0] sm:$0xff]
    %v333 = vld [vmem:[#allocation2 + $0x7a8] sm:$0xff]
    %v334 = vld [vmem:[#allocation2 + $0x7b0] sm:$0xff]
    %v335 = vld [vmem:[#allocation2 + $0x7b8] sm:$0xff]
    %v336 = vld [vmem:[#allocation2 + $0x7c0] sm:$0xff]
    %v337 = vld [vmem:[#allocation2 + $0x7c8] sm:$0xff]
    %v338 = vld [vmem:[#allocation2 + $0x7d0] sm:$0xff]
    %v339 = vld [vmem:[#allocation2 + $0x7d8] sm:$0xff]
    %v340 = vld [vmem:[#allocation2 + $0x7e0] sm:$0xff]
    %v341 = vld [vmem:[#allocation2 + $0x7e8] sm:$0xff]
    %v342 = vld [vmem:[#allocation2 + $0x7f0] sm:$0xff]
    %v343 = vld [vmem:[#allocation2 + $0x7f8] sm:$0xff]
    %345 = vst [vmem:[#allocation1] ss:$9 sm:$0xff] %v86
    %v346 = vld [vmem:[#allocation1] sm:$0xff]
    %v347 = vld [vmem:[#allocation1 + $0x9] sm:$0xff]
    %v348 = vld [vmem:[#allocation1 + $0x12] sm:$0xff]
    %v349 = vld [vmem:[#allocation1 + $0x1b] sm:$0xff]
    %v350 = vld [vmem:[#allocation1 + $0x24] sm:$0xff]
    %v351 = vld [vmem:[#allocation1 + $0x2d] sm:$0xff]
    %v352 = vld [vmem:[#allocation1 + $0x36] sm:$0xff]
    %v353 = vld [vmem:[#allocation1 + $0x3f] sm:$0xff]
    %v618 = vunpack.c.l.b16 %v88
    %v619 = vunpack.c.h.b16 %v88
    %v620 = vunpack.c.l.b16 %v89
    %v621 = vunpack.c.h.b16 %v89
    %v622 = vunpack.c.l.b16 %v90
    %v623 = vunpack.c.h.b16 %v90
    %v624 = vunpack.c.l.b16 %v91
    %v625 = vunpack.c.h.b16 %v91
    %v626 = vunpack.c.l.b16 %v92
    %v627 = vunpack.c.h.b16 %v92
    %v628 = vunpack.c.l.b16 %v93
    %v629 = vunpack.c.h.b16 %v93
    %v630 = vunpack.c.l.b16 %v94
    %v631 = vunpack.c.h.b16 %v94
    %v632 = vunpack.c.l.b16 %v95
    %v633 = vunpack.c.h.b16 %v95
    %v634 = vunpack.c.l.b16 %v96
    %v635 = vunpack.c.h.b16 %v96
    %v636 = vunpack.c.l.b16 %v97
    %v637 = vunpack.c.h.b16 %v97
    %v638 = vunpack.c.l.b16 %v98
    %v639 = vunpack.c.h.b16 %v98
    %v640 = vunpack.c.l.b16 %v99
    %v641 = vunpack.c.h.b16 %v99
    %v642 = vunpack.c.l.b16 %v100
    %v643 = vunpack.c.h.b16 %v100
    %v644 = vunpack.c.l.b16 %v101
    %v645 = vunpack.c.h.b16 %v101
    %v646 = vunpack.c.l.b16 %v102
    %v647 = vunpack.c.h.b16 %v102
    %v648 = vunpack.c.l.b16 %v103
    %v649 = vunpack.c.h.b16 %v103
    %v650 = vunpack.c.l.b16 %v104
    %v651 = vunpack.c.h.b16 %v104
    %v652 = vunpack.c.l.b16 %v105
    %v653 = vunpack.c.h.b16 %v105
    %v654 = vunpack.c.l.b16 %v106
    %v655 = vunpack.c.h.b16 %v106
    %v656 = vunpack.c.l.b16 %v107
    %v657 = vunpack.c.h.b16 %v107
    %v658 = vunpack.c.l.b16 %v108
    %v659 = vunpack.c.h.b16 %v108
    %v660 = vunpack.c.l.b16 %v109
    %v661 = vunpack.c.h.b16 %v109
    %v662 = vunpack.c.l.b16 %v110
    %v663 = vunpack.c.h.b16 %v110
    %v664 = vunpack.c.l.b16 %v111
    %v665 = vunpack.c.h.b16 %v111
    %v666 = vunpack.c.l.b16 %v112
    %v667 = vunpack.c.h.b16 %v112
    %v668 = vunpack.c.l.b16 %v113
    %v669 = vunpack.c.h.b16 %v113
    %v670 = vunpack.c.l.b16 %v114
    %v671 = vunpack.c.h.b16 %v114
    %v672 = vunpack.c.l.b16 %v115
    %v673 = vunpack.c.h.b16 %v115
    %v674 = vunpack.c.l.b16 %v116
    %v675 = vunpack.c.h.b16 %v116
    %v676 = vunpack.c.l.b16 %v117
    %v677 = vunpack.c.h.b16 %v117
    %v678 = vunpack.c.l.b16 %v118
    %v679 = vunpack.c.h.b16 %v118
    %v680 = vunpack.c.l.b16 %v119
    %v681 = vunpack.c.h.b16 %v119
    %v682 = vunpack.c.l.b16 %v120
    %v683 = vunpack.c.h.b16 %v120
    %v684 = vunpack.c.l.b16 %v121
    %v685 = vunpack.c.h.b16 %v121
    %v686 = vunpack.c.l.b16 %v122
    %v687 = vunpack.c.h.b16 %v122
    %v688 = vunpack.c.l.b16 %v123
    %v689 = vunpack.c.h.b16 %v123
    %v690 = vunpack.c.l.b16 %v124
    %v691 = vunpack.c.h.b16 %v124
    %v692 = vunpack.c.l.b16 %v125
    %v693 = vunpack.c.h.b16 %v125
    %v694 = vunpack.c.l.b16 %v126
    %v695 = vunpack.c.h.b16 %v126
    %v696 = vunpack.c.l.b16 %v127
    %v697 = vunpack.c.h.b16 %v127
    %v698 = vunpack.c.l.b16 %v128
    %v699 = vunpack.c.h.b16 %v128
    %v700 = vunpack.c.l.b16 %v129
    %v701 = vunpack.c.h.b16 %v129
    %v702 = vunpack.c.l.b16 %v130
    %v703 = vunpack.c.h.b16 %v130
    %v704 = vunpack.c.l.b16 %v131
    %v705 = vunpack.c.h.b16 %v131
    %v706 = vunpack.c.l.b16 %v132
    %v707 = vunpack.c.h.b16 %v132
    %v708 = vunpack.c.l.b16 %v133
    %v709 = vunpack.c.h.b16 %v133
    %v710 = vunpack.c.l.b16 %v134
    %v711 = vunpack.c.h.b16 %v134
    %v712 = vunpack.c.l.b16 %v135
    %v713 = vunpack.c.h.b16 %v135
    %v714 = vunpack.c.l.b16 %v136
    %v715 = vunpack.c.h.b16 %v136
    %v716 = vunpack.c.l.b16 %v137
    %v717 = vunpack.c.h.b16 %v137
    %v718 = vunpack.c.l.b16 %v138
    %v719 = vunpack.c.h.b16 %v138
    %v720 = vunpack.c.l.b16 %v139
    %v721 = vunpack.c.h.b16 %v139
    %v722 = vunpack.c.l.b16 %v140
    %v723 = vunpack.c.h.b16 %v140
    %v724 = vunpack.c.l.b16 %v141
    %v725 = vunpack.c.h.b16 %v141
    %v726 = vunpack.c.l.b16 %v142
    %v727 = vunpack.c.h.b16 %v142
    %v728 = vunpack.c.l.b16 %v143
    %v729 = vunpack.c.h.b16 %v143
    %v730 = vunpack.c.l.b16 %v144
    %v731 = vunpack.c.h.b16 %v144
    %v732 = vunpack.c.l.b16 %v145
    %v733 = vunpack.c.h.b16 %v145
    %v734 = vunpack.c.l.b16 %v146
    %v735 = vunpack.c.h.b16 %v146
    %v736 = vunpack.c.l.b16 %v147
    %v737 = vunpack.c.h.b16 %v147
    %v738 = vunpack.c.l.b16 %v148
    %v739 = vunpack.c.h.b16 %v148
    %v740 = vunpack.c.l.b16 %v149
    %v741 = vunpack.c.h.b16 %v149
    %v742 = vunpack.c.l.b16 %v150
    %v743 = vunpack.c.h.b16 %v150
    %v744 = vunpack.c.l.b16 %v151
    %v745 = vunpack.c.h.b16 %v151
    %v746 = vunpack.c.l.b16 %v152
    %v747 = vunpack.c.h.b16 %v152
    %v748 = vunpack.c.l.b16 %v153
    %v749 = vunpack.c.h.b16 %v153
    %v750 = vunpack.c.l.b16 %v154
    %v751 = vunpack.c.h.b16 %v154
    %v752 = vunpack.c.l.b16 %v155
    %v753 = vunpack.c.h.b16 %v155
    %v754 = vunpack.c.l.b16 %v156
    %v755 = vunpack.c.h.b16 %v156
    %v756 = vunpack.c.l.b16 %v157
    %v757 = vunpack.c.h.b16 %v157
    %v758 = vunpack.c.l.b16 %v158
    %v759 = vunpack.c.h.b16 %v158
    %v760 = vunpack.c.l.b16 %v159
    %v761 = vunpack.c.h.b16 %v159
    %v762 = vunpack.c.l.b16 %v160
    %v763 = vunpack.c.h.b16 %v160
    %v764 = vunpack.c.l.b16 %v161
    %v765 = vunpack.c.h.b16 %v161
    %v766 = vunpack.c.l.b16 %v162
    %v767 = vunpack.c.h.b16 %v162
    %v768 = vunpack.c.l.b16 %v163
    %v769 = vunpack.c.h.b16 %v163
    %v770 = vunpack.c.l.b16 %v164
    %v771 = vunpack.c.h.b16 %v164
    %v772 = vunpack.c.l.b16 %v165
    %v773 = vunpack.c.h.b16 %v165
    %v774 = vunpack.c.l.b16 %v166
    %v775 = vunpack.c.h.b16 %v166
    %v776 = vunpack.c.l.b16 %v167
    %v777 = vunpack.c.h.b16 %v167
    %v778 = vunpack.c.l.b16 %v168
    %v779 = vunpack.c.h.b16 %v168
    %v780 = vunpack.c.l.b16 %v169
    %v781 = vunpack.c.h.b16 %v169
    %v782 = vunpack.c.l.b16 %v170
    %v783 = vunpack.c.h.b16 %v170
    %v784 = vunpack.c.l.b16 %v171
    %v785 = vunpack.c.h.b16 %v171
    %v786 = vunpack.c.l.b16 %v172
    %v787 = vunpack.c.h.b16 %v172
    %v788 = vunpack.c.l.b16 %v173
    %v789 = vunpack.c.h.b16 %v173
    %v790 = vunpack.c.l.b16 %v174
    %v791 = vunpack.c.h.b16 %v174
    %v792 = vunpack.c.l.b16 %v175
    %v793 = vunpack.c.h.b16 %v175
    %v794 = vunpack.c.l.b16 %v176
    %v795 = vunpack.c.h.b16 %v176
    %v796 = vunpack.c.l.b16 %v177
    %v797 = vunpack.c.h.b16 %v177
    %v798 = vunpack.c.l.b16 %v178
    %v799 = vunpack.c.h.b16 %v178
    %v800 = vunpack.c.l.b16 %v179
    %v801 = vunpack.c.h.b16 %v179
    %v802 = vunpack.c.l.b16 %v180
    %v803 = vunpack.c.h.b16 %v180
    %v804 = vunpack.c.l.b16 %v181
    %v805 = vunpack.c.h.b16 %v181
    %v806 = vunpack.c.l.b16 %v182
    %v807 = vunpack.c.h.b16 %v182
    %v808 = vunpack.c.l.b16 %v183
    %v809 = vunpack.c.h.b16 %v183
    %v810 = vunpack.c.l.b16 %v184
    %v811 = vunpack.c.h.b16 %v184
    %v812 = vunpack.c.l.b16 %v185
    %v813 = vunpack.c.h.b16 %v185
    %v814 = vunpack.c.l.b16 %v186
    %v815 = vunpack.c.h.b16 %v186
    %v816 = vunpack.c.l.b16 %v187
    %v817 = vunpack.c.h.b16 %v187
    %v818 = vunpack.c.l.b16 %v188
    %v819 = vunpack.c.h.b16 %v188
    %v820 = vunpack.c.l.b16 %v189
    %v821 = vunpack.c.h.b16 %v189
    %v822 = vunpack.c.l.b16 %v190
    %v823 = vunpack.c.h.b16 %v190
    %v824 = vunpack.c.l.b16 %v191
    %v825 = vunpack.c.h.b16 %v191
    %v826 = vunpack.c.l.b16 %v192
    %v827 = vunpack.c.h.b16 %v192
    %v828 = vunpack.c.l.b16 %v193
    %v829 = vunpack.c.h.b16 %v193
    %v830 = vunpack.c.l.b16 %v194
    %v831 = vunpack.c.h.b16 %v194
    %v832 = vunpack.c.l.b16 %v195
    %v833 = vunpack.c.h.b16 %v195
    %v834 = vunpack.c.l.b16 %v196
    %v835 = vunpack.c.h.b16 %v196
    %v836 = vunpack.c.l.b16 %v197
    %v837 = vunpack.c.h.b16 %v197
    %v838 = vunpack.c.l.b16 %v198
    %v839 = vunpack.c.h.b16 %v198
    %v840 = vunpack.c.l.b16 %v199
    %v841 = vunpack.c.h.b16 %v199
    %v842 = vunpack.c.l.b16 %v200
    %v843 = vunpack.c.h.b16 %v200
    %v844 = vunpack.c.l.b16 %v201
    %v845 = vunpack.c.h.b16 %v201
    %v846 = vunpack.c.l.b16 %v202
    %v847 = vunpack.c.h.b16 %v202
    %v848 = vunpack.c.l.b16 %v203
    %v849 = vunpack.c.h.b16 %v203
    %v850 = vunpack.c.l.b16 %v204
    %v851 = vunpack.c.h.b16 %v204
    %v852 = vunpack.c.l.b16 %v205
    %v853 = vunpack.c.h.b16 %v205
    %v854 = vunpack.c.l.b16 %v206
    %v855 = vunpack.c.h.b16 %v206
    %v856 = vunpack.c.l.b16 %v207
    %v857 = vunpack.c.h.b16 %v207
    %v858 = vunpack.c.l.b16 %v208
    %v859 = vunpack.c.h.b16 %v208
    %v860 = vunpack.c.l.b16 %v209
    %v861 = vunpack.c.h.b16 %v209
    %v862 = vunpack.c.l.b16 %v210
    %v863 = vunpack.c.h.b16 %v210
    %v864 = vunpack.c.l.b16 %v211
    %v865 = vunpack.c.h.b16 %v211
    %v866 = vunpack.c.l.b16 %v212
    %v867 = vunpack.c.h.b16 %v212
    %v868 = vunpack.c.l.b16 %v213
    %v869 = vunpack.c.h.b16 %v213
    %v870 = vunpack.c.l.b16 %v214
    %v871 = vunpack.c.h.b16 %v214
    %v872 = vunpack.c.l.b16 %v215
    %v873 = vunpack.c.h.b16 %v215
    %v874 = vunpack.c.l.b16 %v216
    %v875 = vunpack.c.h.b16 %v216
    %v876 = vunpack.c.l.b16 %v217
    %v877 = vunpack.c.h.b16 %v217
    %v878 = vunpack.c.l.b16 %v218
    %v879 = vunpack.c.h.b16 %v218
    %v880 = vunpack.c.l.b16 %v219
    %v881 = vunpack.c.h.b16 %v219
    %v882 = vunpack.c.l.b16 %v220
    %v883 = vunpack.c.h.b16 %v220
    %v884 = vunpack.c.l.b16 %v221
    %v885 = vunpack.c.h.b16 %v221
    %v886 = vunpack.c.l.b16 %v222
    %v887 = vunpack.c.h.b16 %v222
    %v888 = vunpack.c.l.b16 %v223
    %v889 = vunpack.c.h.b16 %v223
    %v890 = vunpack.c.l.b16 %v224
    %v891 = vunpack.c.h.b16 %v224
    %v892 = vunpack.c.l.b16 %v225
    %v893 = vunpack.c.h.b16 %v225
    %v894 = vunpack.c.l.b16 %v226
    %v895 = vunpack.c.h.b16 %v226
    %v896 = vunpack.c.l.b16 %v227
    %v897 = vunpack.c.h.b16 %v227
    %v898 = vunpack.c.l.b16 %v228
    %v899 = vunpack.c.h.b16 %v228
    %v900 = vunpack.c.l.b16 %v229
    %v901 = vunpack.c.h.b16 %v229
    %v902 = vunpack.c.l.b16 %v230
    %v903 = vunpack.c.h.b16 %v230
    %v904 = vunpack.c.l.b16 %v231
    %v905 = vunpack.c.h.b16 %v231
    %v906 = vunpack.c.l.b16 %v232
    %v907 = vunpack.c.h.b16 %v232
    %v908 = vunpack.c.l.b16 %v233
    %v909 = vunpack.c.h.b16 %v233
    %v910 = vunpack.c.l.b16 %v234
    %v911 = vunpack.c.h.b16 %v234
    %v912 = vunpack.c.l.b16 %v235
    %v913 = vunpack.c.h.b16 %v235
    %v914 = vunpack.c.l.b16 %v236
    %v915 = vunpack.c.h.b16 %v236
    %v916 = vunpack.c.l.b16 %v237
    %v917 = vunpack.c.h.b16 %v237
    %v918 = vunpack.c.l.b16 %v238
    %v919 = vunpack.c.h.b16 %v238
    %v920 = vunpack.c.l.b16 %v239
    %v921 = vunpack.c.h.b16 %v239
    %v922 = vunpack.c.l.b16 %v240
    %v923 = vunpack.c.h.b16 %v240
    %v924 = vunpack.c.l.b16 %v241
    %v925 = vunpack.c.h.b16 %v241
    %v926 = vunpack.c.l.b16 %v242
    %v927 = vunpack.c.h.b16 %v242
    %v928 = vunpack.c.l.b16 %v243
    %v929 = vunpack.c.h.b16 %v243
    %v930 = vunpack.c.l.b16 %v244
    %v931 = vunpack.c.h.b16 %v244
    %v932 = vunpack.c.l.b16 %v245
    %v933 = vunpack.c.h.b16 %v245
    %v934 = vunpack.c.l.b16 %v246
    %v935 = vunpack.c.h.b16 %v246
    %v936 = vunpack.c.l.b16 %v247
    %v937 = vunpack.c.h.b16 %v247
    %v938 = vunpack.c.l.b16 %v248
    %v939 = vunpack.c.h.b16 %v248
    %v940 = vunpack.c.l.b16 %v249
    %v941 = vunpack.c.h.b16 %v249
    %v942 = vunpack.c.l.b16 %v250
    %v943 = vunpack.c.h.b16 %v250
    %v944 = vunpack.c.l.b16 %v251
    %v945 = vunpack.c.h.b16 %v251
    %v946 = vunpack.c.l.b16 %v252
    %v947 = vunpack.c.h.b16 %v252
    %v948 = vunpack.c.l.b16 %v253
    %v949 = vunpack.c.h.b16 %v253
    %v950 = vunpack.c.l.b16 %v254
    %v951 = vunpack.c.h.b16 %v254
    %v952 = vunpack.c.l.b16 %v255
    %v953 = vunpack.c.h.b16 %v255
    %v954 = vunpack.c.l.b16 %v256
    %v955 = vunpack.c.h.b16 %v256
    %v956 = vunpack.c.l.b16 %v257
    %v957 = vunpack.c.h.b16 %v257
    %v958 = vunpack.c.l.b16 %v258
    %v959 = vunpack.c.h.b16 %v258
    %v960 = vunpack.c.l.b16 %v259
    %v961 = vunpack.c.h.b16 %v259
    %v962 = vunpack.c.l.b16 %v260
    %v963 = vunpack.c.h.b16 %v260
    %v964 = vunpack.c.l.b16 %v261
    %v965 = vunpack.c.h.b16 %v261
    %v966 = vunpack.c.l.b16 %v262
    %v967 = vunpack.c.h.b16 %v262
    %v968 = vunpack.c.l.b16 %v263
    %v969 = vunpack.c.h.b16 %v263
    %v970 = vunpack.c.l.b16 %v264
    %v971 = vunpack.c.h.b16 %v264
    %v972 = vunpack.c.l.b16 %v265
    %v973 = vunpack.c.h.b16 %v265
    %v974 = vunpack.c.l.b16 %v266
    %v975 = vunpack.c.h.b16 %v266
    %v976 = vunpack.c.l.b16 %v267
    %v977 = vunpack.c.h.b16 %v267
    %v978 = vunpack.c.l.b16 %v268
    %v979 = vunpack.c.h.b16 %v268
    %v980 = vunpack.c.l.b16 %v269
    %v981 = vunpack.c.h.b16 %v269
    %v982 = vunpack.c.l.b16 %v270
    %v983 = vunpack.c.h.b16 %v270
    %v984 = vunpack.c.l.b16 %v271
    %v985 = vunpack.c.h.b16 %v271
    %v986 = vunpack.c.l.b16 %v272
    %v987 = vunpack.c.h.b16 %v272
    %v988 = vunpack.c.l.b16 %v273
    %v989 = vunpack.c.h.b16 %v273
    %v990 = vunpack.c.l.b16 %v274
    %v991 = vunpack.c.h.b16 %v274
    %v992 = vunpack.c.l.b16 %v275
    %v993 = vunpack.c.h.b16 %v275
    %v994 = vunpack.c.l.b16 %v276
    %v995 = vunpack.c.h.b16 %v276
    %v996 = vunpack.c.l.b16 %v277
    %v997 = vunpack.c.h.b16 %v277
    %v998 = vunpack.c.l.b16 %v278
    %v999 = vunpack.c.h.b16 %v278
    %v1000 = vunpack.c.l.b16 %v279
    %v1001 = vunpack.c.h.b16 %v279
    %v1002 = vunpack.c.l.b16 %v280
    %v1003 = vunpack.c.h.b16 %v280
    %v1004 = vunpack.c.l.b16 %v281
    %v1005 = vunpack.c.h.b16 %v281
    %v1006 = vunpack.c.l.b16 %v282
    %v1007 = vunpack.c.h.b16 %v282
    %v1008 = vunpack.c.l.b16 %v283
    %v1009 = vunpack.c.h.b16 %v283
    %v1010 = vunpack.c.l.b16 %v284
    %v1011 = vunpack.c.h.b16 %v284
    %v1012 = vunpack.c.l.b16 %v285
    %v1013 = vunpack.c.h.b16 %v285
    %v1014 = vunpack.c.l.b16 %v286
    %v1015 = vunpack.c.h.b16 %v286
    %v1016 = vunpack.c.l.b16 %v287
    %v1017 = vunpack.c.h.b16 %v287
    %v1018 = vunpack.c.l.b16 %v288
    %v1019 = vunpack.c.h.b16 %v288
    %v1020 = vunpack.c.l.b16 %v289
    %v1021 = vunpack.c.h.b16 %v289
    %v1022 = vunpack.c.l.b16 %v290
    %v1023 = vunpack.c.h.b16 %v290
    %v1024 = vunpack.c.l.b16 %v291
    %v1025 = vunpack.c.h.b16 %v291
    %v1026 = vunpack.c.l.b16 %v292
    %v1027 = vunpack.c.h.b16 %v292
    %v1028 = vunpack.c.l.b16 %v293
    %v1029 = vunpack.c.h.b16 %v293
    %v1030 = vunpack.c.l.b16 %v294
    %v1031 = vunpack.c.h.b16 %v294
    %v1032 = vunpack.c.l.b16 %v295
    %v1033 = vunpack.c.h.b16 %v295
    %v1034 = vunpack.c.l.b16 %v296
    %v1035 = vunpack.c.h.b16 %v296
    %v1036 = vunpack.c.l.b16 %v297
    %v1037 = vunpack.c.h.b16 %v297
    %v1038 = vunpack.c.l.b16 %v298
    %v1039 = vunpack.c.h.b16 %v298
    %v1040 = vunpack.c.l.b16 %v299
    %v1041 = vunpack.c.h.b16 %v299
    %v1042 = vunpack.c.l.b16 %v300
    %v1043 = vunpack.c.h.b16 %v300
    %v1044 = vunpack.c.l.b16 %v301
    %v1045 = vunpack.c.h.b16 %v301
    %v1046 = vunpack.c.l.b16 %v302
    %v1047 = vunpack.c.h.b16 %v302
    %v1048 = vunpack.c.l.b16 %v303
    %v1049 = vunpack.c.h.b16 %v303
    %v1050 = vunpack.c.l.b16 %v304
    %v1051 = vunpack.c.h.b16 %v304
    %v1052 = vunpack.c.l.b16 %v305
    %v1053 = vunpack.c.h.b16 %v305
    %v1054 = vunpack.c.l.b16 %v306
    %v1055 = vunpack.c.h.b16 %v306
    %v1056 = vunpack.c.l.b16 %v307
    %v1057 = vunpack.c.h.b16 %v307
    %v1058 = vunpack.c.l.b16 %v308
    %v1059 = vunpack.c.h.b16 %v308
    %v1060 = vunpack.c.l.b16 %v309
    %v1061 = vunpack.c.h.b16 %v309
    %v1062 = vunpack.c.l.b16 %v310
    %v1063 = vunpack.c.h.b16 %v310
    %v1064 = vunpack.c.l.b16 %v311
    %v1065 = vunpack.c.h.b16 %v311
    %v1066 = vunpack.c.l.b16 %v312
    %v1067 = vunpack.c.h.b16 %v312
    %v1068 = vunpack.c.l.b16 %v313
    %v1069 = vunpack.c.h.b16 %v313
    %v1070 = vunpack.c.l.b16 %v314
    %v1071 = vunpack.c.h.b16 %v314
    %v1072 = vunpack.c.l.b16 %v315
    %v1073 = vunpack.c.h.b16 %v315
    %v1074 = vunpack.c.l.b16 %v316
    %v1075 = vunpack.c.h.b16 %v316
    %v1076 = vunpack.c.l.b16 %v317
    %v1077 = vunpack.c.h.b16 %v317
    %v1078 = vunpack.c.l.b16 %v318
    %v1079 = vunpack.c.h.b16 %v318
    %v1080 = vunpack.c.l.b16 %v319
    %v1081 = vunpack.c.h.b16 %v319
    %v1082 = vunpack.c.l.b16 %v320
    %v1083 = vunpack.c.h.b16 %v320
    %v1084 = vunpack.c.l.b16 %v321
    %v1085 = vunpack.c.h.b16 %v321
    %v1086 = vunpack.c.l.b16 %v322
    %v1087 = vunpack.c.h.b16 %v322
    %v1088 = vunpack.c.l.b16 %v323
    %v1089 = vunpack.c.h.b16 %v323
    %v1090 = vunpack.c.l.b16 %v324
    %v1091 = vunpack.c.h.b16 %v324
    %v1092 = vunpack.c.l.b16 %v325
    %v1093 = vunpack.c.h.b16 %v325
    %v1094 = vunpack.c.l.b16 %v326
    %v1095 = vunpack.c.h.b16 %v326
    %v1096 = vunpack.c.l.b16 %v327
    %v1097 = vunpack.c.h.b16 %v327
    %v1098 = vunpack.c.l.b16 %v328
    %v1099 = vunpack.c.h.b16 %v328
    %v1100 = vunpack.c.l.b16 %v329
    %v1101 = vunpack.c.h.b16 %v329
    %v1102 = vunpack.c.l.b16 %v330
    %v1103 = vunpack.c.h.b16 %v330
    %v1104 = vunpack.c.l.b16 %v331
    %v1105 = vunpack.c.h.b16 %v331
    %v1106 = vunpack.c.l.b16 %v332
    %v1107 = vunpack.c.h.b16 %v332
    %v1108 = vunpack.c.l.b16 %v333
    %v1109 = vunpack.c.h.b16 %v333
    %v1110 = vunpack.c.l.b16 %v334
    %v1111 = vunpack.c.h.b16 %v334
    %v1112 = vunpack.c.l.b16 %v335
    %v1113 = vunpack.c.h.b16 %v335
    %v1114 = vunpack.c.l.b16 %v336
    %v1115 = vunpack.c.h.b16 %v336
    %v1116 = vunpack.c.l.b16 %v337
    %v1117 = vunpack.c.h.b16 %v337
    %v1118 = vunpack.c.l.b16 %v338
    %v1119 = vunpack.c.h.b16 %v338
    %v1120 = vunpack.c.l.b16 %v339
    %v1121 = vunpack.c.h.b16 %v339
    %v1122 = vunpack.c.l.b16 %v340
    %v1123 = vunpack.c.h.b16 %v340
    %v1124 = vunpack.c.l.b16 %v341
    %v1125 = vunpack.c.h.b16 %v341
    %v1126 = vunpack.c.l.b16 %v342
    %v1127 = vunpack.c.h.b16 %v342
    %v1128 = vunpack.c.l.b16 %v343
    %v1129 = vunpack.c.h.b16 %v343
    %v1130 = vpack.c.b16 %v622, %v618
    %v1131 = vpack.c.b16 %v623, %v619
    %v1132 = vpack.c.b16 %v624, %v620
    %v1133 = vpack.c.b16 %v625, %v621
    %v1134 = vpack.c.b16 %v630, %v626
    %v1135 = vpack.c.b16 %v631, %v627
    %v1136 = vpack.c.b16 %v632, %v628
    %v1137 = vpack.c.b16 %v633, %v629
    %v1138 = vpack.c.b16 %v638, %v634
    %v1139 = vpack.c.b16 %v639, %v635
    %v1140 = vpack.c.b16 %v640, %v636
    %v1141 = vpack.c.b16 %v641, %v637
    %v1142 = vpack.c.b16 %v646, %v642
    %v1143 = vpack.c.b16 %v647, %v643
    %v1144 = vpack.c.b16 %v648, %v644
    %v1145 = vpack.c.b16 %v649, %v645
    %v1146 = vpack.c.b16 %v654, %v650
    %v1147 = vpack.c.b16 %v655, %v651
    %v1148 = vpack.c.b16 %v656, %v652
    %v1149 = vpack.c.b16 %v657, %v653
    %v1150 = vpack.c.b16 %v662, %v658
    %v1151 = vpack.c.b16 %v663, %v659
    %v1152 = vpack.c.b16 %v664, %v660
    %v1153 = vpack.c.b16 %v665, %v661
    %v1154 = vpack.c.b16 %v670, %v666
    %v1155 = vpack.c.b16 %v671, %v667
    %v1156 = vpack.c.b16 %v672, %v668
    %v1157 = vpack.c.b16 %v673, %v669
    %v1158 = vpack.c.b16 %v678, %v674
    %v1159 = vpack.c.b16 %v679, %v675
    %v1160 = vpack.c.b16 %v680, %v676
    %v1161 = vpack.c.b16 %v681, %v677
    %v1162 = vpack.c.b16 %v686, %v682
    %v1163 = vpack.c.b16 %v687, %v683
    %v1164 = vpack.c.b16 %v688, %v684
    %v1165 = vpack.c.b16 %v689, %v685
    %v1166 = vpack.c.b16 %v694, %v690
    %v1167 = vpack.c.b16 %v695, %v691
    %v1168 = vpack.c.b16 %v696, %v692
    %v1169 = vpack.c.b16 %v697, %v693
    %v1170 = vpack.c.b16 %v702, %v698
    %v1171 = vpack.c.b16 %v703, %v699
    %v1172 = vpack.c.b16 %v704, %v700
    %v1173 = vpack.c.b16 %v705, %v701
    %v1174 = vpack.c.b16 %v710, %v706
    %v1175 = vpack.c.b16 %v711, %v707
    %v1176 = vpack.c.b16 %v712, %v708
    %v1177 = vpack.c.b16 %v713, %v709
    %v1178 = vpack.c.b16 %v718, %v714
    %v1179 = vpack.c.b16 %v719, %v715
    %v1180 = vpack.c.b16 %v720, %v716
    %v1181 = vpack.c.b16 %v721, %v717
    %v1182 = vpack.c.b16 %v726, %v722
    %v1183 = vpack.c.b16 %v727, %v723
    %v1184 = vpack.c.b16 %v728, %v724
    %v1185 = vpack.c.b16 %v729, %v725
    %v1186 = vpack.c.b16 %v734, %v730
    %v1187 = vpack.c.b16 %v735, %v731
    %v1188 = vpack.c.b16 %v736, %v732
    %v1189 = vpack.c.b16 %v737, %v733
    %v1190 = vpack.c.b16 %v742, %v738
    %v1191 = vpack.c.b16 %v743, %v739
    %v1192 = vpack.c.b16 %v744, %v740
    %v1193 = vpack.c.b16 %v745, %v741
    %v1194 = vpack.c.b16 %v750, %v746
    %v1195 = vpack.c.b16 %v751, %v747
    %v1196 = vpack.c.b16 %v752, %v748
    %v1197 = vpack.c.b16 %v753, %v749
    %v1198 = vpack.c.b16 %v758, %v754
    %v1199 = vpack.c.b16 %v759, %v755
    %v1200 = vpack.c.b16 %v760, %v756
    %v1201 = vpack.c.b16 %v761, %v757
    %v1202 = vpack.c.b16 %v766, %v762
    %v1203 = vpack.c.b16 %v767, %v763
    %v1204 = vpack.c.b16 %v768, %v764
    %v1205 = vpack.c.b16 %v769, %v765
    %v1206 = vpack.c.b16 %v774, %v770
    %v1207 = vpack.c.b16 %v775, %v771
    %v1208 = vpack.c.b16 %v776, %v772
    %v1209 = vpack.c.b16 %v777, %v773
    %v1210 = vpack.c.b16 %v782, %v778
    %v1211 = vpack.c.b16 %v783, %v779
    %v1212 = vpack.c.b16 %v784, %v780
    %v1213 = vpack.c.b16 %v785, %v781
    %v1214 = vpack.c.b16 %v790, %v786
    %v1215 = vpack.c.b16 %v791, %v787
    %v1216 = vpack.c.b16 %v792, %v788
    %v1217 = vpack.c.b16 %v793, %v789
    %v1218 = vpack.c.b16 %v798, %v794
    %v1219 = vpack.c.b16 %v799, %v795
    %v1220 = vpack.c.b16 %v800, %v796
    %v1221 = vpack.c.b16 %v801, %v797
    %v1222 = vpack.c.b16 %v806, %v802
    %v1223 = vpack.c.b16 %v807, %v803
    %v1224 = vpack.c.b16 %v808, %v804
    %v1225 = vpack.c.b16 %v809, %v805
    %v1226 = vpack.c.b16 %v814, %v810
    %v1227 = vpack.c.b16 %v815, %v811
    %v1228 = vpack.c.b16 %v816, %v812
    %v1229 = vpack.c.b16 %v817, %v813
    %v1230 = vpack.c.b16 %v822, %v818
    %v1231 = vpack.c.b16 %v823, %v819
    %v1232 = vpack.c.b16 %v824, %v820
    %v1233 = vpack.c.b16 %v825, %v821
    %v1234 = vpack.c.b16 %v830, %v826
    %v1235 = vpack.c.b16 %v831, %v827
    %v1236 = vpack.c.b16 %v832, %v828
    %v1237 = vpack.c.b16 %v833, %v829
    %v1238 = vpack.c.b16 %v838, %v834
    %v1239 = vpack.c.b16 %v839, %v835
    %v1240 = vpack.c.b16 %v840, %v836
    %v1241 = vpack.c.b16 %v841, %v837
    %v1242 = vpack.c.b16 %v846, %v842
    %v1243 = vpack.c.b16 %v847, %v843
    %v1244 = vpack.c.b16 %v848, %v844
    %v1245 = vpack.c.b16 %v849, %v845
    %v1246 = vpack.c.b16 %v854, %v850
    %v1247 = vpack.c.b16 %v855, %v851
    %v1248 = vpack.c.b16 %v856, %v852
    %v1249 = vpack.c.b16 %v857, %v853
    %v1250 = vpack.c.b16 %v862, %v858
    %v1251 = vpack.c.b16 %v863, %v859
    %v1252 = vpack.c.b16 %v864, %v860
    %v1253 = vpack.c.b16 %v865, %v861
    %v1254 = vpack.c.b16 %v870, %v866
    %v1255 = vpack.c.b16 %v871, %v867
    %v1256 = vpack.c.b16 %v872, %v868
    %v1257 = vpack.c.b16 %v873, %v869
    %v1258 = vpack.c.b16 %v878, %v874
    %v1259 = vpack.c.b16 %v879, %v875
    %v1260 = vpack.c.b16 %v880, %v876
    %v1261 = vpack.c.b16 %v881, %v877
    %v1262 = vpack.c.b16 %v886, %v882
    %v1263 = vpack.c.b16 %v887, %v883
    %v1264 = vpack.c.b16 %v888, %v884
    %v1265 = vpack.c.b16 %v889, %v885
    %v1266 = vpack.c.b16 %v894, %v890
    %v1267 = vpack.c.b16 %v895, %v891
    %v1268 = vpack.c.b16 %v896, %v892
    %v1269 = vpack.c.b16 %v897, %v893
    %v1270 = vpack.c.b16 %v902, %v898
    %v1271 = vpack.c.b16 %v903, %v899
    %v1272 = vpack.c.b16 %v904, %v900
    %v1273 = vpack.c.b16 %v905, %v901
    %v1274 = vpack.c.b16 %v910, %v906
    %v1275 = vpack.c.b16 %v911, %v907
    %v1276 = vpack.c.b16 %v912, %v908
    %v1277 = vpack.c.b16 %v913, %v909
    %v1278 = vpack.c.b16 %v918, %v914
    %v1279 = vpack.c.b16 %v919, %v915
    %v1280 = vpack.c.b16 %v920, %v916
    %v1281 = vpack.c.b16 %v921, %v917
    %v1282 = vpack.c.b16 %v926, %v922
    %v1283 = vpack.c.b16 %v927, %v923
    %v1284 = vpack.c.b16 %v928, %v924
    %v1285 = vpack.c.b16 %v929, %v925
    %v1286 = vpack.c.b16 %v934, %v930
    %v1287 = vpack.c.b16 %v935, %v931
    %v1288 = vpack.c.b16 %v936, %v932
    %v1289 = vpack.c.b16 %v937, %v933
    %v1290 = vpack.c.b16 %v942, %v938
    %v1291 = vpack.c.b16 %v943, %v939
    %v1292 = vpack.c.b16 %v944, %v940
    %v1293 = vpack.c.b16 %v945, %v941
    %v1294 = vpack.c.b16 %v950, %v946
    %v1295 = vpack.c.b16 %v951, %v947
    %v1296 = vpack.c.b16 %v952, %v948
    %v1297 = vpack.c.b16 %v953, %v949
    %v1298 = vpack.c.b16 %v958, %v954
    %v1299 = vpack.c.b16 %v959, %v955
    %v1300 = vpack.c.b16 %v960, %v956
    %v1301 = vpack.c.b16 %v961, %v957
    %v1302 = vpack.c.b16 %v966, %v962
    %v1303 = vpack.c.b16 %v967, %v963
    %v1304 = vpack.c.b16 %v968, %v964
    %v1305 = vpack.c.b16 %v969, %v965
    %v1306 = vpack.c.b16 %v974, %v970
    %v1307 = vpack.c.b16 %v975, %v971
    %v1308 = vpack.c.b16 %v976, %v972
    %v1309 = vpack.c.b16 %v977, %v973
    %v1310 = vpack.c.b16 %v982, %v978
    %v1311 = vpack.c.b16 %v983, %v979
    %v1312 = vpack.c.b16 %v984, %v980
    %v1313 = vpack.c.b16 %v985, %v981
    %v1314 = vpack.c.b16 %v990, %v986
    %v1315 = vpack.c.b16 %v991, %v987
    %v1316 = vpack.c.b16 %v992, %v988
    %v1317 = vpack.c.b16 %v993, %v989
    %v1318 = vpack.c.b16 %v998, %v994
    %v1319 = vpack.c.b16 %v999, %v995
    %v1320 = vpack.c.b16 %v1000, %v996
    %v1321 = vpack.c.b16 %v1001, %v997
    %v1322 = vpack.c.b16 %v1006, %v1002
    %v1323 = vpack.c.b16 %v1007, %v1003
    %v1324 = vpack.c.b16 %v1008, %v1004
    %v1325 = vpack.c.b16 %v1009, %v1005
    %v1326 = vpack.c.b16 %v1014, %v1010
    %v1327 = vpack.c.b16 %v1015, %v1011
    %v1328 = vpack.c.b16 %v1016, %v1012
    %v1329 = vpack.c.b16 %v1017, %v1013
    %v1330 = vpack.c.b16 %v1022, %v1018
    %v1331 = vpack.c.b16 %v1023, %v1019
    %v1332 = vpack.c.b16 %v1024, %v1020
    %v1333 = vpack.c.b16 %v1025, %v1021
    %v1334 = vpack.c.b16 %v1030, %v1026
    %v1335 = vpack.c.b16 %v1031, %v1027
    %v1336 = vpack.c.b16 %v1032, %v1028
    %v1337 = vpack.c.b16 %v1033, %v1029
    %v1338 = vpack.c.b16 %v1038, %v1034
    %v1339 = vpack.c.b16 %v1039, %v1035
    %v1340 = vpack.c.b16 %v1040, %v1036
    %v1341 = vpack.c.b16 %v1041, %v1037
    %v1342 = vpack.c.b16 %v1046, %v1042
    %v1343 = vpack.c.b16 %v1047, %v1043
    %v1344 = vpack.c.b16 %v1048, %v1044
    %v1345 = vpack.c.b16 %v1049, %v1045
    %v1346 = vpack.c.b16 %v1054, %v1050
    %v1347 = vpack.c.b16 %v1055, %v1051
    %v1348 = vpack.c.b16 %v1056, %v1052
    %v1349 = vpack.c.b16 %v1057, %v1053
    %v1350 = vpack.c.b16 %v1062, %v1058
    %v1351 = vpack.c.b16 %v1063, %v1059
    %v1352 = vpack.c.b16 %v1064, %v1060
    %v1353 = vpack.c.b16 %v1065, %v1061
    %v1354 = vpack.c.b16 %v1070, %v1066
    %v1355 = vpack.c.b16 %v1071, %v1067
    %v1356 = vpack.c.b16 %v1072, %v1068
    %v1357 = vpack.c.b16 %v1073, %v1069
    %v1358 = vpack.c.b16 %v1078, %v1074
    %v1359 = vpack.c.b16 %v1079, %v1075
    %v1360 = vpack.c.b16 %v1080, %v1076
    %v1361 = vpack.c.b16 %v1081, %v1077
    %v1362 = vpack.c.b16 %v1086, %v1082
    %v1363 = vpack.c.b16 %v1087, %v1083
    %v1364 = vpack.c.b16 %v1088, %v1084
    %v1365 = vpack.c.b16 %v1089, %v1085
    %v1366 = vpack.c.b16 %v1094, %v1090
    %v1367 = vpack.c.b16 %v1095, %v1091
    %v1368 = vpack.c.b16 %v1096, %v1092
    %v1369 = vpack.c.b16 %v1097, %v1093
    %v1370 = vpack.c.b16 %v1102, %v1098
    %v1371 = vpack.c.b16 %v1103, %v1099
    %v1372 = vpack.c.b16 %v1104, %v1100
    %v1373 = vpack.c.b16 %v1105, %v1101
    %v1374 = vpack.c.b16 %v1110, %v1106
    %v1375 = vpack.c.b16 %v1111, %v1107
    %v1376 = vpack.c.b16 %v1112, %v1108
    %v1377 = vpack.c.b16 %v1113, %v1109
    %v1378 = vpack.c.b16 %v1118, %v1114
    %v1379 = vpack.c.b16 %v1119, %v1115
    %v1380 = vpack.c.b16 %v1120, %v1116
    %v1381 = vpack.c.b16 %v1121, %v1117
    %v1382 = vpack.c.b16 %v1126, %v1122
    %v1383 = vpack.c.b16 %v1127, %v1123
    %v1384 = vpack.c.b16 %v1128, %v1124
    %v1385 = vpack.c.b16 %v1129, %v1125
    %1642 = vmatpush.bf16.msra.mxu0 %v1158
    %1643 = vmatpush.bf16.msra.mxu0 %v1154
    %1644 = vmatpush.bf16.msra.mxu0 %v1150
    %1645 = vmatpush.bf16.msra.mxu0 %v1146
    %1646 = vmatpush.bf16.msra.mxu0 %v1142
    %1647 = vmatpush.bf16.msra.mxu0 %v1138
    %1648 = vmatpush.bf16.msra.mxu0 %v1134
    %1649 = vmatpush.bf16.msra.mxu0 %v1130
    %1650 = vmatmul.bf16.gmra.mxu0 %v346
    %v1651 = vpop.f32.mrf.mxu0
    %v1652 = vadd.f32 0.0, %v1651
    %v1653 = vpop.f32.mrf.mxu0
    %1654 = vdwg.mxu0
    %1655 = vmatpush.bf16.msra.mxu0 %v1190
    %1656 = vmatpush.bf16.msra.mxu0 %v1186
    %1657 = vmatpush.bf16.msra.mxu0 %v1182
    %1658 = vmatpush.bf16.msra.mxu0 %v1178
    %1659 = vmatpush.bf16.msra.mxu0 %v1174
    %1660 = vmatpush.bf16.msra.mxu0 %v1170
    %1661 = vmatpush.bf16.msra.mxu0 %v1166
    %1662 = vmatpush.bf16.msra.mxu0 %v1162
    %1663 = vmatmul.bf16.gmra.mxu0 %v347
    %v1664 = vpop.f32.mrf.mxu0
    %v1665 = vadd.f32 %v1652, %v1664
    %v1666 = vpop.f32.mrf.mxu0
    %1667 = vdwg.mxu0
    %1668 = vmatpush.bf16.msra.mxu0 %v1222
    %1669 = vmatpush.bf16.msra.mxu0 %v1218
    %1670 = vmatpush.bf16.msra.mxu0 %v1214
    %1671 = vmatpush.bf16.msra.mxu0 %v1210
    %1672 = vmatpush.bf16.msra.mxu0 %v1206
    %1673 = vmatpush.bf16.msra.mxu0 %v1202
    %1674 = vmatpush.bf16.msra.mxu0 %v1198
    %1675 = vmatpush.bf16.msra.mxu0 %v1194
    %1676 = vmatmul.bf16.gmra.mxu0 %v348
    %v1677 = vpop.f32.mrf.mxu0
    %v1678 = vadd.f32 %v1665, %v1677
    %v1679 = vpop.f32.mrf.mxu0
    %1680 = vdwg.mxu0
    %1681 = vmatpush.bf16.msra.mxu0 %v1254
    %1682 = vmatpush.bf16.msra.mxu0 %v1250
    %1683 = vmatpush.bf16.msra.mxu0 %v1246
    %1684 = vmatpush.bf16.msra.mxu0 %v1242
    %1685 = vmatpush.bf16.msra.mxu0 %v1238
    %1686 = vmatpush.bf16.msra.mxu0 %v1234
    %1687 = vmatpush.bf16.msra.mxu0 %v1230
    %1688 = vmatpush.bf16.msra.mxu0 %v1226
    %1689 = vmatmul.bf16.gmra.mxu0 %v349
    %v1690 = vpop.f32.mrf.mxu0
    %v1691 = vadd.f32 %v1678, %v1690
    %v1692 = vpop.f32.mrf.mxu0
    %1693 = vdwg.mxu0
    %1694 = vmatpush.bf16.msra.mxu0 %v1286
    %1695 = vmatpush.bf16.msra.mxu0 %v1282
    %1696 = vmatpush.bf16.msra.mxu0 %v1278
    %1697 = vmatpush.bf16.msra.mxu0 %v1274
    %1698 = vmatpush.bf16.msra.mxu0 %v1270
    %1699 = vmatpush.bf16.msra.mxu0 %v1266
    %1700 = vmatpush.bf16.msra.mxu0 %v1262
    %1701 = vmatpush.bf16.msra.mxu0 %v1258
    %1702 = vmatmul.bf16.gmra.mxu0 %v350
    %v1703 = vpop.f32.mrf.mxu0
    %v1704 = vadd.f32 %v1691, %v1703
    %v1705 = vpop.f32.mrf.mxu0
    %1706 = vdwg.mxu0
    %1707 = vmatpush.bf16.msra.mxu0 %v1318
    %1708 = vmatpush.bf16.msra.mxu0 %v1314
    %1709 = vmatpush.bf16.msra.mxu0 %v1310
    %1710 = vmatpush.bf16.msra.mxu0 %v1306
    %1711 = vmatpush.bf16.msra.mxu0 %v1302
    %1712 = vmatpush.bf16.msra.mxu0 %v1298
    %1713 = vmatpush.bf16.msra.mxu0 %v1294
    %1714 = vmatpush.bf16.msra.mxu0 %v1290
    %1715 = vmatmul.bf16.gmra.mxu0 %v351
    %v1716 = vpop.f32.mrf.mxu0
    %v1717 = vadd.f32 %v1704, %v1716
    %v1718 = vpop.f32.mrf.mxu0
    %1719 = vdwg.mxu0
    %1720 = vmatpush.bf16.msra.mxu0 %v1350
    %1721 = vmatpush.bf16.msra.mxu0 %v1346
    %1722 = vmatpush.bf16.msra.mxu0 %v1342
    %1723 = vmatpush.bf16.msra.mxu0 %v1338
    %1724 = vmatpush.bf16.msra.mxu0 %v1334
    %1725 = vmatpush.bf16.msra.mxu0 %v1330
    %1726 = vmatpush.bf16.msra.mxu0 %v1326
    %1727 = vmatpush.bf16.msra.mxu0 %v1322
    %1728 = vmatmul.bf16.gmra.mxu0 %v352
    %v1729 = vpop.f32.mrf.mxu0
    %v1730 = vadd.f32 %v1717, %v1729
    %v1731 = vpop.f32.mrf.mxu0
    %1732 = vdwg.mxu0
    %1733 = vmatpush.bf16.msra.mxu0 %v1382
    %1734 = vmatpush.bf16.msra.mxu0 %v1378
    %1735 = vmatpush.bf16.msra.mxu0 %v1374
    %1736 = vmatpush.bf16.msra.mxu0 %v1370
    %1737 = vmatpush.bf16.msra.mxu0 %v1366
    %1738 = vmatpush.bf16.msra.mxu0 %v1362
    %1739 = vmatpush.bf16.msra.mxu0 %v1358
    %1740 = vmatpush.bf16.msra.mxu0 %v1354
    %1741 = vmatmul.bf16.gmra.mxu0 %v353
    %v1742 = vpop.f32.mrf.mxu0
    %v1743 = vadd.f32 %v1730, %v1742
    %v1744 = vpop.f32.mrf.mxu0
    %1745 = vdwg.mxu0
    %1746 = vmatpush.bf16.msra.mxu0 %v1159
    %1747 = vmatpush.bf16.msra.mxu0 %v1155
    %1748 = vmatpush.bf16.msra.mxu0 %v1151
    %1749 = vmatpush.bf16.msra.mxu0 %v1147
    %1750 = vmatpush.bf16.msra.mxu0 %v1143
    %1751 = vmatpush.bf16.msra.mxu0 %v1139
    %1752 = vmatpush.bf16.msra.mxu0 %v1135
    %1753 = vmatpush.bf16.msra.mxu0 %v1131
    %1754 = vmatmul.bf16.gmra.mxu0 %v346
    %v1755 = vpop.f32.mrf.mxu0
    %v1756 = vadd.f32 0.0, %v1755
    %v1757 = vpop.f32.mrf.mxu0
    %1758 = vdwg.mxu0
    %1759 = vmatpush.bf16.msra.mxu0 %v1191
    %1760 = vmatpush.bf16.msra.mxu0 %v1187
    %1761 = vmatpush.bf16.msra.mxu0 %v1183
    %1762 = vmatpush.bf16.msra.mxu0 %v1179
    %1763 = vmatpush.bf16.msra.mxu0 %v1175
    %1764 = vmatpush.bf16.msra.mxu0 %v1171
    %1765 = vmatpush.bf16.msra.mxu0 %v1167
    %1766 = vmatpush.bf16.msra.mxu0 %v1163
    %1767 = vmatmul.bf16.gmra.mxu0 %v347
    %v1768 = vpop.f32.mrf.mxu0
    %v1769 = vadd.f32 %v1756, %v1768
    %v1770 = vpop.f32.mrf.mxu0
    %1771 = vdwg.mxu0
    %1772 = vmatpush.bf16.msra.mxu0 %v1223
    %1773 = vmatpush.bf16.msra.mxu0 %v1219
    %1774 = vmatpush.bf16.msra.mxu0 %v1215
    %1775 = vmatpush.bf16.msra.mxu0 %v1211
    %1776 = vmatpush.bf16.msra.mxu0 %v1207
    %1777 = vmatpush.bf16.msra.mxu0 %v1203
    %1778 = vmatpush.bf16.msra.mxu0 %v1199
    %1779 = vmatpush.bf16.msra.mxu0 %v1195
    %1780 = vmatmul.bf16.gmra.mxu0 %v348
    %v1781 = vpop.f32.mrf.mxu0
    %v1782 = vadd.f32 %v1769, %v1781
    %v1783 = vpop.f32.mrf.mxu0
    %1784 = vdwg.mxu0
    %1785 = vmatpush.bf16.msra.mxu0 %v1255
    %1786 = vmatpush.bf16.msra.mxu0 %v1251
    %1787 = vmatpush.bf16.msra.mxu0 %v1247
    %1788 = vmatpush.bf16.msra.mxu0 %v1243
    %1789 = vmatpush.bf16.msra.mxu0 %v1239
    %1790 = vmatpush.bf16.msra.mxu0 %v1235
    %1791 = vmatpush.bf16.msra.mxu0 %v1231
    %1792 = vmatpush.bf16.msra.mxu0 %v1227
    %1793 = vmatmul.bf16.gmra.mxu0 %v349
    %v1794 = vpop.f32.mrf.mxu0
    %v1795 = vadd.f32 %v1782, %v1794
    %v1796 = vpop.f32.mrf.mxu0
    %1797 = vdwg.mxu0
    %1798 = vmatpush.bf16.msra.mxu0 %v1287
    %1799 = vmatpush.bf16.msra.mxu0 %v1283
    %1800 = vmatpush.bf16.msra.mxu0 %v1279
    %1801 = vmatpush.bf16.msra.mxu0 %v1275
    %1802 = vmatpush.bf16.msra.mxu0 %v1271
    %1803 = vmatpush.bf16.msra.mxu0 %v1267
    %1804 = vmatpush.bf16.msra.mxu0 %v1263
    %1805 = vmatpush.bf16.msra.mxu0 %v1259
    %1806 = vmatmul.bf16.gmra.mxu0 %v350
    %v1807 = vpop.f32.mrf.mxu0
    %v1808 = vadd.f32 %v1795, %v1807
    %v1809 = vpop.f32.mrf.mxu0
    %1810 = vdwg.mxu0
    %1811 = vmatpush.bf16.msra.mxu0 %v1319
    %1812 = vmatpush.bf16.msra.mxu0 %v1315
    %1813 = vmatpush.bf16.msra.mxu0 %v1311
    %1814 = vmatpush.bf16.msra.mxu0 %v1307
    %1815 = vmatpush.bf16.msra.mxu0 %v1303
    %1816 = vmatpush.bf16.msra.mxu0 %v1299
    %1817 = vmatpush.bf16.msra.mxu0 %v1295
    %1818 = vmatpush.bf16.msra.mxu0 %v1291
    %1819 = vmatmul.bf16.gmra.mxu0 %v351
    %v1820 = vpop.f32.mrf.mxu0
    %v1821 = vadd.f32 %v1808, %v1820
    %v1822 = vpop.f32.mrf.mxu0
    %1823 = vdwg.mxu0
    %1824 = vmatpush.bf16.msra.mxu0 %v1351
    %1825 = vmatpush.bf16.msra.mxu0 %v1347
    %1826 = vmatpush.bf16.msra.mxu0 %v1343
    %1827 = vmatpush.bf16.msra.mxu0 %v1339
    %1828 = vmatpush.bf16.msra.mxu0 %v1335
    %1829 = vmatpush.bf16.msra.mxu0 %v1331
    %1830 = vmatpush.bf16.msra.mxu0 %v1327
    %1831 = vmatpush.bf16.msra.mxu0 %v1323
    %1832 = vmatmul.bf16.gmra.mxu0 %v352
    %v1833 = vpop.f32.mrf.mxu0
    %v1834 = vadd.f32 %v1821, %v1833
    %v1835 = vpop.f32.mrf.mxu0
    %1836 = vdwg.mxu0
    %1837 = vmatpush.bf16.msra.mxu0 %v1383
    %1838 = vmatpush.bf16.msra.mxu0 %v1379
    %1839 = vmatpush.bf16.msra.mxu0 %v1375
    %1840 = vmatpush.bf16.msra.mxu0 %v1371
    %1841 = vmatpush.bf16.msra.mxu0 %v1367
    %1842 = vmatpush.bf16.msra.mxu0 %v1363
    %1843 = vmatpush.bf16.msra.mxu0 %v1359
    %1844 = vmatpush.bf16.msra.mxu0 %v1355
    %1845 = vmatmul.bf16.gmra.mxu0 %v353
    %v1846 = vpop.f32.mrf.mxu0
    %v1847 = vadd.f32 %v1834, %v1846
    %v1848 = vpop.f32.mrf.mxu0
    %1849 = vdwg.mxu0
    %1850 = vmatpush.bf16.msra.mxu0 %v1160
    %1851 = vmatpush.bf16.msra.mxu0 %v1156
    %1852 = vmatpush.bf16.msra.mxu0 %v1152
    %1853 = vmatpush.bf16.msra.mxu0 %v1148
    %1854 = vmatpush.bf16.msra.mxu0 %v1144
    %1855 = vmatpush.bf16.msra.mxu0 %v1140
    %1856 = vmatpush.bf16.msra.mxu0 %v1136
    %1857 = vmatpush.bf16.msra.mxu0 %v1132
    %1858 = vmatmul.bf16.gmra.mxu0 %v346
    %v1859 = vpop.f32.mrf.mxu0
    %v1860 = vadd.f32 0.0, %v1859
    %v1861 = vpop.f32.mrf.mxu0
    %1862 = vdwg.mxu0
    %1863 = vmatpush.bf16.msra.mxu0 %v1192
    %1864 = vmatpush.bf16.msra.mxu0 %v1188
    %1865 = vmatpush.bf16.msra.mxu0 %v1184
    %1866 = vmatpush.bf16.msra.mxu0 %v1180
    %1867 = vmatpush.bf16.msra.mxu0 %v1176
    %1868 = vmatpush.bf16.msra.mxu0 %v1172
    %1869 = vmatpush.bf16.msra.mxu0 %v1168
    %1870 = vmatpush.bf16.msra.mxu0 %v1164
    %1871 = vmatmul.bf16.gmra.mxu0 %v347
    %v1872 = vpop.f32.mrf.mxu0
    %v1873 = vadd.f32 %v1860, %v1872
    %v1874 = vpop.f32.mrf.mxu0
    %1875 = vdwg.mxu0
    %1876 = vmatpush.bf16.msra.mxu0 %v1224
    %1877 = vmatpush.bf16.msra.mxu0 %v1220
    %1878 = vmatpush.bf16.msra.mxu0 %v1216
    %1879 = vmatpush.bf16.msra.mxu0 %v1212
    %1880 = vmatpush.bf16.msra.mxu0 %v1208
    %1881 = vmatpush.bf16.msra.mxu0 %v1204
    %1882 = vmatpush.bf16.msra.mxu0 %v1200
    %1883 = vmatpush.bf16.msra.mxu0 %v1196
    %1884 = vmatmul.bf16.gmra.mxu0 %v348
    %v1885 = vpop.f32.mrf.mxu0
    %v1886 = vadd.f32 %v1873, %v1885
    %v1887 = vpop.f32.mrf.mxu0
    %1888 = vdwg.mxu0
    %1889 = vmatpush.bf16.msra.mxu0 %v1256
    %1890 = vmatpush.bf16.msra.mxu0 %v1252
    %1891 = vmatpush.bf16.msra.mxu0 %v1248
    %1892 = vmatpush.bf16.msra.mxu0 %v1244
    %1893 = vmatpush.bf16.msra.mxu0 %v1240
    %1894 = vmatpush.bf16.msra.mxu0 %v1236
    %1895 = vmatpush.bf16.msra.mxu0 %v1232
    %1896 = vmatpush.bf16.msra.mxu0 %v1228
    %1897 = vmatmul.bf16.gmra.mxu0 %v349
    %v1898 = vpop.f32.mrf.mxu0
    %v1899 = vadd.f32 %v1886, %v1898
    %v1900 = vpop.f32.mrf.mxu0
    %1901 = vdwg.mxu0
    %1902 = vmatpush.bf16.msra.mxu0 %v1288
    %1903 = vmatpush.bf16.msra.mxu0 %v1284
    %1904 = vmatpush.bf16.msra.mxu0 %v1280
    %1905 = vmatpush.bf16.msra.mxu0 %v1276
    %1906 = vmatpush.bf16.msra.mxu0 %v1272
    %1907 = vmatpush.bf16.msra.mxu0 %v1268
    %1908 = vmatpush.bf16.msra.mxu0 %v1264
    %1909 = vmatpush.bf16.msra.mxu0 %v1260
    %1910 = vmatmul.bf16.gmra.mxu0 %v350
    %v1911 = vpop.f32.mrf.mxu0
    %v1912 = vadd.f32 %v1899, %v1911
    %v1913 = vpop.f32.mrf.mxu0
    %1914 = vdwg.mxu0
    %1915 = vmatpush.bf16.msra.mxu0 %v1320
    %1916 = vmatpush.bf16.msra.mxu0 %v1316
    %1917 = vmatpush.bf16.msra.mxu0 %v1312
    %1918 = vmatpush.bf16.msra.mxu0 %v1308
    %1919 = vmatpush.bf16.msra.mxu0 %v1304
    %1920 = vmatpush.bf16.msra.mxu0 %v1300
    %1921 = vmatpush.bf16.msra.mxu0 %v1296
    %1922 = vmatpush.bf16.msra.mxu0 %v1292
    %1923 = vmatmul.bf16.gmra.mxu0 %v351
    %v1924 = vpop.f32.mrf.mxu0
    %v1925 = vadd.f32 %v1912, %v1924
    %v1926 = vpop.f32.mrf.mxu0
    %1927 = vdwg.mxu0
    %1928 = vmatpush.bf16.msra.mxu0 %v1352
    %1929 = vmatpush.bf16.msra.mxu0 %v1348
    %1930 = vmatpush.bf16.msra.mxu0 %v1344
    %1931 = vmatpush.bf16.msra.mxu0 %v1340
    %1932 = vmatpush.bf16.msra.mxu0 %v1336
    %1933 = vmatpush.bf16.msra.mxu0 %v1332
    %1934 = vmatpush.bf16.msra.mxu0 %v1328
    %1935 = vmatpush.bf16.msra.mxu0 %v1324
    %1936 = vmatmul.bf16.gmra.mxu0 %v352
    %v1937 = vpop.f32.mrf.mxu0
    %v1938 = vadd.f32 %v1925, %v1937
    %v1939 = vpop.f32.mrf.mxu0
    %1940 = vdwg.mxu0
    %1941 = vmatpush.bf16.msra.mxu0 %v1384
    %1942 = vmatpush.bf16.msra.mxu0 %v1380
    %1943 = vmatpush.bf16.msra.mxu0 %v1376
    %1944 = vmatpush.bf16.msra.mxu0 %v1372
    %1945 = vmatpush.bf16.msra.mxu0 %v1368
    %1946 = vmatpush.bf16.msra.mxu0 %v1364
    %1947 = vmatpush.bf16.msra.mxu0 %v1360
    %1948 = vmatpush.bf16.msra.mxu0 %v1356
    %1949 = vmatmul.bf16.gmra.mxu0 %v353
    %v1950 = vpop.f32.mrf.mxu0
    %v1951 = vadd.f32 %v1938, %v1950
    %v1952 = vpop.f32.mrf.mxu0
    %1953 = vdwg.mxu0
    %1954 = vmatpush.bf16.msra.mxu0 %v1161
    %1955 = vmatpush.bf16.msra.mxu0 %v1157
    %1956 = vmatpush.bf16.msra.mxu0 %v1153
    %1957 = vmatpush.bf16.msra.mxu0 %v1149
    %1958 = vmatpush.bf16.msra.mxu0 %v1145
    %1959 = vmatpush.bf16.msra.mxu0 %v1141
    %1960 = vmatpush.bf16.msra.mxu0 %v1137
    %1961 = vmatpush.bf16.msra.mxu0 %v1133
    %1962 = vmatmul.bf16.gmra.mxu0 %v346
    %v1963 = vpop.f32.mrf.mxu0
    %v1964 = vadd.f32 0.0, %v1963
    %v1965 = vpop.f32.mrf.mxu0
    %1966 = vdwg.mxu0
    %1967 = vmatpush.bf16.msra.mxu0 %v1193
    %1968 = vmatpush.bf16.msra.mxu0 %v1189
    %1969 = vmatpush.bf16.msra.mxu0 %v1185
    %1970 = vmatpush.bf16.msra.mxu0 %v1181
    %1971 = vmatpush.bf16.msra.mxu0 %v1177
    %1972 = vmatpush.bf16.msra.mxu0 %v1173
    %1973 = vmatpush.bf16.msra.mxu0 %v1169
    %1974 = vmatpush.bf16.msra.mxu0 %v1165
    %1975 = vmatmul.bf16.gmra.mxu0 %v347
    %v1976 = vpop.f32.mrf.mxu0
    %v1977 = vadd.f32 %v1964, %v1976
    %v1978 = vpop.f32.mrf.mxu0
    %1979 = vdwg.mxu0
    %1980 = vmatpush.bf16.msra.mxu0 %v1225
    %1981 = vmatpush.bf16.msra.mxu0 %v1221
    %1982 = vmatpush.bf16.msra.mxu0 %v1217
    %1983 = vmatpush.bf16.msra.mxu0 %v1213
    %1984 = vmatpush.bf16.msra.mxu0 %v1209
    %1985 = vmatpush.bf16.msra.mxu0 %v1205
    %1986 = vmatpush.bf16.msra.mxu0 %v1201
    %1987 = vmatpush.bf16.msra.mxu0 %v1197
    %1988 = vmatmul.bf16.gmra.mxu0 %v348
    %v1989 = vpop.f32.mrf.mxu0
    %v1990 = vadd.f32 %v1977, %v1989
    %v1991 = vpop.f32.mrf.mxu0
    %1992 = vdwg.mxu0
    %1993 = vmatpush.bf16.msra.mxu0 %v1257
    %1994 = vmatpush.bf16.msra.mxu0 %v1253
    %1995 = vmatpush.bf16.msra.mxu0 %v1249
    %1996 = vmatpush.bf16.msra.mxu0 %v1245
    %1997 = vmatpush.bf16.msra.mxu0 %v1241
    %1998 = vmatpush.bf16.msra.mxu0 %v1237
    %1999 = vmatpush.bf16.msra.mxu0 %v1233
    %2000 = vmatpush.bf16.msra.mxu0 %v1229
    %2001 = vmatmul.bf16.gmra.mxu0 %v349
    %v2002 = vpop.f32.mrf.mxu0
    %v2003 = vadd.f32 %v1990, %v2002
    %v2004 = vpop.f32.mrf.mxu0
    %2005 = vdwg.mxu0
    %2006 = vmatpush.bf16.msra.mxu0 %v1289
    %2007 = vmatpush.bf16.msra.mxu0 %v1285
    %2008 = vmatpush.bf16.msra.mxu0 %v1281
    %2009 = vmatpush.bf16.msra.mxu0 %v1277
    %2010 = vmatpush.bf16.msra.mxu0 %v1273
    %2011 = vmatpush.bf16.msra.mxu0 %v1269
    %2012 = vmatpush.bf16.msra.mxu0 %v1265
    %2013 = vmatpush.bf16.msra.mxu0 %v1261
    %2014 = vmatmul.bf16.gmra.mxu0 %v350
    %v2015 = vpop.f32.mrf.mxu0
    %v2016 = vadd.f32 %v2003, %v2015
    %v2017 = vpop.f32.mrf.mxu0
    %2018 = vdwg.mxu0
    %2019 = vmatpush.bf16.msra.mxu0 %v1321
    %2020 = vmatpush.bf16.msra.mxu0 %v1317
    %2021 = vmatpush.bf16.msra.mxu0 %v1313
    %2022 = vmatpush.bf16.msra.mxu0 %v1309
    %2023 = vmatpush.bf16.msra.mxu0 %v1305
    %2024 = vmatpush.bf16.msra.mxu0 %v1301
    %2025 = vmatpush.bf16.msra.mxu0 %v1297
    %2026 = vmatpush.bf16.msra.mxu0 %v1293
    %2027 = vmatmul.bf16.gmra.mxu0 %v351
    %v2028 = vpop.f32.mrf.mxu0
    %v2029 = vadd.f32 %v2016, %v2028
    %v2030 = vpop.f32.mrf.mxu0
    %2031 = vdwg.mxu0
    %2032 = vmatpush.bf16.msra.mxu0 %v1353
    %2033 = vmatpush.bf16.msra.mxu0 %v1349
    %2034 = vmatpush.bf16.msra.mxu0 %v1345
    %2035 = vmatpush.bf16.msra.mxu0 %v1341
    %2036 = vmatpush.bf16.msra.mxu0 %v1337
    %2037 = vmatpush.bf16.msra.mxu0 %v1333
    %2038 = vmatpush.bf16.msra.mxu0 %v1329
    %2039 = vmatpush.bf16.msra.mxu0 %v1325
    %2040 = vmatmul.bf16.gmra.mxu0 %v352
    %v2041 = vpop.f32.mrf.mxu0
    %v2042 = vadd.f32 %v2029, %v2041
    %v2043 = vpop.f32.mrf.mxu0
    %2044 = vdwg.mxu0
    %2045 = vmatpush.bf16.msra.mxu0 %v1385
    %2046 = vmatpush.bf16.msra.mxu0 %v1381
    %2047 = vmatpush.bf16.msra.mxu0 %v1377
    %2048 = vmatpush.bf16.msra.mxu0 %v1373
    %2049 = vmatpush.bf16.msra.mxu0 %v1369
    %2050 = vmatpush.bf16.msra.mxu0 %v1365
    %2051 = vmatpush.bf16.msra.mxu0 %v1361
    %2052 = vmatpush.bf16.msra.mxu0 %v1357
    %2053 = vmatmul.bf16.gmra.mxu0 %v353
    %v2054 = vpop.f32.mrf.mxu0
    %v2055 = vadd.f32 %v2042, %v2054
    %v2056 = vpop.f32.mrf.mxu0
    %2057 = vdwg.mxu0
    %v2062 = vrot.slane %v1847, 6
    %v2063 = vrot.slane %v1951, 4
    %v2064 = vrot.slane %v2055, 2
    %vm2065 = vcmask 1041408
    %v2066 = vsel %vm2065, %v1743, %v2062
    %vm2067 = vcmask 1045508
    %v2068 = vsel %vm2067, %v2063, %v2064
    %vm2069 = vcmask 1043456
    %v2070 = vsel %vm2069, %v2066, %v2068
    %v2072 = vadd.f32 %v87, %v2070
    %2073 = vst [vmem:[%s5] sm:$0xff] %v2072
    // Predicated region
    $region42: #{dann2_forward.4} parent=1 // pred_check
      %p2074 = pneg %p77
    $region43: #{dann2_forward.4} parent=1 // pred_check_branch
      %2076 = sbr.rel (%p2074) target = $region45
    $region44: #{dann2_forward.4} parent=1 // pred_region
      %v2077 = vld [vmem:[%s5] sm:$0xff]
      %v2078 = vld [vmem:[#allocation4] sm:$0xf]
      %v2080 = vperm.slane %v2078, 0
      %v2081 = vperm.slane %v2078, 1
      %v2082 = vperm.slane %v2078, 2
      %v2083 = vperm.slane %v2078, 3
      %v2084 = vrot.slane %v2081, 6
      %v2085 = vrot.slane %v2082, 4
      %v2086 = vrot.slane %v2083, 2
      %v2087 = vsel %vm2065, %v2080, %v2084
      %v2088 = vsel %vm2067, %v2085, %v2086
      %v2089 = vsel %vm2069, %v2087, %v2088
      %v2091 = vadd.f32 %v2077, %v2089
      %2093 = vst [vmem:[#allocation1] ss:$4 sm:$0xff] %v2091
      %v2094 = vld.sshfl [vmem:[#allocation1] sm:$0xff pattern:$0x73625140]
      %v2095 = vld.sshfl [vmem:[#allocation1 + $0x8] sm:$0xff pattern:$0x73625140]
      %v2096 = vld.sshfl [vmem:[#allocation1 + $0x10] sm:$0xff pattern:$0x73625140]
      %v2097 = vld.sshfl [vmem:[#allocation1 + $0x18] sm:$0xff pattern:$0x73625140]
      %v2102 = vsel %vm2065, %v2094, 0.0
      %v2103 = vrot.slane %v2102, 4
      %v2104 = vadd.f32 %v2102, %v2103
      %v2105 = vrot.slane %v2104, 2
      %v2106 = vadd.f32 %v2104, %v2105
      %v2107 = vrot.slane %v2106, 1
      %v2108 = vadd.f32 %v2106, %v2107
      %v2109 = vsel %vm2065, %v2095, 0.0
      %v2110 = vrot.slane %v2109, 4
      %v2111 = vadd.f32 %v2109, %v2110
      %v2112 = vrot.slane %v2111, 2
      %v2113 = vadd.f32 %v2111, %v2112
      %v2114 = vrot.slane %v2113, 1
      %v2115 = vadd.f32 %v2113, %v2114
      %v2116 = vsel %vm2065, %v2096, 0.0
      %v2117 = vrot.slane %v2116, 4
      %v2118 = vadd.f32 %v2116, %v2117
      %v2119 = vrot.slane %v2118, 2
      %v2120 = vadd.f32 %v2118, %v2119
      %v2121 = vrot.slane %v2120, 1
      %v2122 = vadd.f32 %v2120, %v2121
      %v2123 = vsel %vm2065, %v2097, 0.0
      %v2124 = vrot.slane %v2123, 4
      %v2125 = vadd.f32 %v2123, %v2124
      %v2126 = vrot.slane %v2125, 2
      %v2127 = vadd.f32 %v2125, %v2126
      %v2128 = vrot.slane %v2127, 1
      %v2129 = vadd.f32 %v2127, %v2128
      %v2130 = vrcp.pop 2.0
      %v2131 = vmul.f32 2.0, %v2130
      %v2132 = vsub.f32 1.0, %v2131
      %v2133 = vmul.f32 %v2130, %v2132
      %v2134 = vadd.f32 %v2130, %v2133
      %vm2135 = vweird.f32 %v2130
      %v2136 = vsel %vm2135, %v2130, %v2134
      %v2137 = vmul.f32 %v2108, %v2136
      %v2138 = vmul.f32 %v2115, %v2136
      %v2139 = vmul.f32 %v2122, %v2136
      %v2140 = vmul.f32 %v2129, %v2136
      %v2145 = vrot.slane %v2138, 6
      %v2146 = vrot.slane %v2139, 4
      %v2147 = vrot.slane %v2140, 2
      %v2148 = vsel %vm2065, %v2137, %v2145
      %v2149 = vsel %vm2067, %v2146, %v2147
      %v2150 = vsel %vm2069, %v2148, %v2149
      %v2152 = vsub.f32 %v2091, %v2150
      %v2153 = vmul.f32 %v2152, %v2152
      %2155 = vst [vmem:[#allocation1] ss:$4 sm:$0xff] %v2153
      %v2156 = vld.sshfl [vmem:[#allocation1] sm:$0xff pattern:$0x73625140]
      %v2157 = vld.sshfl [vmem:[#allocation1 + $0x8] sm:$0xff pattern:$0x73625140]
      %v2158 = vld.sshfl [vmem:[#allocation1 + $0x10] sm:$0xff pattern:$0x73625140]
      %v2159 = vld.sshfl [vmem:[#allocation1 + $0x18] sm:$0xff pattern:$0x73625140]
      %v2164 = vsel %vm2065, %v2156, 0.0
      %v2165 = vrot.slane %v2164, 4
      %v2166 = vadd.f32 %v2164, %v2165
      %v2167 = vrot.slane %v2166, 2
      %v2168 = vadd.f32 %v2166, %v2167
      %v2169 = vrot.slane %v2168, 1
      %v2170 = vadd.f32 %v2168, %v2169
      %v2171 = vsel %vm2065, %v2157, 0.0
      %v2172 = vrot.slane %v2171, 4
      %v2173 = vadd.f32 %v2171, %v2172
      %v2174 = vrot.slane %v2173, 2
      %v2175 = vadd.f32 %v2173, %v2174
      %v2176 = vrot.slane %v2175, 1
      %v2177 = vadd.f32 %v2175, %v2176
      %v2178 = vsel %vm2065, %v2158, 0.0
      %v2179 = vrot.slane %v2178, 4
      %v2180 = vadd.f32 %v2178, %v2179
      %v2181 = vrot.slane %v2180, 2
      %v2182 = vadd.f32 %v2180, %v2181
      %v2183 = vrot.slane %v2182, 1
      %v2184 = vadd.f32 %v2182, %v2183
      %v2185 = vsel %vm2065, %v2159, 0.0
      %v2186 = vrot.slane %v2185, 4
      %v2187 = vadd.f32 %v2185, %v2186
      %v2188 = vrot.slane %v2187, 2
      %v2189 = vadd.f32 %v2187, %v2188
      %v2190 = vrot.slane %v2189, 1
      %v2191 = vadd.f32 %v2189, %v2190
      %v2192 = vmul.f32 %v2170, %v2136
      %v2193 = vmul.f32 %v2177, %v2136
      %v2194 = vmul.f32 %v2184, %v2136
      %v2195 = vmul.f32 %v2191, %v2136
      %v2196 = vadd.f32 %v2192, 1e-05
      %v2197 = vadd.f32 %v2193, 1e-05
      %v2198 = vadd.f32 %v2194, 1e-05
      %v2199 = vadd.f32 %v2195, 1e-05
      %v2200 = vrsqrt.pop %v2196
      %v2201 = vmul.f32 %v2200, %v2196
      %v2202 = vmul.f32 %v2201, %v2200
      %v2203 = vmul.f32 0.5, %v2202
      %v2204 = vsub.f32 1.5, %v2203
      %v2205 = vmul.f32 %v2200, %v2204
      %vm2206 = vweird.f32 %v2196
      %vm2207 = vweird.f32 %v2200
      %vm2208 = vmor %vm2206, %vm2207
      %v2209 = vsel %vm2208, %v2200, %v2205
      %v2210 = vrsqrt.pop %v2197
      %v2211 = vmul.f32 %v2210, %v2197
      %v2212 = vmul.f32 %v2211, %v2210
      %v2213 = vmul.f32 0.5, %v2212
      %v2214 = vsub.f32 1.5, %v2213
      %v2215 = vmul.f32 %v2210, %v2214
      %vm2216 = vweird.f32 %v2197
      %vm2217 = vweird.f32 %v2210
      %vm2218 = vmor %vm2216, %vm2217
      %v2219 = vsel %vm2218, %v2210, %v2215
      %v2220 = vrsqrt.pop %v2198
      %v2221 = vmul.f32 %v2220, %v2198
      %v2222 = vmul.f32 %v2221, %v2220
      %v2223 = vmul.f32 0.5, %v2222
      %v2224 = vsub.f32 1.5, %v2223
      %v2225 = vmul.f32 %v2220, %v2224
      %vm2226 = vweird.f32 %v2198
      %vm2227 = vweird.f32 %v2220
      %vm2228 = vmor %vm2226, %vm2227
      %v2229 = vsel %vm2228, %v2220, %v2225
      %v2230 = vrsqrt.pop %v2199
      %v2231 = vmul.f32 %v2230, %v2199
      %v2232 = vmul.f32 %v2231, %v2230
      %v2233 = vmul.f32 0.5, %v2232
      %v2234 = vsub.f32 1.5, %v2233
      %v2235 = vmul.f32 %v2230, %v2234
      %vm2236 = vweird.f32 %v2199
      %vm2237 = vweird.f32 %v2230
      %vm2238 = vmor %vm2236, %vm2237
      %v2239 = vsel %vm2238, %v2230, %v2235
      %v2244 = vrot.slane %v2219, 6
      %v2245 = vrot.slane %v2229, 4
      %v2246 = vrot.slane %v2239, 2
      %v2247 = vsel %vm2065, %v2209, %v2244
      %v2248 = vsel %vm2067, %v2245, %v2246
      %v2249 = vsel %vm2069, %v2247, %v2248
      %v2251 = vmul.f32 %v2152, %v2249
      %v2252 = vld [vmem:[#allocation6] sm:$0xf]
      %v2254 = vperm.slane %v2252, 0
      %v2255 = vperm.slane %v2252, 1
      %v2256 = vperm.slane %v2252, 2
      %v2257 = vperm.slane %v2252, 3
      %v2258 = vrot.slane %v2255, 6
      %v2259 = vrot.slane %v2256, 4
      %v2260 = vrot.slane %v2257, 2
      %v2261 = vsel %vm2065, %v2254, %v2258
      %v2262 = vsel %vm2067, %v2259, %v2260
      %v2263 = vsel %vm2069, %v2261, %v2262
      %v2265 = vmul.f32 %v2251, %v2263
      %v2266 = vld [vmem:[#allocation7] sm:$0xf]
      %v2268 = vperm.slane %v2266, 0
      %v2269 = vperm.slane %v2266, 1
      %v2270 = vperm.slane %v2266, 2
      %v2271 = vperm.slane %v2266, 3
      %v2272 = vrot.slane %v2269, 6
      %v2273 = vrot.slane %v2270, 4
      %v2274 = vrot.slane %v2271, 2
      %v2275 = vsel %vm2065, %v2268, %v2272
      %v2276 = vsel %vm2067, %v2273, %v2274
      %v2277 = vsel %vm2069, %v2275, %v2276
      %v2279 = vadd.f32 %v2265, %v2277
      %v2280 = vmax.f32 %v2279, 0.0
      %2281 = vst [vmem:[%s5] sm:$0xff] %v2280
    $region45: #{dann2_forward.4} parent=1 // pred_fallthru
      _
    // Predicated region
    $region46: #{dann2_forward.4} parent=1 // pred_check
      _
    $region47: #{dann2_forward.4} parent=1 // pred_check_branch
      %2283 = sbr.rel (0) target = $region49
    $region48: #{dann2_forward.4} parent=1 // pred_region
      _
    $region49: #{dann2_forward.4} parent=1 // pred_fallthru
      _
    // Predicated region
    $region50: #{dann2_forward.4} parent=1 // pred_check
      _
    $region51: #{dann2_forward.4} parent=1 // pred_check_branch
      %2285 = sbr.rel (0) target = $region53
    $region52: #{dann2_forward.4} parent=1 // pred_region
      _
    $region53: #{dann2_forward.4} parent=1 // pred_fallthru
      _
    %2286 = vsyncpa [#allocation3], 1
    %2287 = vsyncpa [#allocation5], 1
    %2288 = vsyncpa [#allocation8], 1

// kernel: dann2_forward.6
$region0: #{dann2_forward.6}
  #allocation0 [shape = 'u32[]', space=smem, size = 0x4, offset = 0x4, fixed_abs, tag = 'smem constant byte address 0x4 - core index']
  #allocation1 [shape = 'u32[72,128]{1,0:T(1,128)}', space=vmem, size = 0x9000, scoped, tag = 'internal scratch']
  %s0 = inlined_call_operand.vmem [shape: bf16[2,1024], index: 0, kind: input, shape index: {}]
  %s1 = inlined_call_operand.hbm [shape: bf16[1,1,1024,2048], index: 1, kind: input, shape index: {}]
  %s2 = inlined_call_operand.hbm [shape: f32[1,2048], index: 2, kind: input, shape index: {}]
  %s3 = inlined_call_operand.hbm [shape: f32[1,2048], index: 3, kind: input, shape index: {}]
  %s4 = inlined_call_operand.hbm [shape: f32[1,2048], index: 4, kind: input, shape index: {}]
  %s5 = inlined_call_operand.vmem [shape: f32[2,2048], index: 5, kind: output, shape index: {}]
  %s6 = sld [smem:[#allocation0]]
  $region54: #{dann2_forward.6} parent=0
    _
  %s8 = ssub.s32 1, %s6
  %s9 = scalar_select 0, %s8, %s6
  $region1: #{dann2_forward.6} parent=0
    #allocation2 [shape = 'u8[4194304]{0}', space=vmem, size = 0x400000, scoped, tag = 'input window, operand 1, single buffered']
    #allocation3 [shape = 's32[1]{0}', space=sflag, size = 0x4, scoped, tag = 'scoped memory for dann2_forward.6']
    #allocation4 [shape = 'u8[8192]{0}', space=vmem, size = 0x2000, scoped, tag = 'input window, operand 2, single buffered']
    #allocation5 [shape = 's32[1]{0}', space=sflag, size = 0x4, scoped, tag = 'scoped memory for dann2_forward.6']
    #allocation6 [shape = 'u8[8192]{0}', space=vmem, size = 0x2000, scoped, tag = 'input window, operand 3, single buffered']
    #allocation7 [shape = 'u8[8192]{0}', space=vmem, size = 0x2000, scoped, tag = 'input window, operand 4, single buffered']
    #allocation8 [shape = 's32[1]{0}', space=sflag, size = 0x4, scoped, tag = 'scoped memory for dann2_forward.6']
    %10 = vsyncpa [#allocation3], 0
    %11 = vsyncpa [#allocation5], 0
    %12 = vsyncpa [#allocation8], 0
    // Predicated region
    $region2: #{dann2_forward.6} parent=1 // pred_check
      _
    $region3: #{dann2_forward.6} parent=1 // pred_check_branch
      %14 = sbr.rel (0) target = $region5
    $region4: #{dann2_forward.6} parent=1 // pred_region
      _
    $region5: #{dann2_forward.6} parent=1 // pred_fallthru
      _
    // Predicated region
    $region6: #{dann2_forward.6} parent=1 // pred_check
      _
    $region7: #{dann2_forward.6} parent=1 // pred_check_branch
      %16 = sbr.rel (0) target = $region9
    $region8: #{dann2_forward.6} parent=1 // pred_region
      %18 = vsyncadd [#allocation3], 0
      %s19 = sshll.u32 %s1, 4
      %s20 = int_to_ptr.hbm [resolvable:$true] %s19
      %s21 = sshll.u32 [#allocation2], 4
      %s22 = int_to_ptr.vmem [resolvable:$true] %s21
      %27 = dma.hbm_to_vmem [thread:$0]  %s20, 131072, %s22, [#allocation3], 1024, 1024, 64
    $region9: #{dann2_forward.6} parent=1 // pred_fallthru
      _
    // Predicated region
    $region10: #{dann2_forward.6} parent=1 // pred_check
      _
    $region11: #{dann2_forward.6} parent=1 // pred_check_branch
      %29 = sbr.rel (0) target = $region13
    $region12: #{dann2_forward.6} parent=1 // pred_region
      %31 = vsyncadd [#allocation5], 0
      %s33 = sshll.u32 %s2, 4
      %s34 = int_to_ptr.hbm [resolvable:$true] %s33
      %s35 = sshll.u32 [#allocation4], 4
      %s36 = int_to_ptr.vmem [resolvable:$true] %s35
      %38 = dma.hbm_to_vmem [thread:$0]  %s34, 256, %s36, [#allocation5]
    $region13: #{dann2_forward.6} parent=1 // pred_fallthru
      _
    // Predicated region
    $region14: #{dann2_forward.6} parent=1 // pred_check
      _
    $region15: #{dann2_forward.6} parent=1 // pred_check_branch
      %40 = sbr.rel (0) target = $region17
    $region16: #{dann2_forward.6} parent=1 // pred_region
      %42 = vsyncadd [#allocation5], 0
      %s44 = sshll.u32 %s3, 4
      %s45 = int_to_ptr.hbm [resolvable:$true] %s44
      %s46 = sshll.u32 [#allocation6], 4
      %s47 = int_to_ptr.vmem [resolvable:$true] %s46
      %49 = dma.hbm_to_vmem [thread:$0]  %s45, 256, %s47, [#allocation5]
    $region17: #{dann2_forward.6} parent=1 // pred_fallthru
      _
    // Predicated region
    $region18: #{dann2_forward.6} parent=1 // pred_check
      _
    $region19: #{dann2_forward.6} parent=1 // pred_check_branch
      %51 = sbr.rel (0) target = $region21
    $region20: #{dann2_forward.6} parent=1 // pred_region
      %53 = vsyncadd [#allocation8], 0
      %s55 = sshll.u32 %s4, 4
      %s56 = int_to_ptr.hbm [resolvable:$true] %s55
      %s57 = sshll.u32 [#allocation7], 4
      %s58 = int_to_ptr.vmem [resolvable:$true] %s57
      %60 = dma.hbm_to_vmem [thread:$0]  %s56, 256, %s58, [#allocation8]
    $region21: #{dann2_forward.6} parent=1 // pred_fallthru
      _
    // Predicated region
    $region22: #{dann2_forward.6} parent=1 // pred_check
      _
    $region23: #{dann2_forward.6} parent=1 // pred_check_branch
      %62 = sbr.rel (0) target = $region25
    $region24: #{dann2_forward.6} parent=1 // pred_region
      %64 = dma.done [#allocation3], 131072
    $region25: #{dann2_forward.6} parent=1 // pred_fallthru
      _
    // Predicated region
    $region26: #{dann2_forward.6} parent=1 // pred_check
      _
    $region27: #{dann2_forward.6} parent=1 // pred_check_branch
      %66 = sbr.rel (0) target = $region29
    $region28: #{dann2_forward.6} parent=1 // pred_region
      %68 = dma.done [#allocation5], 256
    $region29: #{dann2_forward.6} parent=1 // pred_fallthru
      _
    // Predicated region
    $region30: #{dann2_forward.6} parent=1 // pred_check
      _
    $region31: #{dann2_forward.6} parent=1 // pred_check_branch
      %70 = sbr.rel (0) target = $region33
    $region32: #{dann2_forward.6} parent=1 // pred_region
      %72 = dma.done [#allocation5], 256
    $region33: #{dann2_forward.6} parent=1 // pred_fallthru
      _
    // Predicated region
    $region34: #{dann2_forward.6} parent=1 // pred_check
      _
    $region35: #{dann2_forward.6} parent=1 // pred_check_branch
      %74 = sbr.rel (0) target = $region37
    $region36: #{dann2_forward.6} parent=1 // pred_region
      %76 = dma.done [#allocation8], 256
    $region37: #{dann2_forward.6} parent=1 // pred_fallthru
      _
    %p77 = scmp.eq.s32.totalorder 0, 0
    // Predicated region
    $region38: #{dann2_forward.6} parent=1 // pred_check
      %p78 = pneg %p77
    $region39: #{dann2_forward.6} parent=1 // pred_check_branch
      %80 = sbr.rel (%p78) target = $region41
    $region40: #{dann2_forward.6} parent=1 // pred_region
      %81 = vst [vmem:[%s5] sm:$0xff] 0.0
      %82 = vst [vmem:[%s5 + $0x8] sm:$0xff] 0.0
      %83 = vst [vmem:[%s5 + $0x10] sm:$0xff] 0.0
      %84 = vst [vmem:[%s5 + $0x18] sm:$0xff] 0.0
    $region41: #{dann2_forward.6} parent=1 // pred_fallthru
      _
    %s85 = smul.u32 0, 1024
    %s86 = sshra.s32 %s85, 7
    %s87 = sand.u32 %s85, 127
    %s88 = scalar_lea.vmem %s0, %s86
    %v89 = vld [vmem:[%s88] sm:$0xff]
    %v90 = vld [vmem:[%s5] sm:$0xff]
    %v91 = vld [vmem:[%s5 + $0x8] sm:$0xff]
    %v92 = vld [vmem:[%s5 + $0x10] sm:$0xff]
    %v93 = vld [vmem:[%s5 + $0x18] sm:$0xff]
    %v94 = vld [vmem:[#allocation2] sm:$0xff]
    %v95 = vld [vmem:[#allocation2 + $0x8] sm:$0xff]
    %v96 = vld [vmem:[#allocation2 + $0x10] sm:$0xff]
    %v97 = vld [vmem:[#allocation2 + $0x18] sm:$0xff]
    %v98 = vld [vmem:[#allocation2 + $0x20] sm:$0xff]
    %v99 = vld [vmem:[#allocation2 + $0x28] sm:$0xff]
    %v100 = vld [vmem:[#allocation2 + $0x30] sm:$0xff]
    %v101 = vld [vmem:[#allocation2 + $0x38] sm:$0xff]
    %v102 = vld [vmem:[#allocation2 + $0x40] sm:$0xff]
    %v103 = vld [vmem:[#allocation2 + $0x48] sm:$0xff]
    %v104 = vld [vmem:[#allocation2 + $0x50] sm:$0xff]
    %v105 = vld [vmem:[#allocation2 + $0x58] sm:$0xff]
    %v106 = vld [vmem:[#allocation2 + $0x60] sm:$0xff]
    %v107 = vld [vmem:[#allocation2 + $0x68] sm:$0xff]
    %v108 = vld [vmem:[#allocation2 + $0x70] sm:$0xff]
    %v109 = vld [vmem:[#allocation2 + $0x78] sm:$0xff]
    %v110 = vld [vmem:[#allocation2 + $0x80] sm:$0xff]
    %v111 = vld [vmem:[#allocation2 + $0x88] sm:$0xff]
    %v112 = vld [vmem:[#allocation2 + $0x90] sm:$0xff]
    %v113 = vld [vmem:[#allocation2 + $0x98] sm:$0xff]
    %v114 = vld [vmem:[#allocation2 + $0xa0] sm:$0xff]
    %v115 = vld [vmem:[#allocation2 + $0xa8] sm:$0xff]
    %v116 = vld [vmem:[#allocation2 + $0xb0] sm:$0xff]
    %v117 = vld [vmem:[#allocation2 + $0xb8] sm:$0xff]
    %v118 = vld [vmem:[#allocation2 + $0xc0] sm:$0xff]
    %v119 = vld [vmem:[#allocation2 + $0xc8] sm:$0xff]
    %v120 = vld [vmem:[#allocation2 + $0xd0] sm:$0xff]
    %v121 = vld [vmem:[#allocation2 + $0xd8] sm:$0xff]
    %v122 = vld [vmem:[#allocation2 + $0xe0] sm:$0xff]
    %v123 = vld [vmem:[#allocation2 + $0xe8] sm:$0xff]
    %v124 = vld [vmem:[#allocation2 + $0xf0] sm:$0xff]
    %v125 = vld [vmem:[#allocation2 + $0xf8] sm:$0xff]
    %v126 = vld [vmem:[#allocation2 + $0x100] sm:$0xff]
    %v127 = vld [vmem:[#allocation2 + $0x108] sm:$0xff]
    %v128 = vld [vmem:[#allocation2 + $0x110] sm:$0xff]
    %v129 = vld [vmem:[#allocation2 + $0x118] sm:$0xff]
    %v130 = vld [vmem:[#allocation2 + $0x120] sm:$0xff]
    %v131 = vld [vmem:[#allocation2 + $0x128] sm:$0xff]
    %v132 = vld [vmem:[#allocation2 + $0x130] sm:$0xff]
    %v133 = vld [vmem:[#allocation2 + $0x138] sm:$0xff]
    %v134 = vld [vmem:[#allocation2 + $0x140] sm:$0xff]
    %v135 = vld [vmem:[#allocation2 + $0x148] sm:$0xff]
    %v136 = vld [vmem:[#allocation2 + $0x150] sm:$0xff]
    %v137 = vld [vmem:[#allocation2 + $0x158] sm:$0xff]
    %v138 = vld [vmem:[#allocation2 + $0x160] sm:$0xff]
    %v139 = vld [vmem:[#allocation2 + $0x168] sm:$0xff]
    %v140 = vld [vmem:[#allocation2 + $0x170] sm:$0xff]
    %v141 = vld [vmem:[#allocation2 + $0x178] sm:$0xff]
    %v142 = vld [vmem:[#allocation2 + $0x180] sm:$0xff]
    %v143 = vld [vmem:[#allocation2 + $0x188] sm:$0xff]
    %v144 = vld [vmem:[#allocation2 + $0x190] sm:$0xff]
    %v145 = vld [vmem:[#allocation2 + $0x198] sm:$0xff]
    %v146 = vld [vmem:[#allocation2 + $0x1a0] sm:$0xff]
    %v147 = vld [vmem:[#allocation2 + $0x1a8] sm:$0xff]
    %v148 = vld [vmem:[#allocation2 + $0x1b0] sm:$0xff]
    %v149 = vld [vmem:[#allocation2 + $0x1b8] sm:$0xff]
    %v150 = vld [vmem:[#allocation2 + $0x1c0] sm:$0xff]
    %v151 = vld [vmem:[#allocation2 + $0x1c8] sm:$0xff]
    %v152 = vld [vmem:[#allocation2 + $0x1d0] sm:$0xff]
    %v153 = vld [vmem:[#allocation2 + $0x1d8] sm:$0xff]
    %v154 = vld [vmem:[#allocation2 + $0x1e0] sm:$0xff]
    %v155 = vld [vmem:[#allocation2 + $0x1e8] sm:$0xff]
    %v156 = vld [vmem:[#allocation2 + $0x1f0] sm:$0xff]
    %v157 = vld [vmem:[#allocation2 + $0x1f8] sm:$0xff]
    %v158 = vld [vmem:[#allocation2 + $0x200] sm:$0xff]
    %v159 = vld [vmem:[#allocation2 + $0x208] sm:$0xff]
    %v160 = vld [vmem:[#allocation2 + $0x210] sm:$0xff]
    %v161 = vld [vmem:[#allocation2 + $0x218] sm:$0xff]
    %v162 = vld [vmem:[#allocation2 + $0x220] sm:$0xff]
    %v163 = vld [vmem:[#allocation2 + $0x228] sm:$0xff]
    %v164 = vld [vmem:[#allocation2 + $0x230] sm:$0xff]
    %v165 = vld [vmem:[#allocation2 + $0x238] sm:$0xff]
    %v166 = vld [vmem:[#allocation2 + $0x240] sm:$0xff]
    %v167 = vld [vmem:[#allocation2 + $0x248] sm:$0xff]
    %v168 = vld [vmem:[#allocation2 + $0x250] sm:$0xff]
    %v169 = vld [vmem:[#allocation2 + $0x258] sm:$0xff]
    %v170 = vld [vmem:[#allocation2 + $0x260] sm:$0xff]
    %v171 = vld [vmem:[#allocation2 + $0x268] sm:$0xff]
    %v172 = vld [vmem:[#allocation2 + $0x270] sm:$0xff]
    %v173 = vld [vmem:[#allocation2 + $0x278] sm:$0xff]
    %v174 = vld [vmem:[#allocation2 + $0x280] sm:$0xff]
    %v175 = vld [vmem:[#allocation2 + $0x288] sm:$0xff]
    %v176 = vld [vmem:[#allocation2 + $0x290] sm:$0xff]
    %v177 = vld [vmem:[#allocation2 + $0x298] sm:$0xff]
    %v178 = vld [vmem:[#allocation2 + $0x2a0] sm:$0xff]
    %v179 = vld [vmem:[#allocation2 + $0x2a8] sm:$0xff]
    %v180 = vld [vmem:[#allocation2 + $0x2b0] sm:$0xff]
    %v181 = vld [vmem:[#allocation2 + $0x2b8] sm:$0xff]
    %v182 = vld [vmem:[#allocation2 + $0x2c0] sm:$0xff]
    %v183 = vld [vmem:[#allocation2 + $0x2c8] sm:$0xff]
    %v184 = vld [vmem:[#allocation2 + $0x2d0] sm:$0xff]
    %v185 = vld [vmem:[#allocation2 + $0x2d8] sm:$0xff]
    %v186 = vld [vmem:[#allocation2 + $0x2e0] sm:$0xff]
    %v187 = vld [vmem:[#allocation2 + $0x2e8] sm:$0xff]
    %v188 = vld [vmem:[#allocation2 + $0x2f0] sm:$0xff]
    %v189 = vld [vmem:[#allocation2 + $0x2f8] sm:$0xff]
    %v190 = vld [vmem:[#allocation2 + $0x300] sm:$0xff]
    %v191 = vld [vmem:[#allocation2 + $0x308] sm:$0xff]
    %v192 = vld [vmem:[#allocation2 + $0x310] sm:$0xff]
    %v193 = vld [vmem:[#allocation2 + $0x318] sm:$0xff]
    %v194 = vld [vmem:[#allocation2 + $0x320] sm:$0xff]
    %v195 = vld [vmem:[#allocation2 + $0x328] sm:$0xff]
    %v196 = vld [vmem:[#allocation2 + $0x330] sm:$0xff]
    %v197 = vld [vmem:[#allocation2 + $0x338] sm:$0xff]
    %v198 = vld [vmem:[#allocation2 + $0x340] sm:$0xff]
    %v199 = vld [vmem:[#allocation2 + $0x348] sm:$0xff]
    %v200 = vld [vmem:[#allocation2 + $0x350] sm:$0xff]
    %v201 = vld [vmem:[#allocation2 + $0x358] sm:$0xff]
    %v202 = vld [vmem:[#allocation2 + $0x360] sm:$0xff]
    %v203 = vld [vmem:[#allocation2 + $0x368] sm:$0xff]
    %v204 = vld [vmem:[#allocation2 + $0x370] sm:$0xff]
    %v205 = vld [vmem:[#allocation2 + $0x378] sm:$0xff]
    %v206 = vld [vmem:[#allocation2 + $0x380] sm:$0xff]
    %v207 = vld [vmem:[#allocation2 + $0x388] sm:$0xff]
    %v208 = vld [vmem:[#allocation2 + $0x390] sm:$0xff]
    %v209 = vld [vmem:[#allocation2 + $0x398] sm:$0xff]
    %v210 = vld [vmem:[#allocation2 + $0x3a0] sm:$0xff]
    %v211 = vld [vmem:[#allocation2 + $0x3a8] sm:$0xff]
    %v212 = vld [vmem:[#allocation2 + $0x3b0] sm:$0xff]
    %v213 = vld [vmem:[#allocation2 + $0x3b8] sm:$0xff]
    %v214 = vld [vmem:[#allocation2 + $0x3c0] sm:$0xff]
    %v215 = vld [vmem:[#allocation2 + $0x3c8] sm:$0xff]
    %v216 = vld [vmem:[#allocation2 + $0x3d0] sm:$0xff]
    %v217 = vld [vmem:[#allocation2 + $0x3d8] sm:$0xff]
    %v218 = vld [vmem:[#allocation2 + $0x3e0] sm:$0xff]
    %v219 = vld [vmem:[#allocation2 + $0x3e8] sm:$0xff]
    %v220 = vld [vmem:[#allocation2 + $0x3f0] sm:$0xff]
    %v221 = vld [vmem:[#allocation2 + $0x3f8] sm:$0xff]
    %v222 = vld [vmem:[#allocation2 + $0x400] sm:$0xff]
    %v223 = vld [vmem:[#allocation2 + $0x408] sm:$0xff]
    %v224 = vld [vmem:[#allocation2 + $0x410] sm:$0xff]
    %v225 = vld [vmem:[#allocation2 + $0x418] sm:$0xff]
    %v226 = vld [vmem:[#allocation2 + $0x420] sm:$0xff]
    %v227 = vld [vmem:[#allocation2 + $0x428] sm:$0xff]
    %v228 = vld [vmem:[#allocation2 + $0x430] sm:$0xff]
    %v229 = vld [vmem:[#allocation2 + $0x438] sm:$0xff]
    %v230 = vld [vmem:[#allocation2 + $0x440] sm:$0xff]
    %v231 = vld [vmem:[#allocation2 + $0x448] sm:$0xff]
    %v232 = vld [vmem:[#allocation2 + $0x450] sm:$0xff]
    %v233 = vld [vmem:[#allocation2 + $0x458] sm:$0xff]
    %v234 = vld [vmem:[#allocation2 + $0x460] sm:$0xff]
    %v235 = vld [vmem:[#allocation2 + $0x468] sm:$0xff]
    %v236 = vld [vmem:[#allocation2 + $0x470] sm:$0xff]
    %v237 = vld [vmem:[#allocation2 + $0x478] sm:$0xff]
    %v238 = vld [vmem:[#allocation2 + $0x480] sm:$0xff]
    %v239 = vld [vmem:[#allocation2 + $0x488] sm:$0xff]
    %v240 = vld [vmem:[#allocation2 + $0x490] sm:$0xff]
    %v241 = vld [vmem:[#allocation2 + $0x498] sm:$0xff]
    %v242 = vld [vmem:[#allocation2 + $0x4a0] sm:$0xff]
    %v243 = vld [vmem:[#allocation2 + $0x4a8] sm:$0xff]
    %v244 = vld [vmem:[#allocation2 + $0x4b0] sm:$0xff]
    %v245 = vld [vmem:[#allocation2 + $0x4b8] sm:$0xff]
    %v246 = vld [vmem:[#allocation2 + $0x4c0] sm:$0xff]
    %v247 = vld [vmem:[#allocation2 + $0x4c8] sm:$0xff]
    %v248 = vld [vmem:[#allocation2 + $0x4d0] sm:$0xff]
    %v249 = vld [vmem:[#allocation2 + $0x4d8] sm:$0xff]
    %v250 = vld [vmem:[#allocation2 + $0x4e0] sm:$0xff]
    %v251 = vld [vmem:[#allocation2 + $0x4e8] sm:$0xff]
    %v252 = vld [vmem:[#allocation2 + $0x4f0] sm:$0xff]
    %v253 = vld [vmem:[#allocation2 + $0x4f8] sm:$0xff]
    %v254 = vld [vmem:[#allocation2 + $0x500] sm:$0xff]
    %v255 = vld [vmem:[#allocation2 + $0x508] sm:$0xff]
    %v256 = vld [vmem:[#allocation2 + $0x510] sm:$0xff]
    %v257 = vld [vmem:[#allocation2 + $0x518] sm:$0xff]
    %v258 = vld [vmem:[#allocation2 + $0x520] sm:$0xff]
    %v259 = vld [vmem:[#allocation2 + $0x528] sm:$0xff]
    %v260 = vld [vmem:[#allocation2 + $0x530] sm:$0xff]
    %v261 = vld [vmem:[#allocation2 + $0x538] sm:$0xff]
    %v262 = vld [vmem:[#allocation2 + $0x540] sm:$0xff]
    %v263 = vld [vmem:[#allocation2 + $0x548] sm:$0xff]
    %v264 = vld [vmem:[#allocation2 + $0x550] sm:$0xff]
    %v265 = vld [vmem:[#allocation2 + $0x558] sm:$0xff]
    %v266 = vld [vmem:[#allocation2 + $0x560] sm:$0xff]
    %v267 = vld [vmem:[#allocation2 + $0x568] sm:$0xff]
    %v268 = vld [vmem:[#allocation2 + $0x570] sm:$0xff]
    %v269 = vld [vmem:[#allocation2 + $0x578] sm:$0xff]
    %v270 = vld [vmem:[#allocation2 + $0x580] sm:$0xff]
    %v271 = vld [vmem:[#allocation2 + $0x588] sm:$0xff]
    %v272 = vld [vmem:[#allocation2 + $0x590] sm:$0xff]
    %v273 = vld [vmem:[#allocation2 + $0x598] sm:$0xff]
    %v274 = vld [vmem:[#allocation2 + $0x5a0] sm:$0xff]
    %v275 = vld [vmem:[#allocation2 + $0x5a8] sm:$0xff]
    %v276 = vld [vmem:[#allocation2 + $0x5b0] sm:$0xff]
    %v277 = vld [vmem:[#allocation2 + $0x5b8] sm:$0xff]
    %v278 = vld [vmem:[#allocation2 + $0x5c0] sm:$0xff]
    %v279 = vld [vmem:[#allocation2 + $0x5c8] sm:$0xff]
    %v280 = vld [vmem:[#allocation2 + $0x5d0] sm:$0xff]
    %v281 = vld [vmem:[#allocation2 + $0x5d8] sm:$0xff]
    %v282 = vld [vmem:[#allocation2 + $0x5e0] sm:$0xff]
    %v283 = vld [vmem:[#allocation2 + $0x5e8] sm:$0xff]
    %v284 = vld [vmem:[#allocation2 + $0x5f0] sm:$0xff]
    %v285 = vld [vmem:[#allocation2 + $0x5f8] sm:$0xff]
    %v286 = vld [vmem:[#allocation2 + $0x600] sm:$0xff]
    %v287 = vld [vmem:[#allocation2 + $0x608] sm:$0xff]
    %v288 = vld [vmem:[#allocation2 + $0x610] sm:$0xff]
    %v289 = vld [vmem:[#allocation2 + $0x618] sm:$0xff]
    %v290 = vld [vmem:[#allocation2 + $0x620] sm:$0xff]
    %v291 = vld [vmem:[#allocation2 + $0x628] sm:$0xff]
    %v292 = vld [vmem:[#allocation2 + $0x630] sm:$0xff]
    %v293 = vld [vmem:[#allocation2 + $0x638] sm:$0xff]
    %v294 = vld [vmem:[#allocation2 + $0x640] sm:$0xff]
    %v295 = vld [vmem:[#allocation2 + $0x648] sm:$0xff]
    %v296 = vld [vmem:[#allocation2 + $0x650] sm:$0xff]
    %v297 = vld [vmem:[#allocation2 + $0x658] sm:$0xff]
    %v298 = vld [vmem:[#allocation2 + $0x660] sm:$0xff]
    %v299 = vld [vmem:[#allocation2 + $0x668] sm:$0xff]
    %v300 = vld [vmem:[#allocation2 + $0x670] sm:$0xff]
    %v301 = vld [vmem:[#allocation2 + $0x678] sm:$0xff]
    %v302 = vld [vmem:[#allocation2 + $0x680] sm:$0xff]
    %v303 = vld [vmem:[#allocation2 + $0x688] sm:$0xff]
    %v304 = vld [vmem:[#allocation2 + $0x690] sm:$0xff]
    %v305 = vld [vmem:[#allocation2 + $0x698] sm:$0xff]
    %v306 = vld [vmem:[#allocation2 + $0x6a0] sm:$0xff]
    %v307 = vld [vmem:[#allocation2 + $0x6a8] sm:$0xff]
    %v308 = vld [vmem:[#allocation2 + $0x6b0] sm:$0xff]
    %v309 = vld [vmem:[#allocation2 + $0x6b8] sm:$0xff]
    %v310 = vld [vmem:[#allocation2 + $0x6c0] sm:$0xff]
    %v311 = vld [vmem:[#allocation2 + $0x6c8] sm:$0xff]
    %v312 = vld [vmem:[#allocation2 + $0x6d0] sm:$0xff]
    %v313 = vld [vmem:[#allocation2 + $0x6d8] sm:$0xff]
    %v314 = vld [vmem:[#allocation2 + $0x6e0] sm:$0xff]
    %v315 = vld [vmem:[#allocation2 + $0x6e8] sm:$0xff]
    %v316 = vld [vmem:[#allocation2 + $0x6f0] sm:$0xff]
    %v317 = vld [vmem:[#allocation2 + $0x6f8] sm:$0xff]
    %v318 = vld [vmem:[#allocation2 + $0x700] sm:$0xff]
    %v319 = vld [vmem:[#allocation2 + $0x708] sm:$0xff]
    %v320 = vld [vmem:[#allocation2 + $0x710] sm:$0xff]
    %v321 = vld [vmem:[#allocation2 + $0x718] sm:$0xff]
    %v322 = vld [vmem:[#allocation2 + $0x720] sm:$0xff]
    %v323 = vld [vmem:[#allocation2 + $0x728] sm:$0xff]
    %v324 = vld [vmem:[#allocation2 + $0x730] sm:$0xff]
    %v325 = vld [vmem:[#allocation2 + $0x738] sm:$0xff]
    %v326 = vld [vmem:[#allocation2 + $0x740] sm:$0xff]
    %v327 = vld [vmem:[#allocation2 + $0x748] sm:$0xff]
    %v328 = vld [vmem:[#allocation2 + $0x750] sm:$0xff]
    %v329 = vld [vmem:[#allocation2 + $0x758] sm:$0xff]
    %v330 = vld [vmem:[#allocation2 + $0x760] sm:$0xff]
    %v331 = vld [vmem:[#allocation2 + $0x768] sm:$0xff]
    %v332 = vld [vmem:[#allocation2 + $0x770] sm:$0xff]
    %v333 = vld [vmem:[#allocation2 + $0x778] sm:$0xff]
    %v334 = vld [vmem:[#allocation2 + $0x780] sm:$0xff]
    %v335 = vld [vmem:[#allocation2 + $0x788] sm:$0xff]
    %v336 = vld [vmem:[#allocation2 + $0x790] sm:$0xff]
    %v337 = vld [vmem:[#allocation2 + $0x798] sm:$0xff]
    %v338 = vld [vmem:[#allocation2 + $0x7a0] sm:$0xff]
    %v339 = vld [vmem:[#allocation2 + $0x7a8] sm:$0xff]
    %v340 = vld [vmem:[#allocation2 + $0x7b0] sm:$0xff]
    %v341 = vld [vmem:[#allocation2 + $0x7b8] sm:$0xff]
    %v342 = vld [vmem:[#allocation2 + $0x7c0] sm:$0xff]
    %v343 = vld [vmem:[#allocation2 + $0x7c8] sm:$0xff]
    %v344 = vld [vmem:[#allocation2 + $0x7d0] sm:$0xff]
    %v345 = vld [vmem:[#allocation2 + $0x7d8] sm:$0xff]
    %v346 = vld [vmem:[#allocation2 + $0x7e0] sm:$0xff]
    %v347 = vld [vmem:[#allocation2 + $0x7e8] sm:$0xff]
    %v348 = vld [vmem:[#allocation2 + $0x7f0] sm:$0xff]
    %v349 = vld [vmem:[#allocation2 + $0x7f8] sm:$0xff]
    %v350 = vld [vmem:[#allocation2 + $0x800] sm:$0xff]
    %v351 = vld [vmem:[#allocation2 + $0x808] sm:$0xff]
    %v352 = vld [vmem:[#allocation2 + $0x810] sm:$0xff]
    %v353 = vld [vmem:[#allocation2 + $0x818] sm:$0xff]
    %v354 = vld [vmem:[#allocation2 + $0x820] sm:$0xff]
    %v355 = vld [vmem:[#allocation2 + $0x828] sm:$0xff]
    %v356 = vld [vmem:[#allocation2 + $0x830] sm:$0xff]
    %v357 = vld [vmem:[#allocation2 + $0x838] sm:$0xff]
    %v358 = vld [vmem:[#allocation2 + $0x840] sm:$0xff]
    %v359 = vld [vmem:[#allocation2 + $0x848] sm:$0xff]
    %v360 = vld [vmem:[#allocation2 + $0x850] sm:$0xff]
    %v361 = vld [vmem:[#allocation2 + $0x858] sm:$0xff]
    %v362 = vld [vmem:[#allocation2 + $0x860] sm:$0xff]
    %v363 = vld [vmem:[#allocation2 + $0x868] sm:$0xff]
    %v364 = vld [vmem:[#allocation2 + $0x870] sm:$0xff]
    %v365 = vld [vmem:[#allocation2 + $0x878] sm:$0xff]
    %v366 = vld [vmem:[#allocation2 + $0x880] sm:$0xff]
    %v367 = vld [vmem:[#allocation2 + $0x888] sm:$0xff]
    %v368 = vld [vmem:[#allocation2 + $0x890] sm:$0xff]
    %v369 = vld [vmem:[#allocation2 + $0x898] sm:$0xff]
    %v370 = vld [vmem:[#allocation2 + $0x8a0] sm:$0xff]
    %v371 = vld [vmem:[#allocation2 + $0x8a8] sm:$0xff]
    %v372 = vld [vmem:[#allocation2 + $0x8b0] sm:$0xff]
    %v373 = vld [vmem:[#allocation2 + $0x8b8] sm:$0xff]
    %v374 = vld [vmem:[#allocation2 + $0x8c0] sm:$0xff]
    %v375 = vld [vmem:[#allocation2 + $0x8c8] sm:$0xff]
    %v376 = vld [vmem:[#allocation2 + $0x8d0] sm:$0xff]
    %v377 = vld [vmem:[#allocation2 + $0x8d8] sm:$0xff]
    %v378 = vld [vmem:[#allocation2 + $0x8e0] sm:$0xff]
    %v379 = vld [vmem:[#allocation2 + $0x8e8] sm:$0xff]
    %v380 = vld [vmem:[#allocation2 + $0x8f0] sm:$0xff]
    %v381 = vld [vmem:[#allocation2 + $0x8f8] sm:$0xff]
    %v382 = vld [vmem:[#allocation2 + $0x900] sm:$0xff]
    %v383 = vld [vmem:[#allocation2 + $0x908] sm:$0xff]
    %v384 = vld [vmem:[#allocation2 + $0x910] sm:$0xff]
    %v385 = vld [vmem:[#allocation2 + $0x918] sm:$0xff]
    %v386 = vld [vmem:[#allocation2 + $0x920] sm:$0xff]
    %v387 = vld [vmem:[#allocation2 + $0x928] sm:$0xff]
    %v388 = vld [vmem:[#allocation2 + $0x930] sm:$0xff]
    %v389 = vld [vmem:[#allocation2 + $0x938] sm:$0xff]
    %v390 = vld [vmem:[#allocation2 + $0x940] sm:$0xff]
    %v391 = vld [vmem:[#allocation2 + $0x948] sm:$0xff]
    %v392 = vld [vmem:[#allocation2 + $0x950] sm:$0xff]
    %v393 = vld [vmem:[#allocation2 + $0x958] sm:$0xff]
    %v394 = vld [vmem:[#allocation2 + $0x960] sm:$0xff]
    %v395 = vld [vmem:[#allocation2 + $0x968] sm:$0xff]
    %v396 = vld [vmem:[#allocation2 + $0x970] sm:$0xff]
    %v397 = vld [vmem:[#allocation2 + $0x978] sm:$0xff]
    %v398 = vld [vmem:[#allocation2 + $0x980] sm:$0xff]
    %v399 = vld [vmem:[#allocation2 + $0x988] sm:$0xff]
    %v400 = vld [vmem:[#allocation2 + $0x990] sm:$0xff]
    %v401 = vld [vmem:[#allocation2 + $0x998] sm:$0xff]
    %v402 = vld [vmem:[#allocation2 + $0x9a0] sm:$0xff]
    %v403 = vld [vmem:[#allocation2 + $0x9a8] sm:$0xff]
    %v404 = vld [vmem:[#allocation2 + $0x9b0] sm:$0xff]
    %v405 = vld [vmem:[#allocation2 + $0x9b8] sm:$0xff]
    %v406 = vld [vmem:[#allocation2 + $0x9c0] sm:$0xff]
    %v407 = vld [vmem:[#allocation2 + $0x9c8] sm:$0xff]
    %v408 = vld [vmem:[#allocation2 + $0x9d0] sm:$0xff]
    %v409 = vld [vmem:[#allocation2 + $0x9d8] sm:$0xff]
    %v410 = vld [vmem:[#allocation2 + $0x9e0] sm:$0xff]
    %v411 = vld [vmem:[#allocation2 + $0x9e8] sm:$0xff]
    %v412 = vld [vmem:[#allocation2 + $0x9f0] sm:$0xff]
    %v413 = vld [vmem:[#allocation2 + $0x9f8] sm:$0xff]
    %v414 = vld [vmem:[#allocation2 + $0xa00] sm:$0xff]
    %v415 = vld [vmem:[#allocation2 + $0xa08] sm:$0xff]
    %v416 = vld [vmem:[#allocation2 + $0xa10] sm:$0xff]
    %v417 = vld [vmem:[#allocation2 + $0xa18] sm:$0xff]
    %v418 = vld [vmem:[#allocation2 + $0xa20] sm:$0xff]
    %v419 = vld [vmem:[#allocation2 + $0xa28] sm:$0xff]
    %v420 = vld [vmem:[#allocation2 + $0xa30] sm:$0xff]
    %v421 = vld [vmem:[#allocation2 + $0xa38] sm:$0xff]
    %v422 = vld [vmem:[#allocation2 + $0xa40] sm:$0xff]
    %v423 = vld [vmem:[#allocation2 + $0xa48] sm:$0xff]
    %v424 = vld [vmem:[#allocation2 + $0xa50] sm:$0xff]
    %v425 = vld [vmem:[#allocation2 + $0xa58] sm:$0xff]
    %v426 = vld [vmem:[#allocation2 + $0xa60] sm:$0xff]
    %v427 = vld [vmem:[#allocation2 + $0xa68] sm:$0xff]
    %v428 = vld [vmem:[#allocation2 + $0xa70] sm:$0xff]
    %v429 = vld [vmem:[#allocation2 + $0xa78] sm:$0xff]
    %v430 = vld [vmem:[#allocation2 + $0xa80] sm:$0xff]
    %v431 = vld [vmem:[#allocation2 + $0xa88] sm:$0xff]
    %v432 = vld [vmem:[#allocation2 + $0xa90] sm:$0xff]
    %v433 = vld [vmem:[#allocation2 + $0xa98] sm:$0xff]
    %v434 = vld [vmem:[#allocation2 + $0xaa0] sm:$0xff]
    %v435 = vld [vmem:[#allocation2 + $0xaa8] sm:$0xff]
    %v436 = vld [vmem:[#allocation2 + $0xab0] sm:$0xff]
    %v437 = vld [vmem:[#allocation2 + $0xab8] sm:$0xff]
    %v438 = vld [vmem:[#allocation2 + $0xac0] sm:$0xff]
    %v439 = vld [vmem:[#allocation2 + $0xac8] sm:$0xff]
    %v440 = vld [vmem:[#allocation2 + $0xad0] sm:$0xff]
    %v441 = vld [vmem:[#allocation2 + $0xad8] sm:$0xff]
    %v442 = vld [vmem:[#allocation2 + $0xae0] sm:$0xff]
    %v443 = vld [vmem:[#allocation2 + $0xae8] sm:$0xff]
    %v444 = vld [vmem:[#allocation2 + $0xaf0] sm:$0xff]
    %v445 = vld [vmem:[#allocation2 + $0xaf8] sm:$0xff]
    %v446 = vld [vmem:[#allocation2 + $0xb00] sm:$0xff]
    %v447 = vld [vmem:[#allocation2 + $0xb08] sm:$0xff]
    %v448 = vld [vmem:[#allocation2 + $0xb10] sm:$0xff]
    %v449 = vld [vmem:[#allocation2 + $0xb18] sm:$0xff]
    %v450 = vld [vmem:[#allocation2 + $0xb20] sm:$0xff]
    %v451 = vld [vmem:[#allocation2 + $0xb28] sm:$0xff]
    %v452 = vld [vmem:[#allocation2 + $0xb30] sm:$0xff]
    %v453 = vld [vmem:[#allocation2 + $0xb38] sm:$0xff]
    %v454 = vld [vmem:[#allocation2 + $0xb40] sm:$0xff]
    %v455 = vld [vmem:[#allocation2 + $0xb48] sm:$0xff]
    %v456 = vld [vmem:[#allocation2 + $0xb50] sm:$0xff]
    %v457 = vld [vmem:[#allocation2 + $0xb58] sm:$0xff]
    %v458 = vld [vmem:[#allocation2 + $0xb60] sm:$0xff]
    %v459 = vld [vmem:[#allocation2 + $0xb68] sm:$0xff]
    %v460 = vld [vmem:[#allocation2 + $0xb70] sm:$0xff]
    %v461 = vld [vmem:[#allocation2 + $0xb78] sm:$0xff]
    %v462 = vld [vmem:[#allocation2 + $0xb80] sm:$0xff]
    %v463 = vld [vmem:[#allocation2 + $0xb88] sm:$0xff]
    %v464 = vld [vmem:[#allocation2 + $0xb90] sm:$0xff]
    %v465 = vld [vmem:[#allocation2 + $0xb98] sm:$0xff]
    %v466 = vld [vmem:[#allocation2 + $0xba0] sm:$0xff]
    %v467 = vld [vmem:[#allocation2 + $0xba8] sm:$0xff]
    %v468 = vld [vmem:[#allocation2 + $0xbb0] sm:$0xff]
    %v469 = vld [vmem:[#allocation2 + $0xbb8] sm:$0xff]
    %v470 = vld [vmem:[#allocation2 + $0xbc0] sm:$0xff]
    %v471 = vld [vmem:[#allocation2 + $0xbc8] sm:$0xff]
    %v472 = vld [vmem:[#allocation2 + $0xbd0] sm:$0xff]
    %v473 = vld [vmem:[#allocation2 + $0xbd8] sm:$0xff]
    %v474 = vld [vmem:[#allocation2 + $0xbe0] sm:$0xff]
    %v475 = vld [vmem:[#allocation2 + $0xbe8] sm:$0xff]
    %v476 = vld [vmem:[#allocation2 + $0xbf0] sm:$0xff]
    %v477 = vld [vmem:[#allocation2 + $0xbf8] sm:$0xff]
    %v478 = vld [vmem:[#allocation2 + $0xc00] sm:$0xff]
    %v479 = vld [vmem:[#allocation2 + $0xc08] sm:$0xff]
    %v480 = vld [vmem:[#allocation2 + $0xc10] sm:$0xff]
    %v481 = vld [vmem:[#allocation2 + $0xc18] sm:$0xff]
    %v482 = vld [vmem:[#allocation2 + $0xc20] sm:$0xff]
    %v483 = vld [vmem:[#allocation2 + $0xc28] sm:$0xff]
    %v484 = vld [vmem:[#allocation2 + $0xc30] sm:$0xff]
    %v485 = vld [vmem:[#allocation2 + $0xc38] sm:$0xff]
    %v486 = vld [vmem:[#allocation2 + $0xc40] sm:$0xff]
    %v487 = vld [vmem:[#allocation2 + $0xc48] sm:$0xff]
    %v488 = vld [vmem:[#allocation2 + $0xc50] sm:$0xff]
    %v489 = vld [vmem:[#allocation2 + $0xc58] sm:$0xff]
    %v490 = vld [vmem:[#allocation2 + $0xc60] sm:$0xff]
    %v491 = vld [vmem:[#allocation2 + $0xc68] sm:$0xff]
    %v492 = vld [vmem:[#allocation2 + $0xc70] sm:$0xff]
    %v493 = vld [vmem:[#allocation2 + $0xc78] sm:$0xff]
    %v494 = vld [vmem:[#allocation2 + $0xc80] sm:$0xff]
    %v495 = vld [vmem:[#allocation2 + $0xc88] sm:$0xff]
    %v496 = vld [vmem:[#allocation2 + $0xc90] sm:$0xff]
    %v497 = vld [vmem:[#allocation2 + $0xc98] sm:$0xff]
    %v498 = vld [vmem:[#allocation2 + $0xca0] sm:$0xff]
    %v499 = vld [vmem:[#allocation2 + $0xca8] sm:$0xff]
    %v500 = vld [vmem:[#allocation2 + $0xcb0] sm:$0xff]
    %v501 = vld [vmem:[#allocation2 + $0xcb8] sm:$0xff]
    %v502 = vld [vmem:[#allocation2 + $0xcc0] sm:$0xff]
    %v503 = vld [vmem:[#allocation2 + $0xcc8] sm:$0xff]
    %v504 = vld [vmem:[#allocation2 + $0xcd0] sm:$0xff]
    %v505 = vld [vmem:[#allocation2 + $0xcd8] sm:$0xff]
    %v506 = vld [vmem:[#allocation2 + $0xce0] sm:$0xff]
    %v507 = vld [vmem:[#allocation2 + $0xce8] sm:$0xff]
    %v508 = vld [vmem:[#allocation2 + $0xcf0] sm:$0xff]
    %v509 = vld [vmem:[#allocation2 + $0xcf8] sm:$0xff]
    %v510 = vld [vmem:[#allocation2 + $0xd00] sm:$0xff]
    %v511 = vld [vmem:[#allocation2 + $0xd08] sm:$0xff]
    %v512 = vld [vmem:[#allocation2 + $0xd10] sm:$0xff]
    %v513 = vld [vmem:[#allocation2 + $0xd18] sm:$0xff]
    %v514 = vld [vmem:[#allocation2 + $0xd20] sm:$0xff]
    %v515 = vld [vmem:[#allocation2 + $0xd28] sm:$0xff]
    %v516 = vld [vmem:[#allocation2 + $0xd30] sm:$0xff]
    %v517 = vld [vmem:[#allocation2 + $0xd38] sm:$0xff]
    %v518 = vld [vmem:[#allocation2 + $0xd40] sm:$0xff]
    %v519 = vld [vmem:[#allocation2 + $0xd48] sm:$0xff]
    %v520 = vld [vmem:[#allocation2 + $0xd50] sm:$0xff]
    %v521 = vld [vmem:[#allocation2 + $0xd58] sm:$0xff]
    %v522 = vld [vmem:[#allocation2 + $0xd60] sm:$0xff]
    %v523 = vld [vmem:[#allocation2 + $0xd68] sm:$0xff]
    %v524 = vld [vmem:[#allocation2 + $0xd70] sm:$0xff]
    %v525 = vld [vmem:[#allocation2 + $0xd78] sm:$0xff]
    %v526 = vld [vmem:[#allocation2 + $0xd80] sm:$0xff]
    %v527 = vld [vmem:[#allocation2 + $0xd88] sm:$0xff]
    %v528 = vld [vmem:[#allocation2 + $0xd90] sm:$0xff]
    %v529 = vld [vmem:[#allocation2 + $0xd98] sm:$0xff]
    %v530 = vld [vmem:[#allocation2 + $0xda0] sm:$0xff]
    %v531 = vld [vmem:[#allocation2 + $0xda8] sm:$0xff]
    %v532 = vld [vmem:[#allocation2 + $0xdb0] sm:$0xff]
    %v533 = vld [vmem:[#allocation2 + $0xdb8] sm:$0xff]
    %v534 = vld [vmem:[#allocation2 + $0xdc0] sm:$0xff]
    %v535 = vld [vmem:[#allocation2 + $0xdc8] sm:$0xff]
    %v536 = vld [vmem:[#allocation2 + $0xdd0] sm:$0xff]
    %v537 = vld [vmem:[#allocation2 + $0xdd8] sm:$0xff]
    %v538 = vld [vmem:[#allocation2 + $0xde0] sm:$0xff]
    %v539 = vld [vmem:[#allocation2 + $0xde8] sm:$0xff]
    %v540 = vld [vmem:[#allocation2 + $0xdf0] sm:$0xff]
    %v541 = vld [vmem:[#allocation2 + $0xdf8] sm:$0xff]
    %v542 = vld [vmem:[#allocation2 + $0xe00] sm:$0xff]
    %v543 = vld [vmem:[#allocation2 + $0xe08] sm:$0xff]
    %v544 = vld [vmem:[#allocation2 + $0xe10] sm:$0xff]
    %v545 = vld [vmem:[#allocation2 + $0xe18] sm:$0xff]
    %v546 = vld [vmem:[#allocation2 + $0xe20] sm:$0xff]
    %v547 = vld [vmem:[#allocation2 + $0xe28] sm:$0xff]
    %v548 = vld [vmem:[#allocation2 + $0xe30] sm:$0xff]
    %v549 = vld [vmem:[#allocation2 + $0xe38] sm:$0xff]
    %v550 = vld [vmem:[#allocation2 + $0xe40] sm:$0xff]
    %v551 = vld [vmem:[#allocation2 + $0xe48] sm:$0xff]
    %v552 = vld [vmem:[#allocation2 + $0xe50] sm:$0xff]
    %v553 = vld [vmem:[#allocation2 + $0xe58] sm:$0xff]
    %v554 = vld [vmem:[#allocation2 + $0xe60] sm:$0xff]
    %v555 = vld [vmem:[#allocation2 + $0xe68] sm:$0xff]
    %v556 = vld [vmem:[#allocation2 + $0xe70] sm:$0xff]
    %v557 = vld [vmem:[#allocation2 + $0xe78] sm:$0xff]
    %v558 = vld [vmem:[#allocation2 + $0xe80] sm:$0xff]
    %v559 = vld [vmem:[#allocation2 + $0xe88] sm:$0xff]
    %v560 = vld [vmem:[#allocation2 + $0xe90] sm:$0xff]
    %v561 = vld [vmem:[#allocation2 + $0xe98] sm:$0xff]
    %v562 = vld [vmem:[#allocation2 + $0xea0] sm:$0xff]
    %v563 = vld [vmem:[#allocation2 + $0xea8] sm:$0xff]
    %v564 = vld [vmem:[#allocation2 + $0xeb0] sm:$0xff]
    %v565 = vld [vmem:[#allocation2 + $0xeb8] sm:$0xff]
    %v566 = vld [vmem:[#allocation2 + $0xec0] sm:$0xff]
    %v567 = vld [vmem:[#allocation2 + $0xec8] sm:$0xff]
    %v568 = vld [vmem:[#allocation2 + $0xed0] sm:$0xff]
    %v569 = vld [vmem:[#allocation2 + $0xed8] sm:$0xff]
    %v570 = vld [vmem:[#allocation2 + $0xee0] sm:$0xff]
    %v571 = vld [vmem:[#allocation2 + $0xee8] sm:$0xff]
    %v572 = vld [vmem:[#allocation2 + $0xef0] sm:$0xff]
    %v573 = vld [vmem:[#allocation2 + $0xef8] sm:$0xff]
    %v574 = vld [vmem:[#allocation2 + $0xf00] sm:$0xff]
    %v575 = vld [vmem:[#allocation2 + $0xf08] sm:$0xff]
    %v576 = vld [vmem:[#allocation2 + $0xf10] sm:$0xff]
    %v577 = vld [vmem:[#allocation2 + $0xf18] sm:$0xff]
    %v578 = vld [vmem:[#allocation2 + $0xf20] sm:$0xff]
    %v579 = vld [vmem:[#allocation2 + $0xf28] sm:$0xff]
    %v580 = vld [vmem:[#allocation2 + $0xf30] sm:$0xff]
    %v581 = vld [vmem:[#allocation2 + $0xf38] sm:$0xff]
    %v582 = vld [vmem:[#allocation2 + $0xf40] sm:$0xff]
    %v583 = vld [vmem:[#allocation2 + $0xf48] sm:$0xff]
    %v584 = vld [vmem:[#allocation2 + $0xf50] sm:$0xff]
    %v585 = vld [vmem:[#allocation2 + $0xf58] sm:$0xff]
    %v586 = vld [vmem:[#allocation2 + $0xf60] sm:$0xff]
    %v587 = vld [vmem:[#allocation2 + $0xf68] sm:$0xff]
    %v588 = vld [vmem:[#allocation2 + $0xf70] sm:$0xff]
    %v589 = vld [vmem:[#allocation2 + $0xf78] sm:$0xff]
    %v590 = vld [vmem:[#allocation2 + $0xf80] sm:$0xff]
    %v591 = vld [vmem:[#allocation2 + $0xf88] sm:$0xff]
    %v592 = vld [vmem:[#allocation2 + $0xf90] sm:$0xff]
    %v593 = vld [vmem:[#allocation2 + $0xf98] sm:$0xff]
    %v594 = vld [vmem:[#allocation2 + $0xfa0] sm:$0xff]
    %v595 = vld [vmem:[#allocation2 + $0xfa8] sm:$0xff]
    %v596 = vld [vmem:[#allocation2 + $0xfb0] sm:$0xff]
    %v597 = vld [vmem:[#allocation2 + $0xfb8] sm:$0xff]
    %v598 = vld [vmem:[#allocation2 + $0xfc0] sm:$0xff]
    %v599 = vld [vmem:[#allocation2 + $0xfc8] sm:$0xff]
    %v600 = vld [vmem:[#allocation2 + $0xfd0] sm:$0xff]
    %v601 = vld [vmem:[#allocation2 + $0xfd8] sm:$0xff]
    %v602 = vld [vmem:[#allocation2 + $0xfe0] sm:$0xff]
    %v603 = vld [vmem:[#allocation2 + $0xfe8] sm:$0xff]
    %v604 = vld [vmem:[#allocation2 + $0xff0] sm:$0xff]
    %v605 = vld [vmem:[#allocation2 + $0xff8] sm:$0xff]
    %v606 = vld [vmem:[#allocation2 + $0x1000] sm:$0xff]
    %v607 = vld [vmem:[#allocation2 + $0x1008] sm:$0xff]
    %v608 = vld [vmem:[#allocation2 + $0x1010] sm:$0xff]
    %v609 = vld [vmem:[#allocation2 + $0x1018] sm:$0xff]
    %v610 = vld [vmem:[#allocation2 + $0x1020] sm:$0xff]
    %v611 = vld [vmem:[#allocation2 + $0x1028] sm:$0xff]
    %v612 = vld [vmem:[#allocation2 + $0x1030] sm:$0xff]
    %v613 = vld [vmem:[#allocation2 + $0x1038] sm:$0xff]
    %v614 = vld [vmem:[#allocation2 + $0x1040] sm:$0xff]
    %v615 = vld [vmem:[#allocation2 + $0x1048] sm:$0xff]
    %v616 = vld [vmem:[#allocation2 + $0x1050] sm:$0xff]
    %v617 = vld [vmem:[#allocation2 + $0x1058] sm:$0xff]
    %v618 = vld [vmem:[#allocation2 + $0x1060] sm:$0xff]
    %v619 = vld [vmem:[#allocation2 + $0x1068] sm:$0xff]
    %v620 = vld [vmem:[#allocation2 + $0x1070] sm:$0xff]
    %v621 = vld [vmem:[#allocation2 + $0x1078] sm:$0xff]
    %v622 = vld [vmem:[#allocation2 + $0x1080] sm:$0xff]
    %v623 = vld [vmem:[#allocation2 + $0x1088] sm:$0xff]
    %v624 = vld [vmem:[#allocation2 + $0x1090] sm:$0xff]
    %v625 = vld [vmem:[#allocation2 + $0x1098] sm:$0xff]
    %v626 = vld [vmem:[#allocation2 + $0x10a0] sm:$0xff]
    %v627 = vld [vmem:[#allocation2 + $0x10a8] sm:$0xff]
    %v628 = vld [vmem:[#allocation2 + $0x10b0] sm:$0xff]
    %v629 = vld [vmem:[#allocation2 + $0x10b8] sm:$0xff]
    %v630 = vld [vmem:[#allocation2 + $0x10c0] sm:$0xff]
    %v631 = vld [vmem:[#allocation2 + $0x10c8] sm:$0xff]
    %v632 = vld [vmem:[#allocation2 + $0x10d0] sm:$0xff]
    %v633 = vld [vmem:[#allocation2 + $0x10d8] sm:$0xff]
    %v634 = vld [vmem:[#allocation2 + $0x10e0] sm:$0xff]
    %v635 = vld [vmem:[#allocation2 + $0x10e8] sm:$0xff]
    %v636 = vld [vmem:[#allocation2 + $0x10f0] sm:$0xff]
    %v637 = vld [vmem:[#allocation2 + $0x10f8] sm:$0xff]
    %v638 = vld [vmem:[#allocation2 + $0x1100] sm:$0xff]
    %v639 = vld [vmem:[#allocation2 + $0x1108] sm:$0xff]
    %v640 = vld [vmem:[#allocation2 + $0x1110] sm:$0xff]
    %v641 = vld [vmem:[#allocation2 + $0x1118] sm:$0xff]
    %v642 = vld [vmem:[#allocation2 + $0x1120] sm:$0xff]
    %v643 = vld [vmem:[#allocation2 + $0x1128] sm:$0xff]
    %v644 = vld [vmem:[#allocation2 + $0x1130] sm:$0xff]
    %v645 = vld [vmem:[#allocation2 + $0x1138] sm:$0xff]
    %v646 = vld [vmem:[#allocation2 + $0x1140] sm:$0xff]
    %v647 = vld [vmem:[#allocation2 + $0x1148] sm:$0xff]
    %v648 = vld [vmem:[#allocation2 + $0x1150] sm:$0xff]
    %v649 = vld [vmem:[#allocation2 + $0x1158] sm:$0xff]
    %v650 = vld [vmem:[#allocation2 + $0x1160] sm:$0xff]
    %v651 = vld [vmem:[#allocation2 + $0x1168] sm:$0xff]
    %v652 = vld [vmem:[#allocation2 + $0x1170] sm:$0xff]
    %v653 = vld [vmem:[#allocation2 + $0x1178] sm:$0xff]
    %v654 = vld [vmem:[#allocation2 + $0x1180] sm:$0xff]
    %v655 = vld [vmem:[#allocation2 + $0x1188] sm:$0xff]
    %v656 = vld [vmem:[#allocation2 + $0x1190] sm:$0xff]
    %v657 = vld [vmem:[#allocation2 + $0x1198] sm:$0xff]
    %v658 = vld [vmem:[#allocation2 + $0x11a0] sm:$0xff]
    %v659 = vld [vmem:[#allocation2 + $0x11a8] sm:$0xff]
    %v660 = vld [vmem:[#allocation2 + $0x11b0] sm:$0xff]
    %v661 = vld [vmem:[#allocation2 + $0x11b8] sm:$0xff]
    %v662 = vld [vmem:[#allocation2 + $0x11c0] sm:$0xff]
    %v663 = vld [vmem:[#allocation2 + $0x11c8] sm:$0xff]
    %v664 = vld [vmem:[#allocation2 + $0x11d0] sm:$0xff]
    %v665 = vld [vmem:[#allocation2 + $0x11d8] sm:$0xff]
    %v666 = vld [vmem:[#allocation2 + $0x11e0] sm:$0xff]
    %v667 = vld [vmem:[#allocation2 + $0x11e8] sm:$0xff]
    %v668 = vld [vmem:[#allocation2 + $0x11f0] sm:$0xff]
    %v669 = vld [vmem:[#allocation2 + $0x11f8] sm:$0xff]
    %v670 = vld [vmem:[#allocation2 + $0x1200] sm:$0xff]
    %v671 = vld [vmem:[#allocation2 + $0x1208] sm:$0xff]
    %v672 = vld [vmem:[#allocation2 + $0x1210] sm:$0xff]
    %v673 = vld [vmem:[#allocation2 + $0x1218] sm:$0xff]
    %v674 = vld [vmem:[#allocation2 + $0x1220] sm:$0xff]
    %v675 = vld [vmem:[#allocation2 + $0x1228] sm:$0xff]
    %v676 = vld [vmem:[#allocation2 + $0x1230] sm:$0xff]
    %v677 = vld [vmem:[#allocation2 + $0x1238] sm:$0xff]
    %v678 = vld [vmem:[#allocation2 + $0x1240] sm:$0xff]
    %v679 = vld [vmem:[#allocation2 + $0x1248] sm:$0xff]
    %v680 = vld [vmem:[#allocation2 + $0x1250] sm:$0xff]
    %v681 = vld [vmem:[#allocation2 + $0x1258] sm:$0xff]
    %v682 = vld [vmem:[#allocation2 + $0x1260] sm:$0xff]
    %v683 = vld [vmem:[#allocation2 + $0x1268] sm:$0xff]
    %v684 = vld [vmem:[#allocation2 + $0x1270] sm:$0xff]
    %v685 = vld [vmem:[#allocation2 + $0x1278] sm:$0xff]
    %v686 = vld [vmem:[#allocation2 + $0x1280] sm:$0xff]
    %v687 = vld [vmem:[#allocation2 + $0x1288] sm:$0xff]
    %v688 = vld [vmem:[#allocation2 + $0x1290] sm:$0xff]
    %v689 = vld [vmem:[#allocation2 + $0x1298] sm:$0xff]
    %v690 = vld [vmem:[#allocation2 + $0x12a0] sm:$0xff]
    %v691 = vld [vmem:[#allocation2 + $0x12a8] sm:$0xff]
    %v692 = vld [vmem:[#allocation2 + $0x12b0] sm:$0xff]
    %v693 = vld [vmem:[#allocation2 + $0x12b8] sm:$0xff]
    %v694 = vld [vmem:[#allocation2 + $0x12c0] sm:$0xff]
    %v695 = vld [vmem:[#allocation2 + $0x12c8] sm:$0xff]
    %v696 = vld [vmem:[#allocation2 + $0x12d0] sm:$0xff]
    %v697 = vld [vmem:[#allocation2 + $0x12d8] sm:$0xff]
    %v698 = vld [vmem:[#allocation2 + $0x12e0] sm:$0xff]
    %v699 = vld [vmem:[#allocation2 + $0x12e8] sm:$0xff]
    %v700 = vld [vmem:[#allocation2 + $0x12f0] sm:$0xff]
    %v701 = vld [vmem:[#allocation2 + $0x12f8] sm:$0xff]
    %v702 = vld [vmem:[#allocation2 + $0x1300] sm:$0xff]
    %v703 = vld [vmem:[#allocation2 + $0x1308] sm:$0xff]
    %v704 = vld [vmem:[#allocation2 + $0x1310] sm:$0xff]
    %v705 = vld [vmem:[#allocation2 + $0x1318] sm:$0xff]
    %v706 = vld [vmem:[#allocation2 + $0x1320] sm:$0xff]
    %v707 = vld [vmem:[#allocation2 + $0x1328] sm:$0xff]
    %v708 = vld [vmem:[#allocation2 + $0x1330] sm:$0xff]
    %v709 = vld [vmem:[#allocation2 + $0x1338] sm:$0xff]
    %v710 = vld [vmem:[#allocation2 + $0x1340] sm:$0xff]
    %v711 = vld [vmem:[#allocation2 + $0x1348] sm:$0xff]
    %v712 = vld [vmem:[#allocation2 + $0x1350] sm:$0xff]
    %v713 = vld [vmem:[#allocation2 + $0x1358] sm:$0xff]
    %v714 = vld [vmem:[#allocation2 + $0x1360] sm:$0xff]
    %v715 = vld [vmem:[#allocation2 + $0x1368] sm:$0xff]
    %v716 = vld [vmem:[#allocation2 + $0x1370] sm:$0xff]
    %v717 = vld [vmem:[#allocation2 + $0x1378] sm:$0xff]
    %v718 = vld [vmem:[#allocation2 + $0x1380] sm:$0xff]
    %v719 = vld [vmem:[#allocation2 + $0x1388] sm:$0xff]
    %v720 = vld [vmem:[#allocation2 + $0x1390] sm:$0xff]
    %v721 = vld [vmem:[#allocation2 + $0x1398] sm:$0xff]
    %v722 = vld [vmem:[#allocation2 + $0x13a0] sm:$0xff]
    %v723 = vld [vmem:[#allocation2 + $0x13a8] sm:$0xff]
    %v724 = vld [vmem:[#allocation2 + $0x13b0] sm:$0xff]
    %v725 = vld [vmem:[#allocation2 + $0x13b8] sm:$0xff]
    %v726 = vld [vmem:[#allocation2 + $0x13c0] sm:$0xff]
    %v727 = vld [vmem:[#allocation2 + $0x13c8] sm:$0xff]
    %v728 = vld [vmem:[#allocation2 + $0x13d0] sm:$0xff]
    %v729 = vld [vmem:[#allocation2 + $0x13d8] sm:$0xff]
    %v730 = vld [vmem:[#allocation2 + $0x13e0] sm:$0xff]
    %v731 = vld [vmem:[#allocation2 + $0x13e8] sm:$0xff]
    %v732 = vld [vmem:[#allocation2 + $0x13f0] sm:$0xff]
    %v733 = vld [vmem:[#allocation2 + $0x13f8] sm:$0xff]
    %v734 = vld [vmem:[#allocation2 + $0x1400] sm:$0xff]
    %v735 = vld [vmem:[#allocation2 + $0x1408] sm:$0xff]
    %v736 = vld [vmem:[#allocation2 + $0x1410] sm:$0xff]
    %v737 = vld [vmem:[#allocation2 + $0x1418] sm:$0xff]
    %v738 = vld [vmem:[#allocation2 + $0x1420] sm:$0xff]
    %v739 = vld [vmem:[#allocation2 + $0x1428] sm:$0xff]
    %v740 = vld [vmem:[#allocation2 + $0x1430] sm:$0xff]
    %v741 = vld [vmem:[#allocation2 + $0x1438] sm:$0xff]
    %v742 = vld [vmem:[#allocation2 + $0x1440] sm:$0xff]
    %v743 = vld [vmem:[#allocation2 + $0x1448] sm:$0xff]
    %v744 = vld [vmem:[#allocation2 + $0x1450] sm:$0xff]
    %v745 = vld [vmem:[#allocation2 + $0x1458] sm:$0xff]
    %v746 = vld [vmem:[#allocation2 + $0x1460] sm:$0xff]
    %v747 = vld [vmem:[#allocation2 + $0x1468] sm:$0xff]
    %v748 = vld [vmem:[#allocation2 + $0x1470] sm:$0xff]
    %v749 = vld [vmem:[#allocation2 + $0x1478] sm:$0xff]
    %v750 = vld [vmem:[#allocation2 + $0x1480] sm:$0xff]
    %v751 = vld [vmem:[#allocation2 + $0x1488] sm:$0xff]
    %v752 = vld [vmem:[#allocation2 + $0x1490] sm:$0xff]
    %v753 = vld [vmem:[#allocation2 + $0x1498] sm:$0xff]
    %v754 = vld [vmem:[#allocation2 + $0x14a0] sm:$0xff]
    %v755 = vld [vmem:[#allocation2 + $0x14a8] sm:$0xff]
    %v756 = vld [vmem:[#allocation2 + $0x14b0] sm:$0xff]
    %v757 = vld [vmem:[#allocation2 + $0x14b8] sm:$0xff]
    %v758 = vld [vmem:[#allocation2 + $0x14c0] sm:$0xff]
    %v759 = vld [vmem:[#allocation2 + $0x14c8] sm:$0xff]
    %v760 = vld [vmem:[#allocation2 + $0x14d0] sm:$0xff]
    %v761 = vld [vmem:[#allocation2 + $0x14d8] sm:$0xff]
    %v762 = vld [vmem:[#allocation2 + $0x14e0] sm:$0xff]
    %v763 = vld [vmem:[#allocation2 + $0x14e8] sm:$0xff]
    %v764 = vld [vmem:[#allocation2 + $0x14f0] sm:$0xff]
    %v765 = vld [vmem:[#allocation2 + $0x14f8] sm:$0xff]
    %v766 = vld [vmem:[#allocation2 + $0x1500] sm:$0xff]
    %v767 = vld [vmem:[#allocation2 + $0x1508] sm:$0xff]
    %v768 = vld [vmem:[#allocation2 + $0x1510] sm:$0xff]
    %v769 = vld [vmem:[#allocation2 + $0x1518] sm:$0xff]
    %v770 = vld [vmem:[#allocation2 + $0x1520] sm:$0xff]
    %v771 = vld [vmem:[#allocation2 + $0x1528] sm:$0xff]
    %v772 = vld [vmem:[#allocation2 + $0x1530] sm:$0xff]
    %v773 = vld [vmem:[#allocation2 + $0x1538] sm:$0xff]
    %v774 = vld [vmem:[#allocation2 + $0x1540] sm:$0xff]
    %v775 = vld [vmem:[#allocation2 + $0x1548] sm:$0xff]
    %v776 = vld [vmem:[#allocation2 + $0x1550] sm:$0xff]
    %v777 = vld [vmem:[#allocation2 + $0x1558] sm:$0xff]
    %v778 = vld [vmem:[#allocation2 + $0x1560] sm:$0xff]
    %v779 = vld [vmem:[#allocation2 + $0x1568] sm:$0xff]
    %v780 = vld [vmem:[#allocation2 + $0x1570] sm:$0xff]
    %v781 = vld [vmem:[#allocation2 + $0x1578] sm:$0xff]
    %v782 = vld [vmem:[#allocation2 + $0x1580] sm:$0xff]
    %v783 = vld [vmem:[#allocation2 + $0x1588] sm:$0xff]
    %v784 = vld [vmem:[#allocation2 + $0x1590] sm:$0xff]
    %v785 = vld [vmem:[#allocation2 + $0x1598] sm:$0xff]
    %v786 = vld [vmem:[#allocation2 + $0x15a0] sm:$0xff]
    %v787 = vld [vmem:[#allocation2 + $0x15a8] sm:$0xff]
    %v788 = vld [vmem:[#allocation2 + $0x15b0] sm:$0xff]
    %v789 = vld [vmem:[#allocation2 + $0x15b8] sm:$0xff]
    %v790 = vld [vmem:[#allocation2 + $0x15c0] sm:$0xff]
    %v791 = vld [vmem:[#allocation2 + $0x15c8] sm:$0xff]
    %v792 = vld [vmem:[#allocation2 + $0x15d0] sm:$0xff]
    %v793 = vld [vmem:[#allocation2 + $0x15d8] sm:$0xff]
    %v794 = vld [vmem:[#allocation2 + $0x15e0] sm:$0xff]
    %v795 = vld [vmem:[#allocation2 + $0x15e8] sm:$0xff]
    %v796 = vld [vmem:[#allocation2 + $0x15f0] sm:$0xff]
    %v797 = vld [vmem:[#allocation2 + $0x15f8] sm:$0xff]
    %v798 = vld [vmem:[#allocation2 + $0x1600] sm:$0xff]
    %v799 = vld [vmem:[#allocation2 + $0x1608] sm:$0xff]
    %v800 = vld [vmem:[#allocation2 + $0x1610] sm:$0xff]
    %v801 = vld [vmem:[#allocation2 + $0x1618] sm:$0xff]
    %v802 = vld [vmem:[#allocation2 + $0x1620] sm:$0xff]
    %v803 = vld [vmem:[#allocation2 + $0x1628] sm:$0xff]
    %v804 = vld [vmem:[#allocation2 + $0x1630] sm:$0xff]
    %v805 = vld [vmem:[#allocation2 + $0x1638] sm:$0xff]
    %v806 = vld [vmem:[#allocation2 + $0x1640] sm:$0xff]
    %v807 = vld [vmem:[#allocation2 + $0x1648] sm:$0xff]
    %v808 = vld [vmem:[#allocation2 + $0x1650] sm:$0xff]
    %v809 = vld [vmem:[#allocation2 + $0x1658] sm:$0xff]
    %v810 = vld [vmem:[#allocation2 + $0x1660] sm:$0xff]
    %v811 = vld [vmem:[#allocation2 + $0x1668] sm:$0xff]
    %v812 = vld [vmem:[#allocation2 + $0x1670] sm:$0xff]
    %v813 = vld [vmem:[#allocation2 + $0x1678] sm:$0xff]
    %v814 = vld [vmem:[#allocation2 + $0x1680] sm:$0xff]
    %v815 = vld [vmem:[#allocation2 + $0x1688] sm:$0xff]
    %v816 = vld [vmem:[#allocation2 + $0x1690] sm:$0xff]
    %v817 = vld [vmem:[#allocation2 + $0x1698] sm:$0xff]
    %v818 = vld [vmem:[#allocation2 + $0x16a0] sm:$0xff]
    %v819 = vld [vmem:[#allocation2 + $0x16a8] sm:$0xff]
    %v820 = vld [vmem:[#allocation2 + $0x16b0] sm:$0xff]
    %v821 = vld [vmem:[#allocation2 + $0x16b8] sm:$0xff]
    %v822 = vld [vmem:[#allocation2 + $0x16c0] sm:$0xff]
    %v823 = vld [vmem:[#allocation2 + $0x16c8] sm:$0xff]
    %v824 = vld [vmem:[#allocation2 + $0x16d0] sm:$0xff]
    %v825 = vld [vmem:[#allocation2 + $0x16d8] sm:$0xff]
    %v826 = vld [vmem:[#allocation2 + $0x16e0] sm:$0xff]
    %v827 = vld [vmem:[#allocation2 + $0x16e8] sm:$0xff]
    %v828 = vld [vmem:[#allocation2 + $0x16f0] sm:$0xff]
    %v829 = vld [vmem:[#allocation2 + $0x16f8] sm:$0xff]
    %v830 = vld [vmem:[#allocation2 + $0x1700] sm:$0xff]
    %v831 = vld [vmem:[#allocation2 + $0x1708] sm:$0xff]
    %v832 = vld [vmem:[#allocation2 + $0x1710] sm:$0xff]
    %v833 = vld [vmem:[#allocation2 + $0x1718] sm:$0xff]
    %v834 = vld [vmem:[#allocation2 + $0x1720] sm:$0xff]
    %v835 = vld [vmem:[#allocation2 + $0x1728] sm:$0xff]
    %v836 = vld [vmem:[#allocation2 + $0x1730] sm:$0xff]
    %v837 = vld [vmem:[#allocation2 + $0x1738] sm:$0xff]
    %v838 = vld [vmem:[#allocation2 + $0x1740] sm:$0xff]
    %v839 = vld [vmem:[#allocation2 + $0x1748] sm:$0xff]
    %v840 = vld [vmem:[#allocation2 + $0x1750] sm:$0xff]
    %v841 = vld [vmem:[#allocation2 + $0x1758] sm:$0xff]
    %v842 = vld [vmem:[#allocation2 + $0x1760] sm:$0xff]
    %v843 = vld [vmem:[#allocation2 + $0x1768] sm:$0xff]
    %v844 = vld [vmem:[#allocation2 + $0x1770] sm:$0xff]
    %v845 = vld [vmem:[#allocation2 + $0x1778] sm:$0xff]
    %v846 = vld [vmem:[#allocation2 + $0x1780] sm:$0xff]
    %v847 = vld [vmem:[#allocation2 + $0x1788] sm:$0xff]
    %v848 = vld [vmem:[#allocation2 + $0x1790] sm:$0xff]
    %v849 = vld [vmem:[#allocation2 + $0x1798] sm:$0xff]
    %v850 = vld [vmem:[#allocation2 + $0x17a0] sm:$0xff]
    %v851 = vld [vmem:[#allocation2 + $0x17a8] sm:$0xff]
    %v852 = vld [vmem:[#allocation2 + $0x17b0] sm:$0xff]
    %v853 = vld [vmem:[#allocation2 + $0x17b8] sm:$0xff]
    %v854 = vld [vmem:[#allocation2 + $0x17c0] sm:$0xff]
    %v855 = vld [vmem:[#allocation2 + $0x17c8] sm:$0xff]
    %v856 = vld [vmem:[#allocation2 + $0x17d0] sm:$0xff]
    %v857 = vld [vmem:[#allocation2 + $0x17d8] sm:$0xff]
    %v858 = vld [vmem:[#allocation2 + $0x17e0] sm:$0xff]
    %v859 = vld [vmem:[#allocation2 + $0x17e8] sm:$0xff]
    %v860 = vld [vmem:[#allocation2 + $0x17f0] sm:$0xff]
    %v861 = vld [vmem:[#allocation2 + $0x17f8] sm:$0xff]
    %v862 = vld [vmem:[#allocation2 + $0x1800] sm:$0xff]
    %v863 = vld [vmem:[#allocation2 + $0x1808] sm:$0xff]
    %v864 = vld [vmem:[#allocation2 + $0x1810] sm:$0xff]
    %v865 = vld [vmem:[#allocation2 + $0x1818] sm:$0xff]
    %v866 = vld [vmem:[#allocation2 + $0x1820] sm:$0xff]
    %v867 = vld [vmem:[#allocation2 + $0x1828] sm:$0xff]
    %v868 = vld [vmem:[#allocation2 + $0x1830] sm:$0xff]
    %v869 = vld [vmem:[#allocation2 + $0x1838] sm:$0xff]
    %v870 = vld [vmem:[#allocation2 + $0x1840] sm:$0xff]
    %v871 = vld [vmem:[#allocation2 + $0x1848] sm:$0xff]
    %v872 = vld [vmem:[#allocation2 + $0x1850] sm:$0xff]
    %v873 = vld [vmem:[#allocation2 + $0x1858] sm:$0xff]
    %v874 = vld [vmem:[#allocation2 + $0x1860] sm:$0xff]
    %v875 = vld [vmem:[#allocation2 + $0x1868] sm:$0xff]
    %v876 = vld [vmem:[#allocation2 + $0x1870] sm:$0xff]
    %v877 = vld [vmem:[#allocation2 + $0x1878] sm:$0xff]
    %v878 = vld [vmem:[#allocation2 + $0x1880] sm:$0xff]
    %v879 = vld [vmem:[#allocation2 + $0x1888] sm:$0xff]
    %v880 = vld [vmem:[#allocation2 + $0x1890] sm:$0xff]
    %v881 = vld [vmem:[#allocation2 + $0x1898] sm:$0xff]
    %v882 = vld [vmem:[#allocation2 + $0x18a0] sm:$0xff]
    %v883 = vld [vmem:[#allocation2 + $0x18a8] sm:$0xff]
    %v884 = vld [vmem:[#allocation2 + $0x18b0] sm:$0xff]
    %v885 = vld [vmem:[#allocation2 + $0x18b8] sm:$0xff]
    %v886 = vld [vmem:[#allocation2 + $0x18c0] sm:$0xff]
    %v887 = vld [vmem:[#allocation2 + $0x18c8] sm:$0xff]
    %v888 = vld [vmem:[#allocation2 + $0x18d0] sm:$0xff]
    %v889 = vld [vmem:[#allocation2 + $0x18d8] sm:$0xff]
    %v890 = vld [vmem:[#allocation2 + $0x18e0] sm:$0xff]
    %v891 = vld [vmem:[#allocation2 + $0x18e8] sm:$0xff]
    %v892 = vld [vmem:[#allocation2 + $0x18f0] sm:$0xff]
    %v893 = vld [vmem:[#allocation2 + $0x18f8] sm:$0xff]
    %v894 = vld [vmem:[#allocation2 + $0x1900] sm:$0xff]
    %v895 = vld [vmem:[#allocation2 + $0x1908] sm:$0xff]
    %v896 = vld [vmem:[#allocation2 + $0x1910] sm:$0xff]
    %v897 = vld [vmem:[#allocation2 + $0x1918] sm:$0xff]
    %v898 = vld [vmem:[#allocation2 + $0x1920] sm:$0xff]
    %v899 = vld [vmem:[#allocation2 + $0x1928] sm:$0xff]
    %v900 = vld [vmem:[#allocation2 + $0x1930] sm:$0xff]
    %v901 = vld [vmem:[#allocation2 + $0x1938] sm:$0xff]
    %v902 = vld [vmem:[#allocation2 + $0x1940] sm:$0xff]
    %v903 = vld [vmem:[#allocation2 + $0x1948] sm:$0xff]
    %v904 = vld [vmem:[#allocation2 + $0x1950] sm:$0xff]
    %v905 = vld [vmem:[#allocation2 + $0x1958] sm:$0xff]
    %v906 = vld [vmem:[#allocation2 + $0x1960] sm:$0xff]
    %v907 = vld [vmem:[#allocation2 + $0x1968] sm:$0xff]
    %v908 = vld [vmem:[#allocation2 + $0x1970] sm:$0xff]
    %v909 = vld [vmem:[#allocation2 + $0x1978] sm:$0xff]
    %v910 = vld [vmem:[#allocation2 + $0x1980] sm:$0xff]
    %v911 = vld [vmem:[#allocation2 + $0x1988] sm:$0xff]
    %v912 = vld [vmem:[#allocation2 + $0x1990] sm:$0xff]
    %v913 = vld [vmem:[#allocation2 + $0x1998] sm:$0xff]
    %v914 = vld [vmem:[#allocation2 + $0x19a0] sm:$0xff]
    %v915 = vld [vmem:[#allocation2 + $0x19a8] sm:$0xff]
    %v916 = vld [vmem:[#allocation2 + $0x19b0] sm:$0xff]
    %v917 = vld [vmem:[#allocation2 + $0x19b8] sm:$0xff]
    %v918 = vld [vmem:[#allocation2 + $0x19c0] sm:$0xff]
    %v919 = vld [vmem:[#allocation2 + $0x19c8] sm:$0xff]
    %v920 = vld [vmem:[#allocation2 + $0x19d0] sm:$0xff]
    %v921 = vld [vmem:[#allocation2 + $0x19d8] sm:$0xff]
    %v922 = vld [vmem:[#allocation2 + $0x19e0] sm:$0xff]
    %v923 = vld [vmem:[#allocation2 + $0x19e8] sm:$0xff]
    %v924 = vld [vmem:[#allocation2 + $0x19f0] sm:$0xff]
    %v925 = vld [vmem:[#allocation2 + $0x19f8] sm:$0xff]
    %v926 = vld [vmem:[#allocation2 + $0x1a00] sm:$0xff]
    %v927 = vld [vmem:[#allocation2 + $0x1a08] sm:$0xff]
    %v928 = vld [vmem:[#allocation2 + $0x1a10] sm:$0xff]
    %v929 = vld [vmem:[#allocation2 + $0x1a18] sm:$0xff]
    %v930 = vld [vmem:[#allocation2 + $0x1a20] sm:$0xff]
    %v931 = vld [vmem:[#allocation2 + $0x1a28] sm:$0xff]
    %v932 = vld [vmem:[#allocation2 + $0x1a30] sm:$0xff]
    %v933 = vld [vmem:[#allocation2 + $0x1a38] sm:$0xff]
    %v934 = vld [vmem:[#allocation2 + $0x1a40] sm:$0xff]
    %v935 = vld [vmem:[#allocation2 + $0x1a48] sm:$0xff]
    %v936 = vld [vmem:[#allocation2 + $0x1a50] sm:$0xff]
    %v937 = vld [vmem:[#allocation2 + $0x1a58] sm:$0xff]
    %v938 = vld [vmem:[#allocation2 + $0x1a60] sm:$0xff]
    %v939 = vld [vmem:[#allocation2 + $0x1a68] sm:$0xff]
    %v940 = vld [vmem:[#allocation2 + $0x1a70] sm:$0xff]
    %v941 = vld [vmem:[#allocation2 + $0x1a78] sm:$0xff]
    %v942 = vld [vmem:[#allocation2 + $0x1a80] sm:$0xff]
    %v943 = vld [vmem:[#allocation2 + $0x1a88] sm:$0xff]
    %v944 = vld [vmem:[#allocation2 + $0x1a90] sm:$0xff]
    %v945 = vld [vmem:[#allocation2 + $0x1a98] sm:$0xff]
    %v946 = vld [vmem:[#allocation2 + $0x1aa0] sm:$0xff]
    %v947 = vld [vmem:[#allocation2 + $0x1aa8] sm:$0xff]
    %v948 = vld [vmem:[#allocation2 + $0x1ab0] sm:$0xff]
    %v949 = vld [vmem:[#allocation2 + $0x1ab8] sm:$0xff]
    %v950 = vld [vmem:[#allocation2 + $0x1ac0] sm:$0xff]
    %v951 = vld [vmem:[#allocation2 + $0x1ac8] sm:$0xff]
    %v952 = vld [vmem:[#allocation2 + $0x1ad0] sm:$0xff]
    %v953 = vld [vmem:[#allocation2 + $0x1ad8] sm:$0xff]
    %v954 = vld [vmem:[#allocation2 + $0x1ae0] sm:$0xff]
    %v955 = vld [vmem:[#allocation2 + $0x1ae8] sm:$0xff]
    %v956 = vld [vmem:[#allocation2 + $0x1af0] sm:$0xff]
    %v957 = vld [vmem:[#allocation2 + $0x1af8] sm:$0xff]
    %v958 = vld [vmem:[#allocation2 + $0x1b00] sm:$0xff]
    %v959 = vld [vmem:[#allocation2 + $0x1b08] sm:$0xff]
    %v960 = vld [vmem:[#allocation2 + $0x1b10] sm:$0xff]
    %v961 = vld [vmem:[#allocation2 + $0x1b18] sm:$0xff]
    %v962 = vld [vmem:[#allocation2 + $0x1b20] sm:$0xff]
    %v963 = vld [vmem:[#allocation2 + $0x1b28] sm:$0xff]
    %v964 = vld [vmem:[#allocation2 + $0x1b30] sm:$0xff]
    %v965 = vld [vmem:[#allocation2 + $0x1b38] sm:$0xff]
    %v966 = vld [vmem:[#allocation2 + $0x1b40] sm:$0xff]
    %v967 = vld [vmem:[#allocation2 + $0x1b48] sm:$0xff]
    %v968 = vld [vmem:[#allocation2 + $0x1b50] sm:$0xff]
    %v969 = vld [vmem:[#allocation2 + $0x1b58] sm:$0xff]
    %v970 = vld [vmem:[#allocation2 + $0x1b60] sm:$0xff]
    %v971 = vld [vmem:[#allocation2 + $0x1b68] sm:$0xff]
    %v972 = vld [vmem:[#allocation2 + $0x1b70] sm:$0xff]
    %v973 = vld [vmem:[#allocation2 + $0x1b78] sm:$0xff]
    %v974 = vld [vmem:[#allocation2 + $0x1b80] sm:$0xff]
    %v975 = vld [vmem:[#allocation2 + $0x1b88] sm:$0xff]
    %v976 = vld [vmem:[#allocation2 + $0x1b90] sm:$0xff]
    %v977 = vld [vmem:[#allocation2 + $0x1b98] sm:$0xff]
    %v978 = vld [vmem:[#allocation2 + $0x1ba0] sm:$0xff]
    %v979 = vld [vmem:[#allocation2 + $0x1ba8] sm:$0xff]
    %v980 = vld [vmem:[#allocation2 + $0x1bb0] sm:$0xff]
    %v981 = vld [vmem:[#allocation2 + $0x1bb8] sm:$0xff]
    %v982 = vld [vmem:[#allocation2 + $0x1bc0] sm:$0xff]
    %v983 = vld [vmem:[#allocation2 + $0x1bc8] sm:$0xff]
    %v984 = vld [vmem:[#allocation2 + $0x1bd0] sm:$0xff]
    %v985 = vld [vmem:[#allocation2 + $0x1bd8] sm:$0xff]
    %v986 = vld [vmem:[#allocation2 + $0x1be0] sm:$0xff]
    %v987 = vld [vmem:[#allocation2 + $0x1be8] sm:$0xff]
    %v988 = vld [vmem:[#allocation2 + $0x1bf0] sm:$0xff]
    %v989 = vld [vmem:[#allocation2 + $0x1bf8] sm:$0xff]
    %v990 = vld [vmem:[#allocation2 + $0x1c00] sm:$0xff]
    %v991 = vld [vmem:[#allocation2 + $0x1c08] sm:$0xff]
    %v992 = vld [vmem:[#allocation2 + $0x1c10] sm:$0xff]
    %v993 = vld [vmem:[#allocation2 + $0x1c18] sm:$0xff]
    %v994 = vld [vmem:[#allocation2 + $0x1c20] sm:$0xff]
    %v995 = vld [vmem:[#allocation2 + $0x1c28] sm:$0xff]
    %v996 = vld [vmem:[#allocation2 + $0x1c30] sm:$0xff]
    %v997 = vld [vmem:[#allocation2 + $0x1c38] sm:$0xff]
    %v998 = vld [vmem:[#allocation2 + $0x1c40] sm:$0xff]
    %v999 = vld [vmem:[#allocation2 + $0x1c48] sm:$0xff]
    %v1000 = vld [vmem:[#allocation2 + $0x1c50] sm:$0xff]
    %v1001 = vld [vmem:[#allocation2 + $0x1c58] sm:$0xff]
    %v1002 = vld [vmem:[#allocation2 + $0x1c60] sm:$0xff]
    %v1003 = vld [vmem:[#allocation2 + $0x1c68] sm:$0xff]
    %v1004 = vld [vmem:[#allocation2 + $0x1c70] sm:$0xff]
    %v1005 = vld [vmem:[#allocation2 + $0x1c78] sm:$0xff]
    %v1006 = vld [vmem:[#allocation2 + $0x1c80] sm:$0xff]
    %v1007 = vld [vmem:[#allocation2 + $0x1c88] sm:$0xff]
    %v1008 = vld [vmem:[#allocation2 + $0x1c90] sm:$0xff]
    %v1009 = vld [vmem:[#allocation2 + $0x1c98] sm:$0xff]
    %v1010 = vld [vmem:[#allocation2 + $0x1ca0] sm:$0xff]
    %v1011 = vld [vmem:[#allocation2 + $0x1ca8] sm:$0xff]
    %v1012 = vld [vmem:[#allocation2 + $0x1cb0] sm:$0xff]
    %v1013 = vld [vmem:[#allocation2 + $0x1cb8] sm:$0xff]
    %v1014 = vld [vmem:[#allocation2 + $0x1cc0] sm:$0xff]
    %v1015 = vld [vmem:[#allocation2 + $0x1cc8] sm:$0xff]
    %v1016 = vld [vmem:[#allocation2 + $0x1cd0] sm:$0xff]
    %v1017 = vld [vmem:[#allocation2 + $0x1cd8] sm:$0xff]
    %v1018 = vld [vmem:[#allocation2 + $0x1ce0] sm:$0xff]
    %v1019 = vld [vmem:[#allocation2 + $0x1ce8] sm:$0xff]
    %v1020 = vld [vmem:[#allocation2 + $0x1cf0] sm:$0xff]
    %v1021 = vld [vmem:[#allocation2 + $0x1cf8] sm:$0xff]
    %v1022 = vld [vmem:[#allocation2 + $0x1d00] sm:$0xff]
    %v1023 = vld [vmem:[#allocation2 + $0x1d08] sm:$0xff]
    %v1024 = vld [vmem:[#allocation2 + $0x1d10] sm:$0xff]
    %v1025 = vld [vmem:[#allocation2 + $0x1d18] sm:$0xff]
    %v1026 = vld [vmem:[#allocation2 + $0x1d20] sm:$0xff]
    %v1027 = vld [vmem:[#allocation2 + $0x1d28] sm:$0xff]
    %v1028 = vld [vmem:[#allocation2 + $0x1d30] sm:$0xff]
    %v1029 = vld [vmem:[#allocation2 + $0x1d38] sm:$0xff]
    %v1030 = vld [vmem:[#allocation2 + $0x1d40] sm:$0xff]
    %v1031 = vld [vmem:[#allocation2 + $0x1d48] sm:$0xff]
    %v1032 = vld [vmem:[#allocation2 + $0x1d50] sm:$0xff]
    %v1033 = vld [vmem:[#allocation2 + $0x1d58] sm:$0xff]
    %v1034 = vld [vmem:[#allocation2 + $0x1d60] sm:$0xff]
    %v1035 = vld [vmem:[#allocation2 + $0x1d68] sm:$0xff]
    %v1036 = vld [vmem:[#allocation2 + $0x1d70] sm:$0xff]
    %v1037 = vld [vmem:[#allocation2 + $0x1d78] sm:$0xff]
    %v1038 = vld [vmem:[#allocation2 + $0x1d80] sm:$0xff]
    %v1039 = vld [vmem:[#allocation2 + $0x1d88] sm:$0xff]
    %v1040 = vld [vmem:[#allocation2 + $0x1d90] sm:$0xff]
    %v1041 = vld [vmem:[#allocation2 + $0x1d98] sm:$0xff]
    %v1042 = vld [vmem:[#allocation2 + $0x1da0] sm:$0xff]
    %v1043 = vld [vmem:[#allocation2 + $0x1da8] sm:$0xff]
    %v1044 = vld [vmem:[#allocation2 + $0x1db0] sm:$0xff]
    %v1045 = vld [vmem:[#allocation2 + $0x1db8] sm:$0xff]
    %v1046 = vld [vmem:[#allocation2 + $0x1dc0] sm:$0xff]
    %v1047 = vld [vmem:[#allocation2 + $0x1dc8] sm:$0xff]
    %v1048 = vld [vmem:[#allocation2 + $0x1dd0] sm:$0xff]
    %v1049 = vld [vmem:[#allocation2 + $0x1dd8] sm:$0xff]
    %v1050 = vld [vmem:[#allocation2 + $0x1de0] sm:$0xff]
    %v1051 = vld [vmem:[#allocation2 + $0x1de8] sm:$0xff]
    %v1052 = vld [vmem:[#allocation2 + $0x1df0] sm:$0xff]
    %v1053 = vld [vmem:[#allocation2 + $0x1df8] sm:$0xff]
    %v1054 = vld [vmem:[#allocation2 + $0x1e00] sm:$0xff]
    %v1055 = vld [vmem:[#allocation2 + $0x1e08] sm:$0xff]
    %v1056 = vld [vmem:[#allocation2 + $0x1e10] sm:$0xff]
    %v1057 = vld [vmem:[#allocation2 + $0x1e18] sm:$0xff]
    %v1058 = vld [vmem:[#allocation2 + $0x1e20] sm:$0xff]
    %v1059 = vld [vmem:[#allocation2 + $0x1e28] sm:$0xff]
    %v1060 = vld [vmem:[#allocation2 + $0x1e30] sm:$0xff]
    %v1061 = vld [vmem:[#allocation2 + $0x1e38] sm:$0xff]
    %v1062 = vld [vmem:[#allocation2 + $0x1e40] sm:$0xff]
    %v1063 = vld [vmem:[#allocation2 + $0x1e48] sm:$0xff]
    %v1064 = vld [vmem:[#allocation2 + $0x1e50] sm:$0xff]
    %v1065 = vld [vmem:[#allocation2 + $0x1e58] sm:$0xff]
    %v1066 = vld [vmem:[#allocation2 + $0x1e60] sm:$0xff]
    %v1067 = vld [vmem:[#allocation2 + $0x1e68] sm:$0xff]
    %v1068 = vld [vmem:[#allocation2 + $0x1e70] sm:$0xff]
    %v1069 = vld [vmem:[#allocation2 + $0x1e78] sm:$0xff]
    %v1070 = vld [vmem:[#allocation2 + $0x1e80] sm:$0xff]
    %v1071 = vld [vmem:[#allocation2 + $0x1e88] sm:$0xff]
    %v1072 = vld [vmem:[#allocation2 + $0x1e90] sm:$0xff]
    %v1073 = vld [vmem:[#allocation2 + $0x1e98] sm:$0xff]
    %v1074 = vld [vmem:[#allocation2 + $0x1ea0] sm:$0xff]
    %v1075 = vld [vmem:[#allocation2 + $0x1ea8] sm:$0xff]
    %v1076 = vld [vmem:[#allocation2 + $0x1eb0] sm:$0xff]
    %v1077 = vld [vmem:[#allocation2 + $0x1eb8] sm:$0xff]
    %v1078 = vld [vmem:[#allocation2 + $0x1ec0] sm:$0xff]
    %v1079 = vld [vmem:[#allocation2 + $0x1ec8] sm:$0xff]
    %v1080 = vld [vmem:[#allocation2 + $0x1ed0] sm:$0xff]
    %v1081 = vld [vmem:[#allocation2 + $0x1ed8] sm:$0xff]
    %v1082 = vld [vmem:[#allocation2 + $0x1ee0] sm:$0xff]
    %v1083 = vld [vmem:[#allocation2 + $0x1ee8] sm:$0xff]
    %v1084 = vld [vmem:[#allocation2 + $0x1ef0] sm:$0xff]
    %v1085 = vld [vmem:[#allocation2 + $0x1ef8] sm:$0xff]
    %v1086 = vld [vmem:[#allocation2 + $0x1f00] sm:$0xff]
    %v1087 = vld [vmem:[#allocation2 + $0x1f08] sm:$0xff]
    %v1088 = vld [vmem:[#allocation2 + $0x1f10] sm:$0xff]
    %v1089 = vld [vmem:[#allocation2 + $0x1f18] sm:$0xff]
    %v1090 = vld [vmem:[#allocation2 + $0x1f20] sm:$0xff]
    %v1091 = vld [vmem:[#allocation2 + $0x1f28] sm:$0xff]
    %v1092 = vld [vmem:[#allocation2 + $0x1f30] sm:$0xff]
    %v1093 = vld [vmem:[#allocation2 + $0x1f38] sm:$0xff]
    %v1094 = vld [vmem:[#allocation2 + $0x1f40] sm:$0xff]
    %v1095 = vld [vmem:[#allocation2 + $0x1f48] sm:$0xff]
    %v1096 = vld [vmem:[#allocation2 + $0x1f50] sm:$0xff]
    %v1097 = vld [vmem:[#allocation2 + $0x1f58] sm:$0xff]
    %v1098 = vld [vmem:[#allocation2 + $0x1f60] sm:$0xff]
    %v1099 = vld [vmem:[#allocation2 + $0x1f68] sm:$0xff]
    %v1100 = vld [vmem:[#allocation2 + $0x1f70] sm:$0xff]
    %v1101 = vld [vmem:[#allocation2 + $0x1f78] sm:$0xff]
    %v1102 = vld [vmem:[#allocation2 + $0x1f80] sm:$0xff]
    %v1103 = vld [vmem:[#allocation2 + $0x1f88] sm:$0xff]
    %v1104 = vld [vmem:[#allocation2 + $0x1f90] sm:$0xff]
    %v1105 = vld [vmem:[#allocation2 + $0x1f98] sm:$0xff]
    %v1106 = vld [vmem:[#allocation2 + $0x1fa0] sm:$0xff]
    %v1107 = vld [vmem:[#allocation2 + $0x1fa8] sm:$0xff]
    %v1108 = vld [vmem:[#allocation2 + $0x1fb0] sm:$0xff]
    %v1109 = vld [vmem:[#allocation2 + $0x1fb8] sm:$0xff]
    %v1110 = vld [vmem:[#allocation2 + $0x1fc0] sm:$0xff]
    %v1111 = vld [vmem:[#allocation2 + $0x1fc8] sm:$0xff]
    %v1112 = vld [vmem:[#allocation2 + $0x1fd0] sm:$0xff]
    %v1113 = vld [vmem:[#allocation2 + $0x1fd8] sm:$0xff]
    %v1114 = vld [vmem:[#allocation2 + $0x1fe0] sm:$0xff]
    %v1115 = vld [vmem:[#allocation2 + $0x1fe8] sm:$0xff]
    %v1116 = vld [vmem:[#allocation2 + $0x1ff0] sm:$0xff]
    %v1117 = vld [vmem:[#allocation2 + $0x1ff8] sm:$0xff]
    %1119 = vst [vmem:[#allocation1] ss:$9 sm:$0xff] %v89
    %v1120 = vld [vmem:[#allocation1] sm:$0xff]
    %v1121 = vld [vmem:[#allocation1 + $0x9] sm:$0xff]
    %v1122 = vld [vmem:[#allocation1 + $0x12] sm:$0xff]
    %v1123 = vld [vmem:[#allocation1 + $0x1b] sm:$0xff]
    %v1124 = vld [vmem:[#allocation1 + $0x24] sm:$0xff]
    %v1125 = vld [vmem:[#allocation1 + $0x2d] sm:$0xff]
    %v1126 = vld [vmem:[#allocation1 + $0x36] sm:$0xff]
    %v1127 = vld [vmem:[#allocation1 + $0x3f] sm:$0xff]
    %v2160 = vunpack.c.l.b16 %v94
    %v2161 = vunpack.c.h.b16 %v94
    %v2162 = vunpack.c.l.b16 %v95
    %v2163 = vunpack.c.h.b16 %v95
    %v2164 = vunpack.c.l.b16 %v96
    %v2165 = vunpack.c.h.b16 %v96
    %v2166 = vunpack.c.l.b16 %v97
    %v2167 = vunpack.c.h.b16 %v97
    %v2168 = vunpack.c.l.b16 %v98
    %v2169 = vunpack.c.h.b16 %v98
    %v2170 = vunpack.c.l.b16 %v99
    %v2171 = vunpack.c.h.b16 %v99
    %v2172 = vunpack.c.l.b16 %v100
    %v2173 = vunpack.c.h.b16 %v100
    %v2174 = vunpack.c.l.b16 %v101
    %v2175 = vunpack.c.h.b16 %v101
    %v2176 = vunpack.c.l.b16 %v102
    %v2177 = vunpack.c.h.b16 %v102
    %v2178 = vunpack.c.l.b16 %v103
    %v2179 = vunpack.c.h.b16 %v103
    %v2180 = vunpack.c.l.b16 %v104
    %v2181 = vunpack.c.h.b16 %v104
    %v2182 = vunpack.c.l.b16 %v105
    %v2183 = vunpack.c.h.b16 %v105
    %v2184 = vunpack.c.l.b16 %v106
    %v2185 = vunpack.c.h.b16 %v106
    %v2186 = vunpack.c.l.b16 %v107
    %v2187 = vunpack.c.h.b16 %v107
    %v2188 = vunpack.c.l.b16 %v108
    %v2189 = vunpack.c.h.b16 %v108
    %v2190 = vunpack.c.l.b16 %v109
    %v2191 = vunpack.c.h.b16 %v109
    %v2192 = vunpack.c.l.b16 %v110
    %v2193 = vunpack.c.h.b16 %v110
    %v2194 = vunpack.c.l.b16 %v111
    %v2195 = vunpack.c.h.b16 %v111
    %v2196 = vunpack.c.l.b16 %v112
    %v2197 = vunpack.c.h.b16 %v112
    %v2198 = vunpack.c.l.b16 %v113
    %v2199 = vunpack.c.h.b16 %v113
    %v2200 = vunpack.c.l.b16 %v114
    %v2201 = vunpack.c.h.b16 %v114
    %v2202 = vunpack.c.l.b16 %v115
    %v2203 = vunpack.c.h.b16 %v115
    %v2204 = vunpack.c.l.b16 %v116
    %v2205 = vunpack.c.h.b16 %v116
    %v2206 = vunpack.c.l.b16 %v117
    %v2207 = vunpack.c.h.b16 %v117
    %v2208 = vunpack.c.l.b16 %v118
    %v2209 = vunpack.c.h.b16 %v118
    %v2210 = vunpack.c.l.b16 %v119
    %v2211 = vunpack.c.h.b16 %v119
    %v2212 = vunpack.c.l.b16 %v120
    %v2213 = vunpack.c.h.b16 %v120
    %v2214 = vunpack.c.l.b16 %v121
    %v2215 = vunpack.c.h.b16 %v121
    %v2216 = vunpack.c.l.b16 %v122
    %v2217 = vunpack.c.h.b16 %v122
    %v2218 = vunpack.c.l.b16 %v123
    %v2219 = vunpack.c.h.b16 %v123
    %v2220 = vunpack.c.l.b16 %v124
    %v2221 = vunpack.c.h.b16 %v124
    %v2222 = vunpack.c.l.b16 %v125
    %v2223 = vunpack.c.h.b16 %v125
    %v2224 = vunpack.c.l.b16 %v126
    %v2225 = vunpack.c.h.b16 %v126
    %v2226 = vunpack.c.l.b16 %v127
    %v2227 = vunpack.c.h.b16 %v127
    %v2228 = vunpack.c.l.b16 %v128
    %v2229 = vunpack.c.h.b16 %v128
    %v2230 = vunpack.c.l.b16 %v129
    %v2231 = vunpack.c.h.b16 %v129
    %v2232 = vunpack.c.l.b16 %v130
    %v2233 = vunpack.c.h.b16 %v130
    %v2234 = vunpack.c.l.b16 %v131
    %v2235 = vunpack.c.h.b16 %v131
    %v2236 = vunpack.c.l.b16 %v132
    %v2237 = vunpack.c.h.b16 %v132
    %v2238 = vunpack.c.l.b16 %v133
    %v2239 = vunpack.c.h.b16 %v133
    %v2240 = vunpack.c.l.b16 %v134
    %v2241 = vunpack.c.h.b16 %v134
    %v2242 = vunpack.c.l.b16 %v135
    %v2243 = vunpack.c.h.b16 %v135
    %v2244 = vunpack.c.l.b16 %v136
    %v2245 = vunpack.c.h.b16 %v136
    %v2246 = vunpack.c.l.b16 %v137
    %v2247 = vunpack.c.h.b16 %v137
    %v2248 = vunpack.c.l.b16 %v138
    %v2249 = vunpack.c.h.b16 %v138
    %v2250 = vunpack.c.l.b16 %v139
    %v2251 = vunpack.c.h.b16 %v139
    %v2252 = vunpack.c.l.b16 %v140
    %v2253 = vunpack.c.h.b16 %v140
    %v2254 = vunpack.c.l.b16 %v141
    %v2255 = vunpack.c.h.b16 %v141
    %v2256 = vunpack.c.l.b16 %v142
    %v2257 = vunpack.c.h.b16 %v142
    %v2258 = vunpack.c.l.b16 %v143
    %v2259 = vunpack.c.h.b16 %v143
    %v2260 = vunpack.c.l.b16 %v144
    %v2261 = vunpack.c.h.b16 %v144
    %v2262 = vunpack.c.l.b16 %v145
    %v2263 = vunpack.c.h.b16 %v145
    %v2264 = vunpack.c.l.b16 %v146
    %v2265 = vunpack.c.h.b16 %v146
    %v2266 = vunpack.c.l.b16 %v147
    %v2267 = vunpack.c.h.b16 %v147
    %v2268 = vunpack.c.l.b16 %v148
    %v2269 = vunpack.c.h.b16 %v148
    %v2270 = vunpack.c.l.b16 %v149
    %v2271 = vunpack.c.h.b16 %v149
    %v2272 = vunpack.c.l.b16 %v150
    %v2273 = vunpack.c.h.b16 %v150
    %v2274 = vunpack.c.l.b16 %v151
    %v2275 = vunpack.c.h.b16 %v151
    %v2276 = vunpack.c.l.b16 %v152
    %v2277 = vunpack.c.h.b16 %v152
    %v2278 = vunpack.c.l.b16 %v153
    %v2279 = vunpack.c.h.b16 %v153
    %v2280 = vunpack.c.l.b16 %v154
    %v2281 = vunpack.c.h.b16 %v154
    %v2282 = vunpack.c.l.b16 %v155
    %v2283 = vunpack.c.h.b16 %v155
    %v2284 = vunpack.c.l.b16 %v156
    %v2285 = vunpack.c.h.b16 %v156
    %v2286 = vunpack.c.l.b16 %v157
    %v2287 = vunpack.c.h.b16 %v157
    %v2288 = vunpack.c.l.b16 %v158
    %v2289 = vunpack.c.h.b16 %v158
    %v2290 = vunpack.c.l.b16 %v159
    %v2291 = vunpack.c.h.b16 %v159
    %v2292 = vunpack.c.l.b16 %v160
    %v2293 = vunpack.c.h.b16 %v160
    %v2294 = vunpack.c.l.b16 %v161
    %v2295 = vunpack.c.h.b16 %v161
    %v2296 = vunpack.c.l.b16 %v162
    %v2297 = vunpack.c.h.b16 %v162
    %v2298 = vunpack.c.l.b16 %v163
    %v2299 = vunpack.c.h.b16 %v163
    %v2300 = vunpack.c.l.b16 %v164
    %v2301 = vunpack.c.h.b16 %v164
    %v2302 = vunpack.c.l.b16 %v165
    %v2303 = vunpack.c.h.b16 %v165
    %v2304 = vunpack.c.l.b16 %v166
    %v2305 = vunpack.c.h.b16 %v166
    %v2306 = vunpack.c.l.b16 %v167
    %v2307 = vunpack.c.h.b16 %v167
    %v2308 = vunpack.c.l.b16 %v168
    %v2309 = vunpack.c.h.b16 %v168
    %v2310 = vunpack.c.l.b16 %v169
    %v2311 = vunpack.c.h.b16 %v169
    %v2312 = vunpack.c.l.b16 %v170
    %v2313 = vunpack.c.h.b16 %v170
    %v2314 = vunpack.c.l.b16 %v171
    %v2315 = vunpack.c.h.b16 %v171
    %v2316 = vunpack.c.l.b16 %v172
    %v2317 = vunpack.c.h.b16 %v172
    %v2318 = vunpack.c.l.b16 %v173
    %v2319 = vunpack.c.h.b16 %v173
    %v2320 = vunpack.c.l.b16 %v174
    %v2321 = vunpack.c.h.b16 %v174
    %v2322 = vunpack.c.l.b16 %v175
    %v2323 = vunpack.c.h.b16 %v175
    %v2324 = vunpack.c.l.b16 %v176
    %v2325 = vunpack.c.h.b16 %v176
    %v2326 = vunpack.c.l.b16 %v177
    %v2327 = vunpack.c.h.b16 %v177
    %v2328 = vunpack.c.l.b16 %v178
    %v2329 = vunpack.c.h.b16 %v178
    %v2330 = vunpack.c.l.b16 %v179
    %v2331 = vunpack.c.h.b16 %v179
    %v2332 = vunpack.c.l.b16 %v180
    %v2333 = vunpack.c.h.b16 %v180
    %v2334 = vunpack.c.l.b16 %v181
    %v2335 = vunpack.c.h.b16 %v181
    %v2336 = vunpack.c.l.b16 %v182
    %v2337 = vunpack.c.h.b16 %v182
    %v2338 = vunpack.c.l.b16 %v183
    %v2339 = vunpack.c.h.b16 %v183
    %v2340 = vunpack.c.l.b16 %v184
    %v2341 = vunpack.c.h.b16 %v184
    %v2342 = vunpack.c.l.b16 %v185
    %v2343 = vunpack.c.h.b16 %v185
    %v2344 = vunpack.c.l.b16 %v186
    %v2345 = vunpack.c.h.b16 %v186
    %v2346 = vunpack.c.l.b16 %v187
    %v2347 = vunpack.c.h.b16 %v187
    %v2348 = vunpack.c.l.b16 %v188
    %v2349 = vunpack.c.h.b16 %v188
    %v2350 = vunpack.c.l.b16 %v189
    %v2351 = vunpack.c.h.b16 %v189
    %v2352 = vunpack.c.l.b16 %v190
    %v2353 = vunpack.c.h.b16 %v190
    %v2354 = vunpack.c.l.b16 %v191
    %v2355 = vunpack.c.h.b16 %v191
    %v2356 = vunpack.c.l.b16 %v192
    %v2357 = vunpack.c.h.b16 %v192
    %v2358 = vunpack.c.l.b16 %v193
    %v2359 = vunpack.c.h.b16 %v193
    %v2360 = vunpack.c.l.b16 %v194
    %v2361 = vunpack.c.h.b16 %v194
    %v2362 = vunpack.c.l.b16 %v195
    %v2363 = vunpack.c.h.b16 %v195
    %v2364 = vunpack.c.l.b16 %v196
    %v2365 = vunpack.c.h.b16 %v196
    %v2366 = vunpack.c.l.b16 %v197
    %v2367 = vunpack.c.h.b16 %v197
    %v2368 = vunpack.c.l.b16 %v198
    %v2369 = vunpack.c.h.b16 %v198
    %v2370 = vunpack.c.l.b16 %v199
    %v2371 = vunpack.c.h.b16 %v199
    %v2372 = vunpack.c.l.b16 %v200
    %v2373 = vunpack.c.h.b16 %v200
    %v2374 = vunpack.c.l.b16 %v201
    %v2375 = vunpack.c.h.b16 %v201
    %v2376 = vunpack.c.l.b16 %v202
    %v2377 = vunpack.c.h.b16 %v202
    %v2378 = vunpack.c.l.b16 %v203
    %v2379 = vunpack.c.h.b16 %v203
    %v2380 = vunpack.c.l.b16 %v204
    %v2381 = vunpack.c.h.b16 %v204
    %v2382 = vunpack.c.l.b16 %v205
    %v2383 = vunpack.c.h.b16 %v205
    %v2384 = vunpack.c.l.b16 %v206
    %v2385 = vunpack.c.h.b16 %v206
    %v2386 = vunpack.c.l.b16 %v207
    %v2387 = vunpack.c.h.b16 %v207
    %v2388 = vunpack.c.l.b16 %v208
    %v2389 = vunpack.c.h.b16 %v208
    %v2390 = vunpack.c.l.b16 %v209
    %v2391 = vunpack.c.h.b16 %v209
    %v2392 = vunpack.c.l.b16 %v210
    %v2393 = vunpack.c.h.b16 %v210
    %v2394 = vunpack.c.l.b16 %v211
    %v2395 = vunpack.c.h.b16 %v211
    %v2396 = vunpack.c.l.b16 %v212
    %v2397 = vunpack.c.h.b16 %v212
    %v2398 = vunpack.c.l.b16 %v213
    %v2399 = vunpack.c.h.b16 %v213
    %v2400 = vunpack.c.l.b16 %v214
    %v2401 = vunpack.c.h.b16 %v214
    %v2402 = vunpack.c.l.b16 %v215
    %v2403 = vunpack.c.h.b16 %v215
    %v2404 = vunpack.c.l.b16 %v216
    %v2405 = vunpack.c.h.b16 %v216
    %v2406 = vunpack.c.l.b16 %v217
    %v2407 = vunpack.c.h.b16 %v217
    %v2408 = vunpack.c.l.b16 %v218
    %v2409 = vunpack.c.h.b16 %v218
    %v2410 = vunpack.c.l.b16 %v219
    %v2411 = vunpack.c.h.b16 %v219
    %v2412 = vunpack.c.l.b16 %v220
    %v2413 = vunpack.c.h.b16 %v220
    %v2414 = vunpack.c.l.b16 %v221
    %v2415 = vunpack.c.h.b16 %v221
    %v2416 = vunpack.c.l.b16 %v222
    %v2417 = vunpack.c.h.b16 %v222
    %v2418 = vunpack.c.l.b16 %v223
    %v2419 = vunpack.c.h.b16 %v223
    %v2420 = vunpack.c.l.b16 %v224
    %v2421 = vunpack.c.h.b16 %v224
    %v2422 = vunpack.c.l.b16 %v225
    %v2423 = vunpack.c.h.b16 %v225
    %v2424 = vunpack.c.l.b16 %v226
    %v2425 = vunpack.c.h.b16 %v226
    %v2426 = vunpack.c.l.b16 %v227
    %v2427 = vunpack.c.h.b16 %v227
    %v2428 = vunpack.c.l.b16 %v228
    %v2429 = vunpack.c.h.b16 %v228
    %v2430 = vunpack.c.l.b16 %v229
    %v2431 = vunpack.c.h.b16 %v229
    %v2432 = vunpack.c.l.b16 %v230
    %v2433 = vunpack.c.h.b16 %v230
    %v2434 = vunpack.c.l.b16 %v231
    %v2435 = vunpack.c.h.b16 %v231
    %v2436 = vunpack.c.l.b16 %v232
    %v2437 = vunpack.c.h.b16 %v232
    %v2438 = vunpack.c.l.b16 %v233
    %v2439 = vunpack.c.h.b16 %v233
    %v2440 = vunpack.c.l.b16 %v234
    %v2441 = vunpack.c.h.b16 %v234
    %v2442 = vunpack.c.l.b16 %v235
    %v2443 = vunpack.c.h.b16 %v235
    %v2444 = vunpack.c.l.b16 %v236
    %v2445 = vunpack.c.h.b16 %v236
    %v2446 = vunpack.c.l.b16 %v237
    %v2447 = vunpack.c.h.b16 %v237
    %v2448 = vunpack.c.l.b16 %v238
    %v2449 = vunpack.c.h.b16 %v238
    %v2450 = vunpack.c.l.b16 %v239
    %v2451 = vunpack.c.h.b16 %v239
    %v2452 = vunpack.c.l.b16 %v240
    %v2453 = vunpack.c.h.b16 %v240
    %v2454 = vunpack.c.l.b16 %v241
    %v2455 = vunpack.c.h.b16 %v241
    %v2456 = vunpack.c.l.b16 %v242
    %v2457 = vunpack.c.h.b16 %v242
    %v2458 = vunpack.c.l.b16 %v243
    %v2459 = vunpack.c.h.b16 %v243
    %v2460 = vunpack.c.l.b16 %v244
    %v2461 = vunpack.c.h.b16 %v244
    %v2462 = vunpack.c.l.b16 %v245
    %v2463 = vunpack.c.h.b16 %v245
    %v2464 = vunpack.c.l.b16 %v246
    %v2465 = vunpack.c.h.b16 %v246
    %v2466 = vunpack.c.l.b16 %v247
    %v2467 = vunpack.c.h.b16 %v247
    %v2468 = vunpack.c.l.b16 %v248
    %v2469 = vunpack.c.h.b16 %v248
    %v2470 = vunpack.c.l.b16 %v249
    %v2471 = vunpack.c.h.b16 %v249
    %v2472 = vunpack.c.l.b16 %v250
    %v2473 = vunpack.c.h.b16 %v250
    %v2474 = vunpack.c.l.b16 %v251
    %v2475 = vunpack.c.h.b16 %v251
    %v2476 = vunpack.c.l.b16 %v252
    %v2477 = vunpack.c.h.b16 %v252
    %v2478 = vunpack.c.l.b16 %v253
    %v2479 = vunpack.c.h.b16 %v253
    %v2480 = vunpack.c.l.b16 %v254
    %v2481 = vunpack.c.h.b16 %v254
    %v2482 = vunpack.c.l.b16 %v255
    %v2483 = vunpack.c.h.b16 %v255
    %v2484 = vunpack.c.l.b16 %v256
    %v2485 = vunpack.c.h.b16 %v256
    %v2486 = vunpack.c.l.b16 %v257
    %v2487 = vunpack.c.h.b16 %v257
    %v2488 = vunpack.c.l.b16 %v258
    %v2489 = vunpack.c.h.b16 %v258
    %v2490 = vunpack.c.l.b16 %v259
    %v2491 = vunpack.c.h.b16 %v259
    %v2492 = vunpack.c.l.b16 %v260
    %v2493 = vunpack.c.h.b16 %v260
    %v2494 = vunpack.c.l.b16 %v261
    %v2495 = vunpack.c.h.b16 %v261
    %v2496 = vunpack.c.l.b16 %v262
    %v2497 = vunpack.c.h.b16 %v262
    %v2498 = vunpack.c.l.b16 %v263
    %v2499 = vunpack.c.h.b16 %v263
    %v2500 = vunpack.c.l.b16 %v264
    %v2501 = vunpack.c.h.b16 %v264
    %v2502 = vunpack.c.l.b16 %v265
    %v2503 = vunpack.c.h.b16 %v265
    %v2504 = vunpack.c.l.b16 %v266
    %v2505 = vunpack.c.h.b16 %v266
    %v2506 = vunpack.c.l.b16 %v267
    %v2507 = vunpack.c.h.b16 %v267
    %v2508 = vunpack.c.l.b16 %v268
    %v2509 = vunpack.c.h.b16 %v268
    %v2510 = vunpack.c.l.b16 %v269
    %v2511 = vunpack.c.h.b16 %v269
    %v2512 = vunpack.c.l.b16 %v270
    %v2513 = vunpack.c.h.b16 %v270
    %v2514 = vunpack.c.l.b16 %v271
    %v2515 = vunpack.c.h.b16 %v271
    %v2516 = vunpack.c.l.b16 %v272
    %v2517 = vunpack.c.h.b16 %v272
    %v2518 = vunpack.c.l.b16 %v273
    %v2519 = vunpack.c.h.b16 %v273
    %v2520 = vunpack.c.l.b16 %v274
    %v2521 = vunpack.c.h.b16 %v274
    %v2522 = vunpack.c.l.b16 %v275
    %v2523 = vunpack.c.h.b16 %v275
    %v2524 = vunpack.c.l.b16 %v276
    %v2525 = vunpack.c.h.b16 %v276
    %v2526 = vunpack.c.l.b16 %v277
    %v2527 = vunpack.c.h.b16 %v277
    %v2528 = vunpack.c.l.b16 %v278
    %v2529 = vunpack.c.h.b16 %v278
    %v2530 = vunpack.c.l.b16 %v279
    %v2531 = vunpack.c.h.b16 %v279
    %v2532 = vunpack.c.l.b16 %v280
    %v2533 = vunpack.c.h.b16 %v280
    %v2534 = vunpack.c.l.b16 %v281
    %v2535 = vunpack.c.h.b16 %v281
    %v2536 = vunpack.c.l.b16 %v282
    %v2537 = vunpack.c.h.b16 %v282
    %v2538 = vunpack.c.l.b16 %v283
    %v2539 = vunpack.c.h.b16 %v283
    %v2540 = vunpack.c.l.b16 %v284
    %v2541 = vunpack.c.h.b16 %v284
    %v2542 = vunpack.c.l.b16 %v285
    %v2543 = vunpack.c.h.b16 %v285
    %v2544 = vunpack.c.l.b16 %v286
    %v2545 = vunpack.c.h.b16 %v286
    %v2546 = vunpack.c.l.b16 %v287
    %v2547 = vunpack.c.h.b16 %v287
    %v2548 = vunpack.c.l.b16 %v288
    %v2549 = vunpack.c.h.b16 %v288
    %v2550 = vunpack.c.l.b16 %v289
    %v2551 = vunpack.c.h.b16 %v289
    %v2552 = vunpack.c.l.b16 %v290
    %v2553 = vunpack.c.h.b16 %v290
    %v2554 = vunpack.c.l.b16 %v291
    %v2555 = vunpack.c.h.b16 %v291
    %v2556 = vunpack.c.l.b16 %v292
    %v2557 = vunpack.c.h.b16 %v292
    %v2558 = vunpack.c.l.b16 %v293
    %v2559 = vunpack.c.h.b16 %v293
    %v2560 = vunpack.c.l.b16 %v294
    %v2561 = vunpack.c.h.b16 %v294
    %v2562 = vunpack.c.l.b16 %v295
    %v2563 = vunpack.c.h.b16 %v295
    %v2564 = vunpack.c.l.b16 %v296
    %v2565 = vunpack.c.h.b16 %v296
    %v2566 = vunpack.c.l.b16 %v297
    %v2567 = vunpack.c.h.b16 %v297
    %v2568 = vunpack.c.l.b16 %v298
    %v2569 = vunpack.c.h.b16 %v298
    %v2570 = vunpack.c.l.b16 %v299
    %v2571 = vunpack.c.h.b16 %v299
    %v2572 = vunpack.c.l.b16 %v300
    %v2573 = vunpack.c.h.b16 %v300
    %v2574 = vunpack.c.l.b16 %v301
    %v2575 = vunpack.c.h.b16 %v301
    %v2576 = vunpack.c.l.b16 %v302
    %v2577 = vunpack.c.h.b16 %v302
    %v2578 = vunpack.c.l.b16 %v303
    %v2579 = vunpack.c.h.b16 %v303
    %v2580 = vunpack.c.l.b16 %v304
    %v2581 = vunpack.c.h.b16 %v304
    %v2582 = vunpack.c.l.b16 %v305
    %v2583 = vunpack.c.h.b16 %v305
    %v2584 = vunpack.c.l.b16 %v306
    %v2585 = vunpack.c.h.b16 %v306
    %v2586 = vunpack.c.l.b16 %v307
    %v2587 = vunpack.c.h.b16 %v307
    %v2588 = vunpack.c.l.b16 %v308
    %v2589 = vunpack.c.h.b16 %v308
    %v2590 = vunpack.c.l.b16 %v309
    %v2591 = vunpack.c.h.b16 %v309
    %v2592 = vunpack.c.l.b16 %v310
    %v2593 = vunpack.c.h.b16 %v310
    %v2594 = vunpack.c.l.b16 %v311
    %v2595 = vunpack.c.h.b16 %v311
    %v2596 = vunpack.c.l.b16 %v312
    %v2597 = vunpack.c.h.b16 %v312
    %v2598 = vunpack.c.l.b16 %v313
    %v2599 = vunpack.c.h.b16 %v313
    %v2600 = vunpack.c.l.b16 %v314
    %v2601 = vunpack.c.h.b16 %v314
    %v2602 = vunpack.c.l.b16 %v315
    %v2603 = vunpack.c.h.b16 %v315
    %v2604 = vunpack.c.l.b16 %v316
    %v2605 = vunpack.c.h.b16 %v316
    %v2606 = vunpack.c.l.b16 %v317
    %v2607 = vunpack.c.h.b16 %v317
    %v2608 = vunpack.c.l.b16 %v318
    %v2609 = vunpack.c.h.b16 %v318
    %v2610 = vunpack.c.l.b16 %v319
    %v2611 = vunpack.c.h.b16 %v319
    %v2612 = vunpack.c.l.b16 %v320
    %v2613 = vunpack.c.h.b16 %v320
    %v2614 = vunpack.c.l.b16 %v321
    %v2615 = vunpack.c.h.b16 %v321
    %v2616 = vunpack.c.l.b16 %v322
    %v2617 = vunpack.c.h.b16 %v322
    %v2618 = vunpack.c.l.b16 %v323
    %v2619 = vunpack.c.h.b16 %v323
    %v2620 = vunpack.c.l.b16 %v324
    %v2621 = vunpack.c.h.b16 %v324
    %v2622 = vunpack.c.l.b16 %v325
    %v2623 = vunpack.c.h.b16 %v325
    %v2624 = vunpack.c.l.b16 %v326
    %v2625 = vunpack.c.h.b16 %v326
    %v2626 = vunpack.c.l.b16 %v327
    %v2627 = vunpack.c.h.b16 %v327
    %v2628 = vunpack.c.l.b16 %v328
    %v2629 = vunpack.c.h.b16 %v328
    %v2630 = vunpack.c.l.b16 %v329
    %v2631 = vunpack.c.h.b16 %v329
    %v2632 = vunpack.c.l.b16 %v330
    %v2633 = vunpack.c.h.b16 %v330
    %v2634 = vunpack.c.l.b16 %v331
    %v2635 = vunpack.c.h.b16 %v331
    %v2636 = vunpack.c.l.b16 %v332
    %v2637 = vunpack.c.h.b16 %v332
    %v2638 = vunpack.c.l.b16 %v333
    %v2639 = vunpack.c.h.b16 %v333
    %v2640 = vunpack.c.l.b16 %v334
    %v2641 = vunpack.c.h.b16 %v334
    %v2642 = vunpack.c.l.b16 %v335
    %v2643 = vunpack.c.h.b16 %v335
    %v2644 = vunpack.c.l.b16 %v336
    %v2645 = vunpack.c.h.b16 %v336
    %v2646 = vunpack.c.l.b16 %v337
    %v2647 = vunpack.c.h.b16 %v337
    %v2648 = vunpack.c.l.b16 %v338
    %v2649 = vunpack.c.h.b16 %v338
    %v2650 = vunpack.c.l.b16 %v339
    %v2651 = vunpack.c.h.b16 %v339
    %v2652 = vunpack.c.l.b16 %v340
    %v2653 = vunpack.c.h.b16 %v340
    %v2654 = vunpack.c.l.b16 %v341
    %v2655 = vunpack.c.h.b16 %v341
    %v2656 = vunpack.c.l.b16 %v342
    %v2657 = vunpack.c.h.b16 %v342
    %v2658 = vunpack.c.l.b16 %v343
    %v2659 = vunpack.c.h.b16 %v343
    %v2660 = vunpack.c.l.b16 %v344
    %v2661 = vunpack.c.h.b16 %v344
    %v2662 = vunpack.c.l.b16 %v345
    %v2663 = vunpack.c.h.b16 %v345
    %v2664 = vunpack.c.l.b16 %v346
    %v2665 = vunpack.c.h.b16 %v346
    %v2666 = vunpack.c.l.b16 %v347
    %v2667 = vunpack.c.h.b16 %v347
    %v2668 = vunpack.c.l.b16 %v348
    %v2669 = vunpack.c.h.b16 %v348
    %v2670 = vunpack.c.l.b16 %v349
    %v2671 = vunpack.c.h.b16 %v349
    %v2672 = vunpack.c.l.b16 %v350
    %v2673 = vunpack.c.h.b16 %v350
    %v2674 = vunpack.c.l.b16 %v351
    %v2675 = vunpack.c.h.b16 %v351
    %v2676 = vunpack.c.l.b16 %v352
    %v2677 = vunpack.c.h.b16 %v352
    %v2678 = vunpack.c.l.b16 %v353
    %v2679 = vunpack.c.h.b16 %v353
    %v2680 = vunpack.c.l.b16 %v354
    %v2681 = vunpack.c.h.b16 %v354
    %v2682 = vunpack.c.l.b16 %v355
    %v2683 = vunpack.c.h.b16 %v355
    %v2684 = vunpack.c.l.b16 %v356
    %v2685 = vunpack.c.h.b16 %v356
    %v2686 = vunpack.c.l.b16 %v357
    %v2687 = vunpack.c.h.b16 %v357
    %v2688 = vunpack.c.l.b16 %v358
    %v2689 = vunpack.c.h.b16 %v358
    %v2690 = vunpack.c.l.b16 %v359
    %v2691 = vunpack.c.h.b16 %v359
    %v2692 = vunpack.c.l.b16 %v360
    %v2693 = vunpack.c.h.b16 %v360
    %v2694 = vunpack.c.l.b16 %v361
    %v2695 = vunpack.c.h.b16 %v361
    %v2696 = vunpack.c.l.b16 %v362
    %v2697 = vunpack.c.h.b16 %v362
    %v2698 = vunpack.c.l.b16 %v363
    %v2699 = vunpack.c.h.b16 %v363
    %v2700 = vunpack.c.l.b16 %v364
    %v2701 = vunpack.c.h.b16 %v364
    %v2702 = vunpack.c.l.b16 %v365
    %v2703 = vunpack.c.h.b16 %v365
    %v2704 = vunpack.c.l.b16 %v366
    %v2705 = vunpack.c.h.b16 %v366
    %v2706 = vunpack.c.l.b16 %v367
    %v2707 = vunpack.c.h.b16 %v367
    %v2708 = vunpack.c.l.b16 %v368
    %v2709 = vunpack.c.h.b16 %v368
    %v2710 = vunpack.c.l.b16 %v369
    %v2711 = vunpack.c.h.b16 %v369
    %v2712 = vunpack.c.l.b16 %v370
    %v2713 = vunpack.c.h.b16 %v370
    %v2714 = vunpack.c.l.b16 %v371
    %v2715 = vunpack.c.h.b16 %v371
    %v2716 = vunpack.c.l.b16 %v372
    %v2717 = vunpack.c.h.b16 %v372
    %v2718 = vunpack.c.l.b16 %v373
    %v2719 = vunpack.c.h.b16 %v373
    %v2720 = vunpack.c.l.b16 %v374
    %v2721 = vunpack.c.h.b16 %v374
    %v2722 = vunpack.c.l.b16 %v375
    %v2723 = vunpack.c.h.b16 %v375
    %v2724 = vunpack.c.l.b16 %v376
    %v2725 = vunpack.c.h.b16 %v376
    %v2726 = vunpack.c.l.b16 %v377
    %v2727 = vunpack.c.h.b16 %v377
    %v2728 = vunpack.c.l.b16 %v378
    %v2729 = vunpack.c.h.b16 %v378
    %v2730 = vunpack.c.l.b16 %v379
    %v2731 = vunpack.c.h.b16 %v379
    %v2732 = vunpack.c.l.b16 %v380
    %v2733 = vunpack.c.h.b16 %v380
    %v2734 = vunpack.c.l.b16 %v381
    %v2735 = vunpack.c.h.b16 %v381
    %v2736 = vunpack.c.l.b16 %v382
    %v2737 = vunpack.c.h.b16 %v382
    %v2738 = vunpack.c.l.b16 %v383
    %v2739 = vunpack.c.h.b16 %v383
    %v2740 = vunpack.c.l.b16 %v384
    %v2741 = vunpack.c.h.b16 %v384
    %v2742 = vunpack.c.l.b16 %v385
    %v2743 = vunpack.c.h.b16 %v385
    %v2744 = vunpack.c.l.b16 %v386
    %v2745 = vunpack.c.h.b16 %v386
    %v2746 = vunpack.c.l.b16 %v387
    %v2747 = vunpack.c.h.b16 %v387
    %v2748 = vunpack.c.l.b16 %v388
    %v2749 = vunpack.c.h.b16 %v388
    %v2750 = vunpack.c.l.b16 %v389
    %v2751 = vunpack.c.h.b16 %v389
    %v2752 = vunpack.c.l.b16 %v390
    %v2753 = vunpack.c.h.b16 %v390
    %v2754 = vunpack.c.l.b16 %v391
    %v2755 = vunpack.c.h.b16 %v391
    %v2756 = vunpack.c.l.b16 %v392
    %v2757 = vunpack.c.h.b16 %v392
    %v2758 = vunpack.c.l.b16 %v393
    %v2759 = vunpack.c.h.b16 %v393
    %v2760 = vunpack.c.l.b16 %v394
    %v2761 = vunpack.c.h.b16 %v394
    %v2762 = vunpack.c.l.b16 %v395
    %v2763 = vunpack.c.h.b16 %v395
    %v2764 = vunpack.c.l.b16 %v396
    %v2765 = vunpack.c.h.b16 %v396
    %v2766 = vunpack.c.l.b16 %v397
    %v2767 = vunpack.c.h.b16 %v397
    %v2768 = vunpack.c.l.b16 %v398
    %v2769 = vunpack.c.h.b16 %v398
    %v2770 = vunpack.c.l.b16 %v399
    %v2771 = vunpack.c.h.b16 %v399
    %v2772 = vunpack.c.l.b16 %v400
    %v2773 = vunpack.c.h.b16 %v400
    %v2774 = vunpack.c.l.b16 %v401
    %v2775 = vunpack.c.h.b16 %v401
    %v2776 = vunpack.c.l.b16 %v402
    %v2777 = vunpack.c.h.b16 %v402
    %v2778 = vunpack.c.l.b16 %v403
    %v2779 = vunpack.c.h.b16 %v403
    %v2780 = vunpack.c.l.b16 %v404
    %v2781 = vunpack.c.h.b16 %v404
    %v2782 = vunpack.c.l.b16 %v405
    %v2783 = vunpack.c.h.b16 %v405
    %v2784 = vunpack.c.l.b16 %v406
    %v2785 = vunpack.c.h.b16 %v406
    %v2786 = vunpack.c.l.b16 %v407
    %v2787 = vunpack.c.h.b16 %v407
    %v2788 = vunpack.c.l.b16 %v408
    %v2789 = vunpack.c.h.b16 %v408
    %v2790 = vunpack.c.l.b16 %v409
    %v2791 = vunpack.c.h.b16 %v409
    %v2792 = vunpack.c.l.b16 %v410
    %v2793 = vunpack.c.h.b16 %v410
    %v2794 = vunpack.c.l.b16 %v411
    %v2795 = vunpack.c.h.b16 %v411
    %v2796 = vunpack.c.l.b16 %v412
    %v2797 = vunpack.c.h.b16 %v412
    %v2798 = vunpack.c.l.b16 %v413
    %v2799 = vunpack.c.h.b16 %v413
    %v2800 = vunpack.c.l.b16 %v414
    %v2801 = vunpack.c.h.b16 %v414
    %v2802 = vunpack.c.l.b16 %v415
    %v2803 = vunpack.c.h.b16 %v415
    %v2804 = vunpack.c.l.b16 %v416
    %v2805 = vunpack.c.h.b16 %v416
    %v2806 = vunpack.c.l.b16 %v417
    %v2807 = vunpack.c.h.b16 %v417
    %v2808 = vunpack.c.l.b16 %v418
    %v2809 = vunpack.c.h.b16 %v418
    %v2810 = vunpack.c.l.b16 %v419
    %v2811 = vunpack.c.h.b16 %v419
    %v2812 = vunpack.c.l.b16 %v420
    %v2813 = vunpack.c.h.b16 %v420
    %v2814 = vunpack.c.l.b16 %v421
    %v2815 = vunpack.c.h.b16 %v421
    %v2816 = vunpack.c.l.b16 %v422
    %v2817 = vunpack.c.h.b16 %v422
    %v2818 = vunpack.c.l.b16 %v423
    %v2819 = vunpack.c.h.b16 %v423
    %v2820 = vunpack.c.l.b16 %v424
    %v2821 = vunpack.c.h.b16 %v424
    %v2822 = vunpack.c.l.b16 %v425
    %v2823 = vunpack.c.h.b16 %v425
    %v2824 = vunpack.c.l.b16 %v426
    %v2825 = vunpack.c.h.b16 %v426
    %v2826 = vunpack.c.l.b16 %v427
    %v2827 = vunpack.c.h.b16 %v427
    %v2828 = vunpack.c.l.b16 %v428
    %v2829 = vunpack.c.h.b16 %v428
    %v2830 = vunpack.c.l.b16 %v429
    %v2831 = vunpack.c.h.b16 %v429
    %v2832 = vunpack.c.l.b16 %v430
    %v2833 = vunpack.c.h.b16 %v430
    %v2834 = vunpack.c.l.b16 %v431
    %v2835 = vunpack.c.h.b16 %v431
    %v2836 = vunpack.c.l.b16 %v432
    %v2837 = vunpack.c.h.b16 %v432
    %v2838 = vunpack.c.l.b16 %v433
    %v2839 = vunpack.c.h.b16 %v433
    %v2840 = vunpack.c.l.b16 %v434
    %v2841 = vunpack.c.h.b16 %v434
    %v2842 = vunpack.c.l.b16 %v435
    %v2843 = vunpack.c.h.b16 %v435
    %v2844 = vunpack.c.l.b16 %v436
    %v2845 = vunpack.c.h.b16 %v436
    %v2846 = vunpack.c.l.b16 %v437
    %v2847 = vunpack.c.h.b16 %v437
    %v2848 = vunpack.c.l.b16 %v438
    %v2849 = vunpack.c.h.b16 %v438
    %v2850 = vunpack.c.l.b16 %v439
    %v2851 = vunpack.c.h.b16 %v439
    %v2852 = vunpack.c.l.b16 %v440
    %v2853 = vunpack.c.h.b16 %v440
    %v2854 = vunpack.c.l.b16 %v441
    %v2855 = vunpack.c.h.b16 %v441
    %v2856 = vunpack.c.l.b16 %v442
    %v2857 = vunpack.c.h.b16 %v442
    %v2858 = vunpack.c.l.b16 %v443
    %v2859 = vunpack.c.h.b16 %v443
    %v2860 = vunpack.c.l.b16 %v444
    %v2861 = vunpack.c.h.b16 %v444
    %v2862 = vunpack.c.l.b16 %v445
    %v2863 = vunpack.c.h.b16 %v445
    %v2864 = vunpack.c.l.b16 %v446
    %v2865 = vunpack.c.h.b16 %v446
    %v2866 = vunpack.c.l.b16 %v447
    %v2867 = vunpack.c.h.b16 %v447
    %v2868 = vunpack.c.l.b16 %v448
    %v2869 = vunpack.c.h.b16 %v448
    %v2870 = vunpack.c.l.b16 %v449
    %v2871 = vunpack.c.h.b16 %v449
    %v2872 = vunpack.c.l.b16 %v450
    %v2873 = vunpack.c.h.b16 %v450
    %v2874 = vunpack.c.l.b16 %v451
    %v2875 = vunpack.c.h.b16 %v451
    %v2876 = vunpack.c.l.b16 %v452
    %v2877 = vunpack.c.h.b16 %v452
    %v2878 = vunpack.c.l.b16 %v453
    %v2879 = vunpack.c.h.b16 %v453
    %v2880 = vunpack.c.l.b16 %v454
    %v2881 = vunpack.c.h.b16 %v454
    %v2882 = vunpack.c.l.b16 %v455
    %v2883 = vunpack.c.h.b16 %v455
    %v2884 = vunpack.c.l.b16 %v456
    %v2885 = vunpack.c.h.b16 %v456
    %v2886 = vunpack.c.l.b16 %v457
    %v2887 = vunpack.c.h.b16 %v457
    %v2888 = vunpack.c.l.b16 %v458
    %v2889 = vunpack.c.h.b16 %v458
    %v2890 = vunpack.c.l.b16 %v459
    %v2891 = vunpack.c.h.b16 %v459
    %v2892 = vunpack.c.l.b16 %v460
    %v2893 = vunpack.c.h.b16 %v460
    %v2894 = vunpack.c.l.b16 %v461
    %v2895 = vunpack.c.h.b16 %v461
    %v2896 = vunpack.c.l.b16 %v462
    %v2897 = vunpack.c.h.b16 %v462
    %v2898 = vunpack.c.l.b16 %v463
    %v2899 = vunpack.c.h.b16 %v463
    %v2900 = vunpack.c.l.b16 %v464
    %v2901 = vunpack.c.h.b16 %v464
    %v2902 = vunpack.c.l.b16 %v465
    %v2903 = vunpack.c.h.b16 %v465
    %v2904 = vunpack.c.l.b16 %v466
    %v2905 = vunpack.c.h.b16 %v466
    %v2906 = vunpack.c.l.b16 %v467
    %v2907 = vunpack.c.h.b16 %v467
    %v2908 = vunpack.c.l.b16 %v468
    %v2909 = vunpack.c.h.b16 %v468
    %v2910 = vunpack.c.l.b16 %v469
    %v2911 = vunpack.c.h.b16 %v469
    %v2912 = vunpack.c.l.b16 %v470
    %v2913 = vunpack.c.h.b16 %v470
    %v2914 = vunpack.c.l.b16 %v471
    %v2915 = vunpack.c.h.b16 %v471
    %v2916 = vunpack.c.l.b16 %v472
    %v2917 = vunpack.c.h.b16 %v472
    %v2918 = vunpack.c.l.b16 %v473
    %v2919 = vunpack.c.h.b16 %v473
    %v2920 = vunpack.c.l.b16 %v474
    %v2921 = vunpack.c.h.b16 %v474
    %v2922 = vunpack.c.l.b16 %v475
    %v2923 = vunpack.c.h.b16 %v475
    %v2924 = vunpack.c.l.b16 %v476
    %v2925 = vunpack.c.h.b16 %v476
    %v2926 = vunpack.c.l.b16 %v477
    %v2927 = vunpack.c.h.b16 %v477
    %v2928 = vunpack.c.l.b16 %v478
    %v2929 = vunpack.c.h.b16 %v478
    %v2930 = vunpack.c.l.b16 %v479
    %v2931 = vunpack.c.h.b16 %v479
    %v2932 = vunpack.c.l.b16 %v480
    %v2933 = vunpack.c.h.b16 %v480
    %v2934 = vunpack.c.l.b16 %v481
    %v2935 = vunpack.c.h.b16 %v481
    %v2936 = vunpack.c.l.b16 %v482
    %v2937 = vunpack.c.h.b16 %v482
    %v2938 = vunpack.c.l.b16 %v483
    %v2939 = vunpack.c.h.b16 %v483
    %v2940 = vunpack.c.l.b16 %v484
    %v2941 = vunpack.c.h.b16 %v484
    %v2942 = vunpack.c.l.b16 %v485
    %v2943 = vunpack.c.h.b16 %v485
    %v2944 = vunpack.c.l.b16 %v486
    %v2945 = vunpack.c.h.b16 %v486
    %v2946 = vunpack.c.l.b16 %v487
    %v2947 = vunpack.c.h.b16 %v487
    %v2948 = vunpack.c.l.b16 %v488
    %v2949 = vunpack.c.h.b16 %v488
    %v2950 = vunpack.c.l.b16 %v489
    %v2951 = vunpack.c.h.b16 %v489
    %v2952 = vunpack.c.l.b16 %v490
    %v2953 = vunpack.c.h.b16 %v490
    %v2954 = vunpack.c.l.b16 %v491
    %v2955 = vunpack.c.h.b16 %v491
    %v2956 = vunpack.c.l.b16 %v492
    %v2957 = vunpack.c.h.b16 %v492
    %v2958 = vunpack.c.l.b16 %v493
    %v2959 = vunpack.c.h.b16 %v493
    %v2960 = vunpack.c.l.b16 %v494
    %v2961 = vunpack.c.h.b16 %v494
    %v2962 = vunpack.c.l.b16 %v495
    %v2963 = vunpack.c.h.b16 %v495
    %v2964 = vunpack.c.l.b16 %v496
    %v2965 = vunpack.c.h.b16 %v496
    %v2966 = vunpack.c.l.b16 %v497
    %v2967 = vunpack.c.h.b16 %v497
    %v2968 = vunpack.c.l.b16 %v498
    %v2969 = vunpack.c.h.b16 %v498
    %v2970 = vunpack.c.l.b16 %v499
    %v2971 = vunpack.c.h.b16 %v499
    %v2972 = vunpack.c.l.b16 %v500
    %v2973 = vunpack.c.h.b16 %v500
    %v2974 = vunpack.c.l.b16 %v501
    %v2975 = vunpack.c.h.b16 %v501
    %v2976 = vunpack.c.l.b16 %v502
    %v2977 = vunpack.c.h.b16 %v502
    %v2978 = vunpack.c.l.b16 %v503
    %v2979 = vunpack.c.h.b16 %v503
    %v2980 = vunpack.c.l.b16 %v504
    %v2981 = vunpack.c.h.b16 %v504
    %v2982 = vunpack.c.l.b16 %v505
    %v2983 = vunpack.c.h.b16 %v505
    %v2984 = vunpack.c.l.b16 %v506
    %v2985 = vunpack.c.h.b16 %v506
    %v2986 = vunpack.c.l.b16 %v507
    %v2987 = vunpack.c.h.b16 %v507
    %v2988 = vunpack.c.l.b16 %v508
    %v2989 = vunpack.c.h.b16 %v508
    %v2990 = vunpack.c.l.b16 %v509
    %v2991 = vunpack.c.h.b16 %v509
    %v2992 = vunpack.c.l.b16 %v510
    %v2993 = vunpack.c.h.b16 %v510
    %v2994 = vunpack.c.l.b16 %v511
    %v2995 = vunpack.c.h.b16 %v511
    %v2996 = vunpack.c.l.b16 %v512
    %v2997 = vunpack.c.h.b16 %v512
    %v2998 = vunpack.c.l.b16 %v513
    %v2999 = vunpack.c.h.b16 %v513
    %v3000 = vunpack.c.l.b16 %v514
    %v3001 = vunpack.c.h.b16 %v514
    %v3002 = vunpack.c.l.b16 %v515
    %v3003 = vunpack.c.h.b16 %v515
    %v3004 = vunpack.c.l.b16 %v516
    %v3005 = vunpack.c.h.b16 %v516
    %v3006 = vunpack.c.l.b16 %v517
    %v3007 = vunpack.c.h.b16 %v517
    %v3008 = vunpack.c.l.b16 %v518
    %v3009 = vunpack.c.h.b16 %v518
    %v3010 = vunpack.c.l.b16 %v519
    %v3011 = vunpack.c.h.b16 %v519
    %v3012 = vunpack.c.l.b16 %v520
    %v3013 = vunpack.c.h.b16 %v520
    %v3014 = vunpack.c.l.b16 %v521
    %v3015 = vunpack.c.h.b16 %v521
    %v3016 = vunpack.c.l.b16 %v522
    %v3017 = vunpack.c.h.b16 %v522
    %v3018 = vunpack.c.l.b16 %v523
    %v3019 = vunpack.c.h.b16 %v523
    %v3020 = vunpack.c.l.b16 %v524
    %v3021 = vunpack.c.h.b16 %v524
    %v3022 = vunpack.c.l.b16 %v525
    %v3023 = vunpack.c.h.b16 %v525
    %v3024 = vunpack.c.l.b16 %v526
    %v3025 = vunpack.c.h.b16 %v526
    %v3026 = vunpack.c.l.b16 %v527
    %v3027 = vunpack.c.h.b16 %v527
    %v3028 = vunpack.c.l.b16 %v528
    %v3029 = vunpack.c.h.b16 %v528
    %v3030 = vunpack.c.l.b16 %v529
    %v3031 = vunpack.c.h.b16 %v529
    %v3032 = vunpack.c.l.b16 %v530
    %v3033 = vunpack.c.h.b16 %v530
    %v3034 = vunpack.c.l.b16 %v531
    %v3035 = vunpack.c.h.b16 %v531
    %v3036 = vunpack.c.l.b16 %v532
    %v3037 = vunpack.c.h.b16 %v532
    %v3038 = vunpack.c.l.b16 %v533
    %v3039 = vunpack.c.h.b16 %v533
    %v3040 = vunpack.c.l.b16 %v534
    %v3041 = vunpack.c.h.b16 %v534
    %v3042 = vunpack.c.l.b16 %v535
    %v3043 = vunpack.c.h.b16 %v535
    %v3044 = vunpack.c.l.b16 %v536
    %v3045 = vunpack.c.h.b16 %v536
    %v3046 = vunpack.c.l.b16 %v537
    %v3047 = vunpack.c.h.b16 %v537
    %v3048 = vunpack.c.l.b16 %v538
    %v3049 = vunpack.c.h.b16 %v538
    %v3050 = vunpack.c.l.b16 %v539
    %v3051 = vunpack.c.h.b16 %v539
    %v3052 = vunpack.c.l.b16 %v540
    %v3053 = vunpack.c.h.b16 %v540
    %v3054 = vunpack.c.l.b16 %v541
    %v3055 = vunpack.c.h.b16 %v541
    %v3056 = vunpack.c.l.b16 %v542
    %v3057 = vunpack.c.h.b16 %v542
    %v3058 = vunpack.c.l.b16 %v543
    %v3059 = vunpack.c.h.b16 %v543
    %v3060 = vunpack.c.l.b16 %v544
    %v3061 = vunpack.c.h.b16 %v544
    %v3062 = vunpack.c.l.b16 %v545
    %v3063 = vunpack.c.h.b16 %v545
    %v3064 = vunpack.c.l.b16 %v546
    %v3065 = vunpack.c.h.b16 %v546
    %v3066 = vunpack.c.l.b16 %v547
    %v3067 = vunpack.c.h.b16 %v547
    %v3068 = vunpack.c.l.b16 %v548
    %v3069 = vunpack.c.h.b16 %v548
    %v3070 = vunpack.c.l.b16 %v549
    %v3071 = vunpack.c.h.b16 %v549
    %v3072 = vunpack.c.l.b16 %v550
    %v3073 = vunpack.c.h.b16 %v550
    %v3074 = vunpack.c.l.b16 %v551
    %v3075 = vunpack.c.h.b16 %v551
    %v3076 = vunpack.c.l.b16 %v552
    %v3077 = vunpack.c.h.b16 %v552
    %v3078 = vunpack.c.l.b16 %v553
    %v3079 = vunpack.c.h.b16 %v553
    %v3080 = vunpack.c.l.b16 %v554
    %v3081 = vunpack.c.h.b16 %v554
    %v3082 = vunpack.c.l.b16 %v555
    %v3083 = vunpack.c.h.b16 %v555
    %v3084 = vunpack.c.l.b16 %v556
    %v3085 = vunpack.c.h.b16 %v556
    %v3086 = vunpack.c.l.b16 %v557
    %v3087 = vunpack.c.h.b16 %v557
    %v3088 = vunpack.c.l.b16 %v558
    %v3089 = vunpack.c.h.b16 %v558
    %v3090 = vunpack.c.l.b16 %v559
    %v3091 = vunpack.c.h.b16 %v559
    %v3092 = vunpack.c.l.b16 %v560
    %v3093 = vunpack.c.h.b16 %v560
    %v3094 = vunpack.c.l.b16 %v561
    %v3095 = vunpack.c.h.b16 %v561
    %v3096 = vunpack.c.l.b16 %v562
    %v3097 = vunpack.c.h.b16 %v562
    %v3098 = vunpack.c.l.b16 %v563
    %v3099 = vunpack.c.h.b16 %v563
    %v3100 = vunpack.c.l.b16 %v564
    %v3101 = vunpack.c.h.b16 %v564
    %v3102 = vunpack.c.l.b16 %v565
    %v3103 = vunpack.c.h.b16 %v565
    %v3104 = vunpack.c.l.b16 %v566
    %v3105 = vunpack.c.h.b16 %v566
    %v3106 = vunpack.c.l.b16 %v567
    %v3107 = vunpack.c.h.b16 %v567
    %v3108 = vunpack.c.l.b16 %v568
    %v3109 = vunpack.c.h.b16 %v568
    %v3110 = vunpack.c.l.b16 %v569
    %v3111 = vunpack.c.h.b16 %v569
    %v3112 = vunpack.c.l.b16 %v570
    %v3113 = vunpack.c.h.b16 %v570
    %v3114 = vunpack.c.l.b16 %v571
    %v3115 = vunpack.c.h.b16 %v571
    %v3116 = vunpack.c.l.b16 %v572
    %v3117 = vunpack.c.h.b16 %v572
    %v3118 = vunpack.c.l.b16 %v573
    %v3119 = vunpack.c.h.b16 %v573
    %v3120 = vunpack.c.l.b16 %v574
    %v3121 = vunpack.c.h.b16 %v574
    %v3122 = vunpack.c.l.b16 %v575
    %v3123 = vunpack.c.h.b16 %v575
    %v3124 = vunpack.c.l.b16 %v576
    %v3125 = vunpack.c.h.b16 %v576
    %v3126 = vunpack.c.l.b16 %v577
    %v3127 = vunpack.c.h.b16 %v577
    %v3128 = vunpack.c.l.b16 %v578
    %v3129 = vunpack.c.h.b16 %v578
    %v3130 = vunpack.c.l.b16 %v579
    %v3131 = vunpack.c.h.b16 %v579
    %v3132 = vunpack.c.l.b16 %v580
    %v3133 = vunpack.c.h.b16 %v580
    %v3134 = vunpack.c.l.b16 %v581
    %v3135 = vunpack.c.h.b16 %v581
    %v3136 = vunpack.c.l.b16 %v582
    %v3137 = vunpack.c.h.b16 %v582
    %v3138 = vunpack.c.l.b16 %v583
    %v3139 = vunpack.c.h.b16 %v583
    %v3140 = vunpack.c.l.b16 %v584
    %v3141 = vunpack.c.h.b16 %v584
    %v3142 = vunpack.c.l.b16 %v585
    %v3143 = vunpack.c.h.b16 %v585
    %v3144 = vunpack.c.l.b16 %v586
    %v3145 = vunpack.c.h.b16 %v586
    %v3146 = vunpack.c.l.b16 %v587
    %v3147 = vunpack.c.h.b16 %v587
    %v3148 = vunpack.c.l.b16 %v588
    %v3149 = vunpack.c.h.b16 %v588
    %v3150 = vunpack.c.l.b16 %v589
    %v3151 = vunpack.c.h.b16 %v589
    %v3152 = vunpack.c.l.b16 %v590
    %v3153 = vunpack.c.h.b16 %v590
    %v3154 = vunpack.c.l.b16 %v591
    %v3155 = vunpack.c.h.b16 %v591
    %v3156 = vunpack.c.l.b16 %v592
    %v3157 = vunpack.c.h.b16 %v592
    %v3158 = vunpack.c.l.b16 %v593
    %v3159 = vunpack.c.h.b16 %v593
    %v3160 = vunpack.c.l.b16 %v594
    %v3161 = vunpack.c.h.b16 %v594
    %v3162 = vunpack.c.l.b16 %v595
    %v3163 = vunpack.c.h.b16 %v595
    %v3164 = vunpack.c.l.b16 %v596
    %v3165 = vunpack.c.h.b16 %v596
    %v3166 = vunpack.c.l.b16 %v597
    %v3167 = vunpack.c.h.b16 %v597
    %v3168 = vunpack.c.l.b16 %v598
    %v3169 = vunpack.c.h.b16 %v598
    %v3170 = vunpack.c.l.b16 %v599
    %v3171 = vunpack.c.h.b16 %v599
    %v3172 = vunpack.c.l.b16 %v600
    %v3173 = vunpack.c.h.b16 %v600
    %v3174 = vunpack.c.l.b16 %v601
    %v3175 = vunpack.c.h.b16 %v601
    %v3176 = vunpack.c.l.b16 %v602
    %v3177 = vunpack.c.h.b16 %v602
    %v3178 = vunpack.c.l.b16 %v603
    %v3179 = vunpack.c.h.b16 %v603
    %v3180 = vunpack.c.l.b16 %v604
    %v3181 = vunpack.c.h.b16 %v604
    %v3182 = vunpack.c.l.b16 %v605
    %v3183 = vunpack.c.h.b16 %v605
    %v3184 = vunpack.c.l.b16 %v606
    %v3185 = vunpack.c.h.b16 %v606
    %v3186 = vunpack.c.l.b16 %v607
    %v3187 = vunpack.c.h.b16 %v607
    %v3188 = vunpack.c.l.b16 %v608
    %v3189 = vunpack.c.h.b16 %v608
    %v3190 = vunpack.c.l.b16 %v609
    %v3191 = vunpack.c.h.b16 %v609
    %v3192 = vunpack.c.l.b16 %v610
    %v3193 = vunpack.c.h.b16 %v610
    %v3194 = vunpack.c.l.b16 %v611
    %v3195 = vunpack.c.h.b16 %v611
    %v3196 = vunpack.c.l.b16 %v612
    %v3197 = vunpack.c.h.b16 %v612
    %v3198 = vunpack.c.l.b16 %v613
    %v3199 = vunpack.c.h.b16 %v613
    %v3200 = vunpack.c.l.b16 %v614
    %v3201 = vunpack.c.h.b16 %v614
    %v3202 = vunpack.c.l.b16 %v615
    %v3203 = vunpack.c.h.b16 %v615
    %v3204 = vunpack.c.l.b16 %v616
    %v3205 = vunpack.c.h.b16 %v616
    %v3206 = vunpack.c.l.b16 %v617
    %v3207 = vunpack.c.h.b16 %v617
    %v3208 = vunpack.c.l.b16 %v618
    %v3209 = vunpack.c.h.b16 %v618
    %v3210 = vunpack.c.l.b16 %v619
    %v3211 = vunpack.c.h.b16 %v619
    %v3212 = vunpack.c.l.b16 %v620
    %v3213 = vunpack.c.h.b16 %v620
    %v3214 = vunpack.c.l.b16 %v621
    %v3215 = vunpack.c.h.b16 %v621
    %v3216 = vunpack.c.l.b16 %v622
    %v3217 = vunpack.c.h.b16 %v622
    %v3218 = vunpack.c.l.b16 %v623
    %v3219 = vunpack.c.h.b16 %v623
    %v3220 = vunpack.c.l.b16 %v624
    %v3221 = vunpack.c.h.b16 %v624
    %v3222 = vunpack.c.l.b16 %v625
    %v3223 = vunpack.c.h.b16 %v625
    %v3224 = vunpack.c.l.b16 %v626
    %v3225 = vunpack.c.h.b16 %v626
    %v3226 = vunpack.c.l.b16 %v627
    %v3227 = vunpack.c.h.b16 %v627
    %v3228 = vunpack.c.l.b16 %v628
    %v3229 = vunpack.c.h.b16 %v628
    %v3230 = vunpack.c.l.b16 %v629
    %v3231 = vunpack.c.h.b16 %v629
    %v3232 = vunpack.c.l.b16 %v630
    %v3233 = vunpack.c.h.b16 %v630
    %v3234 = vunpack.c.l.b16 %v631
    %v3235 = vunpack.c.h.b16 %v631
    %v3236 = vunpack.c.l.b16 %v632
    %v3237 = vunpack.c.h.b16 %v632
    %v3238 = vunpack.c.l.b16 %v633
    %v3239 = vunpack.c.h.b16 %v633
    %v3240 = vunpack.c.l.b16 %v634
    %v3241 = vunpack.c.h.b16 %v634
    %v3242 = vunpack.c.l.b16 %v635
    %v3243 = vunpack.c.h.b16 %v635
    %v3244 = vunpack.c.l.b16 %v636
    %v3245 = vunpack.c.h.b16 %v636
    %v3246 = vunpack.c.l.b16 %v637
    %v3247 = vunpack.c.h.b16 %v637
    %v3248 = vunpack.c.l.b16 %v638
    %v3249 = vunpack.c.h.b16 %v638
    %v3250 = vunpack.c.l.b16 %v639
    %v3251 = vunpack.c.h.b16 %v639
    %v3252 = vunpack.c.l.b16 %v640
    %v3253 = vunpack.c.h.b16 %v640
    %v3254 = vunpack.c.l.b16 %v641
    %v3255 = vunpack.c.h.b16 %v641
    %v3256 = vunpack.c.l.b16 %v642
    %v3257 = vunpack.c.h.b16 %v642
    %v3258 = vunpack.c.l.b16 %v643
    %v3259 = vunpack.c.h.b16 %v643
    %v3260 = vunpack.c.l.b16 %v644
    %v3261 = vunpack.c.h.b16 %v644
    %v3262 = vunpack.c.l.b16 %v645
    %v3263 = vunpack.c.h.b16 %v645
    %v3264 = vunpack.c.l.b16 %v646
    %v3265 = vunpack.c.h.b16 %v646
    %v3266 = vunpack.c.l.b16 %v647
    %v3267 = vunpack.c.h.b16 %v647
    %v3268 = vunpack.c.l.b16 %v648
    %v3269 = vunpack.c.h.b16 %v648
    %v3270 = vunpack.c.l.b16 %v649
    %v3271 = vunpack.c.h.b16 %v649
    %v3272 = vunpack.c.l.b16 %v650
    %v3273 = vunpack.c.h.b16 %v650
    %v3274 = vunpack.c.l.b16 %v651
    %v3275 = vunpack.c.h.b16 %v651
    %v3276 = vunpack.c.l.b16 %v652
    %v3277 = vunpack.c.h.b16 %v652
    %v3278 = vunpack.c.l.b16 %v653
    %v3279 = vunpack.c.h.b16 %v653
    %v3280 = vunpack.c.l.b16 %v654
    %v3281 = vunpack.c.h.b16 %v654
    %v3282 = vunpack.c.l.b16 %v655
    %v3283 = vunpack.c.h.b16 %v655
    %v3284 = vunpack.c.l.b16 %v656
    %v3285 = vunpack.c.h.b16 %v656
    %v3286 = vunpack.c.l.b16 %v657
    %v3287 = vunpack.c.h.b16 %v657
    %v3288 = vunpack.c.l.b16 %v658
    %v3289 = vunpack.c.h.b16 %v658
    %v3290 = vunpack.c.l.b16 %v659
    %v3291 = vunpack.c.h.b16 %v659
    %v3292 = vunpack.c.l.b16 %v660
    %v3293 = vunpack.c.h.b16 %v660
    %v3294 = vunpack.c.l.b16 %v661
    %v3295 = vunpack.c.h.b16 %v661
    %v3296 = vunpack.c.l.b16 %v662
    %v3297 = vunpack.c.h.b16 %v662
    %v3298 = vunpack.c.l.b16 %v663
    %v3299 = vunpack.c.h.b16 %v663
    %v3300 = vunpack.c.l.b16 %v664
    %v3301 = vunpack.c.h.b16 %v664
    %v3302 = vunpack.c.l.b16 %v665
    %v3303 = vunpack.c.h.b16 %v665
    %v3304 = vunpack.c.l.b16 %v666
    %v3305 = vunpack.c.h.b16 %v666
    %v3306 = vunpack.c.l.b16 %v667
    %v3307 = vunpack.c.h.b16 %v667
    %v3308 = vunpack.c.l.b16 %v668
    %v3309 = vunpack.c.h.b16 %v668
    %v3310 = vunpack.c.l.b16 %v669
    %v3311 = vunpack.c.h.b16 %v669
    %v3312 = vunpack.c.l.b16 %v670
    %v3313 = vunpack.c.h.b16 %v670
    %v3314 = vunpack.c.l.b16 %v671
    %v3315 = vunpack.c.h.b16 %v671
    %v3316 = vunpack.c.l.b16 %v672
    %v3317 = vunpack.c.h.b16 %v672
    %v3318 = vunpack.c.l.b16 %v673
    %v3319 = vunpack.c.h.b16 %v673
    %v3320 = vunpack.c.l.b16 %v674
    %v3321 = vunpack.c.h.b16 %v674
    %v3322 = vunpack.c.l.b16 %v675
    %v3323 = vunpack.c.h.b16 %v675
    %v3324 = vunpack.c.l.b16 %v676
    %v3325 = vunpack.c.h.b16 %v676
    %v3326 = vunpack.c.l.b16 %v677
    %v3327 = vunpack.c.h.b16 %v677
    %v3328 = vunpack.c.l.b16 %v678
    %v3329 = vunpack.c.h.b16 %v678
    %v3330 = vunpack.c.l.b16 %v679
    %v3331 = vunpack.c.h.b16 %v679
    %v3332 = vunpack.c.l.b16 %v680
    %v3333 = vunpack.c.h.b16 %v680
    %v3334 = vunpack.c.l.b16 %v681
    %v3335 = vunpack.c.h.b16 %v681
    %v3336 = vunpack.c.l.b16 %v682
    %v3337 = vunpack.c.h.b16 %v682
    %v3338 = vunpack.c.l.b16 %v683
    %v3339 = vunpack.c.h.b16 %v683
    %v3340 = vunpack.c.l.b16 %v684
    %v3341 = vunpack.c.h.b16 %v684
    %v3342 = vunpack.c.l.b16 %v685
    %v3343 = vunpack.c.h.b16 %v685
    %v3344 = vunpack.c.l.b16 %v686
    %v3345 = vunpack.c.h.b16 %v686
    %v3346 = vunpack.c.l.b16 %v687
    %v3347 = vunpack.c.h.b16 %v687
    %v3348 = vunpack.c.l.b16 %v688
    %v3349 = vunpack.c.h.b16 %v688
    %v3350 = vunpack.c.l.b16 %v689
    %v3351 = vunpack.c.h.b16 %v689
    %v3352 = vunpack.c.l.b16 %v690
    %v3353 = vunpack.c.h.b16 %v690
    %v3354 = vunpack.c.l.b16 %v691
    %v3355 = vunpack.c.h.b16 %v691
    %v3356 = vunpack.c.l.b16 %v692
    %v3357 = vunpack.c.h.b16 %v692
    %v3358 = vunpack.c.l.b16 %v693
    %v3359 = vunpack.c.h.b16 %v693
    %v3360 = vunpack.c.l.b16 %v694
    %v3361 = vunpack.c.h.b16 %v694
    %v3362 = vunpack.c.l.b16 %v695
    %v3363 = vunpack.c.h.b16 %v695
    %v3364 = vunpack.c.l.b16 %v696
    %v3365 = vunpack.c.h.b16 %v696
    %v3366 = vunpack.c.l.b16 %v697
    %v3367 = vunpack.c.h.b16 %v697
    %v3368 = vunpack.c.l.b16 %v698
    %v3369 = vunpack.c.h.b16 %v698
    %v3370 = vunpack.c.l.b16 %v699
    %v3371 = vunpack.c.h.b16 %v699
    %v3372 = vunpack.c.l.b16 %v700
    %v3373 = vunpack.c.h.b16 %v700
    %v3374 = vunpack.c.l.b16 %v701
    %v3375 = vunpack.c.h.b16 %v701
    %v3376 = vunpack.c.l.b16 %v702
    %v3377 = vunpack.c.h.b16 %v702
    %v3378 = vunpack.c.l.b16 %v703
    %v3379 = vunpack.c.h.b16 %v703
    %v3380 = vunpack.c.l.b16 %v704
    %v3381 = vunpack.c.h.b16 %v704
    %v3382 = vunpack.c.l.b16 %v705
    %v3383 = vunpack.c.h.b16 %v705
    %v3384 = vunpack.c.l.b16 %v706
    %v3385 = vunpack.c.h.b16 %v706
    %v3386 = vunpack.c.l.b16 %v707
    %v3387 = vunpack.c.h.b16 %v707
    %v3388 = vunpack.c.l.b16 %v708
    %v3389 = vunpack.c.h.b16 %v708
    %v3390 = vunpack.c.l.b16 %v709
    %v3391 = vunpack.c.h.b16 %v709
    %v3392 = vunpack.c.l.b16 %v710
    %v3393 = vunpack.c.h.b16 %v710
    %v3394 = vunpack.c.l.b16 %v711
    %v3395 = vunpack.c.h.b16 %v711
    %v3396 = vunpack.c.l.b16 %v712
    %v3397 = vunpack.c.h.b16 %v712
    %v3398 = vunpack.c.l.b16 %v713
    %v3399 = vunpack.c.h.b16 %v713
    %v3400 = vunpack.c.l.b16 %v714
    %v3401 = vunpack.c.h.b16 %v714
    %v3402 = vunpack.c.l.b16 %v715
    %v3403 = vunpack.c.h.b16 %v715
    %v3404 = vunpack.c.l.b16 %v716
    %v3405 = vunpack.c.h.b16 %v716
    %v3406 = vunpack.c.l.b16 %v717
    %v3407 = vunpack.c.h.b16 %v717
    %v3408 = vunpack.c.l.b16 %v718
    %v3409 = vunpack.c.h.b16 %v718
    %v3410 = vunpack.c.l.b16 %v719
    %v3411 = vunpack.c.h.b16 %v719
    %v3412 = vunpack.c.l.b16 %v720
    %v3413 = vunpack.c.h.b16 %v720
    %v3414 = vunpack.c.l.b16 %v721
    %v3415 = vunpack.c.h.b16 %v721
    %v3416 = vunpack.c.l.b16 %v722
    %v3417 = vunpack.c.h.b16 %v722
    %v3418 = vunpack.c.l.b16 %v723
    %v3419 = vunpack.c.h.b16 %v723
    %v3420 = vunpack.c.l.b16 %v724
    %v3421 = vunpack.c.h.b16 %v724
    %v3422 = vunpack.c.l.b16 %v725
    %v3423 = vunpack.c.h.b16 %v725
    %v3424 = vunpack.c.l.b16 %v726
    %v3425 = vunpack.c.h.b16 %v726
    %v3426 = vunpack.c.l.b16 %v727
    %v3427 = vunpack.c.h.b16 %v727
    %v3428 = vunpack.c.l.b16 %v728
    %v3429 = vunpack.c.h.b16 %v728
    %v3430 = vunpack.c.l.b16 %v729
    %v3431 = vunpack.c.h.b16 %v729
    %v3432 = vunpack.c.l.b16 %v730
    %v3433 = vunpack.c.h.b16 %v730
    %v3434 = vunpack.c.l.b16 %v731
    %v3435 = vunpack.c.h.b16 %v731
    %v3436 = vunpack.c.l.b16 %v732
    %v3437 = vunpack.c.h.b16 %v732
    %v3438 = vunpack.c.l.b16 %v733
    %v3439 = vunpack.c.h.b16 %v733
    %v3440 = vunpack.c.l.b16 %v734
    %v3441 = vunpack.c.h.b16 %v734
    %v3442 = vunpack.c.l.b16 %v735
    %v3443 = vunpack.c.h.b16 %v735
    %v3444 = vunpack.c.l.b16 %v736
    %v3445 = vunpack.c.h.b16 %v736
    %v3446 = vunpack.c.l.b16 %v737
    %v3447 = vunpack.c.h.b16 %v737
    %v3448 = vunpack.c.l.b16 %v738
    %v3449 = vunpack.c.h.b16 %v738
    %v3450 = vunpack.c.l.b16 %v739
    %v3451 = vunpack.c.h.b16 %v739
    %v3452 = vunpack.c.l.b16 %v740
    %v3453 = vunpack.c.h.b16 %v740
    %v3454 = vunpack.c.l.b16 %v741
    %v3455 = vunpack.c.h.b16 %v741
    %v3456 = vunpack.c.l.b16 %v742
    %v3457 = vunpack.c.h.b16 %v742
    %v3458 = vunpack.c.l.b16 %v743
    %v3459 = vunpack.c.h.b16 %v743
    %v3460 = vunpack.c.l.b16 %v744
    %v3461 = vunpack.c.h.b16 %v744
    %v3462 = vunpack.c.l.b16 %v745
    %v3463 = vunpack.c.h.b16 %v745
    %v3464 = vunpack.c.l.b16 %v746
    %v3465 = vunpack.c.h.b16 %v746
    %v3466 = vunpack.c.l.b16 %v747
    %v3467 = vunpack.c.h.b16 %v747
    %v3468 = vunpack.c.l.b16 %v748
    %v3469 = vunpack.c.h.b16 %v748
    %v3470 = vunpack.c.l.b16 %v749
    %v3471 = vunpack.c.h.b16 %v749
    %v3472 = vunpack.c.l.b16 %v750
    %v3473 = vunpack.c.h.b16 %v750
    %v3474 = vunpack.c.l.b16 %v751
    %v3475 = vunpack.c.h.b16 %v751
    %v3476 = vunpack.c.l.b16 %v752
    %v3477 = vunpack.c.h.b16 %v752
    %v3478 = vunpack.c.l.b16 %v753
    %v3479 = vunpack.c.h.b16 %v753
    %v3480 = vunpack.c.l.b16 %v754
    %v3481 = vunpack.c.h.b16 %v754
    %v3482 = vunpack.c.l.b16 %v755
    %v3483 = vunpack.c.h.b16 %v755
    %v3484 = vunpack.c.l.b16 %v756
    %v3485 = vunpack.c.h.b16 %v756
    %v3486 = vunpack.c.l.b16 %v757
    %v3487 = vunpack.c.h.b16 %v757
    %v3488 = vunpack.c.l.b16 %v758
    %v3489 = vunpack.c.h.b16 %v758
    %v3490 = vunpack.c.l.b16 %v759
    %v3491 = vunpack.c.h.b16 %v759
    %v3492 = vunpack.c.l.b16 %v760
    %v3493 = vunpack.c.h.b16 %v760
    %v3494 = vunpack.c.l.b16 %v761
    %v3495 = vunpack.c.h.b16 %v761
    %v3496 = vunpack.c.l.b16 %v762
    %v3497 = vunpack.c.h.b16 %v762
    %v3498 = vunpack.c.l.b16 %v763
    %v3499 = vunpack.c.h.b16 %v763
    %v3500 = vunpack.c.l.b16 %v764
    %v3501 = vunpack.c.h.b16 %v764
    %v3502 = vunpack.c.l.b16 %v765
    %v3503 = vunpack.c.h.b16 %v765
    %v3504 = vunpack.c.l.b16 %v766
    %v3505 = vunpack.c.h.b16 %v766
    %v3506 = vunpack.c.l.b16 %v767
    %v3507 = vunpack.c.h.b16 %v767
    %v3508 = vunpack.c.l.b16 %v768
    %v3509 = vunpack.c.h.b16 %v768
    %v3510 = vunpack.c.l.b16 %v769
    %v3511 = vunpack.c.h.b16 %v769
    %v3512 = vunpack.c.l.b16 %v770
    %v3513 = vunpack.c.h.b16 %v770
    %v3514 = vunpack.c.l.b16 %v771
    %v3515 = vunpack.c.h.b16 %v771
    %v3516 = vunpack.c.l.b16 %v772
    %v3517 = vunpack.c.h.b16 %v772
    %v3518 = vunpack.c.l.b16 %v773
    %v3519 = vunpack.c.h.b16 %v773
    %v3520 = vunpack.c.l.b16 %v774
    %v3521 = vunpack.c.h.b16 %v774
    %v3522 = vunpack.c.l.b16 %v775
    %v3523 = vunpack.c.h.b16 %v775
    %v3524 = vunpack.c.l.b16 %v776
    %v3525 = vunpack.c.h.b16 %v776
    %v3526 = vunpack.c.l.b16 %v777
    %v3527 = vunpack.c.h.b16 %v777
    %v3528 = vunpack.c.l.b16 %v778
    %v3529 = vunpack.c.h.b16 %v778
    %v3530 = vunpack.c.l.b16 %v779
    %v3531 = vunpack.c.h.b16 %v779
    %v3532 = vunpack.c.l.b16 %v780
    %v3533 = vunpack.c.h.b16 %v780
    %v3534 = vunpack.c.l.b16 %v781
    %v3535 = vunpack.c.h.b16 %v781
    %v3536 = vunpack.c.l.b16 %v782
    %v3537 = vunpack.c.h.b16 %v782
    %v3538 = vunpack.c.l.b16 %v783
    %v3539 = vunpack.c.h.b16 %v783
    %v3540 = vunpack.c.l.b16 %v784
    %v3541 = vunpack.c.h.b16 %v784
    %v3542 = vunpack.c.l.b16 %v785
    %v3543 = vunpack.c.h.b16 %v785
    %v3544 = vunpack.c.l.b16 %v786
    %v3545 = vunpack.c.h.b16 %v786
    %v3546 = vunpack.c.l.b16 %v787
    %v3547 = vunpack.c.h.b16 %v787
    %v3548 = vunpack.c.l.b16 %v788
    %v3549 = vunpack.c.h.b16 %v788
    %v3550 = vunpack.c.l.b16 %v789
    %v3551 = vunpack.c.h.b16 %v789
    %v3552 = vunpack.c.l.b16 %v790
    %v3553 = vunpack.c.h.b16 %v790
    %v3554 = vunpack.c.l.b16 %v791
    %v3555 = vunpack.c.h.b16 %v791
    %v3556 = vunpack.c.l.b16 %v792
    %v3557 = vunpack.c.h.b16 %v792
    %v3558 = vunpack.c.l.b16 %v793
    %v3559 = vunpack.c.h.b16 %v793
    %v3560 = vunpack.c.l.b16 %v794
    %v3561 = vunpack.c.h.b16 %v794
    %v3562 = vunpack.c.l.b16 %v795
    %v3563 = vunpack.c.h.b16 %v795
    %v3564 = vunpack.c.l.b16 %v796
    %v3565 = vunpack.c.h.b16 %v796
    %v3566 = vunpack.c.l.b16 %v797
    %v3567 = vunpack.c.h.b16 %v797
    %v3568 = vunpack.c.l.b16 %v798
    %v3569 = vunpack.c.h.b16 %v798
    %v3570 = vunpack.c.l.b16 %v799
    %v3571 = vunpack.c.h.b16 %v799
    %v3572 = vunpack.c.l.b16 %v800
    %v3573 = vunpack.c.h.b16 %v800
    %v3574 = vunpack.c.l.b16 %v801
    %v3575 = vunpack.c.h.b16 %v801
    %v3576 = vunpack.c.l.b16 %v802
    %v3577 = vunpack.c.h.b16 %v802
    %v3578 = vunpack.c.l.b16 %v803
    %v3579 = vunpack.c.h.b16 %v803
    %v3580 = vunpack.c.l.b16 %v804
    %v3581 = vunpack.c.h.b16 %v804
    %v3582 = vunpack.c.l.b16 %v805
    %v3583 = vunpack.c.h.b16 %v805
    %v3584 = vunpack.c.l.b16 %v806
    %v3585 = vunpack.c.h.b16 %v806
    %v3586 = vunpack.c.l.b16 %v807
    %v3587 = vunpack.c.h.b16 %v807
    %v3588 = vunpack.c.l.b16 %v808
    %v3589 = vunpack.c.h.b16 %v808
    %v3590 = vunpack.c.l.b16 %v809
    %v3591 = vunpack.c.h.b16 %v809
    %v3592 = vunpack.c.l.b16 %v810
    %v3593 = vunpack.c.h.b16 %v810
    %v3594 = vunpack.c.l.b16 %v811
    %v3595 = vunpack.c.h.b16 %v811
    %v3596 = vunpack.c.l.b16 %v812
    %v3597 = vunpack.c.h.b16 %v812
    %v3598 = vunpack.c.l.b16 %v813
    %v3599 = vunpack.c.h.b16 %v813
    %v3600 = vunpack.c.l.b16 %v814
    %v3601 = vunpack.c.h.b16 %v814
    %v3602 = vunpack.c.l.b16 %v815
    %v3603 = vunpack.c.h.b16 %v815
    %v3604 = vunpack.c.l.b16 %v816
    %v3605 = vunpack.c.h.b16 %v816
    %v3606 = vunpack.c.l.b16 %v817
    %v3607 = vunpack.c.h.b16 %v817
    %v3608 = vunpack.c.l.b16 %v818
    %v3609 = vunpack.c.h.b16 %v818
    %v3610 = vunpack.c.l.b16 %v819
    %v3611 = vunpack.c.h.b16 %v819
    %v3612 = vunpack.c.l.b16 %v820
    %v3613 = vunpack.c.h.b16 %v820
    %v3614 = vunpack.c.l.b16 %v821
    %v3615 = vunpack.c.h.b16 %v821
    %v3616 = vunpack.c.l.b16 %v822
    %v3617 = vunpack.c.h.b16 %v822
    %v3618 = vunpack.c.l.b16 %v823
    %v3619 = vunpack.c.h.b16 %v823
    %v3620 = vunpack.c.l.b16 %v824
    %v3621 = vunpack.c.h.b16 %v824
    %v3622 = vunpack.c.l.b16 %v825
    %v3623 = vunpack.c.h.b16 %v825
    %v3624 = vunpack.c.l.b16 %v826
    %v3625 = vunpack.c.h.b16 %v826
    %v3626 = vunpack.c.l.b16 %v827
    %v3627 = vunpack.c.h.b16 %v827
    %v3628 = vunpack.c.l.b16 %v828
    %v3629 = vunpack.c.h.b16 %v828
    %v3630 = vunpack.c.l.b16 %v829
    %v3631 = vunpack.c.h.b16 %v829
    %v3632 = vunpack.c.l.b16 %v830
    %v3633 = vunpack.c.h.b16 %v830
    %v3634 = vunpack.c.l.b16 %v831
    %v3635 = vunpack.c.h.b16 %v831
    %v3636 = vunpack.c.l.b16 %v832
    %v3637 = vunpack.c.h.b16 %v832
    %v3638 = vunpack.c.l.b16 %v833
    %v3639 = vunpack.c.h.b16 %v833
    %v3640 = vunpack.c.l.b16 %v834
    %v3641 = vunpack.c.h.b16 %v834
    %v3642 = vunpack.c.l.b16 %v835
    %v3643 = vunpack.c.h.b16 %v835
    %v3644 = vunpack.c.l.b16 %v836
    %v3645 = vunpack.c.h.b16 %v836
    %v3646 = vunpack.c.l.b16 %v837
    %v3647 = vunpack.c.h.b16 %v837
    %v3648 = vunpack.c.l.b16 %v838
    %v3649 = vunpack.c.h.b16 %v838
    %v3650 = vunpack.c.l.b16 %v839
    %v3651 = vunpack.c.h.b16 %v839
    %v3652 = vunpack.c.l.b16 %v840
    %v3653 = vunpack.c.h.b16 %v840
    %v3654 = vunpack.c.l.b16 %v841
    %v3655 = vunpack.c.h.b16 %v841
    %v3656 = vunpack.c.l.b16 %v842
    %v3657 = vunpack.c.h.b16 %v842
    %v3658 = vunpack.c.l.b16 %v843
    %v3659 = vunpack.c.h.b16 %v843
    %v3660 = vunpack.c.l.b16 %v844
    %v3661 = vunpack.c.h.b16 %v844
    %v3662 = vunpack.c.l.b16 %v845
    %v3663 = vunpack.c.h.b16 %v845
    %v3664 = vunpack.c.l.b16 %v846
    %v3665 = vunpack.c.h.b16 %v846
    %v3666 = vunpack.c.l.b16 %v847
    %v3667 = vunpack.c.h.b16 %v847
    %v3668 = vunpack.c.l.b16 %v848
    %v3669 = vunpack.c.h.b16 %v848
    %v3670 = vunpack.c.l.b16 %v849
    %v3671 = vunpack.c.h.b16 %v849
    %v3672 = vunpack.c.l.b16 %v850
    %v3673 = vunpack.c.h.b16 %v850
    %v3674 = vunpack.c.l.b16 %v851
    %v3675 = vunpack.c.h.b16 %v851
    %v3676 = vunpack.c.l.b16 %v852
    %v3677 = vunpack.c.h.b16 %v852
    %v3678 = vunpack.c.l.b16 %v853
    %v3679 = vunpack.c.h.b16 %v853
    %v3680 = vunpack.c.l.b16 %v854
    %v3681 = vunpack.c.h.b16 %v854
    %v3682 = vunpack.c.l.b16 %v855
    %v3683 = vunpack.c.h.b16 %v855
    %v3684 = vunpack.c.l.b16 %v856
    %v3685 = vunpack.c.h.b16 %v856
    %v3686 = vunpack.c.l.b16 %v857
    %v3687 = vunpack.c.h.b16 %v857
    %v3688 = vunpack.c.l.b16 %v858
    %v3689 = vunpack.c.h.b16 %v858
    %v3690 = vunpack.c.l.b16 %v859
    %v3691 = vunpack.c.h.b16 %v859
    %v3692 = vunpack.c.l.b16 %v860
    %v3693 = vunpack.c.h.b16 %v860
    %v3694 = vunpack.c.l.b16 %v861
    %v3695 = vunpack.c.h.b16 %v861
    %v3696 = vunpack.c.l.b16 %v862
    %v3697 = vunpack.c.h.b16 %v862
    %v3698 = vunpack.c.l.b16 %v863
    %v3699 = vunpack.c.h.b16 %v863
    %v3700 = vunpack.c.l.b16 %v864
    %v3701 = vunpack.c.h.b16 %v864
    %v3702 = vunpack.c.l.b16 %v865
    %v3703 = vunpack.c.h.b16 %v865
    %v3704 = vunpack.c.l.b16 %v866
    %v3705 = vunpack.c.h.b16 %v866
    %v3706 = vunpack.c.l.b16 %v867
    %v3707 = vunpack.c.h.b16 %v867
    %v3708 = vunpack.c.l.b16 %v868
    %v3709 = vunpack.c.h.b16 %v868
    %v3710 = vunpack.c.l.b16 %v869
    %v3711 = vunpack.c.h.b16 %v869
    %v3712 = vunpack.c.l.b16 %v870
    %v3713 = vunpack.c.h.b16 %v870
    %v3714 = vunpack.c.l.b16 %v871
    %v3715 = vunpack.c.h.b16 %v871
    %v3716 = vunpack.c.l.b16 %v872
    %v3717 = vunpack.c.h.b16 %v872
    %v3718 = vunpack.c.l.b16 %v873
    %v3719 = vunpack.c.h.b16 %v873
    %v3720 = vunpack.c.l.b16 %v874
    %v3721 = vunpack.c.h.b16 %v874
    %v3722 = vunpack.c.l.b16 %v875
    %v3723 = vunpack.c.h.b16 %v875
    %v3724 = vunpack.c.l.b16 %v876
    %v3725 = vunpack.c.h.b16 %v876
    %v3726 = vunpack.c.l.b16 %v877
    %v3727 = vunpack.c.h.b16 %v877
    %v3728 = vunpack.c.l.b16 %v878
    %v3729 = vunpack.c.h.b16 %v878
    %v3730 = vunpack.c.l.b16 %v879
    %v3731 = vunpack.c.h.b16 %v879
    %v3732 = vunpack.c.l.b16 %v880
    %v3733 = vunpack.c.h.b16 %v880
    %v3734 = vunpack.c.l.b16 %v881
    %v3735 = vunpack.c.h.b16 %v881
    %v3736 = vunpack.c.l.b16 %v882
    %v3737 = vunpack.c.h.b16 %v882
    %v3738 = vunpack.c.l.b16 %v883
    %v3739 = vunpack.c.h.b16 %v883
    %v3740 = vunpack.c.l.b16 %v884
    %v3741 = vunpack.c.h.b16 %v884
    %v3742 = vunpack.c.l.b16 %v885
    %v3743 = vunpack.c.h.b16 %v885
    %v3744 = vunpack.c.l.b16 %v886
    %v3745 = vunpack.c.h.b16 %v886
    %v3746 = vunpack.c.l.b16 %v887
    %v3747 = vunpack.c.h.b16 %v887
    %v3748 = vunpack.c.l.b16 %v888
    %v3749 = vunpack.c.h.b16 %v888
    %v3750 = vunpack.c.l.b16 %v889
    %v3751 = vunpack.c.h.b16 %v889
    %v3752 = vunpack.c.l.b16 %v890
    %v3753 = vunpack.c.h.b16 %v890
    %v3754 = vunpack.c.l.b16 %v891
    %v3755 = vunpack.c.h.b16 %v891
    %v3756 = vunpack.c.l.b16 %v892
    %v3757 = vunpack.c.h.b16 %v892
    %v3758 = vunpack.c.l.b16 %v893
    %v3759 = vunpack.c.h.b16 %v893
    %v3760 = vunpack.c.l.b16 %v894
    %v3761 = vunpack.c.h.b16 %v894
    %v3762 = vunpack.c.l.b16 %v895
    %v3763 = vunpack.c.h.b16 %v895
    %v3764 = vunpack.c.l.b16 %v896
    %v3765 = vunpack.c.h.b16 %v896
    %v3766 = vunpack.c.l.b16 %v897
    %v3767 = vunpack.c.h.b16 %v897
    %v3768 = vunpack.c.l.b16 %v898
    %v3769 = vunpack.c.h.b16 %v898
    %v3770 = vunpack.c.l.b16 %v899
    %v3771 = vunpack.c.h.b16 %v899
    %v3772 = vunpack.c.l.b16 %v900
    %v3773 = vunpack.c.h.b16 %v900
    %v3774 = vunpack.c.l.b16 %v901
    %v3775 = vunpack.c.h.b16 %v901
    %v3776 = vunpack.c.l.b16 %v902
    %v3777 = vunpack.c.h.b16 %v902
    %v3778 = vunpack.c.l.b16 %v903
    %v3779 = vunpack.c.h.b16 %v903
    %v3780 = vunpack.c.l.b16 %v904
    %v3781 = vunpack.c.h.b16 %v904
    %v3782 = vunpack.c.l.b16 %v905
    %v3783 = vunpack.c.h.b16 %v905
    %v3784 = vunpack.c.l.b16 %v906
    %v3785 = vunpack.c.h.b16 %v906
    %v3786 = vunpack.c.l.b16 %v907
    %v3787 = vunpack.c.h.b16 %v907
    %v3788 = vunpack.c.l.b16 %v908
    %v3789 = vunpack.c.h.b16 %v908
    %v3790 = vunpack.c.l.b16 %v909
    %v3791 = vunpack.c.h.b16 %v909
    %v3792 = vunpack.c.l.b16 %v910
    %v3793 = vunpack.c.h.b16 %v910
    %v3794 = vunpack.c.l.b16 %v911
    %v3795 = vunpack.c.h.b16 %v911
    %v3796 = vunpack.c.l.b16 %v912
    %v3797 = vunpack.c.h.b16 %v912
    %v3798 = vunpack.c.l.b16 %v913
    %v3799 = vunpack.c.h.b16 %v913
    %v3800 = vunpack.c.l.b16 %v914
    %v3801 = vunpack.c.h.b16 %v914
    %v3802 = vunpack.c.l.b16 %v915
    %v3803 = vunpack.c.h.b16 %v915
    %v3804 = vunpack.c.l.b16 %v916
    %v3805 = vunpack.c.h.b16 %v916
    %v3806 = vunpack.c.l.b16 %v917
    %v3807 = vunpack.c.h.b16 %v917
    %v3808 = vunpack.c.l.b16 %v918
    %v3809 = vunpack.c.h.b16 %v918
    %v3810 = vunpack.c.l.b16 %v919
    %v3811 = vunpack.c.h.b16 %v919
    %v3812 = vunpack.c.l.b16 %v920
    %v3813 = vunpack.c.h.b16 %v920
    %v3814 = vunpack.c.l.b16 %v921
    %v3815 = vunpack.c.h.b16 %v921
    %v3816 = vunpack.c.l.b16 %v922
    %v3817 = vunpack.c.h.b16 %v922
    %v3818 = vunpack.c.l.b16 %v923
    %v3819 = vunpack.c.h.b16 %v923
    %v3820 = vunpack.c.l.b16 %v924
    %v3821 = vunpack.c.h.b16 %v924
    %v3822 = vunpack.c.l.b16 %v925
    %v3823 = vunpack.c.h.b16 %v925
    %v3824 = vunpack.c.l.b16 %v926
    %v3825 = vunpack.c.h.b16 %v926
    %v3826 = vunpack.c.l.b16 %v927
    %v3827 = vunpack.c.h.b16 %v927
    %v3828 = vunpack.c.l.b16 %v928
    %v3829 = vunpack.c.h.b16 %v928
    %v3830 = vunpack.c.l.b16 %v929
    %v3831 = vunpack.c.h.b16 %v929
    %v3832 = vunpack.c.l.b16 %v930
    %v3833 = vunpack.c.h.b16 %v930
    %v3834 = vunpack.c.l.b16 %v931
    %v3835 = vunpack.c.h.b16 %v931
    %v3836 = vunpack.c.l.b16 %v932
    %v3837 = vunpack.c.h.b16 %v932
    %v3838 = vunpack.c.l.b16 %v933
    %v3839 = vunpack.c.h.b16 %v933
    %v3840 = vunpack.c.l.b16 %v934
    %v3841 = vunpack.c.h.b16 %v934
    %v3842 = vunpack.c.l.b16 %v935
    %v3843 = vunpack.c.h.b16 %v935
    %v3844 = vunpack.c.l.b16 %v936
    %v3845 = vunpack.c.h.b16 %v936
    %v3846 = vunpack.c.l.b16 %v937
    %v3847 = vunpack.c.h.b16 %v937
    %v3848 = vunpack.c.l.b16 %v938
    %v3849 = vunpack.c.h.b16 %v938
    %v3850 = vunpack.c.l.b16 %v939
    %v3851 = vunpack.c.h.b16 %v939
    %v3852 = vunpack.c.l.b16 %v940
    %v3853 = vunpack.c.h.b16 %v940
    %v3854 = vunpack.c.l.b16 %v941
    %v3855 = vunpack.c.h.b16 %v941
    %v3856 = vunpack.c.l.b16 %v942
    %v3857 = vunpack.c.h.b16 %v942
    %v3858 = vunpack.c.l.b16 %v943
    %v3859 = vunpack.c.h.b16 %v943
    %v3860 = vunpack.c.l.b16 %v944
    %v3861 = vunpack.c.h.b16 %v944
    %v3862 = vunpack.c.l.b16 %v945
    %v3863 = vunpack.c.h.b16 %v945
    %v3864 = vunpack.c.l.b16 %v946
    %v3865 = vunpack.c.h.b16 %v946
    %v3866 = vunpack.c.l.b16 %v947
    %v3867 = vunpack.c.h.b16 %v947
    %v3868 = vunpack.c.l.b16 %v948
    %v3869 = vunpack.c.h.b16 %v948
    %v3870 = vunpack.c.l.b16 %v949
    %v3871 = vunpack.c.h.b16 %v949
    %v3872 = vunpack.c.l.b16 %v950
    %v3873 = vunpack.c.h.b16 %v950
    %v3874 = vunpack.c.l.b16 %v951
    %v3875 = vunpack.c.h.b16 %v951
    %v3876 = vunpack.c.l.b16 %v952
    %v3877 = vunpack.c.h.b16 %v952
    %v3878 = vunpack.c.l.b16 %v953
    %v3879 = vunpack.c.h.b16 %v953
    %v3880 = vunpack.c.l.b16 %v954
    %v3881 = vunpack.c.h.b16 %v954
    %v3882 = vunpack.c.l.b16 %v955
    %v3883 = vunpack.c.h.b16 %v955
    %v3884 = vunpack.c.l.b16 %v956
    %v3885 = vunpack.c.h.b16 %v956
    %v3886 = vunpack.c.l.b16 %v957
    %v3887 = vunpack.c.h.b16 %v957
    %v3888 = vunpack.c.l.b16 %v958
    %v3889 = vunpack.c.h.b16 %v958
    %v3890 = vunpack.c.l.b16 %v959
    %v3891 = vunpack.c.h.b16 %v959
    %v3892 = vunpack.c.l.b16 %v960
    %v3893 = vunpack.c.h.b16 %v960
    %v3894 = vunpack.c.l.b16 %v961
    %v3895 = vunpack.c.h.b16 %v961
    %v3896 = vunpack.c.l.b16 %v962
    %v3897 = vunpack.c.h.b16 %v962
    %v3898 = vunpack.c.l.b16 %v963
    %v3899 = vunpack.c.h.b16 %v963
    %v3900 = vunpack.c.l.b16 %v964
    %v3901 = vunpack.c.h.b16 %v964
    %v3902 = vunpack.c.l.b16 %v965
    %v3903 = vunpack.c.h.b16 %v965
    %v3904 = vunpack.c.l.b16 %v966
    %v3905 = vunpack.c.h.b16 %v966
    %v3906 = vunpack.c.l.b16 %v967
    %v3907 = vunpack.c.h.b16 %v967
    %v3908 = vunpack.c.l.b16 %v968
    %v3909 = vunpack.c.h.b16 %v968
    %v3910 = vunpack.c.l.b16 %v969
    %v3911 = vunpack.c.h.b16 %v969
    %v3912 = vunpack.c.l.b16 %v970
    %v3913 = vunpack.c.h.b16 %v970
    %v3914 = vunpack.c.l.b16 %v971
    %v3915 = vunpack.c.h.b16 %v971
    %v3916 = vunpack.c.l.b16 %v972
    %v3917 = vunpack.c.h.b16 %v972
    %v3918 = vunpack.c.l.b16 %v973
    %v3919 = vunpack.c.h.b16 %v973
    %v3920 = vunpack.c.l.b16 %v974
    %v3921 = vunpack.c.h.b16 %v974
    %v3922 = vunpack.c.l.b16 %v975
    %v3923 = vunpack.c.h.b16 %v975
    %v3924 = vunpack.c.l.b16 %v976
    %v3925 = vunpack.c.h.b16 %v976
    %v3926 = vunpack.c.l.b16 %v977
    %v3927 = vunpack.c.h.b16 %v977
    %v3928 = vunpack.c.l.b16 %v978
    %v3929 = vunpack.c.h.b16 %v978
    %v3930 = vunpack.c.l.b16 %v979
    %v3931 = vunpack.c.h.b16 %v979
    %v3932 = vunpack.c.l.b16 %v980
    %v3933 = vunpack.c.h.b16 %v980
    %v3934 = vunpack.c.l.b16 %v981
    %v3935 = vunpack.c.h.b16 %v981
    %v3936 = vunpack.c.l.b16 %v982
    %v3937 = vunpack.c.h.b16 %v982
    %v3938 = vunpack.c.l.b16 %v983
    %v3939 = vunpack.c.h.b16 %v983
    %v3940 = vunpack.c.l.b16 %v984
    %v3941 = vunpack.c.h.b16 %v984
    %v3942 = vunpack.c.l.b16 %v985
    %v3943 = vunpack.c.h.b16 %v985
    %v3944 = vunpack.c.l.b16 %v986
    %v3945 = vunpack.c.h.b16 %v986
    %v3946 = vunpack.c.l.b16 %v987
    %v3947 = vunpack.c.h.b16 %v987
    %v3948 = vunpack.c.l.b16 %v988
    %v3949 = vunpack.c.h.b16 %v988
    %v3950 = vunpack.c.l.b16 %v989
    %v3951 = vunpack.c.h.b16 %v989
    %v3952 = vunpack.c.l.b16 %v990
    %v3953 = vunpack.c.h.b16 %v990
    %v3954 = vunpack.c.l.b16 %v991
    %v3955 = vunpack.c.h.b16 %v991
    %v3956 = vunpack.c.l.b16 %v992
    %v3957 = vunpack.c.h.b16 %v992
    %v3958 = vunpack.c.l.b16 %v993
    %v3959 = vunpack.c.h.b16 %v993
    %v3960 = vunpack.c.l.b16 %v994
    %v3961 = vunpack.c.h.b16 %v994
    %v3962 = vunpack.c.l.b16 %v995
    %v3963 = vunpack.c.h.b16 %v995
    %v3964 = vunpack.c.l.b16 %v996
    %v3965 = vunpack.c.h.b16 %v996
    %v3966 = vunpack.c.l.b16 %v997
    %v3967 = vunpack.c.h.b16 %v997
    %v3968 = vunpack.c.l.b16 %v998
    %v3969 = vunpack.c.h.b16 %v998
    %v3970 = vunpack.c.l.b16 %v999
    %v3971 = vunpack.c.h.b16 %v999
    %v3972 = vunpack.c.l.b16 %v1000
    %v3973 = vunpack.c.h.b16 %v1000
    %v3974 = vunpack.c.l.b16 %v1001
    %v3975 = vunpack.c.h.b16 %v1001
    %v3976 = vunpack.c.l.b16 %v1002
    %v3977 = vunpack.c.h.b16 %v1002
    %v3978 = vunpack.c.l.b16 %v1003
    %v3979 = vunpack.c.h.b16 %v1003
    %v3980 = vunpack.c.l.b16 %v1004
    %v3981 = vunpack.c.h.b16 %v1004
    %v3982 = vunpack.c.l.b16 %v1005
    %v3983 = vunpack.c.h.b16 %v1005
    %v3984 = vunpack.c.l.b16 %v1006
    %v3985 = vunpack.c.h.b16 %v1006
    %v3986 = vunpack.c.l.b16 %v1007
    %v3987 = vunpack.c.h.b16 %v1007
    %v3988 = vunpack.c.l.b16 %v1008
    %v3989 = vunpack.c.h.b16 %v1008
    %v3990 = vunpack.c.l.b16 %v1009
    %v3991 = vunpack.c.h.b16 %v1009
    %v3992 = vunpack.c.l.b16 %v1010
    %v3993 = vunpack.c.h.b16 %v1010
    %v3994 = vunpack.c.l.b16 %v1011
    %v3995 = vunpack.c.h.b16 %v1011
    %v3996 = vunpack.c.l.b16 %v1012
    %v3997 = vunpack.c.h.b16 %v1012
    %v3998 = vunpack.c.l.b16 %v1013
    %v3999 = vunpack.c.h.b16 %v1013
    %v4000 = vunpack.c.l.b16 %v1014
    %v4001 = vunpack.c.h.b16 %v1014
    %v4002 = vunpack.c.l.b16 %v1015
    %v4003 = vunpack.c.h.b16 %v1015
    %v4004 = vunpack.c.l.b16 %v1016
    %v4005 = vunpack.c.h.b16 %v1016
    %v4006 = vunpack.c.l.b16 %v1017
    %v4007 = vunpack.c.h.b16 %v1017
    %v4008 = vunpack.c.l.b16 %v1018
    %v4009 = vunpack.c.h.b16 %v1018
    %v4010 = vunpack.c.l.b16 %v1019
    %v4011 = vunpack.c.h.b16 %v1019
    %v4012 = vunpack.c.l.b16 %v1020
    %v4013 = vunpack.c.h.b16 %v1020
    %v4014 = vunpack.c.l.b16 %v1021
    %v4015 = vunpack.c.h.b16 %v1021
    %v4016 = vunpack.c.l.b16 %v1022
    %v4017 = vunpack.c.h.b16 %v1022
    %v4018 = vunpack.c.l.b16 %v1023
    %v4019 = vunpack.c.h.b16 %v1023
    %v4020 = vunpack.c.l.b16 %v1024
    %v4021 = vunpack.c.h.b16 %v1024
    %v4022 = vunpack.c.l.b16 %v1025
    %v4023 = vunpack.c.h.b16 %v1025
    %v4024 = vunpack.c.l.b16 %v1026
    %v4025 = vunpack.c.h.b16 %v1026
    %v4026 = vunpack.c.l.b16 %v1027
    %v4027 = vunpack.c.h.b16 %v1027
    %v4028 = vunpack.c.l.b16 %v1028
    %v4029 = vunpack.c.h.b16 %v1028
    %v4030 = vunpack.c.l.b16 %v1029
    %v4031 = vunpack.c.h.b16 %v1029
    %v4032 = vunpack.c.l.b16 %v1030
    %v4033 = vunpack.c.h.b16 %v1030
    %v4034 = vunpack.c.l.b16 %v1031
    %v4035 = vunpack.c.h.b16 %v1031
    %v4036 = vunpack.c.l.b16 %v1032
    %v4037 = vunpack.c.h.b16 %v1032
    %v4038 = vunpack.c.l.b16 %v1033
    %v4039 = vunpack.c.h.b16 %v1033
    %v4040 = vunpack.c.l.b16 %v1034
    %v4041 = vunpack.c.h.b16 %v1034
    %v4042 = vunpack.c.l.b16 %v1035
    %v4043 = vunpack.c.h.b16 %v1035
    %v4044 = vunpack.c.l.b16 %v1036
    %v4045 = vunpack.c.h.b16 %v1036
    %v4046 = vunpack.c.l.b16 %v1037
    %v4047 = vunpack.c.h.b16 %v1037
    %v4048 = vunpack.c.l.b16 %v1038
    %v4049 = vunpack.c.h.b16 %v1038
    %v4050 = vunpack.c.l.b16 %v1039
    %v4051 = vunpack.c.h.b16 %v1039
    %v4052 = vunpack.c.l.b16 %v1040
    %v4053 = vunpack.c.h.b16 %v1040
    %v4054 = vunpack.c.l.b16 %v1041
    %v4055 = vunpack.c.h.b16 %v1041
    %v4056 = vunpack.c.l.b16 %v1042
    %v4057 = vunpack.c.h.b16 %v1042
    %v4058 = vunpack.c.l.b16 %v1043
    %v4059 = vunpack.c.h.b16 %v1043
    %v4060 = vunpack.c.l.b16 %v1044
    %v4061 = vunpack.c.h.b16 %v1044
    %v4062 = vunpack.c.l.b16 %v1045
    %v4063 = vunpack.c.h.b16 %v1045
    %v4064 = vunpack.c.l.b16 %v1046
    %v4065 = vunpack.c.h.b16 %v1046
    %v4066 = vunpack.c.l.b16 %v1047
    %v4067 = vunpack.c.h.b16 %v1047
    %v4068 = vunpack.c.l.b16 %v1048
    %v4069 = vunpack.c.h.b16 %v1048
    %v4070 = vunpack.c.l.b16 %v1049
    %v4071 = vunpack.c.h.b16 %v1049
    %v4072 = vunpack.c.l.b16 %v1050
    %v4073 = vunpack.c.h.b16 %v1050
    %v4074 = vunpack.c.l.b16 %v1051
    %v4075 = vunpack.c.h.b16 %v1051
    %v4076 = vunpack.c.l.b16 %v1052
    %v4077 = vunpack.c.h.b16 %v1052
    %v4078 = vunpack.c.l.b16 %v1053
    %v4079 = vunpack.c.h.b16 %v1053
    %v4080 = vunpack.c.l.b16 %v1054
    %v4081 = vunpack.c.h.b16 %v1054
    %v4082 = vunpack.c.l.b16 %v1055
    %v4083 = vunpack.c.h.b16 %v1055
    %v4084 = vunpack.c.l.b16 %v1056
    %v4085 = vunpack.c.h.b16 %v1056
    %v4086 = vunpack.c.l.b16 %v1057
    %v4087 = vunpack.c.h.b16 %v1057
    %v4088 = vunpack.c.l.b16 %v1058
    %v4089 = vunpack.c.h.b16 %v1058
    %v4090 = vunpack.c.l.b16 %v1059
    %v4091 = vunpack.c.h.b16 %v1059
    %v4092 = vunpack.c.l.b16 %v1060
    %v4093 = vunpack.c.h.b16 %v1060
    %v4094 = vunpack.c.l.b16 %v1061
    %v4095 = vunpack.c.h.b16 %v1061
    %v4096 = vunpack.c.l.b16 %v1062
    %v4097 = vunpack.c.h.b16 %v1062
    %v4098 = vunpack.c.l.b16 %v1063
    %v4099 = vunpack.c.h.b16 %v1063
    %v4100 = vunpack.c.l.b16 %v1064
    %v4101 = vunpack.c.h.b16 %v1064
    %v4102 = vunpack.c.l.b16 %v1065
    %v4103 = vunpack.c.h.b16 %v1065
    %v4104 = vunpack.c.l.b16 %v1066
    %v4105 = vunpack.c.h.b16 %v1066
    %v4106 = vunpack.c.l.b16 %v1067
    %v4107 = vunpack.c.h.b16 %v1067
    %v4108 = vunpack.c.l.b16 %v1068
    %v4109 = vunpack.c.h.b16 %v1068
    %v4110 = vunpack.c.l.b16 %v1069
    %v4111 = vunpack.c.h.b16 %v1069
    %v4112 = vunpack.c.l.b16 %v1070
    %v4113 = vunpack.c.h.b16 %v1070
    %v4114 = vunpack.c.l.b16 %v1071
    %v4115 = vunpack.c.h.b16 %v1071
    %v4116 = vunpack.c.l.b16 %v1072
    %v4117 = vunpack.c.h.b16 %v1072
    %v4118 = vunpack.c.l.b16 %v1073
    %v4119 = vunpack.c.h.b16 %v1073
    %v4120 = vunpack.c.l.b16 %v1074
    %v4121 = vunpack.c.h.b16 %v1074
    %v4122 = vunpack.c.l.b16 %v1075
    %v4123 = vunpack.c.h.b16 %v1075
    %v4124 = vunpack.c.l.b16 %v1076
    %v4125 = vunpack.c.h.b16 %v1076
    %v4126 = vunpack.c.l.b16 %v1077
    %v4127 = vunpack.c.h.b16 %v1077
    %v4128 = vunpack.c.l.b16 %v1078
    %v4129 = vunpack.c.h.b16 %v1078
    %v4130 = vunpack.c.l.b16 %v1079
    %v4131 = vunpack.c.h.b16 %v1079
    %v4132 = vunpack.c.l.b16 %v1080
    %v4133 = vunpack.c.h.b16 %v1080
    %v4134 = vunpack.c.l.b16 %v1081
    %v4135 = vunpack.c.h.b16 %v1081
    %v4136 = vunpack.c.l.b16 %v1082
    %v4137 = vunpack.c.h.b16 %v1082
    %v4138 = vunpack.c.l.b16 %v1083
    %v4139 = vunpack.c.h.b16 %v1083
    %v4140 = vunpack.c.l.b16 %v1084
    %v4141 = vunpack.c.h.b16 %v1084
    %v4142 = vunpack.c.l.b16 %v1085
    %v4143 = vunpack.c.h.b16 %v1085
    %v4144 = vunpack.c.l.b16 %v1086
    %v4145 = vunpack.c.h.b16 %v1086
    %v4146 = vunpack.c.l.b16 %v1087
    %v4147 = vunpack.c.h.b16 %v1087
    %v4148 = vunpack.c.l.b16 %v1088
    %v4149 = vunpack.c.h.b16 %v1088
    %v4150 = vunpack.c.l.b16 %v1089
    %v4151 = vunpack.c.h.b16 %v1089
    %v4152 = vunpack.c.l.b16 %v1090
    %v4153 = vunpack.c.h.b16 %v1090
    %v4154 = vunpack.c.l.b16 %v1091
    %v4155 = vunpack.c.h.b16 %v1091
    %v4156 = vunpack.c.l.b16 %v1092
    %v4157 = vunpack.c.h.b16 %v1092
    %v4158 = vunpack.c.l.b16 %v1093
    %v4159 = vunpack.c.h.b16 %v1093
    %v4160 = vunpack.c.l.b16 %v1094
    %v4161 = vunpack.c.h.b16 %v1094
    %v4162 = vunpack.c.l.b16 %v1095
    %v4163 = vunpack.c.h.b16 %v1095
    %v4164 = vunpack.c.l.b16 %v1096
    %v4165 = vunpack.c.h.b16 %v1096
    %v4166 = vunpack.c.l.b16 %v1097
    %v4167 = vunpack.c.h.b16 %v1097
    %v4168 = vunpack.c.l.b16 %v1098
    %v4169 = vunpack.c.h.b16 %v1098
    %v4170 = vunpack.c.l.b16 %v1099
    %v4171 = vunpack.c.h.b16 %v1099
    %v4172 = vunpack.c.l.b16 %v1100
    %v4173 = vunpack.c.h.b16 %v1100
    %v4174 = vunpack.c.l.b16 %v1101
    %v4175 = vunpack.c.h.b16 %v1101
    %v4176 = vunpack.c.l.b16 %v1102
    %v4177 = vunpack.c.h.b16 %v1102
    %v4178 = vunpack.c.l.b16 %v1103
    %v4179 = vunpack.c.h.b16 %v1103
    %v4180 = vunpack.c.l.b16 %v1104
    %v4181 = vunpack.c.h.b16 %v1104
    %v4182 = vunpack.c.l.b16 %v1105
    %v4183 = vunpack.c.h.b16 %v1105
    %v4184 = vunpack.c.l.b16 %v1106
    %v4185 = vunpack.c.h.b16 %v1106
    %v4186 = vunpack.c.l.b16 %v1107
    %v4187 = vunpack.c.h.b16 %v1107
    %v4188 = vunpack.c.l.b16 %v1108
    %v4189 = vunpack.c.h.b16 %v1108
    %v4190 = vunpack.c.l.b16 %v1109
    %v4191 = vunpack.c.h.b16 %v1109
    %v4192 = vunpack.c.l.b16 %v1110
    %v4193 = vunpack.c.h.b16 %v1110
    %v4194 = vunpack.c.l.b16 %v1111
    %v4195 = vunpack.c.h.b16 %v1111
    %v4196 = vunpack.c.l.b16 %v1112
    %v4197 = vunpack.c.h.b16 %v1112
    %v4198 = vunpack.c.l.b16 %v1113
    %v4199 = vunpack.c.h.b16 %v1113
    %v4200 = vunpack.c.l.b16 %v1114
    %v4201 = vunpack.c.h.b16 %v1114
    %v4202 = vunpack.c.l.b16 %v1115
    %v4203 = vunpack.c.h.b16 %v1115
    %v4204 = vunpack.c.l.b16 %v1116
    %v4205 = vunpack.c.h.b16 %v1116
    %v4206 = vunpack.c.l.b16 %v1117
    %v4207 = vunpack.c.h.b16 %v1117
    %v4208 = vpack.c.b16 %v2176, %v2160
    %v4209 = vpack.c.b16 %v2177, %v2161
    %v4210 = vpack.c.b16 %v2178, %v2162
    %v4211 = vpack.c.b16 %v2179, %v2163
    %v4212 = vpack.c.b16 %v2180, %v2164
    %v4213 = vpack.c.b16 %v2181, %v2165
    %v4214 = vpack.c.b16 %v2182, %v2166
    %v4215 = vpack.c.b16 %v2183, %v2167
    %v4216 = vpack.c.b16 %v2184, %v2168
    %v4217 = vpack.c.b16 %v2185, %v2169
    %v4218 = vpack.c.b16 %v2186, %v2170
    %v4219 = vpack.c.b16 %v2187, %v2171
    %v4220 = vpack.c.b16 %v2188, %v2172
    %v4221 = vpack.c.b16 %v2189, %v2173
    %v4222 = vpack.c.b16 %v2190, %v2174
    %v4223 = vpack.c.b16 %v2191, %v2175
    %v4224 = vpack.c.b16 %v2208, %v2192
    %v4225 = vpack.c.b16 %v2209, %v2193
    %v4226 = vpack.c.b16 %v2210, %v2194
    %v4227 = vpack.c.b16 %v2211, %v2195
    %v4228 = vpack.c.b16 %v2212, %v2196
    %v4229 = vpack.c.b16 %v2213, %v2197
    %v4230 = vpack.c.b16 %v2214, %v2198
    %v4231 = vpack.c.b16 %v2215, %v2199
    %v4232 = vpack.c.b16 %v2216, %v2200
    %v4233 = vpack.c.b16 %v2217, %v2201
    %v4234 = vpack.c.b16 %v2218, %v2202
    %v4235 = vpack.c.b16 %v2219, %v2203
    %v4236 = vpack.c.b16 %v2220, %v2204
    %v4237 = vpack.c.b16 %v2221, %v2205
    %v4238 = vpack.c.b16 %v2222, %v2206
    %v4239 = vpack.c.b16 %v2223, %v2207
    %v4240 = vpack.c.b16 %v2240, %v2224
    %v4241 = vpack.c.b16 %v2241, %v2225
    %v4242 = vpack.c.b16 %v2242, %v2226
    %v4243 = vpack.c.b16 %v2243, %v2227
    %v4244 = vpack.c.b16 %v2244, %v2228
    %v4245 = vpack.c.b16 %v2245, %v2229
    %v4246 = vpack.c.b16 %v2246, %v2230
    %v4247 = vpack.c.b16 %v2247, %v2231
    %v4248 = vpack.c.b16 %v2248, %v2232
    %v4249 = vpack.c.b16 %v2249, %v2233
    %v4250 = vpack.c.b16 %v2250, %v2234
    %v4251 = vpack.c.b16 %v2251, %v2235
    %v4252 = vpack.c.b16 %v2252, %v2236
    %v4253 = vpack.c.b16 %v2253, %v2237
    %v4254 = vpack.c.b16 %v2254, %v2238
    %v4255 = vpack.c.b16 %v2255, %v2239
    %v4256 = vpack.c.b16 %v2272, %v2256
    %v4257 = vpack.c.b16 %v2273, %v2257
    %v4258 = vpack.c.b16 %v2274, %v2258
    %v4259 = vpack.c.b16 %v2275, %v2259
    %v4260 = vpack.c.b16 %v2276, %v2260
    %v4261 = vpack.c.b16 %v2277, %v2261
    %v4262 = vpack.c.b16 %v2278, %v2262
    %v4263 = vpack.c.b16 %v2279, %v2263
    %v4264 = vpack.c.b16 %v2280, %v2264
    %v4265 = vpack.c.b16 %v2281, %v2265
    %v4266 = vpack.c.b16 %v2282, %v2266
    %v4267 = vpack.c.b16 %v2283, %v2267
    %v4268 = vpack.c.b16 %v2284, %v2268
    %v4269 = vpack.c.b16 %v2285, %v2269
    %v4270 = vpack.c.b16 %v2286, %v2270
    %v4271 = vpack.c.b16 %v2287, %v2271
    %v4272 = vpack.c.b16 %v2304, %v2288
    %v4273 = vpack.c.b16 %v2305, %v2289
    %v4274 = vpack.c.b16 %v2306, %v2290
    %v4275 = vpack.c.b16 %v2307, %v2291
    %v4276 = vpack.c.b16 %v2308, %v2292
    %v4277 = vpack.c.b16 %v2309, %v2293
    %v4278 = vpack.c.b16 %v2310, %v2294
    %v4279 = vpack.c.b16 %v2311, %v2295
    %v4280 = vpack.c.b16 %v2312, %v2296
    %v4281 = vpack.c.b16 %v2313, %v2297
    %v4282 = vpack.c.b16 %v2314, %v2298
    %v4283 = vpack.c.b16 %v2315, %v2299
    %v4284 = vpack.c.b16 %v2316, %v2300
    %v4285 = vpack.c.b16 %v2317, %v2301
    %v4286 = vpack.c.b16 %v2318, %v2302
    %v4287 = vpack.c.b16 %v2319, %v2303
    %v4288 = vpack.c.b16 %v2336, %v2320
    %v4289 = vpack.c.b16 %v2337, %v2321
    %v4290 = vpack.c.b16 %v2338, %v2322
    %v4291 = vpack.c.b16 %v2339, %v2323
    %v4292 = vpack.c.b16 %v2340, %v2324
    %v4293 = vpack.c.b16 %v2341, %v2325
    %v4294 = vpack.c.b16 %v2342, %v2326
    %v4295 = vpack.c.b16 %v2343, %v2327
    %v4296 = vpack.c.b16 %v2344, %v2328
    %v4297 = vpack.c.b16 %v2345, %v2329
    %v4298 = vpack.c.b16 %v2346, %v2330
    %v4299 = vpack.c.b16 %v2347, %v2331
    %v4300 = vpack.c.b16 %v2348, %v2332
    %v4301 = vpack.c.b16 %v2349, %v2333
    %v4302 = vpack.c.b16 %v2350, %v2334
    %v4303 = vpack.c.b16 %v2351, %v2335
    %v4304 = vpack.c.b16 %v2368, %v2352
    %v4305 = vpack.c.b16 %v2369, %v2353
    %v4306 = vpack.c.b16 %v2370, %v2354
    %v4307 = vpack.c.b16 %v2371, %v2355
    %v4308 = vpack.c.b16 %v2372, %v2356
    %v4309 = vpack.c.b16 %v2373, %v2357
    %v4310 = vpack.c.b16 %v2374, %v2358
    %v4311 = vpack.c.b16 %v2375, %v2359
    %v4312 = vpack.c.b16 %v2376, %v2360
    %v4313 = vpack.c.b16 %v2377, %v2361
    %v4314 = vpack.c.b16 %v2378, %v2362
    %v4315 = vpack.c.b16 %v2379, %v2363
    %v4316 = vpack.c.b16 %v2380, %v2364
    %v4317 = vpack.c.b16 %v2381, %v2365
    %v4318 = vpack.c.b16 %v2382, %v2366
    %v4319 = vpack.c.b16 %v2383, %v2367
    %v4320 = vpack.c.b16 %v2400, %v2384
    %v4321 = vpack.c.b16 %v2401, %v2385
    %v4322 = vpack.c.b16 %v2402, %v2386
    %v4323 = vpack.c.b16 %v2403, %v2387
    %v4324 = vpack.c.b16 %v2404, %v2388
    %v4325 = vpack.c.b16 %v2405, %v2389
    %v4326 = vpack.c.b16 %v2406, %v2390
    %v4327 = vpack.c.b16 %v2407, %v2391
    %v4328 = vpack.c.b16 %v2408, %v2392
    %v4329 = vpack.c.b16 %v2409, %v2393
    %v4330 = vpack.c.b16 %v2410, %v2394
    %v4331 = vpack.c.b16 %v2411, %v2395
    %v4332 = vpack.c.b16 %v2412, %v2396
    %v4333 = vpack.c.b16 %v2413, %v2397
    %v4334 = vpack.c.b16 %v2414, %v2398
    %v4335 = vpack.c.b16 %v2415, %v2399
    %v4336 = vpack.c.b16 %v2432, %v2416
    %v4337 = vpack.c.b16 %v2433, %v2417
    %v4338 = vpack.c.b16 %v2434, %v2418
    %v4339 = vpack.c.b16 %v2435, %v2419
    %v4340 = vpack.c.b16 %v2436, %v2420
    %v4341 = vpack.c.b16 %v2437, %v2421
    %v4342 = vpack.c.b16 %v2438, %v2422
    %v4343 = vpack.c.b16 %v2439, %v2423
    %v4344 = vpack.c.b16 %v2440, %v2424
    %v4345 = vpack.c.b16 %v2441, %v2425
    %v4346 = vpack.c.b16 %v2442, %v2426
    %v4347 = vpack.c.b16 %v2443, %v2427
    %v4348 = vpack.c.b16 %v2444, %v2428
    %v4349 = vpack.c.b16 %v2445, %v2429
    %v4350 = vpack.c.b16 %v2446, %v2430
    %v4351 = vpack.c.b16 %v2447, %v2431
    %v4352 = vpack.c.b16 %v2464, %v2448
    %v4353 = vpack.c.b16 %v2465, %v2449
    %v4354 = vpack.c.b16 %v2466, %v2450
    %v4355 = vpack.c.b16 %v2467, %v2451
    %v4356 = vpack.c.b16 %v2468, %v2452
    %v4357 = vpack.c.b16 %v2469, %v2453
    %v4358 = vpack.c.b16 %v2470, %v2454
    %v4359 = vpack.c.b16 %v2471, %v2455
    %v4360 = vpack.c.b16 %v2472, %v2456
    %v4361 = vpack.c.b16 %v2473, %v2457
    %v4362 = vpack.c.b16 %v2474, %v2458
    %v4363 = vpack.c.b16 %v2475, %v2459
    %v4364 = vpack.c.b16 %v2476, %v2460
    %v4365 = vpack.c.b16 %v2477, %v2461
    %v4366 = vpack.c.b16 %v2478, %v2462
    %v4367 = vpack.c.b16 %v2479, %v2463
    %v4368 = vpack.c.b16 %v2496, %v2480
    %v4369 = vpack.c.b16 %v2497, %v2481
    %v4370 = vpack.c.b16 %v2498, %v2482
    %v4371 = vpack.c.b16 %v2499, %v2483
    %v4372 = vpack.c.b16 %v2500, %v2484
    %v4373 = vpack.c.b16 %v2501, %v2485
    %v4374 = vpack.c.b16 %v2502, %v2486
    %v4375 = vpack.c.b16 %v2503, %v2487
    %v4376 = vpack.c.b16 %v2504, %v2488
    %v4377 = vpack.c.b16 %v2505, %v2489
    %v4378 = vpack.c.b16 %v2506, %v2490
    %v4379 = vpack.c.b16 %v2507, %v2491
    %v4380 = vpack.c.b16 %v2508, %v2492
    %v4381 = vpack.c.b16 %v2509, %v2493
    %v4382 = vpack.c.b16 %v2510, %v2494
    %v4383 = vpack.c.b16 %v2511, %v2495
    %v4384 = vpack.c.b16 %v2528, %v2512
    %v4385 = vpack.c.b16 %v2529, %v2513
    %v4386 = vpack.c.b16 %v2530, %v2514
    %v4387 = vpack.c.b16 %v2531, %v2515
    %v4388 = vpack.c.b16 %v2532, %v2516
    %v4389 = vpack.c.b16 %v2533, %v2517
    %v4390 = vpack.c.b16 %v2534, %v2518
    %v4391 = vpack.c.b16 %v2535, %v2519
    %v4392 = vpack.c.b16 %v2536, %v2520
    %v4393 = vpack.c.b16 %v2537, %v2521
    %v4394 = vpack.c.b16 %v2538, %v2522
    %v4395 = vpack.c.b16 %v2539, %v2523
    %v4396 = vpack.c.b16 %v2540, %v2524
    %v4397 = vpack.c.b16 %v2541, %v2525
    %v4398 = vpack.c.b16 %v2542, %v2526
    %v4399 = vpack.c.b16 %v2543, %v2527
    %v4400 = vpack.c.b16 %v2560, %v2544
    %v4401 = vpack.c.b16 %v2561, %v2545
    %v4402 = vpack.c.b16 %v2562, %v2546
    %v4403 = vpack.c.b16 %v2563, %v2547
    %v4404 = vpack.c.b16 %v2564, %v2548
    %v4405 = vpack.c.b16 %v2565, %v2549
    %v4406 = vpack.c.b16 %v2566, %v2550
    %v4407 = vpack.c.b16 %v2567, %v2551
    %v4408 = vpack.c.b16 %v2568, %v2552
    %v4409 = vpack.c.b16 %v2569, %v2553
    %v4410 = vpack.c.b16 %v2570, %v2554
    %v4411 = vpack.c.b16 %v2571, %v2555
    %v4412 = vpack.c.b16 %v2572, %v2556
    %v4413 = vpack.c.b16 %v2573, %v2557
    %v4414 = vpack.c.b16 %v2574, %v2558
    %v4415 = vpack.c.b16 %v2575, %v2559
    %v4416 = vpack.c.b16 %v2592, %v2576
    %v4417 = vpack.c.b16 %v2593, %v2577
    %v4418 = vpack.c.b16 %v2594, %v2578
    %v4419 = vpack.c.b16 %v2595, %v2579
    %v4420 = vpack.c.b16 %v2596, %v2580
    %v4421 = vpack.c.b16 %v2597, %v2581
    %v4422 = vpack.c.b16 %v2598, %v2582
    %v4423 = vpack.c.b16 %v2599, %v2583
    %v4424 = vpack.c.b16 %v2600, %v2584
    %v4425 = vpack.c.b16 %v2601, %v2585
    %v4426 = vpack.c.b16 %v2602, %v2586
    %v4427 = vpack.c.b16 %v2603, %v2587
    %v4428 = vpack.c.b16 %v2604, %v2588
    %v4429 = vpack.c.b16 %v2605, %v2589
    %v4430 = vpack.c.b16 %v2606, %v2590
    %v4431 = vpack.c.b16 %v2607, %v2591
    %v4432 = vpack.c.b16 %v2624, %v2608
    %v4433 = vpack.c.b16 %v2625, %v2609
    %v4434 = vpack.c.b16 %v2626, %v2610
    %v4435 = vpack.c.b16 %v2627, %v2611
    %v4436 = vpack.c.b16 %v2628, %v2612
    %v4437 = vpack.c.b16 %v2629, %v2613
    %v4438 = vpack.c.b16 %v2630, %v2614
    %v4439 = vpack.c.b16 %v2631, %v2615
    %v4440 = vpack.c.b16 %v2632, %v2616
    %v4441 = vpack.c.b16 %v2633, %v2617
    %v4442 = vpack.c.b16 %v2634, %v2618
    %v4443 = vpack.c.b16 %v2635, %v2619
    %v4444 = vpack.c.b16 %v2636, %v2620
    %v4445 = vpack.c.b16 %v2637, %v2621
    %v4446 = vpack.c.b16 %v2638, %v2622
    %v4447 = vpack.c.b16 %v2639, %v2623
    %v4448 = vpack.c.b16 %v2656, %v2640
    %v4449 = vpack.c.b16 %v2657, %v2641
    %v4450 = vpack.c.b16 %v2658, %v2642
    %v4451 = vpack.c.b16 %v2659, %v2643
    %v4452 = vpack.c.b16 %v2660, %v2644
    %v4453 = vpack.c.b16 %v2661, %v2645
    %v4454 = vpack.c.b16 %v2662, %v2646
    %v4455 = vpack.c.b16 %v2663, %v2647
    %v4456 = vpack.c.b16 %v2664, %v2648
    %v4457 = vpack.c.b16 %v2665, %v2649
    %v4458 = vpack.c.b16 %v2666, %v2650
    %v4459 = vpack.c.b16 %v2667, %v2651
    %v4460 = vpack.c.b16 %v2668, %v2652
    %v4461 = vpack.c.b16 %v2669, %v2653
    %v4462 = vpack.c.b16 %v2670, %v2654
    %v4463 = vpack.c.b16 %v2671, %v2655
    %v4464 = vpack.c.b16 %v2688, %v2672
    %v4465 = vpack.c.b16 %v2689, %v2673
    %v4466 = vpack.c.b16 %v2690, %v2674
    %v4467 = vpack.c.b16 %v2691, %v2675
    %v4468 = vpack.c.b16 %v2692, %v2676
    %v4469 = vpack.c.b16 %v2693, %v2677
    %v4470 = vpack.c.b16 %v2694, %v2678
    %v4471 = vpack.c.b16 %v2695, %v2679
    %v4472 = vpack.c.b16 %v2696, %v2680
    %v4473 = vpack.c.b16 %v2697, %v2681
    %v4474 = vpack.c.b16 %v2698, %v2682
    %v4475 = vpack.c.b16 %v2699, %v2683
    %v4476 = vpack.c.b16 %v2700, %v2684
    %v4477 = vpack.c.b16 %v2701, %v2685
    %v4478 = vpack.c.b16 %v2702, %v2686
    %v4479 = vpack.c.b16 %v2703, %v2687
    %v4480 = vpack.c.b16 %v2720, %v2704
    %v4481 = vpack.c.b16 %v2721, %v2705
    %v4482 = vpack.c.b16 %v2722, %v2706
    %v4483 = vpack.c.b16 %v2723, %v2707
    %v4484 = vpack.c.b16 %v2724, %v2708
    %v4485 = vpack.c.b16 %v2725, %v2709
    %v4486 = vpack.c.b16 %v2726, %v2710
    %v4487 = vpack.c.b16 %v2727, %v2711
    %v4488 = vpack.c.b16 %v2728, %v2712
    %v4489 = vpack.c.b16 %v2729, %v2713
    %v4490 = vpack.c.b16 %v2730, %v2714
    %v4491 = vpack.c.b16 %v2731, %v2715
    %v4492 = vpack.c.b16 %v2732, %v2716
    %v4493 = vpack.c.b16 %v2733, %v2717
    %v4494 = vpack.c.b16 %v2734, %v2718
    %v4495 = vpack.c.b16 %v2735, %v2719
    %v4496 = vpack.c.b16 %v2752, %v2736
    %v4497 = vpack.c.b16 %v2753, %v2737
    %v4498 = vpack.c.b16 %v2754, %v2738
    %v4499 = vpack.c.b16 %v2755, %v2739
    %v4500 = vpack.c.b16 %v2756, %v2740
    %v4501 = vpack.c.b16 %v2757, %v2741
    %v4502 = vpack.c.b16 %v2758, %v2742
    %v4503 = vpack.c.b16 %v2759, %v2743
    %v4504 = vpack.c.b16 %v2760, %v2744
    %v4505 = vpack.c.b16 %v2761, %v2745
    %v4506 = vpack.c.b16 %v2762, %v2746
    %v4507 = vpack.c.b16 %v2763, %v2747
    %v4508 = vpack.c.b16 %v2764, %v2748
    %v4509 = vpack.c.b16 %v2765, %v2749
    %v4510 = vpack.c.b16 %v2766, %v2750
    %v4511 = vpack.c.b16 %v2767, %v2751
    %v4512 = vpack.c.b16 %v2784, %v2768
    %v4513 = vpack.c.b16 %v2785, %v2769
    %v4514 = vpack.c.b16 %v2786, %v2770
    %v4515 = vpack.c.b16 %v2787, %v2771
    %v4516 = vpack.c.b16 %v2788, %v2772
    %v4517 = vpack.c.b16 %v2789, %v2773
    %v4518 = vpack.c.b16 %v2790, %v2774
    %v4519 = vpack.c.b16 %v2791, %v2775
    %v4520 = vpack.c.b16 %v2792, %v2776
    %v4521 = vpack.c.b16 %v2793, %v2777
    %v4522 = vpack.c.b16 %v2794, %v2778
    %v4523 = vpack.c.b16 %v2795, %v2779
    %v4524 = vpack.c.b16 %v2796, %v2780
    %v4525 = vpack.c.b16 %v2797, %v2781
    %v4526 = vpack.c.b16 %v2798, %v2782
    %v4527 = vpack.c.b16 %v2799, %v2783
    %v4528 = vpack.c.b16 %v2816, %v2800
    %v4529 = vpack.c.b16 %v2817, %v2801
    %v4530 = vpack.c.b16 %v2818, %v2802
    %v4531 = vpack.c.b16 %v2819, %v2803
    %v4532 = vpack.c.b16 %v2820, %v2804
    %v4533 = vpack.c.b16 %v2821, %v2805
    %v4534 = vpack.c.b16 %v2822, %v2806
    %v4535 = vpack.c.b16 %v2823, %v2807
    %v4536 = vpack.c.b16 %v2824, %v2808
    %v4537 = vpack.c.b16 %v2825, %v2809
    %v4538 = vpack.c.b16 %v2826, %v2810
    %v4539 = vpack.c.b16 %v2827, %v2811
    %v4540 = vpack.c.b16 %v2828, %v2812
    %v4541 = vpack.c.b16 %v2829, %v2813
    %v4542 = vpack.c.b16 %v2830, %v2814
    %v4543 = vpack.c.b16 %v2831, %v2815
    %v4544 = vpack.c.b16 %v2848, %v2832
    %v4545 = vpack.c.b16 %v2849, %v2833
    %v4546 = vpack.c.b16 %v2850, %v2834
    %v4547 = vpack.c.b16 %v2851, %v2835
    %v4548 = vpack.c.b16 %v2852, %v2836
    %v4549 = vpack.c.b16 %v2853, %v2837
    %v4550 = vpack.c.b16 %v2854, %v2838
    %v4551 = vpack.c.b16 %v2855, %v2839
    %v4552 = vpack.c.b16 %v2856, %v2840
    %v4553 = vpack.c.b16 %v2857, %v2841
    %v4554 = vpack.c.b16 %v2858, %v2842
    %v4555 = vpack.c.b16 %v2859, %v2843
    %v4556 = vpack.c.b16 %v2860, %v2844
    %v4557 = vpack.c.b16 %v2861, %v2845
    %v4558 = vpack.c.b16 %v2862, %v2846
    %v4559 = vpack.c.b16 %v2863, %v2847
    %v4560 = vpack.c.b16 %v2880, %v2864
    %v4561 = vpack.c.b16 %v2881, %v2865
    %v4562 = vpack.c.b16 %v2882, %v2866
    %v4563 = vpack.c.b16 %v2883, %v2867
    %v4564 = vpack.c.b16 %v2884, %v2868
    %v4565 = vpack.c.b16 %v2885, %v2869
    %v4566 = vpack.c.b16 %v2886, %v2870
    %v4567 = vpack.c.b16 %v2887, %v2871
    %v4568 = vpack.c.b16 %v2888, %v2872
    %v4569 = vpack.c.b16 %v2889, %v2873
    %v4570 = vpack.c.b16 %v2890, %v2874
    %v4571 = vpack.c.b16 %v2891, %v2875
    %v4572 = vpack.c.b16 %v2892, %v2876
    %v4573 = vpack.c.b16 %v2893, %v2877
    %v4574 = vpack.c.b16 %v2894, %v2878
    %v4575 = vpack.c.b16 %v2895, %v2879
    %v4576 = vpack.c.b16 %v2912, %v2896
    %v4577 = vpack.c.b16 %v2913, %v2897
    %v4578 = vpack.c.b16 %v2914, %v2898
    %v4579 = vpack.c.b16 %v2915, %v2899
    %v4580 = vpack.c.b16 %v2916, %v2900
    %v4581 = vpack.c.b16 %v2917, %v2901
    %v4582 = vpack.c.b16 %v2918, %v2902
    %v4583 = vpack.c.b16 %v2919, %v2903
    %v4584 = vpack.c.b16 %v2920, %v2904
    %v4585 = vpack.c.b16 %v2921, %v2905
    %v4586 = vpack.c.b16 %v2922, %v2906
    %v4587 = vpack.c.b16 %v2923, %v2907
    %v4588 = vpack.c.b16 %v2924, %v2908
    %v4589 = vpack.c.b16 %v2925, %v2909
    %v4590 = vpack.c.b16 %v2926, %v2910
    %v4591 = vpack.c.b16 %v2927, %v2911
    %v4592 = vpack.c.b16 %v2944, %v2928
    %v4593 = vpack.c.b16 %v2945, %v2929
    %v4594 = vpack.c.b16 %v2946, %v2930
    %v4595 = vpack.c.b16 %v2947, %v2931
    %v4596 = vpack.c.b16 %v2948, %v2932
    %v4597 = vpack.c.b16 %v2949, %v2933
    %v4598 = vpack.c.b16 %v2950, %v2934
    %v4599 = vpack.c.b16 %v2951, %v2935
    %v4600 = vpack.c.b16 %v2952, %v2936
    %v4601 = vpack.c.b16 %v2953, %v2937
    %v4602 = vpack.c.b16 %v2954, %v2938
    %v4603 = vpack.c.b16 %v2955, %v2939
    %v4604 = vpack.c.b16 %v2956, %v2940
    %v4605 = vpack.c.b16 %v2957, %v2941
    %v4606 = vpack.c.b16 %v2958, %v2942
    %v4607 = vpack.c.b16 %v2959, %v2943
    %v4608 = vpack.c.b16 %v2976, %v2960
    %v4609 = vpack.c.b16 %v2977, %v2961
    %v4610 = vpack.c.b16 %v2978, %v2962
    %v4611 = vpack.c.b16 %v2979, %v2963
    %v4612 = vpack.c.b16 %v2980, %v2964
    %v4613 = vpack.c.b16 %v2981, %v2965
    %v4614 = vpack.c.b16 %v2982, %v2966
    %v4615 = vpack.c.b16 %v2983, %v2967
    %v4616 = vpack.c.b16 %v2984, %v2968
    %v4617 = vpack.c.b16 %v2985, %v2969
    %v4618 = vpack.c.b16 %v2986, %v2970
    %v4619 = vpack.c.b16 %v2987, %v2971
    %v4620 = vpack.c.b16 %v2988, %v2972
    %v4621 = vpack.c.b16 %v2989, %v2973
    %v4622 = vpack.c.b16 %v2990, %v2974
    %v4623 = vpack.c.b16 %v2991, %v2975
    %v4624 = vpack.c.b16 %v3008, %v2992
    %v4625 = vpack.c.b16 %v3009, %v2993
    %v4626 = vpack.c.b16 %v3010, %v2994
    %v4627 = vpack.c.b16 %v3011, %v2995
    %v4628 = vpack.c.b16 %v3012, %v2996
    %v4629 = vpack.c.b16 %v3013, %v2997
    %v4630 = vpack.c.b16 %v3014, %v2998
    %v4631 = vpack.c.b16 %v3015, %v2999
    %v4632 = vpack.c.b16 %v3016, %v3000
    %v4633 = vpack.c.b16 %v3017, %v3001
    %v4634 = vpack.c.b16 %v3018, %v3002
    %v4635 = vpack.c.b16 %v3019, %v3003
    %v4636 = vpack.c.b16 %v3020, %v3004
    %v4637 = vpack.c.b16 %v3021, %v3005
    %v4638 = vpack.c.b16 %v3022, %v3006
    %v4639 = vpack.c.b16 %v3023, %v3007
    %v4640 = vpack.c.b16 %v3040, %v3024
    %v4641 = vpack.c.b16 %v3041, %v3025
    %v4642 = vpack.c.b16 %v3042, %v3026
    %v4643 = vpack.c.b16 %v3043, %v3027
    %v4644 = vpack.c.b16 %v3044, %v3028
    %v4645 = vpack.c.b16 %v3045, %v3029
    %v4646 = vpack.c.b16 %v3046, %v3030
    %v4647 = vpack.c.b16 %v3047, %v3031
    %v4648 = vpack.c.b16 %v3048, %v3032
    %v4649 = vpack.c.b16 %v3049, %v3033
    %v4650 = vpack.c.b16 %v3050, %v3034
    %v4651 = vpack.c.b16 %v3051, %v3035
    %v4652 = vpack.c.b16 %v3052, %v3036
    %v4653 = vpack.c.b16 %v3053, %v3037
    %v4654 = vpack.c.b16 %v3054, %v3038
    %v4655 = vpack.c.b16 %v3055, %v3039
    %v4656 = vpack.c.b16 %v3072, %v3056
    %v4657 = vpack.c.b16 %v3073, %v3057
    %v4658 = vpack.c.b16 %v3074, %v3058
    %v4659 = vpack.c.b16 %v3075, %v3059
    %v4660 = vpack.c.b16 %v3076, %v3060
    %v4661 = vpack.c.b16 %v3077, %v3061
    %v4662 = vpack.c.b16 %v3078, %v3062
    %v4663 = vpack.c.b16 %v3079, %v3063
    %v4664 = vpack.c.b16 %v3080, %v3064
    %v4665 = vpack.c.b16 %v3081, %v3065
    %v4666 = vpack.c.b16 %v3082, %v3066
    %v4667 = vpack.c.b16 %v3083, %v3067
    %v4668 = vpack.c.b16 %v3084, %v3068
    %v4669 = vpack.c.b16 %v3085, %v3069
    %v4670 = vpack.c.b16 %v3086, %v3070
    %v4671 = vpack.c.b16 %v3087, %v3071
    %v4672 = vpack.c.b16 %v3104, %v3088
    %v4673 = vpack.c.b16 %v3105, %v3089
    %v4674 = vpack.c.b16 %v3106, %v3090
    %v4675 = vpack.c.b16 %v3107, %v3091
    %v4676 = vpack.c.b16 %v3108, %v3092
    %v4677 = vpack.c.b16 %v3109, %v3093
    %v4678 = vpack.c.b16 %v3110, %v3094
    %v4679 = vpack.c.b16 %v3111, %v3095
    %v4680 = vpack.c.b16 %v3112, %v3096
    %v4681 = vpack.c.b16 %v3113, %v3097
    %v4682 = vpack.c.b16 %v3114, %v3098
    %v4683 = vpack.c.b16 %v3115, %v3099
    %v4684 = vpack.c.b16 %v3116, %v3100
    %v4685 = vpack.c.b16 %v3117, %v3101
    %v4686 = vpack.c.b16 %v3118, %v3102
    %v4687 = vpack.c.b16 %v3119, %v3103
    %v4688 = vpack.c.b16 %v3136, %v3120
    %v4689 = vpack.c.b16 %v3137, %v3121
    %v4690 = vpack.c.b16 %v3138, %v3122
    %v4691 = vpack.c.b16 %v3139, %v3123
    %v4692 = vpack.c.b16 %v3140, %v3124
    %v4693 = vpack.c.b16 %v3141, %v3125
    %v4694 = vpack.c.b16 %v3142, %v3126
    %v4695 = vpack.c.b16 %v3143, %v3127
    %v4696 = vpack.c.b16 %v3144, %v3128
    %v4697 = vpack.c.b16 %v3145, %v3129
    %v4698 = vpack.c.b16 %v3146, %v3130
    %v4699 = vpack.c.b16 %v3147, %v3131
    %v4700 = vpack.c.b16 %v3148, %v3132
    %v4701 = vpack.c.b16 %v3149, %v3133
    %v4702 = vpack.c.b16 %v3150, %v3134
    %v4703 = vpack.c.b16 %v3151, %v3135
    %v4704 = vpack.c.b16 %v3168, %v3152
    %v4705 = vpack.c.b16 %v3169, %v3153
    %v4706 = vpack.c.b16 %v3170, %v3154
    %v4707 = vpack.c.b16 %v3171, %v3155
    %v4708 = vpack.c.b16 %v3172, %v3156
    %v4709 = vpack.c.b16 %v3173, %v3157
    %v4710 = vpack.c.b16 %v3174, %v3158
    %v4711 = vpack.c.b16 %v3175, %v3159
    %v4712 = vpack.c.b16 %v3176, %v3160
    %v4713 = vpack.c.b16 %v3177, %v3161
    %v4714 = vpack.c.b16 %v3178, %v3162
    %v4715 = vpack.c.b16 %v3179, %v3163
    %v4716 = vpack.c.b16 %v3180, %v3164
    %v4717 = vpack.c.b16 %v3181, %v3165
    %v4718 = vpack.c.b16 %v3182, %v3166
    %v4719 = vpack.c.b16 %v3183, %v3167
    %v4720 = vpack.c.b16 %v3200, %v3184
    %v4721 = vpack.c.b16 %v3201, %v3185
    %v4722 = vpack.c.b16 %v3202, %v3186
    %v4723 = vpack.c.b16 %v3203, %v3187
    %v4724 = vpack.c.b16 %v3204, %v3188
    %v4725 = vpack.c.b16 %v3205, %v3189
    %v4726 = vpack.c.b16 %v3206, %v3190
    %v4727 = vpack.c.b16 %v3207, %v3191
    %v4728 = vpack.c.b16 %v3208, %v3192
    %v4729 = vpack.c.b16 %v3209, %v3193
    %v4730 = vpack.c.b16 %v3210, %v3194
    %v4731 = vpack.c.b16 %v3211, %v3195
    %v4732 = vpack.c.b16 %v3212, %v3196
    %v4733 = vpack.c.b16 %v3213, %v3197
    %v4734 = vpack.c.b16 %v3214, %v3198
    %v4735 = vpack.c.b16 %v3215, %v3199
    %v4736 = vpack.c.b16 %v3232, %v3216
    %v4737 = vpack.c.b16 %v3233, %v3217
    %v4738 = vpack.c.b16 %v3234, %v3218
    %v4739 = vpack.c.b16 %v3235, %v3219
    %v4740 = vpack.c.b16 %v3236, %v3220
    %v4741 = vpack.c.b16 %v3237, %v3221
    %v4742 = vpack.c.b16 %v3238, %v3222
    %v4743 = vpack.c.b16 %v3239, %v3223
    %v4744 = vpack.c.b16 %v3240, %v3224
    %v4745 = vpack.c.b16 %v3241, %v3225
    %v4746 = vpack.c.b16 %v3242, %v3226
    %v4747 = vpack.c.b16 %v3243, %v3227
    %v4748 = vpack.c.b16 %v3244, %v3228
    %v4749 = vpack.c.b16 %v3245, %v3229
    %v4750 = vpack.c.b16 %v3246, %v3230
    %v4751 = vpack.c.b16 %v3247, %v3231
    %v4752 = vpack.c.b16 %v3264, %v3248
    %v4753 = vpack.c.b16 %v3265, %v3249
    %v4754 = vpack.c.b16 %v3266, %v3250
    %v4755 = vpack.c.b16 %v3267, %v3251
    %v4756 = vpack.c.b16 %v3268, %v3252
    %v4757 = vpack.c.b16 %v3269, %v3253
    %v4758 = vpack.c.b16 %v3270, %v3254
    %v4759 = vpack.c.b16 %v3271, %v3255
    %v4760 = vpack.c.b16 %v3272, %v3256
    %v4761 = vpack.c.b16 %v3273, %v3257
    %v4762 = vpack.c.b16 %v3274, %v3258
    %v4763 = vpack.c.b16 %v3275, %v3259
    %v4764 = vpack.c.b16 %v3276, %v3260
    %v4765 = vpack.c.b16 %v3277, %v3261
    %v4766 = vpack.c.b16 %v3278, %v3262
    %v4767 = vpack.c.b16 %v3279, %v3263
    %v4768 = vpack.c.b16 %v3296, %v3280
    %v4769 = vpack.c.b16 %v3297, %v3281
    %v4770 = vpack.c.b16 %v3298, %v3282
    %v4771 = vpack.c.b16 %v3299, %v3283
    %v4772 = vpack.c.b16 %v3300, %v3284
    %v4773 = vpack.c.b16 %v3301, %v3285
    %v4774 = vpack.c.b16 %v3302, %v3286
    %v4775 = vpack.c.b16 %v3303, %v3287
    %v4776 = vpack.c.b16 %v3304, %v3288
    %v4777 = vpack.c.b16 %v3305, %v3289
    %v4778 = vpack.c.b16 %v3306, %v3290
    %v4779 = vpack.c.b16 %v3307, %v3291
    %v4780 = vpack.c.b16 %v3308, %v3292
    %v4781 = vpack.c.b16 %v3309, %v3293
    %v4782 = vpack.c.b16 %v3310, %v3294
    %v4783 = vpack.c.b16 %v3311, %v3295
    %v4784 = vpack.c.b16 %v3328, %v3312
    %v4785 = vpack.c.b16 %v3329, %v3313
    %v4786 = vpack.c.b16 %v3330, %v3314
    %v4787 = vpack.c.b16 %v3331, %v3315
    %v4788 = vpack.c.b16 %v3332, %v3316
    %v4789 = vpack.c.b16 %v3333, %v3317
    %v4790 = vpack.c.b16 %v3334, %v3318
    %v4791 = vpack.c.b16 %v3335, %v3319
    %v4792 = vpack.c.b16 %v3336, %v3320
    %v4793 = vpack.c.b16 %v3337, %v3321
    %v4794 = vpack.c.b16 %v3338, %v3322
    %v4795 = vpack.c.b16 %v3339, %v3323
    %v4796 = vpack.c.b16 %v3340, %v3324
    %v4797 = vpack.c.b16 %v3341, %v3325
    %v4798 = vpack.c.b16 %v3342, %v3326
    %v4799 = vpack.c.b16 %v3343, %v3327
    %v4800 = vpack.c.b16 %v3360, %v3344
    %v4801 = vpack.c.b16 %v3361, %v3345
    %v4802 = vpack.c.b16 %v3362, %v3346
    %v4803 = vpack.c.b16 %v3363, %v3347
    %v4804 = vpack.c.b16 %v3364, %v3348
    %v4805 = vpack.c.b16 %v3365, %v3349
    %v4806 = vpack.c.b16 %v3366, %v3350
    %v4807 = vpack.c.b16 %v3367, %v3351
    %v4808 = vpack.c.b16 %v3368, %v3352
    %v4809 = vpack.c.b16 %v3369, %v3353
    %v4810 = vpack.c.b16 %v3370, %v3354
    %v4811 = vpack.c.b16 %v3371, %v3355
    %v4812 = vpack.c.b16 %v3372, %v3356
    %v4813 = vpack.c.b16 %v3373, %v3357
    %v4814 = vpack.c.b16 %v3374, %v3358
    %v4815 = vpack.c.b16 %v3375, %v3359
    %v4816 = vpack.c.b16 %v3392, %v3376
    %v4817 = vpack.c.b16 %v3393, %v3377
    %v4818 = vpack.c.b16 %v3394, %v3378
    %v4819 = vpack.c.b16 %v3395, %v3379
    %v4820 = vpack.c.b16 %v3396, %v3380
    %v4821 = vpack.c.b16 %v3397, %v3381
    %v4822 = vpack.c.b16 %v3398, %v3382
    %v4823 = vpack.c.b16 %v3399, %v3383
    %v4824 = vpack.c.b16 %v3400, %v3384
    %v4825 = vpack.c.b16 %v3401, %v3385
    %v4826 = vpack.c.b16 %v3402, %v3386
    %v4827 = vpack.c.b16 %v3403, %v3387
    %v4828 = vpack.c.b16 %v3404, %v3388
    %v4829 = vpack.c.b16 %v3405, %v3389
    %v4830 = vpack.c.b16 %v3406, %v3390
    %v4831 = vpack.c.b16 %v3407, %v3391
    %v4832 = vpack.c.b16 %v3424, %v3408
    %v4833 = vpack.c.b16 %v3425, %v3409
    %v4834 = vpack.c.b16 %v3426, %v3410
    %v4835 = vpack.c.b16 %v3427, %v3411
    %v4836 = vpack.c.b16 %v3428, %v3412
    %v4837 = vpack.c.b16 %v3429, %v3413
    %v4838 = vpack.c.b16 %v3430, %v3414
    %v4839 = vpack.c.b16 %v3431, %v3415
    %v4840 = vpack.c.b16 %v3432, %v3416
    %v4841 = vpack.c.b16 %v3433, %v3417
    %v4842 = vpack.c.b16 %v3434, %v3418
    %v4843 = vpack.c.b16 %v3435, %v3419
    %v4844 = vpack.c.b16 %v3436, %v3420
    %v4845 = vpack.c.b16 %v3437, %v3421
    %v4846 = vpack.c.b16 %v3438, %v3422
    %v4847 = vpack.c.b16 %v3439, %v3423
    %v4848 = vpack.c.b16 %v3456, %v3440
    %v4849 = vpack.c.b16 %v3457, %v3441
    %v4850 = vpack.c.b16 %v3458, %v3442
    %v4851 = vpack.c.b16 %v3459, %v3443
    %v4852 = vpack.c.b16 %v3460, %v3444
    %v4853 = vpack.c.b16 %v3461, %v3445
    %v4854 = vpack.c.b16 %v3462, %v3446
    %v4855 = vpack.c.b16 %v3463, %v3447
    %v4856 = vpack.c.b16 %v3464, %v3448
    %v4857 = vpack.c.b16 %v3465, %v3449
    %v4858 = vpack.c.b16 %v3466, %v3450
    %v4859 = vpack.c.b16 %v3467, %v3451
    %v4860 = vpack.c.b16 %v3468, %v3452
    %v4861 = vpack.c.b16 %v3469, %v3453
    %v4862 = vpack.c.b16 %v3470, %v3454
    %v4863 = vpack.c.b16 %v3471, %v3455
    %v4864 = vpack.c.b16 %v3488, %v3472
    %v4865 = vpack.c.b16 %v3489, %v3473
    %v4866 = vpack.c.b16 %v3490, %v3474
    %v4867 = vpack.c.b16 %v3491, %v3475
    %v4868 = vpack.c.b16 %v3492, %v3476
    %v4869 = vpack.c.b16 %v3493, %v3477
    %v4870 = vpack.c.b16 %v3494, %v3478
    %v4871 = vpack.c.b16 %v3495, %v3479
    %v4872 = vpack.c.b16 %v3496, %v3480
    %v4873 = vpack.c.b16 %v3497, %v3481
    %v4874 = vpack.c.b16 %v3498, %v3482
    %v4875 = vpack.c.b16 %v3499, %v3483
    %v4876 = vpack.c.b16 %v3500, %v3484
    %v4877 = vpack.c.b16 %v3501, %v3485
    %v4878 = vpack.c.b16 %v3502, %v3486
    %v4879 = vpack.c.b16 %v3503, %v3487
    %v4880 = vpack.c.b16 %v3520, %v3504
    %v4881 = vpack.c.b16 %v3521, %v3505
    %v4882 = vpack.c.b16 %v3522, %v3506
    %v4883 = vpack.c.b16 %v3523, %v3507
    %v4884 = vpack.c.b16 %v3524, %v3508
    %v4885 = vpack.c.b16 %v3525, %v3509
    %v4886 = vpack.c.b16 %v3526, %v3510
    %v4887 = vpack.c.b16 %v3527, %v3511
    %v4888 = vpack.c.b16 %v3528, %v3512
    %v4889 = vpack.c.b16 %v3529, %v3513
    %v4890 = vpack.c.b16 %v3530, %v3514
    %v4891 = vpack.c.b16 %v3531, %v3515
    %v4892 = vpack.c.b16 %v3532, %v3516
    %v4893 = vpack.c.b16 %v3533, %v3517
    %v4894 = vpack.c.b16 %v3534, %v3518
    %v4895 = vpack.c.b16 %v3535, %v3519
    %v4896 = vpack.c.b16 %v3552, %v3536
    %v4897 = vpack.c.b16 %v3553, %v3537
    %v4898 = vpack.c.b16 %v3554, %v3538
    %v4899 = vpack.c.b16 %v3555, %v3539
    %v4900 = vpack.c.b16 %v3556, %v3540
    %v4901 = vpack.c.b16 %v3557, %v3541
    %v4902 = vpack.c.b16 %v3558, %v3542
    %v4903 = vpack.c.b16 %v3559, %v3543
    %v4904 = vpack.c.b16 %v3560, %v3544
    %v4905 = vpack.c.b16 %v3561, %v3545
    %v4906 = vpack.c.b16 %v3562, %v3546
    %v4907 = vpack.c.b16 %v3563, %v3547
    %v4908 = vpack.c.b16 %v3564, %v3548
    %v4909 = vpack.c.b16 %v3565, %v3549
    %v4910 = vpack.c.b16 %v3566, %v3550
    %v4911 = vpack.c.b16 %v3567, %v3551
    %v4912 = vpack.c.b16 %v3584, %v3568
    %v4913 = vpack.c.b16 %v3585, %v3569
    %v4914 = vpack.c.b16 %v3586, %v3570
    %v4915 = vpack.c.b16 %v3587, %v3571
    %v4916 = vpack.c.b16 %v3588, %v3572
    %v4917 = vpack.c.b16 %v3589, %v3573
    %v4918 = vpack.c.b16 %v3590, %v3574
    %v4919 = vpack.c.b16 %v3591, %v3575
    %v4920 = vpack.c.b16 %v3592, %v3576
    %v4921 = vpack.c.b16 %v3593, %v3577
    %v4922 = vpack.c.b16 %v3594, %v3578
    %v4923 = vpack.c.b16 %v3595, %v3579
    %v4924 = vpack.c.b16 %v3596, %v3580
    %v4925 = vpack.c.b16 %v3597, %v3581
    %v4926 = vpack.c.b16 %v3598, %v3582
    %v4927 = vpack.c.b16 %v3599, %v3583
    %v4928 = vpack.c.b16 %v3616, %v3600
    %v4929 = vpack.c.b16 %v3617, %v3601
    %v4930 = vpack.c.b16 %v3618, %v3602
    %v4931 = vpack.c.b16 %v3619, %v3603
    %v4932 = vpack.c.b16 %v3620, %v3604
    %v4933 = vpack.c.b16 %v3621, %v3605
    %v4934 = vpack.c.b16 %v3622, %v3606
    %v4935 = vpack.c.b16 %v3623, %v3607
    %v4936 = vpack.c.b16 %v3624, %v3608
    %v4937 = vpack.c.b16 %v3625, %v3609
    %v4938 = vpack.c.b16 %v3626, %v3610
    %v4939 = vpack.c.b16 %v3627, %v3611
    %v4940 = vpack.c.b16 %v3628, %v3612
    %v4941 = vpack.c.b16 %v3629, %v3613
    %v4942 = vpack.c.b16 %v3630, %v3614
    %v4943 = vpack.c.b16 %v3631, %v3615
    %v4944 = vpack.c.b16 %v3648, %v3632
    %v4945 = vpack.c.b16 %v3649, %v3633
    %v4946 = vpack.c.b16 %v3650, %v3634
    %v4947 = vpack.c.b16 %v3651, %v3635
    %v4948 = vpack.c.b16 %v3652, %v3636
    %v4949 = vpack.c.b16 %v3653, %v3637
    %v4950 = vpack.c.b16 %v3654, %v3638
    %v4951 = vpack.c.b16 %v3655, %v3639
    %v4952 = vpack.c.b16 %v3656, %v3640
    %v4953 = vpack.c.b16 %v3657, %v3641
    %v4954 = vpack.c.b16 %v3658, %v3642
    %v4955 = vpack.c.b16 %v3659, %v3643
    %v4956 = vpack.c.b16 %v3660, %v3644
    %v4957 = vpack.c.b16 %v3661, %v3645
    %v4958 = vpack.c.b16 %v3662, %v3646
    %v4959 = vpack.c.b16 %v3663, %v3647
    %v4960 = vpack.c.b16 %v3680, %v3664
    %v4961 = vpack.c.b16 %v3681, %v3665
    %v4962 = vpack.c.b16 %v3682, %v3666
    %v4963 = vpack.c.b16 %v3683, %v3667
    %v4964 = vpack.c.b16 %v3684, %v3668
    %v4965 = vpack.c.b16 %v3685, %v3669
    %v4966 = vpack.c.b16 %v3686, %v3670
    %v4967 = vpack.c.b16 %v3687, %v3671
    %v4968 = vpack.c.b16 %v3688, %v3672
    %v4969 = vpack.c.b16 %v3689, %v3673
    %v4970 = vpack.c.b16 %v3690, %v3674
    %v4971 = vpack.c.b16 %v3691, %v3675
    %v4972 = vpack.c.b16 %v3692, %v3676
    %v4973 = vpack.c.b16 %v3693, %v3677
    %v4974 = vpack.c.b16 %v3694, %v3678
    %v4975 = vpack.c.b16 %v3695, %v3679
    %v4976 = vpack.c.b16 %v3712, %v3696
    %v4977 = vpack.c.b16 %v3713, %v3697
    %v4978 = vpack.c.b16 %v3714, %v3698
    %v4979 = vpack.c.b16 %v3715, %v3699
    %v4980 = vpack.c.b16 %v3716, %v3700
    %v4981 = vpack.c.b16 %v3717, %v3701
    %v4982 = vpack.c.b16 %v3718, %v3702
    %v4983 = vpack.c.b16 %v3719, %v3703
    %v4984 = vpack.c.b16 %v3720, %v3704
    %v4985 = vpack.c.b16 %v3721, %v3705
    %v4986 = vpack.c.b16 %v3722, %v3706
    %v4987 = vpack.c.b16 %v3723, %v3707
    %v4988 = vpack.c.b16 %v3724, %v3708
    %v4989 = vpack.c.b16 %v3725, %v3709
    %v4990 = vpack.c.b16 %v3726, %v3710
    %v4991 = vpack.c.b16 %v3727, %v3711
    %v4992 = vpack.c.b16 %v3744, %v3728
    %v4993 = vpack.c.b16 %v3745, %v3729
    %v4994 = vpack.c.b16 %v3746, %v3730
    %v4995 = vpack.c.b16 %v3747, %v3731
    %v4996 = vpack.c.b16 %v3748, %v3732
    %v4997 = vpack.c.b16 %v3749, %v3733
    %v4998 = vpack.c.b16 %v3750, %v3734
    %v4999 = vpack.c.b16 %v3751, %v3735
    %v5000 = vpack.c.b16 %v3752, %v3736
    %v5001 = vpack.c.b16 %v3753, %v3737
    %v5002 = vpack.c.b16 %v3754, %v3738
    %v5003 = vpack.c.b16 %v3755, %v3739
    %v5004 = vpack.c.b16 %v3756, %v3740
    %v5005 = vpack.c.b16 %v3757, %v3741
    %v5006 = vpack.c.b16 %v3758, %v3742
    %v5007 = vpack.c.b16 %v3759, %v3743
    %v5008 = vpack.c.b16 %v3776, %v3760
    %v5009 = vpack.c.b16 %v3777, %v3761
    %v5010 = vpack.c.b16 %v3778, %v3762
    %v5011 = vpack.c.b16 %v3779, %v3763
    %v5012 = vpack.c.b16 %v3780, %v3764
    %v5013 = vpack.c.b16 %v3781, %v3765
    %v5014 = vpack.c.b16 %v3782, %v3766
    %v5015 = vpack.c.b16 %v3783, %v3767
    %v5016 = vpack.c.b16 %v3784, %v3768
    %v5017 = vpack.c.b16 %v3785, %v3769
    %v5018 = vpack.c.b16 %v3786, %v3770
    %v5019 = vpack.c.b16 %v3787, %v3771
    %v5020 = vpack.c.b16 %v3788, %v3772
    %v5021 = vpack.c.b16 %v3789, %v3773
    %v5022 = vpack.c.b16 %v3790, %v3774
    %v5023 = vpack.c.b16 %v3791, %v3775
    %v5024 = vpack.c.b16 %v3808, %v3792
    %v5025 = vpack.c.b16 %v3809, %v3793
    %v5026 = vpack.c.b16 %v3810, %v3794
    %v5027 = vpack.c.b16 %v3811, %v3795
    %v5028 = vpack.c.b16 %v3812, %v3796
    %v5029 = vpack.c.b16 %v3813, %v3797
    %v5030 = vpack.c.b16 %v3814, %v3798
    %v5031 = vpack.c.b16 %v3815, %v3799
    %v5032 = vpack.c.b16 %v3816, %v3800
    %v5033 = vpack.c.b16 %v3817, %v3801
    %v5034 = vpack.c.b16 %v3818, %v3802
    %v5035 = vpack.c.b16 %v3819, %v3803
    %v5036 = vpack.c.b16 %v3820, %v3804
    %v5037 = vpack.c.b16 %v3821, %v3805
    %v5038 = vpack.c.b16 %v3822, %v3806
    %v5039 = vpack.c.b16 %v3823, %v3807
    %v5040 = vpack.c.b16 %v3840, %v3824
    %v5041 = vpack.c.b16 %v3841, %v3825
    %v5042 = vpack.c.b16 %v3842, %v3826
    %v5043 = vpack.c.b16 %v3843, %v3827
    %v5044 = vpack.c.b16 %v3844, %v3828
    %v5045 = vpack.c.b16 %v3845, %v3829
    %v5046 = vpack.c.b16 %v3846, %v3830
    %v5047 = vpack.c.b16 %v3847, %v3831
    %v5048 = vpack.c.b16 %v3848, %v3832
    %v5049 = vpack.c.b16 %v3849, %v3833
    %v5050 = vpack.c.b16 %v3850, %v3834
    %v5051 = vpack.c.b16 %v3851, %v3835
    %v5052 = vpack.c.b16 %v3852, %v3836
    %v5053 = vpack.c.b16 %v3853, %v3837
    %v5054 = vpack.c.b16 %v3854, %v3838
    %v5055 = vpack.c.b16 %v3855, %v3839
    %v5056 = vpack.c.b16 %v3872, %v3856
    %v5057 = vpack.c.b16 %v3873, %v3857
    %v5058 = vpack.c.b16 %v3874, %v3858
    %v5059 = vpack.c.b16 %v3875, %v3859
    %v5060 = vpack.c.b16 %v3876, %v3860
    %v5061 = vpack.c.b16 %v3877, %v3861
    %v5062 = vpack.c.b16 %v3878, %v3862
    %v5063 = vpack.c.b16 %v3879, %v3863
    %v5064 = vpack.c.b16 %v3880, %v3864
    %v5065 = vpack.c.b16 %v3881, %v3865
    %v5066 = vpack.c.b16 %v3882, %v3866
    %v5067 = vpack.c.b16 %v3883, %v3867
    %v5068 = vpack.c.b16 %v3884, %v3868
    %v5069 = vpack.c.b16 %v3885, %v3869
    %v5070 = vpack.c.b16 %v3886, %v3870
    %v5071 = vpack.c.b16 %v3887, %v3871
    %v5072 = vpack.c.b16 %v3904, %v3888
    %v5073 = vpack.c.b16 %v3905, %v3889
    %v5074 = vpack.c.b16 %v3906, %v3890
    %v5075 = vpack.c.b16 %v3907, %v3891
    %v5076 = vpack.c.b16 %v3908, %v3892
    %v5077 = vpack.c.b16 %v3909, %v3893
    %v5078 = vpack.c.b16 %v3910, %v3894
    %v5079 = vpack.c.b16 %v3911, %v3895
    %v5080 = vpack.c.b16 %v3912, %v3896
    %v5081 = vpack.c.b16 %v3913, %v3897
    %v5082 = vpack.c.b16 %v3914, %v3898
    %v5083 = vpack.c.b16 %v3915, %v3899
    %v5084 = vpack.c.b16 %v3916, %v3900
    %v5085 = vpack.c.b16 %v3917, %v3901
    %v5086 = vpack.c.b16 %v3918, %v3902
    %v5087 = vpack.c.b16 %v3919, %v3903
    %v5088 = vpack.c.b16 %v3936, %v3920
    %v5089 = vpack.c.b16 %v3937, %v3921
    %v5090 = vpack.c.b16 %v3938, %v3922
    %v5091 = vpack.c.b16 %v3939, %v3923
    %v5092 = vpack.c.b16 %v3940, %v3924
    %v5093 = vpack.c.b16 %v3941, %v3925
    %v5094 = vpack.c.b16 %v3942, %v3926
    %v5095 = vpack.c.b16 %v3943, %v3927
    %v5096 = vpack.c.b16 %v3944, %v3928
    %v5097 = vpack.c.b16 %v3945, %v3929
    %v5098 = vpack.c.b16 %v3946, %v3930
    %v5099 = vpack.c.b16 %v3947, %v3931
    %v5100 = vpack.c.b16 %v3948, %v3932
    %v5101 = vpack.c.b16 %v3949, %v3933
    %v5102 = vpack.c.b16 %v3950, %v3934
    %v5103 = vpack.c.b16 %v3951, %v3935
    %v5104 = vpack.c.b16 %v3968, %v3952
    %v5105 = vpack.c.b16 %v3969, %v3953
    %v5106 = vpack.c.b16 %v3970, %v3954
    %v5107 = vpack.c.b16 %v3971, %v3955
    %v5108 = vpack.c.b16 %v3972, %v3956
    %v5109 = vpack.c.b16 %v3973, %v3957
    %v5110 = vpack.c.b16 %v3974, %v3958
    %v5111 = vpack.c.b16 %v3975, %v3959
    %v5112 = vpack.c.b16 %v3976, %v3960
    %v5113 = vpack.c.b16 %v3977, %v3961
    %v5114 = vpack.c.b16 %v3978, %v3962
    %v5115 = vpack.c.b16 %v3979, %v3963
    %v5116 = vpack.c.b16 %v3980, %v3964
    %v5117 = vpack.c.b16 %v3981, %v3965
    %v5118 = vpack.c.b16 %v3982, %v3966
    %v5119 = vpack.c.b16 %v3983, %v3967
    %v5120 = vpack.c.b16 %v4000, %v3984
    %v5121 = vpack.c.b16 %v4001, %v3985
    %v5122 = vpack.c.b16 %v4002, %v3986
    %v5123 = vpack.c.b16 %v4003, %v3987
    %v5124 = vpack.c.b16 %v4004, %v3988
    %v5125 = vpack.c.b16 %v4005, %v3989
    %v5126 = vpack.c.b16 %v4006, %v3990
    %v5127 = vpack.c.b16 %v4007, %v3991
    %v5128 = vpack.c.b16 %v4008, %v3992
    %v5129 = vpack.c.b16 %v4009, %v3993
    %v5130 = vpack.c.b16 %v4010, %v3994
    %v5131 = vpack.c.b16 %v4011, %v3995
    %v5132 = vpack.c.b16 %v4012, %v3996
    %v5133 = vpack.c.b16 %v4013, %v3997
    %v5134 = vpack.c.b16 %v4014, %v3998
    %v5135 = vpack.c.b16 %v4015, %v3999
    %v5136 = vpack.c.b16 %v4032, %v4016
    %v5137 = vpack.c.b16 %v4033, %v4017
    %v5138 = vpack.c.b16 %v4034, %v4018
    %v5139 = vpack.c.b16 %v4035, %v4019
    %v5140 = vpack.c.b16 %v4036, %v4020
    %v5141 = vpack.c.b16 %v4037, %v4021
    %v5142 = vpack.c.b16 %v4038, %v4022
    %v5143 = vpack.c.b16 %v4039, %v4023
    %v5144 = vpack.c.b16 %v4040, %v4024
    %v5145 = vpack.c.b16 %v4041, %v4025
    %v5146 = vpack.c.b16 %v4042, %v4026
    %v5147 = vpack.c.b16 %v4043, %v4027
    %v5148 = vpack.c.b16 %v4044, %v4028
    %v5149 = vpack.c.b16 %v4045, %v4029
    %v5150 = vpack.c.b16 %v4046, %v4030
    %v5151 = vpack.c.b16 %v4047, %v4031
    %v5152 = vpack.c.b16 %v4064, %v4048
    %v5153 = vpack.c.b16 %v4065, %v4049
    %v5154 = vpack.c.b16 %v4066, %v4050
    %v5155 = vpack.c.b16 %v4067, %v4051
    %v5156 = vpack.c.b16 %v4068, %v4052
    %v5157 = vpack.c.b16 %v4069, %v4053
    %v5158 = vpack.c.b16 %v4070, %v4054
    %v5159 = vpack.c.b16 %v4071, %v4055
    %v5160 = vpack.c.b16 %v4072, %v4056
    %v5161 = vpack.c.b16 %v4073, %v4057
    %v5162 = vpack.c.b16 %v4074, %v4058
    %v5163 = vpack.c.b16 %v4075, %v4059
    %v5164 = vpack.c.b16 %v4076, %v4060
    %v5165 = vpack.c.b16 %v4077, %v4061
    %v5166 = vpack.c.b16 %v4078, %v4062
    %v5167 = vpack.c.b16 %v4079, %v4063
    %v5168 = vpack.c.b16 %v4096, %v4080
    %v5169 = vpack.c.b16 %v4097, %v4081
    %v5170 = vpack.c.b16 %v4098, %v4082
    %v5171 = vpack.c.b16 %v4099, %v4083
    %v5172 = vpack.c.b16 %v4100, %v4084
    %v5173 = vpack.c.b16 %v4101, %v4085
    %v5174 = vpack.c.b16 %v4102, %v4086
    %v5175 = vpack.c.b16 %v4103, %v4087
    %v5176 = vpack.c.b16 %v4104, %v4088
    %v5177 = vpack.c.b16 %v4105, %v4089
    %v5178 = vpack.c.b16 %v4106, %v4090
    %v5179 = vpack.c.b16 %v4107, %v4091
    %v5180 = vpack.c.b16 %v4108, %v4092
    %v5181 = vpack.c.b16 %v4109, %v4093
    %v5182 = vpack.c.b16 %v4110, %v4094
    %v5183 = vpack.c.b16 %v4111, %v4095
    %v5184 = vpack.c.b16 %v4128, %v4112
    %v5185 = vpack.c.b16 %v4129, %v4113
    %v5186 = vpack.c.b16 %v4130, %v4114
    %v5187 = vpack.c.b16 %v4131, %v4115
    %v5188 = vpack.c.b16 %v4132, %v4116
    %v5189 = vpack.c.b16 %v4133, %v4117
    %v5190 = vpack.c.b16 %v4134, %v4118
    %v5191 = vpack.c.b16 %v4135, %v4119
    %v5192 = vpack.c.b16 %v4136, %v4120
    %v5193 = vpack.c.b16 %v4137, %v4121
    %v5194 = vpack.c.b16 %v4138, %v4122
    %v5195 = vpack.c.b16 %v4139, %v4123
    %v5196 = vpack.c.b16 %v4140, %v4124
    %v5197 = vpack.c.b16 %v4141, %v4125
    %v5198 = vpack.c.b16 %v4142, %v4126
    %v5199 = vpack.c.b16 %v4143, %v4127
    %v5200 = vpack.c.b16 %v4160, %v4144
    %v5201 = vpack.c.b16 %v4161, %v4145
    %v5202 = vpack.c.b16 %v4162, %v4146
    %v5203 = vpack.c.b16 %v4163, %v4147
    %v5204 = vpack.c.b16 %v4164, %v4148
    %v5205 = vpack.c.b16 %v4165, %v4149
    %v5206 = vpack.c.b16 %v4166, %v4150
    %v5207 = vpack.c.b16 %v4167, %v4151
    %v5208 = vpack.c.b16 %v4168, %v4152
    %v5209 = vpack.c.b16 %v4169, %v4153
    %v5210 = vpack.c.b16 %v4170, %v4154
    %v5211 = vpack.c.b16 %v4171, %v4155
    %v5212 = vpack.c.b16 %v4172, %v4156
    %v5213 = vpack.c.b16 %v4173, %v4157
    %v5214 = vpack.c.b16 %v4174, %v4158
    %v5215 = vpack.c.b16 %v4175, %v4159
    %v5216 = vpack.c.b16 %v4192, %v4176
    %v5217 = vpack.c.b16 %v4193, %v4177
    %v5218 = vpack.c.b16 %v4194, %v4178
    %v5219 = vpack.c.b16 %v4195, %v4179
    %v5220 = vpack.c.b16 %v4196, %v4180
    %v5221 = vpack.c.b16 %v4197, %v4181
    %v5222 = vpack.c.b16 %v4198, %v4182
    %v5223 = vpack.c.b16 %v4199, %v4183
    %v5224 = vpack.c.b16 %v4200, %v4184
    %v5225 = vpack.c.b16 %v4201, %v4185
    %v5226 = vpack.c.b16 %v4202, %v4186
    %v5227 = vpack.c.b16 %v4203, %v4187
    %v5228 = vpack.c.b16 %v4204, %v4188
    %v5229 = vpack.c.b16 %v4205, %v4189
    %v5230 = vpack.c.b16 %v4206, %v4190
    %v5231 = vpack.c.b16 %v4207, %v4191
    %6256 = vmatpush.bf16.msra.mxu0 %v4320
    %6257 = vmatpush.bf16.msra.mxu0 %v4304
    %6258 = vmatpush.bf16.msra.mxu0 %v4288
    %6259 = vmatpush.bf16.msra.mxu0 %v4272
    %6260 = vmatpush.bf16.msra.mxu0 %v4256
    %6261 = vmatpush.bf16.msra.mxu0 %v4240
    %6262 = vmatpush.bf16.msra.mxu0 %v4224
    %6263 = vmatpush.bf16.msra.mxu0 %v4208
    %6264 = vmatmul.bf16.gmra.mxu0 %v1120
    %v6265 = vpop.f32.mrf.mxu0
    %v6266 = vadd.f32 0.0, %v6265
    %v6267 = vpop.f32.mrf.mxu0
    %6268 = vdwg.mxu0
    %6269 = vmatpush.bf16.msra.mxu0 %v4448
    %6270 = vmatpush.bf16.msra.mxu0 %v4432
    %6271 = vmatpush.bf16.msra.mxu0 %v4416
    %6272 = vmatpush.bf16.msra.mxu0 %v4400
    %6273 = vmatpush.bf16.msra.mxu0 %v4384
    %6274 = vmatpush.bf16.msra.mxu0 %v4368
    %6275 = vmatpush.bf16.msra.mxu0 %v4352
    %6276 = vmatpush.bf16.msra.mxu0 %v4336
    %6277 = vmatmul.bf16.gmra.mxu0 %v1121
    %v6278 = vpop.f32.mrf.mxu0
    %v6279 = vadd.f32 %v6266, %v6278
    %v6280 = vpop.f32.mrf.mxu0
    %6281 = vdwg.mxu0
    %6282 = vmatpush.bf16.msra.mxu0 %v4576
    %6283 = vmatpush.bf16.msra.mxu0 %v4560
    %6284 = vmatpush.bf16.msra.mxu0 %v4544
    %6285 = vmatpush.bf16.msra.mxu0 %v4528
    %6286 = vmatpush.bf16.msra.mxu0 %v4512
    %6287 = vmatpush.bf16.msra.mxu0 %v4496
    %6288 = vmatpush.bf16.msra.mxu0 %v4480
    %6289 = vmatpush.bf16.msra.mxu0 %v4464
    %6290 = vmatmul.bf16.gmra.mxu0 %v1122
    %v6291 = vpop.f32.mrf.mxu0
    %v6292 = vadd.f32 %v6279, %v6291
    %v6293 = vpop.f32.mrf.mxu0
    %6294 = vdwg.mxu0
    %6295 = vmatpush.bf16.msra.mxu0 %v4704
    %6296 = vmatpush.bf16.msra.mxu0 %v4688
    %6297 = vmatpush.bf16.msra.mxu0 %v4672
    %6298 = vmatpush.bf16.msra.mxu0 %v4656
    %6299 = vmatpush.bf16.msra.mxu0 %v4640
    %6300 = vmatpush.bf16.msra.mxu0 %v4624
    %6301 = vmatpush.bf16.msra.mxu0 %v4608
    %6302 = vmatpush.bf16.msra.mxu0 %v4592
    %6303 = vmatmul.bf16.gmra.mxu0 %v1123
    %v6304 = vpop.f32.mrf.mxu0
    %v6305 = vadd.f32 %v6292, %v6304
    %v6306 = vpop.f32.mrf.mxu0
    %6307 = vdwg.mxu0
    %6308 = vmatpush.bf16.msra.mxu0 %v4832
    %6309 = vmatpush.bf16.msra.mxu0 %v4816
    %6310 = vmatpush.bf16.msra.mxu0 %v4800
    %6311 = vmatpush.bf16.msra.mxu0 %v4784
    %6312 = vmatpush.bf16.msra.mxu0 %v4768
    %6313 = vmatpush.bf16.msra.mxu0 %v4752
    %6314 = vmatpush.bf16.msra.mxu0 %v4736
    %6315 = vmatpush.bf16.msra.mxu0 %v4720
    %6316 = vmatmul.bf16.gmra.mxu0 %v1124
    %v6317 = vpop.f32.mrf.mxu0
    %v6318 = vadd.f32 %v6305, %v6317
    %v6319 = vpop.f32.mrf.mxu0
    %6320 = vdwg.mxu0
    %6321 = vmatpush.bf16.msra.mxu0 %v4960
    %6322 = vmatpush.bf16.msra.mxu0 %v4944
    %6323 = vmatpush.bf16.msra.mxu0 %v4928
    %6324 = vmatpush.bf16.msra.mxu0 %v4912
    %6325 = vmatpush.bf16.msra.mxu0 %v4896
    %6326 = vmatpush.bf16.msra.mxu0 %v4880
    %6327 = vmatpush.bf16.msra.mxu0 %v4864
    %6328 = vmatpush.bf16.msra.mxu0 %v4848
    %6329 = vmatmul.bf16.gmra.mxu0 %v1125
    %v6330 = vpop.f32.mrf.mxu0
    %v6331 = vadd.f32 %v6318, %v6330
    %v6332 = vpop.f32.mrf.mxu0
    %6333 = vdwg.mxu0
    %6334 = vmatpush.bf16.msra.mxu0 %v5088
    %6335 = vmatpush.bf16.msra.mxu0 %v5072
    %6336 = vmatpush.bf16.msra.mxu0 %v5056
    %6337 = vmatpush.bf16.msra.mxu0 %v5040
    %6338 = vmatpush.bf16.msra.mxu0 %v5024
    %6339 = vmatpush.bf16.msra.mxu0 %v5008
    %6340 = vmatpush.bf16.msra.mxu0 %v4992
    %6341 = vmatpush.bf16.msra.mxu0 %v4976
    %6342 = vmatmul.bf16.gmra.mxu0 %v1126
    %v6343 = vpop.f32.mrf.mxu0
    %v6344 = vadd.f32 %v6331, %v6343
    %v6345 = vpop.f32.mrf.mxu0
    %6346 = vdwg.mxu0
    %6347 = vmatpush.bf16.msra.mxu0 %v5216
    %6348 = vmatpush.bf16.msra.mxu0 %v5200
    %6349 = vmatpush.bf16.msra.mxu0 %v5184
    %6350 = vmatpush.bf16.msra.mxu0 %v5168
    %6351 = vmatpush.bf16.msra.mxu0 %v5152
    %6352 = vmatpush.bf16.msra.mxu0 %v5136
    %6353 = vmatpush.bf16.msra.mxu0 %v5120
    %6354 = vmatpush.bf16.msra.mxu0 %v5104
    %6355 = vmatmul.bf16.gmra.mxu0 %v1127
    %v6356 = vpop.f32.mrf.mxu0
    %v6357 = vadd.f32 %v6344, %v6356
    %v6358 = vpop.f32.mrf.mxu0
    %6359 = vdwg.mxu0
    %6360 = vmatpush.bf16.msra.mxu0 %v4321
    %6361 = vmatpush.bf16.msra.mxu0 %v4305
    %6362 = vmatpush.bf16.msra.mxu0 %v4289
    %6363 = vmatpush.bf16.msra.mxu0 %v4273
    %6364 = vmatpush.bf16.msra.mxu0 %v4257
    %6365 = vmatpush.bf16.msra.mxu0 %v4241
    %6366 = vmatpush.bf16.msra.mxu0 %v4225
    %6367 = vmatpush.bf16.msra.mxu0 %v4209
    %6368 = vmatmul.bf16.gmra.mxu0 %v1120
    %v6369 = vpop.f32.mrf.mxu0
    %v6370 = vadd.f32 0.0, %v6369
    %v6371 = vpop.f32.mrf.mxu0
    %6372 = vdwg.mxu0
    %6373 = vmatpush.bf16.msra.mxu0 %v4449
    %6374 = vmatpush.bf16.msra.mxu0 %v4433
    %6375 = vmatpush.bf16.msra.mxu0 %v4417
    %6376 = vmatpush.bf16.msra.mxu0 %v4401
    %6377 = vmatpush.bf16.msra.mxu0 %v4385
    %6378 = vmatpush.bf16.msra.mxu0 %v4369
    %6379 = vmatpush.bf16.msra.mxu0 %v4353
    %6380 = vmatpush.bf16.msra.mxu0 %v4337
    %6381 = vmatmul.bf16.gmra.mxu0 %v1121
    %v6382 = vpop.f32.mrf.mxu0
    %v6383 = vadd.f32 %v6370, %v6382
    %v6384 = vpop.f32.mrf.mxu0
    %6385 = vdwg.mxu0
    %6386 = vmatpush.bf16.msra.mxu0 %v4577
    %6387 = vmatpush.bf16.msra.mxu0 %v4561
    %6388 = vmatpush.bf16.msra.mxu0 %v4545
    %6389 = vmatpush.bf16.msra.mxu0 %v4529
    %6390 = vmatpush.bf16.msra.mxu0 %v4513
    %6391 = vmatpush.bf16.msra.mxu0 %v4497
    %6392 = vmatpush.bf16.msra.mxu0 %v4481
    %6393 = vmatpush.bf16.msra.mxu0 %v4465
    %6394 = vmatmul.bf16.gmra.mxu0 %v1122
    %v6395 = vpop.f32.mrf.mxu0
    %v6396 = vadd.f32 %v6383, %v6395
    %v6397 = vpop.f32.mrf.mxu0
    %6398 = vdwg.mxu0
    %6399 = vmatpush.bf16.msra.mxu0 %v4705
    %6400 = vmatpush.bf16.msra.mxu0 %v4689
    %6401 = vmatpush.bf16.msra.mxu0 %v4673
    %6402 = vmatpush.bf16.msra.mxu0 %v4657
    %6403 = vmatpush.bf16.msra.mxu0 %v4641
    %6404 = vmatpush.bf16.msra.mxu0 %v4625
    %6405 = vmatpush.bf16.msra.mxu0 %v4609
    %6406 = vmatpush.bf16.msra.mxu0 %v4593
    %6407 = vmatmul.bf16.gmra.mxu0 %v1123
    %v6408 = vpop.f32.mrf.mxu0
    %v6409 = vadd.f32 %v6396, %v6408
    %v6410 = vpop.f32.mrf.mxu0
    %6411 = vdwg.mxu0
    %6412 = vmatpush.bf16.msra.mxu0 %v4833
    %6413 = vmatpush.bf16.msra.mxu0 %v4817
    %6414 = vmatpush.bf16.msra.mxu0 %v4801
    %6415 = vmatpush.bf16.msra.mxu0 %v4785
    %6416 = vmatpush.bf16.msra.mxu0 %v4769
    %6417 = vmatpush.bf16.msra.mxu0 %v4753
    %6418 = vmatpush.bf16.msra.mxu0 %v4737
    %6419 = vmatpush.bf16.msra.mxu0 %v4721
    %6420 = vmatmul.bf16.gmra.mxu0 %v1124
    %v6421 = vpop.f32.mrf.mxu0
    %v6422 = vadd.f32 %v6409, %v6421
    %v6423 = vpop.f32.mrf.mxu0
    %6424 = vdwg.mxu0
    %6425 = vmatpush.bf16.msra.mxu0 %v4961
    %6426 = vmatpush.bf16.msra.mxu0 %v4945
    %6427 = vmatpush.bf16.msra.mxu0 %v4929
    %6428 = vmatpush.bf16.msra.mxu0 %v4913
    %6429 = vmatpush.bf16.msra.mxu0 %v4897
    %6430 = vmatpush.bf16.msra.mxu0 %v4881
    %6431 = vmatpush.bf16.msra.mxu0 %v4865
    %6432 = vmatpush.bf16.msra.mxu0 %v4849
    %6433 = vmatmul.bf16.gmra.mxu0 %v1125
    %v6434 = vpop.f32.mrf.mxu0
    %v6435 = vadd.f32 %v6422, %v6434
    %v6436 = vpop.f32.mrf.mxu0
    %6437 = vdwg.mxu0
    %6438 = vmatpush.bf16.msra.mxu0 %v5089
    %6439 = vmatpush.bf16.msra.mxu0 %v5073
    %6440 = vmatpush.bf16.msra.mxu0 %v5057
    %6441 = vmatpush.bf16.msra.mxu0 %v5041
    %6442 = vmatpush.bf16.msra.mxu0 %v5025
    %6443 = vmatpush.bf16.msra.mxu0 %v5009
    %6444 = vmatpush.bf16.msra.mxu0 %v4993
    %6445 = vmatpush.bf16.msra.mxu0 %v4977
    %6446 = vmatmul.bf16.gmra.mxu0 %v1126
    %v6447 = vpop.f32.mrf.mxu0
    %v6448 = vadd.f32 %v6435, %v6447
    %v6449 = vpop.f32.mrf.mxu0
    %6450 = vdwg.mxu0
    %6451 = vmatpush.bf16.msra.mxu0 %v5217
    %6452 = vmatpush.bf16.msra.mxu0 %v5201
    %6453 = vmatpush.bf16.msra.mxu0 %v5185
    %6454 = vmatpush.bf16.msra.mxu0 %v5169
    %6455 = vmatpush.bf16.msra.mxu0 %v5153
    %6456 = vmatpush.bf16.msra.mxu0 %v5137
    %6457 = vmatpush.bf16.msra.mxu0 %v5121
    %6458 = vmatpush.bf16.msra.mxu0 %v5105
    %6459 = vmatmul.bf16.gmra.mxu0 %v1127
    %v6460 = vpop.f32.mrf.mxu0
    %v6461 = vadd.f32 %v6448, %v6460
    %v6462 = vpop.f32.mrf.mxu0
    %6463 = vdwg.mxu0
    %6464 = vmatpush.bf16.msra.mxu0 %v4322
    %6465 = vmatpush.bf16.msra.mxu0 %v4306
    %6466 = vmatpush.bf16.msra.mxu0 %v4290
    %6467 = vmatpush.bf16.msra.mxu0 %v4274
    %6468 = vmatpush.bf16.msra.mxu0 %v4258
    %6469 = vmatpush.bf16.msra.mxu0 %v4242
    %6470 = vmatpush.bf16.msra.mxu0 %v4226
    %6471 = vmatpush.bf16.msra.mxu0 %v4210
    %6472 = vmatmul.bf16.gmra.mxu0 %v1120
    %v6473 = vpop.f32.mrf.mxu0
    %v6474 = vadd.f32 0.0, %v6473
    %v6475 = vpop.f32.mrf.mxu0
    %6476 = vdwg.mxu0
    %6477 = vmatpush.bf16.msra.mxu0 %v4450
    %6478 = vmatpush.bf16.msra.mxu0 %v4434
    %6479 = vmatpush.bf16.msra.mxu0 %v4418
    %6480 = vmatpush.bf16.msra.mxu0 %v4402
    %6481 = vmatpush.bf16.msra.mxu0 %v4386
    %6482 = vmatpush.bf16.msra.mxu0 %v4370
    %6483 = vmatpush.bf16.msra.mxu0 %v4354
    %6484 = vmatpush.bf16.msra.mxu0 %v4338
    %6485 = vmatmul.bf16.gmra.mxu0 %v1121
    %v6486 = vpop.f32.mrf.mxu0
    %v6487 = vadd.f32 %v6474, %v6486
    %v6488 = vpop.f32.mrf.mxu0
    %6489 = vdwg.mxu0
    %6490 = vmatpush.bf16.msra.mxu0 %v4578
    %6491 = vmatpush.bf16.msra.mxu0 %v4562
    %6492 = vmatpush.bf16.msra.mxu0 %v4546
    %6493 = vmatpush.bf16.msra.mxu0 %v4530
    %6494 = vmatpush.bf16.msra.mxu0 %v4514
    %6495 = vmatpush.bf16.msra.mxu0 %v4498
    %6496 = vmatpush.bf16.msra.mxu0 %v4482
    %6497 = vmatpush.bf16.msra.mxu0 %v4466
    %6498 = vmatmul.bf16.gmra.mxu0 %v1122
    %v6499 = vpop.f32.mrf.mxu0
    %v6500 = vadd.f32 %v6487, %v6499
    %v6501 = vpop.f32.mrf.mxu0
    %6502 = vdwg.mxu0
    %6503 = vmatpush.bf16.msra.mxu0 %v4706
    %6504 = vmatpush.bf16.msra.mxu0 %v4690
    %6505 = vmatpush.bf16.msra.mxu0 %v4674
    %6506 = vmatpush.bf16.msra.mxu0 %v4658
    %6507 = vmatpush.bf16.msra.mxu0 %v4642
    %6508 = vmatpush.bf16.msra.mxu0 %v4626
    %6509 = vmatpush.bf16.msra.mxu0 %v4610
    %6510 = vmatpush.bf16.msra.mxu0 %v4594
    %6511 = vmatmul.bf16.gmra.mxu0 %v1123
    %v6512 = vpop.f32.mrf.mxu0
    %v6513 = vadd.f32 %v6500, %v6512
    %v6514 = vpop.f32.mrf.mxu0
    %6515 = vdwg.mxu0
    %6516 = vmatpush.bf16.msra.mxu0 %v4834
    %6517 = vmatpush.bf16.msra.mxu0 %v4818
    %6518 = vmatpush.bf16.msra.mxu0 %v4802
    %6519 = vmatpush.bf16.msra.mxu0 %v4786
    %6520 = vmatpush.bf16.msra.mxu0 %v4770
    %6521 = vmatpush.bf16.msra.mxu0 %v4754
    %6522 = vmatpush.bf16.msra.mxu0 %v4738
    %6523 = vmatpush.bf16.msra.mxu0 %v4722
    %6524 = vmatmul.bf16.gmra.mxu0 %v1124
    %v6525 = vpop.f32.mrf.mxu0
    %v6526 = vadd.f32 %v6513, %v6525
    %v6527 = vpop.f32.mrf.mxu0
    %6528 = vdwg.mxu0
    %6529 = vmatpush.bf16.msra.mxu0 %v4962
    %6530 = vmatpush.bf16.msra.mxu0 %v4946
    %6531 = vmatpush.bf16.msra.mxu0 %v4930
    %6532 = vmatpush.bf16.msra.mxu0 %v4914
    %6533 = vmatpush.bf16.msra.mxu0 %v4898
    %6534 = vmatpush.bf16.msra.mxu0 %v4882
    %6535 = vmatpush.bf16.msra.mxu0 %v4866
    %6536 = vmatpush.bf16.msra.mxu0 %v4850
    %6537 = vmatmul.bf16.gmra.mxu0 %v1125
    %v6538 = vpop.f32.mrf.mxu0
    %v6539 = vadd.f32 %v6526, %v6538
    %v6540 = vpop.f32.mrf.mxu0
    %6541 = vdwg.mxu0
    %6542 = vmatpush.bf16.msra.mxu0 %v5090
    %6543 = vmatpush.bf16.msra.mxu0 %v5074
    %6544 = vmatpush.bf16.msra.mxu0 %v5058
    %6545 = vmatpush.bf16.msra.mxu0 %v5042
    %6546 = vmatpush.bf16.msra.mxu0 %v5026
    %6547 = vmatpush.bf16.msra.mxu0 %v5010
    %6548 = vmatpush.bf16.msra.mxu0 %v4994
    %6549 = vmatpush.bf16.msra.mxu0 %v4978
    %6550 = vmatmul.bf16.gmra.mxu0 %v1126
    %v6551 = vpop.f32.mrf.mxu0
    %v6552 = vadd.f32 %v6539, %v6551
    %v6553 = vpop.f32.mrf.mxu0
    %6554 = vdwg.mxu0
    %6555 = vmatpush.bf16.msra.mxu0 %v5218
    %6556 = vmatpush.bf16.msra.mxu0 %v5202
    %6557 = vmatpush.bf16.msra.mxu0 %v5186
    %6558 = vmatpush.bf16.msra.mxu0 %v5170
    %6559 = vmatpush.bf16.msra.mxu0 %v5154
    %6560 = vmatpush.bf16.msra.mxu0 %v5138
    %6561 = vmatpush.bf16.msra.mxu0 %v5122
    %6562 = vmatpush.bf16.msra.mxu0 %v5106
    %6563 = vmatmul.bf16.gmra.mxu0 %v1127
    %v6564 = vpop.f32.mrf.mxu0
    %v6565 = vadd.f32 %v6552, %v6564
    %v6566 = vpop.f32.mrf.mxu0
    %6567 = vdwg.mxu0
    %6568 = vmatpush.bf16.msra.mxu0 %v4323
    %6569 = vmatpush.bf16.msra.mxu0 %v4307
    %6570 = vmatpush.bf16.msra.mxu0 %v4291
    %6571 = vmatpush.bf16.msra.mxu0 %v4275
    %6572 = vmatpush.bf16.msra.mxu0 %v4259
    %6573 = vmatpush.bf16.msra.mxu0 %v4243
    %6574 = vmatpush.bf16.msra.mxu0 %v4227
    %6575 = vmatpush.bf16.msra.mxu0 %v4211
    %6576 = vmatmul.bf16.gmra.mxu0 %v1120
    %v6577 = vpop.f32.mrf.mxu0
    %v6578 = vadd.f32 0.0, %v6577
    %v6579 = vpop.f32.mrf.mxu0
    %6580 = vdwg.mxu0
    %6581 = vmatpush.bf16.msra.mxu0 %v4451
    %6582 = vmatpush.bf16.msra.mxu0 %v4435
    %6583 = vmatpush.bf16.msra.mxu0 %v4419
    %6584 = vmatpush.bf16.msra.mxu0 %v4403
    %6585 = vmatpush.bf16.msra.mxu0 %v4387
    %6586 = vmatpush.bf16.msra.mxu0 %v4371
    %6587 = vmatpush.bf16.msra.mxu0 %v4355
    %6588 = vmatpush.bf16.msra.mxu0 %v4339
    %6589 = vmatmul.bf16.gmra.mxu0 %v1121
    %v6590 = vpop.f32.mrf.mxu0
    %v6591 = vadd.f32 %v6578, %v6590
    %v6592 = vpop.f32.mrf.mxu0
    %6593 = vdwg.mxu0
    %6594 = vmatpush.bf16.msra.mxu0 %v4579
    %6595 = vmatpush.bf16.msra.mxu0 %v4563
    %6596 = vmatpush.bf16.msra.mxu0 %v4547
    %6597 = vmatpush.bf16.msra.mxu0 %v4531
    %6598 = vmatpush.bf16.msra.mxu0 %v4515
    %6599 = vmatpush.bf16.msra.mxu0 %v4499
    %6600 = vmatpush.bf16.msra.mxu0 %v4483
    %6601 = vmatpush.bf16.msra.mxu0 %v4467
    %6602 = vmatmul.bf16.gmra.mxu0 %v1122
    %v6603 = vpop.f32.mrf.mxu0
    %v6604 = vadd.f32 %v6591, %v6603
    %v6605 = vpop.f32.mrf.mxu0
    %6606 = vdwg.mxu0
    %6607 = vmatpush.bf16.msra.mxu0 %v4707
    %6608 = vmatpush.bf16.msra.mxu0 %v4691
    %6609 = vmatpush.bf16.msra.mxu0 %v4675
    %6610 = vmatpush.bf16.msra.mxu0 %v4659
    %6611 = vmatpush.bf16.msra.mxu0 %v4643
    %6612 = vmatpush.bf16.msra.mxu0 %v4627
    %6613 = vmatpush.bf16.msra.mxu0 %v4611
    %6614 = vmatpush.bf16.msra.mxu0 %v4595
    %6615 = vmatmul.bf16.gmra.mxu0 %v1123
    %v6616 = vpop.f32.mrf.mxu0
    %v6617 = vadd.f32 %v6604, %v6616
    %v6618 = vpop.f32.mrf.mxu0
    %6619 = vdwg.mxu0
    %6620 = vmatpush.bf16.msra.mxu0 %v4835
    %6621 = vmatpush.bf16.msra.mxu0 %v4819
    %6622 = vmatpush.bf16.msra.mxu0 %v4803
    %6623 = vmatpush.bf16.msra.mxu0 %v4787
    %6624 = vmatpush.bf16.msra.mxu0 %v4771
    %6625 = vmatpush.bf16.msra.mxu0 %v4755
    %6626 = vmatpush.bf16.msra.mxu0 %v4739
    %6627 = vmatpush.bf16.msra.mxu0 %v4723
    %6628 = vmatmul.bf16.gmra.mxu0 %v1124
    %v6629 = vpop.f32.mrf.mxu0
    %v6630 = vadd.f32 %v6617, %v6629
    %v6631 = vpop.f32.mrf.mxu0
    %6632 = vdwg.mxu0
    %6633 = vmatpush.bf16.msra.mxu0 %v4963
    %6634 = vmatpush.bf16.msra.mxu0 %v4947
    %6635 = vmatpush.bf16.msra.mxu0 %v4931
    %6636 = vmatpush.bf16.msra.mxu0 %v4915
    %6637 = vmatpush.bf16.msra.mxu0 %v4899
    %6638 = vmatpush.bf16.msra.mxu0 %v4883
    %6639 = vmatpush.bf16.msra.mxu0 %v4867
    %6640 = vmatpush.bf16.msra.mxu0 %v4851
    %6641 = vmatmul.bf16.gmra.mxu0 %v1125
    %v6642 = vpop.f32.mrf.mxu0
    %v6643 = vadd.f32 %v6630, %v6642
    %v6644 = vpop.f32.mrf.mxu0
    %6645 = vdwg.mxu0
    %6646 = vmatpush.bf16.msra.mxu0 %v5091
    %6647 = vmatpush.bf16.msra.mxu0 %v5075
    %6648 = vmatpush.bf16.msra.mxu0 %v5059
    %6649 = vmatpush.bf16.msra.mxu0 %v5043
    %6650 = vmatpush.bf16.msra.mxu0 %v5027
    %6651 = vmatpush.bf16.msra.mxu0 %v5011
    %6652 = vmatpush.bf16.msra.mxu0 %v4995
    %6653 = vmatpush.bf16.msra.mxu0 %v4979
    %6654 = vmatmul.bf16.gmra.mxu0 %v1126
    %v6655 = vpop.f32.mrf.mxu0
    %v6656 = vadd.f32 %v6643, %v6655
    %v6657 = vpop.f32.mrf.mxu0
    %6658 = vdwg.mxu0
    %6659 = vmatpush.bf16.msra.mxu0 %v5219
    %6660 = vmatpush.bf16.msra.mxu0 %v5203
    %6661 = vmatpush.bf16.msra.mxu0 %v5187
    %6662 = vmatpush.bf16.msra.mxu0 %v5171
    %6663 = vmatpush.bf16.msra.mxu0 %v5155
    %6664 = vmatpush.bf16.msra.mxu0 %v5139
    %6665 = vmatpush.bf16.msra.mxu0 %v5123
    %6666 = vmatpush.bf16.msra.mxu0 %v5107
    %6667 = vmatmul.bf16.gmra.mxu0 %v1127
    %v6668 = vpop.f32.mrf.mxu0
    %v6669 = vadd.f32 %v6656, %v6668
    %v6670 = vpop.f32.mrf.mxu0
    %6671 = vdwg.mxu0
    %6672 = vmatpush.bf16.msra.mxu0 %v4324
    %6673 = vmatpush.bf16.msra.mxu0 %v4308
    %6674 = vmatpush.bf16.msra.mxu0 %v4292
    %6675 = vmatpush.bf16.msra.mxu0 %v4276
    %6676 = vmatpush.bf16.msra.mxu0 %v4260
    %6677 = vmatpush.bf16.msra.mxu0 %v4244
    %6678 = vmatpush.bf16.msra.mxu0 %v4228
    %6679 = vmatpush.bf16.msra.mxu0 %v4212
    %6680 = vmatmul.bf16.gmra.mxu0 %v1120
    %v6681 = vpop.f32.mrf.mxu0
    %v6682 = vadd.f32 0.0, %v6681
    %v6683 = vpop.f32.mrf.mxu0
    %6684 = vdwg.mxu0
    %6685 = vmatpush.bf16.msra.mxu0 %v4452
    %6686 = vmatpush.bf16.msra.mxu0 %v4436
    %6687 = vmatpush.bf16.msra.mxu0 %v4420
    %6688 = vmatpush.bf16.msra.mxu0 %v4404
    %6689 = vmatpush.bf16.msra.mxu0 %v4388
    %6690 = vmatpush.bf16.msra.mxu0 %v4372
    %6691 = vmatpush.bf16.msra.mxu0 %v4356
    %6692 = vmatpush.bf16.msra.mxu0 %v4340
    %6693 = vmatmul.bf16.gmra.mxu0 %v1121
    %v6694 = vpop.f32.mrf.mxu0
    %v6695 = vadd.f32 %v6682, %v6694
    %v6696 = vpop.f32.mrf.mxu0
    %6697 = vdwg.mxu0
    %6698 = vmatpush.bf16.msra.mxu0 %v4580
    %6699 = vmatpush.bf16.msra.mxu0 %v4564
    %6700 = vmatpush.bf16.msra.mxu0 %v4548
    %6701 = vmatpush.bf16.msra.mxu0 %v4532
    %6702 = vmatpush.bf16.msra.mxu0 %v4516
    %6703 = vmatpush.bf16.msra.mxu0 %v4500
    %6704 = vmatpush.bf16.msra.mxu0 %v4484
    %6705 = vmatpush.bf16.msra.mxu0 %v4468
    %6706 = vmatmul.bf16.gmra.mxu0 %v1122
    %v6707 = vpop.f32.mrf.mxu0
    %v6708 = vadd.f32 %v6695, %v6707
    %v6709 = vpop.f32.mrf.mxu0
    %6710 = vdwg.mxu0
    %6711 = vmatpush.bf16.msra.mxu0 %v4708
    %6712 = vmatpush.bf16.msra.mxu0 %v4692
    %6713 = vmatpush.bf16.msra.mxu0 %v4676
    %6714 = vmatpush.bf16.msra.mxu0 %v4660
    %6715 = vmatpush.bf16.msra.mxu0 %v4644
    %6716 = vmatpush.bf16.msra.mxu0 %v4628
    %6717 = vmatpush.bf16.msra.mxu0 %v4612
    %6718 = vmatpush.bf16.msra.mxu0 %v4596
    %6719 = vmatmul.bf16.gmra.mxu0 %v1123
    %v6720 = vpop.f32.mrf.mxu0
    %v6721 = vadd.f32 %v6708, %v6720
    %v6722 = vpop.f32.mrf.mxu0
    %6723 = vdwg.mxu0
    %6724 = vmatpush.bf16.msra.mxu0 %v4836
    %6725 = vmatpush.bf16.msra.mxu0 %v4820
    %6726 = vmatpush.bf16.msra.mxu0 %v4804
    %6727 = vmatpush.bf16.msra.mxu0 %v4788
    %6728 = vmatpush.bf16.msra.mxu0 %v4772
    %6729 = vmatpush.bf16.msra.mxu0 %v4756
    %6730 = vmatpush.bf16.msra.mxu0 %v4740
    %6731 = vmatpush.bf16.msra.mxu0 %v4724
    %6732 = vmatmul.bf16.gmra.mxu0 %v1124
    %v6733 = vpop.f32.mrf.mxu0
    %v6734 = vadd.f32 %v6721, %v6733
    %v6735 = vpop.f32.mrf.mxu0
    %6736 = vdwg.mxu0
    %6737 = vmatpush.bf16.msra.mxu0 %v4964
    %6738 = vmatpush.bf16.msra.mxu0 %v4948
    %6739 = vmatpush.bf16.msra.mxu0 %v4932
    %6740 = vmatpush.bf16.msra.mxu0 %v4916
    %6741 = vmatpush.bf16.msra.mxu0 %v4900
    %6742 = vmatpush.bf16.msra.mxu0 %v4884
    %6743 = vmatpush.bf16.msra.mxu0 %v4868
    %6744 = vmatpush.bf16.msra.mxu0 %v4852
    %6745 = vmatmul.bf16.gmra.mxu0 %v1125
    %v6746 = vpop.f32.mrf.mxu0
    %v6747 = vadd.f32 %v6734, %v6746
    %v6748 = vpop.f32.mrf.mxu0
    %6749 = vdwg.mxu0
    %6750 = vmatpush.bf16.msra.mxu0 %v5092
    %6751 = vmatpush.bf16.msra.mxu0 %v5076
    %6752 = vmatpush.bf16.msra.mxu0 %v5060
    %6753 = vmatpush.bf16.msra.mxu0 %v5044
    %6754 = vmatpush.bf16.msra.mxu0 %v5028
    %6755 = vmatpush.bf16.msra.mxu0 %v5012
    %6756 = vmatpush.bf16.msra.mxu0 %v4996
    %6757 = vmatpush.bf16.msra.mxu0 %v4980
    %6758 = vmatmul.bf16.gmra.mxu0 %v1126
    %v6759 = vpop.f32.mrf.mxu0
    %v6760 = vadd.f32 %v6747, %v6759
    %v6761 = vpop.f32.mrf.mxu0
    %6762 = vdwg.mxu0
    %6763 = vmatpush.bf16.msra.mxu0 %v5220
    %6764 = vmatpush.bf16.msra.mxu0 %v5204
    %6765 = vmatpush.bf16.msra.mxu0 %v5188
    %6766 = vmatpush.bf16.msra.mxu0 %v5172
    %6767 = vmatpush.bf16.msra.mxu0 %v5156
    %6768 = vmatpush.bf16.msra.mxu0 %v5140
    %6769 = vmatpush.bf16.msra.mxu0 %v5124
    %6770 = vmatpush.bf16.msra.mxu0 %v5108
    %6771 = vmatmul.bf16.gmra.mxu0 %v1127
    %v6772 = vpop.f32.mrf.mxu0
    %v6773 = vadd.f32 %v6760, %v6772
    %v6774 = vpop.f32.mrf.mxu0
    %6775 = vdwg.mxu0
    %6776 = vmatpush.bf16.msra.mxu0 %v4325
    %6777 = vmatpush.bf16.msra.mxu0 %v4309
    %6778 = vmatpush.bf16.msra.mxu0 %v4293
    %6779 = vmatpush.bf16.msra.mxu0 %v4277
    %6780 = vmatpush.bf16.msra.mxu0 %v4261
    %6781 = vmatpush.bf16.msra.mxu0 %v4245
    %6782 = vmatpush.bf16.msra.mxu0 %v4229
    %6783 = vmatpush.bf16.msra.mxu0 %v4213
    %6784 = vmatmul.bf16.gmra.mxu0 %v1120
    %v6785 = vpop.f32.mrf.mxu0
    %v6786 = vadd.f32 0.0, %v6785
    %v6787 = vpop.f32.mrf.mxu0
    %6788 = vdwg.mxu0
    %6789 = vmatpush.bf16.msra.mxu0 %v4453
    %6790 = vmatpush.bf16.msra.mxu0 %v4437
    %6791 = vmatpush.bf16.msra.mxu0 %v4421
    %6792 = vmatpush.bf16.msra.mxu0 %v4405
    %6793 = vmatpush.bf16.msra.mxu0 %v4389
    %6794 = vmatpush.bf16.msra.mxu0 %v4373
    %6795 = vmatpush.bf16.msra.mxu0 %v4357
    %6796 = vmatpush.bf16.msra.mxu0 %v4341
    %6797 = vmatmul.bf16.gmra.mxu0 %v1121
    %v6798 = vpop.f32.mrf.mxu0
    %v6799 = vadd.f32 %v6786, %v6798
    %v6800 = vpop.f32.mrf.mxu0
    %6801 = vdwg.mxu0
    %6802 = vmatpush.bf16.msra.mxu0 %v4581
    %6803 = vmatpush.bf16.msra.mxu0 %v4565
    %6804 = vmatpush.bf16.msra.mxu0 %v4549
    %6805 = vmatpush.bf16.msra.mxu0 %v4533
    %6806 = vmatpush.bf16.msra.mxu0 %v4517
    %6807 = vmatpush.bf16.msra.mxu0 %v4501
    %6808 = vmatpush.bf16.msra.mxu0 %v4485
    %6809 = vmatpush.bf16.msra.mxu0 %v4469
    %6810 = vmatmul.bf16.gmra.mxu0 %v1122
    %v6811 = vpop.f32.mrf.mxu0
    %v6812 = vadd.f32 %v6799, %v6811
    %v6813 = vpop.f32.mrf.mxu0
    %6814 = vdwg.mxu0
    %6815 = vmatpush.bf16.msra.mxu0 %v4709
    %6816 = vmatpush.bf16.msra.mxu0 %v4693
    %6817 = vmatpush.bf16.msra.mxu0 %v4677
    %6818 = vmatpush.bf16.msra.mxu0 %v4661
    %6819 = vmatpush.bf16.msra.mxu0 %v4645
    %6820 = vmatpush.bf16.msra.mxu0 %v4629
    %6821 = vmatpush.bf16.msra.mxu0 %v4613
    %6822 = vmatpush.bf16.msra.mxu0 %v4597
    %6823 = vmatmul.bf16.gmra.mxu0 %v1123
    %v6824 = vpop.f32.mrf.mxu0
    %v6825 = vadd.f32 %v6812, %v6824
    %v6826 = vpop.f32.mrf.mxu0
    %6827 = vdwg.mxu0
    %6828 = vmatpush.bf16.msra.mxu0 %v4837
    %6829 = vmatpush.bf16.msra.mxu0 %v4821
    %6830 = vmatpush.bf16.msra.mxu0 %v4805
    %6831 = vmatpush.bf16.msra.mxu0 %v4789
    %6832 = vmatpush.bf16.msra.mxu0 %v4773
    %6833 = vmatpush.bf16.msra.mxu0 %v4757
    %6834 = vmatpush.bf16.msra.mxu0 %v4741
    %6835 = vmatpush.bf16.msra.mxu0 %v4725
    %6836 = vmatmul.bf16.gmra.mxu0 %v1124
    %v6837 = vpop.f32.mrf.mxu0
    %v6838 = vadd.f32 %v6825, %v6837
    %v6839 = vpop.f32.mrf.mxu0
    %6840 = vdwg.mxu0
    %6841 = vmatpush.bf16.msra.mxu0 %v4965
    %6842 = vmatpush.bf16.msra.mxu0 %v4949
    %6843 = vmatpush.bf16.msra.mxu0 %v4933
    %6844 = vmatpush.bf16.msra.mxu0 %v4917
    %6845 = vmatpush.bf16.msra.mxu0 %v4901
    %6846 = vmatpush.bf16.msra.mxu0 %v4885
    %6847 = vmatpush.bf16.msra.mxu0 %v4869
    %6848 = vmatpush.bf16.msra.mxu0 %v4853
    %6849 = vmatmul.bf16.gmra.mxu0 %v1125
    %v6850 = vpop.f32.mrf.mxu0
    %v6851 = vadd.f32 %v6838, %v6850
    %v6852 = vpop.f32.mrf.mxu0
    %6853 = vdwg.mxu0
    %6854 = vmatpush.bf16.msra.mxu0 %v5093
    %6855 = vmatpush.bf16.msra.mxu0 %v5077
    %6856 = vmatpush.bf16.msra.mxu0 %v5061
    %6857 = vmatpush.bf16.msra.mxu0 %v5045
    %6858 = vmatpush.bf16.msra.mxu0 %v5029
    %6859 = vmatpush.bf16.msra.mxu0 %v5013
    %6860 = vmatpush.bf16.msra.mxu0 %v4997
    %6861 = vmatpush.bf16.msra.mxu0 %v4981
    %6862 = vmatmul.bf16.gmra.mxu0 %v1126
    %v6863 = vpop.f32.mrf.mxu0
    %v6864 = vadd.f32 %v6851, %v6863
    %v6865 = vpop.f32.mrf.mxu0
    %6866 = vdwg.mxu0
    %6867 = vmatpush.bf16.msra.mxu0 %v5221
    %6868 = vmatpush.bf16.msra.mxu0 %v5205
    %6869 = vmatpush.bf16.msra.mxu0 %v5189
    %6870 = vmatpush.bf16.msra.mxu0 %v5173
    %6871 = vmatpush.bf16.msra.mxu0 %v5157
    %6872 = vmatpush.bf16.msra.mxu0 %v5141
    %6873 = vmatpush.bf16.msra.mxu0 %v5125
    %6874 = vmatpush.bf16.msra.mxu0 %v5109
    %6875 = vmatmul.bf16.gmra.mxu0 %v1127
    %v6876 = vpop.f32.mrf.mxu0
    %v6877 = vadd.f32 %v6864, %v6876
    %v6878 = vpop.f32.mrf.mxu0
    %6879 = vdwg.mxu0
    %6880 = vmatpush.bf16.msra.mxu0 %v4326
    %6881 = vmatpush.bf16.msra.mxu0 %v4310
    %6882 = vmatpush.bf16.msra.mxu0 %v4294
    %6883 = vmatpush.bf16.msra.mxu0 %v4278
    %6884 = vmatpush.bf16.msra.mxu0 %v4262
    %6885 = vmatpush.bf16.msra.mxu0 %v4246
    %6886 = vmatpush.bf16.msra.mxu0 %v4230
    %6887 = vmatpush.bf16.msra.mxu0 %v4214
    %6888 = vmatmul.bf16.gmra.mxu0 %v1120
    %v6889 = vpop.f32.mrf.mxu0
    %v6890 = vadd.f32 0.0, %v6889
    %v6891 = vpop.f32.mrf.mxu0
    %6892 = vdwg.mxu0
    %6893 = vmatpush.bf16.msra.mxu0 %v4454
    %6894 = vmatpush.bf16.msra.mxu0 %v4438
    %6895 = vmatpush.bf16.msra.mxu0 %v4422
    %6896 = vmatpush.bf16.msra.mxu0 %v4406
    %6897 = vmatpush.bf16.msra.mxu0 %v4390
    %6898 = vmatpush.bf16.msra.mxu0 %v4374
    %6899 = vmatpush.bf16.msra.mxu0 %v4358
    %6900 = vmatpush.bf16.msra.mxu0 %v4342
    %6901 = vmatmul.bf16.gmra.mxu0 %v1121
    %v6902 = vpop.f32.mrf.mxu0
    %v6903 = vadd.f32 %v6890, %v6902
    %v6904 = vpop.f32.mrf.mxu0
    %6905 = vdwg.mxu0
    %6906 = vmatpush.bf16.msra.mxu0 %v4582
    %6907 = vmatpush.bf16.msra.mxu0 %v4566
    %6908 = vmatpush.bf16.msra.mxu0 %v4550
    %6909 = vmatpush.bf16.msra.mxu0 %v4534
    %6910 = vmatpush.bf16.msra.mxu0 %v4518
    %6911 = vmatpush.bf16.msra.mxu0 %v4502
    %6912 = vmatpush.bf16.msra.mxu0 %v4486
    %6913 = vmatpush.bf16.msra.mxu0 %v4470
    %6914 = vmatmul.bf16.gmra.mxu0 %v1122
    %v6915 = vpop.f32.mrf.mxu0
    %v6916 = vadd.f32 %v6903, %v6915
    %v6917 = vpop.f32.mrf.mxu0
    %6918 = vdwg.mxu0
    %6919 = vmatpush.bf16.msra.mxu0 %v4710
    %6920 = vmatpush.bf16.msra.mxu0 %v4694
    %6921 = vmatpush.bf16.msra.mxu0 %v4678
    %6922 = vmatpush.bf16.msra.mxu0 %v4662
    %6923 = vmatpush.bf16.msra.mxu0 %v4646
    %6924 = vmatpush.bf16.msra.mxu0 %v4630
    %6925 = vmatpush.bf16.msra.mxu0 %v4614
    %6926 = vmatpush.bf16.msra.mxu0 %v4598
    %6927 = vmatmul.bf16.gmra.mxu0 %v1123
    %v6928 = vpop.f32.mrf.mxu0
    %v6929 = vadd.f32 %v6916, %v6928
    %v6930 = vpop.f32.mrf.mxu0
    %6931 = vdwg.mxu0
    %6932 = vmatpush.bf16.msra.mxu0 %v4838
    %6933 = vmatpush.bf16.msra.mxu0 %v4822
    %6934 = vmatpush.bf16.msra.mxu0 %v4806
    %6935 = vmatpush.bf16.msra.mxu0 %v4790
    %6936 = vmatpush.bf16.msra.mxu0 %v4774
    %6937 = vmatpush.bf16.msra.mxu0 %v4758
    %6938 = vmatpush.bf16.msra.mxu0 %v4742
    %6939 = vmatpush.bf16.msra.mxu0 %v4726
    %6940 = vmatmul.bf16.gmra.mxu0 %v1124
    %v6941 = vpop.f32.mrf.mxu0
    %v6942 = vadd.f32 %v6929, %v6941
    %v6943 = vpop.f32.mrf.mxu0
    %6944 = vdwg.mxu0
    %6945 = vmatpush.bf16.msra.mxu0 %v4966
    %6946 = vmatpush.bf16.msra.mxu0 %v4950
    %6947 = vmatpush.bf16.msra.mxu0 %v4934
    %6948 = vmatpush.bf16.msra.mxu0 %v4918
    %6949 = vmatpush.bf16.msra.mxu0 %v4902
    %6950 = vmatpush.bf16.msra.mxu0 %v4886
    %6951 = vmatpush.bf16.msra.mxu0 %v4870
    %6952 = vmatpush.bf16.msra.mxu0 %v4854
    %6953 = vmatmul.bf16.gmra.mxu0 %v1125
    %v6954 = vpop.f32.mrf.mxu0
    %v6955 = vadd.f32 %v6942, %v6954
    %v6956 = vpop.f32.mrf.mxu0
    %6957 = vdwg.mxu0
    %6958 = vmatpush.bf16.msra.mxu0 %v5094
    %6959 = vmatpush.bf16.msra.mxu0 %v5078
    %6960 = vmatpush.bf16.msra.mxu0 %v5062
    %6961 = vmatpush.bf16.msra.mxu0 %v5046
    %6962 = vmatpush.bf16.msra.mxu0 %v5030
    %6963 = vmatpush.bf16.msra.mxu0 %v5014
    %6964 = vmatpush.bf16.msra.mxu0 %v4998
    %6965 = vmatpush.bf16.msra.mxu0 %v4982
    %6966 = vmatmul.bf16.gmra.mxu0 %v1126
    %v6967 = vpop.f32.mrf.mxu0
    %v6968 = vadd.f32 %v6955, %v6967
    %v6969 = vpop.f32.mrf.mxu0
    %6970 = vdwg.mxu0
    %6971 = vmatpush.bf16.msra.mxu0 %v5222
    %6972 = vmatpush.bf16.msra.mxu0 %v5206
    %6973 = vmatpush.bf16.msra.mxu0 %v5190
    %6974 = vmatpush.bf16.msra.mxu0 %v5174
    %6975 = vmatpush.bf16.msra.mxu0 %v5158
    %6976 = vmatpush.bf16.msra.mxu0 %v5142
    %6977 = vmatpush.bf16.msra.mxu0 %v5126
    %6978 = vmatpush.bf16.msra.mxu0 %v5110
    %6979 = vmatmul.bf16.gmra.mxu0 %v1127
    %v6980 = vpop.f32.mrf.mxu0
    %v6981 = vadd.f32 %v6968, %v6980
    %v6982 = vpop.f32.mrf.mxu0
    %6983 = vdwg.mxu0
    %6984 = vmatpush.bf16.msra.mxu0 %v4327
    %6985 = vmatpush.bf16.msra.mxu0 %v4311
    %6986 = vmatpush.bf16.msra.mxu0 %v4295
    %6987 = vmatpush.bf16.msra.mxu0 %v4279
    %6988 = vmatpush.bf16.msra.mxu0 %v4263
    %6989 = vmatpush.bf16.msra.mxu0 %v4247
    %6990 = vmatpush.bf16.msra.mxu0 %v4231
    %6991 = vmatpush.bf16.msra.mxu0 %v4215
    %6992 = vmatmul.bf16.gmra.mxu0 %v1120
    %v6993 = vpop.f32.mrf.mxu0
    %v6994 = vadd.f32 0.0, %v6993
    %v6995 = vpop.f32.mrf.mxu0
    %6996 = vdwg.mxu0
    %6997 = vmatpush.bf16.msra.mxu0 %v4455
    %6998 = vmatpush.bf16.msra.mxu0 %v4439
    %6999 = vmatpush.bf16.msra.mxu0 %v4423
    %7000 = vmatpush.bf16.msra.mxu0 %v4407
    %7001 = vmatpush.bf16.msra.mxu0 %v4391
    %7002 = vmatpush.bf16.msra.mxu0 %v4375
    %7003 = vmatpush.bf16.msra.mxu0 %v4359
    %7004 = vmatpush.bf16.msra.mxu0 %v4343
    %7005 = vmatmul.bf16.gmra.mxu0 %v1121
    %v7006 = vpop.f32.mrf.mxu0
    %v7007 = vadd.f32 %v6994, %v7006
    %v7008 = vpop.f32.mrf.mxu0
    %7009 = vdwg.mxu0
    %7010 = vmatpush.bf16.msra.mxu0 %v4583
    %7011 = vmatpush.bf16.msra.mxu0 %v4567
    %7012 = vmatpush.bf16.msra.mxu0 %v4551
    %7013 = vmatpush.bf16.msra.mxu0 %v4535
    %7014 = vmatpush.bf16.msra.mxu0 %v4519
    %7015 = vmatpush.bf16.msra.mxu0 %v4503
    %7016 = vmatpush.bf16.msra.mxu0 %v4487
    %7017 = vmatpush.bf16.msra.mxu0 %v4471
    %7018 = vmatmul.bf16.gmra.mxu0 %v1122
    %v7019 = vpop.f32.mrf.mxu0
    %v7020 = vadd.f32 %v7007, %v7019
    %v7021 = vpop.f32.mrf.mxu0
    %7022 = vdwg.mxu0
    %7023 = vmatpush.bf16.msra.mxu0 %v4711
    %7024 = vmatpush.bf16.msra.mxu0 %v4695
    %7025 = vmatpush.bf16.msra.mxu0 %v4679
    %7026 = vmatpush.bf16.msra.mxu0 %v4663
    %7027 = vmatpush.bf16.msra.mxu0 %v4647
    %7028 = vmatpush.bf16.msra.mxu0 %v4631
    %7029 = vmatpush.bf16.msra.mxu0 %v4615
    %7030 = vmatpush.bf16.msra.mxu0 %v4599
    %7031 = vmatmul.bf16.gmra.mxu0 %v1123
    %v7032 = vpop.f32.mrf.mxu0
    %v7033 = vadd.f32 %v7020, %v7032
    %v7034 = vpop.f32.mrf.mxu0
    %7035 = vdwg.mxu0
    %7036 = vmatpush.bf16.msra.mxu0 %v4839
    %7037 = vmatpush.bf16.msra.mxu0 %v4823
    %7038 = vmatpush.bf16.msra.mxu0 %v4807
    %7039 = vmatpush.bf16.msra.mxu0 %v4791
    %7040 = vmatpush.bf16.msra.mxu0 %v4775
    %7041 = vmatpush.bf16.msra.mxu0 %v4759
    %7042 = vmatpush.bf16.msra.mxu0 %v4743
    %7043 = vmatpush.bf16.msra.mxu0 %v4727
    %7044 = vmatmul.bf16.gmra.mxu0 %v1124
    %v7045 = vpop.f32.mrf.mxu0
    %v7046 = vadd.f32 %v7033, %v7045
    %v7047 = vpop.f32.mrf.mxu0
    %7048 = vdwg.mxu0
    %7049 = vmatpush.bf16.msra.mxu0 %v4967
    %7050 = vmatpush.bf16.msra.mxu0 %v4951
    %7051 = vmatpush.bf16.msra.mxu0 %v4935
    %7052 = vmatpush.bf16.msra.mxu0 %v4919
    %7053 = vmatpush.bf16.msra.mxu0 %v4903
    %7054 = vmatpush.bf16.msra.mxu0 %v4887
    %7055 = vmatpush.bf16.msra.mxu0 %v4871
    %7056 = vmatpush.bf16.msra.mxu0 %v4855
    %7057 = vmatmul.bf16.gmra.mxu0 %v1125
    %v7058 = vpop.f32.mrf.mxu0
    %v7059 = vadd.f32 %v7046, %v7058
    %v7060 = vpop.f32.mrf.mxu0
    %7061 = vdwg.mxu0
    %7062 = vmatpush.bf16.msra.mxu0 %v5095
    %7063 = vmatpush.bf16.msra.mxu0 %v5079
    %7064 = vmatpush.bf16.msra.mxu0 %v5063
    %7065 = vmatpush.bf16.msra.mxu0 %v5047
    %7066 = vmatpush.bf16.msra.mxu0 %v5031
    %7067 = vmatpush.bf16.msra.mxu0 %v5015
    %7068 = vmatpush.bf16.msra.mxu0 %v4999
    %7069 = vmatpush.bf16.msra.mxu0 %v4983
    %7070 = vmatmul.bf16.gmra.mxu0 %v1126
    %v7071 = vpop.f32.mrf.mxu0
    %v7072 = vadd.f32 %v7059, %v7071
    %v7073 = vpop.f32.mrf.mxu0
    %7074 = vdwg.mxu0
    %7075 = vmatpush.bf16.msra.mxu0 %v5223
    %7076 = vmatpush.bf16.msra.mxu0 %v5207
    %7077 = vmatpush.bf16.msra.mxu0 %v5191
    %7078 = vmatpush.bf16.msra.mxu0 %v5175
    %7079 = vmatpush.bf16.msra.mxu0 %v5159
    %7080 = vmatpush.bf16.msra.mxu0 %v5143
    %7081 = vmatpush.bf16.msra.mxu0 %v5127
    %7082 = vmatpush.bf16.msra.mxu0 %v5111
    %7083 = vmatmul.bf16.gmra.mxu0 %v1127
    %v7084 = vpop.f32.mrf.mxu0
    %v7085 = vadd.f32 %v7072, %v7084
    %v7086 = vpop.f32.mrf.mxu0
    %7087 = vdwg.mxu0
    %7088 = vmatpush.bf16.msra.mxu0 %v4328
    %7089 = vmatpush.bf16.msra.mxu0 %v4312
    %7090 = vmatpush.bf16.msra.mxu0 %v4296
    %7091 = vmatpush.bf16.msra.mxu0 %v4280
    %7092 = vmatpush.bf16.msra.mxu0 %v4264
    %7093 = vmatpush.bf16.msra.mxu0 %v4248
    %7094 = vmatpush.bf16.msra.mxu0 %v4232
    %7095 = vmatpush.bf16.msra.mxu0 %v4216
    %7096 = vmatmul.bf16.gmra.mxu0 %v1120
    %v7097 = vpop.f32.mrf.mxu0
    %v7098 = vadd.f32 0.0, %v7097
    %v7099 = vpop.f32.mrf.mxu0
    %7100 = vdwg.mxu0
    %7101 = vmatpush.bf16.msra.mxu0 %v4456
    %7102 = vmatpush.bf16.msra.mxu0 %v4440
    %7103 = vmatpush.bf16.msra.mxu0 %v4424
    %7104 = vmatpush.bf16.msra.mxu0 %v4408
    %7105 = vmatpush.bf16.msra.mxu0 %v4392
    %7106 = vmatpush.bf16.msra.mxu0 %v4376
    %7107 = vmatpush.bf16.msra.mxu0 %v4360
    %7108 = vmatpush.bf16.msra.mxu0 %v4344
    %7109 = vmatmul.bf16.gmra.mxu0 %v1121
    %v7110 = vpop.f32.mrf.mxu0
    %v7111 = vadd.f32 %v7098, %v7110
    %v7112 = vpop.f32.mrf.mxu0
    %7113 = vdwg.mxu0
    %7114 = vmatpush.bf16.msra.mxu0 %v4584
    %7115 = vmatpush.bf16.msra.mxu0 %v4568
    %7116 = vmatpush.bf16.msra.mxu0 %v4552
    %7117 = vmatpush.bf16.msra.mxu0 %v4536
    %7118 = vmatpush.bf16.msra.mxu0 %v4520
    %7119 = vmatpush.bf16.msra.mxu0 %v4504
    %7120 = vmatpush.bf16.msra.mxu0 %v4488
    %7121 = vmatpush.bf16.msra.mxu0 %v4472
    %7122 = vmatmul.bf16.gmra.mxu0 %v1122
    %v7123 = vpop.f32.mrf.mxu0
    %v7124 = vadd.f32 %v7111, %v7123
    %v7125 = vpop.f32.mrf.mxu0
    %7126 = vdwg.mxu0
    %7127 = vmatpush.bf16.msra.mxu0 %v4712
    %7128 = vmatpush.bf16.msra.mxu0 %v4696
    %7129 = vmatpush.bf16.msra.mxu0 %v4680
    %7130 = vmatpush.bf16.msra.mxu0 %v4664
    %7131 = vmatpush.bf16.msra.mxu0 %v4648
    %7132 = vmatpush.bf16.msra.mxu0 %v4632
    %7133 = vmatpush.bf16.msra.mxu0 %v4616
    %7134 = vmatpush.bf16.msra.mxu0 %v4600
    %7135 = vmatmul.bf16.gmra.mxu0 %v1123
    %v7136 = vpop.f32.mrf.mxu0
    %v7137 = vadd.f32 %v7124, %v7136
    %v7138 = vpop.f32.mrf.mxu0
    %7139 = vdwg.mxu0
    %7140 = vmatpush.bf16.msra.mxu0 %v4840
    %7141 = vmatpush.bf16.msra.mxu0 %v4824
    %7142 = vmatpush.bf16.msra.mxu0 %v4808
    %7143 = vmatpush.bf16.msra.mxu0 %v4792
    %7144 = vmatpush.bf16.msra.mxu0 %v4776
    %7145 = vmatpush.bf16.msra.mxu0 %v4760
    %7146 = vmatpush.bf16.msra.mxu0 %v4744
    %7147 = vmatpush.bf16.msra.mxu0 %v4728
    %7148 = vmatmul.bf16.gmra.mxu0 %v1124
    %v7149 = vpop.f32.mrf.mxu0
    %v7150 = vadd.f32 %v7137, %v7149
    %v7151 = vpop.f32.mrf.mxu0
    %7152 = vdwg.mxu0
    %7153 = vmatpush.bf16.msra.mxu0 %v4968
    %7154 = vmatpush.bf16.msra.mxu0 %v4952
    %7155 = vmatpush.bf16.msra.mxu0 %v4936
    %7156 = vmatpush.bf16.msra.mxu0 %v4920
    %7157 = vmatpush.bf16.msra.mxu0 %v4904
    %7158 = vmatpush.bf16.msra.mxu0 %v4888
    %7159 = vmatpush.bf16.msra.mxu0 %v4872
    %7160 = vmatpush.bf16.msra.mxu0 %v4856
    %7161 = vmatmul.bf16.gmra.mxu0 %v1125
    %v7162 = vpop.f32.mrf.mxu0
    %v7163 = vadd.f32 %v7150, %v7162
    %v7164 = vpop.f32.mrf.mxu0
    %7165 = vdwg.mxu0
    %7166 = vmatpush.bf16.msra.mxu0 %v5096
    %7167 = vmatpush.bf16.msra.mxu0 %v5080
    %7168 = vmatpush.bf16.msra.mxu0 %v5064
    %7169 = vmatpush.bf16.msra.mxu0 %v5048
    %7170 = vmatpush.bf16.msra.mxu0 %v5032
    %7171 = vmatpush.bf16.msra.mxu0 %v5016
    %7172 = vmatpush.bf16.msra.mxu0 %v5000
    %7173 = vmatpush.bf16.msra.mxu0 %v4984
    %7174 = vmatmul.bf16.gmra.mxu0 %v1126
    %v7175 = vpop.f32.mrf.mxu0
    %v7176 = vadd.f32 %v7163, %v7175
    %v7177 = vpop.f32.mrf.mxu0
    %7178 = vdwg.mxu0
    %7179 = vmatpush.bf16.msra.mxu0 %v5224
    %7180 = vmatpush.bf16.msra.mxu0 %v5208
    %7181 = vmatpush.bf16.msra.mxu0 %v5192
    %7182 = vmatpush.bf16.msra.mxu0 %v5176
    %7183 = vmatpush.bf16.msra.mxu0 %v5160
    %7184 = vmatpush.bf16.msra.mxu0 %v5144
    %7185 = vmatpush.bf16.msra.mxu0 %v5128
    %7186 = vmatpush.bf16.msra.mxu0 %v5112
    %7187 = vmatmul.bf16.gmra.mxu0 %v1127
    %v7188 = vpop.f32.mrf.mxu0
    %v7189 = vadd.f32 %v7176, %v7188
    %v7190 = vpop.f32.mrf.mxu0
    %7191 = vdwg.mxu0
    %7192 = vmatpush.bf16.msra.mxu0 %v4329
    %7193 = vmatpush.bf16.msra.mxu0 %v4313
    %7194 = vmatpush.bf16.msra.mxu0 %v4297
    %7195 = vmatpush.bf16.msra.mxu0 %v4281
    %7196 = vmatpush.bf16.msra.mxu0 %v4265
    %7197 = vmatpush.bf16.msra.mxu0 %v4249
    %7198 = vmatpush.bf16.msra.mxu0 %v4233
    %7199 = vmatpush.bf16.msra.mxu0 %v4217
    %7200 = vmatmul.bf16.gmra.mxu0 %v1120
    %v7201 = vpop.f32.mrf.mxu0
    %v7202 = vadd.f32 0.0, %v7201
    %v7203 = vpop.f32.mrf.mxu0
    %7204 = vdwg.mxu0
    %7205 = vmatpush.bf16.msra.mxu0 %v4457
    %7206 = vmatpush.bf16.msra.mxu0 %v4441
    %7207 = vmatpush.bf16.msra.mxu0 %v4425
    %7208 = vmatpush.bf16.msra.mxu0 %v4409
    %7209 = vmatpush.bf16.msra.mxu0 %v4393
    %7210 = vmatpush.bf16.msra.mxu0 %v4377
    %7211 = vmatpush.bf16.msra.mxu0 %v4361
    %7212 = vmatpush.bf16.msra.mxu0 %v4345
    %7213 = vmatmul.bf16.gmra.mxu0 %v1121
    %v7214 = vpop.f32.mrf.mxu0
    %v7215 = vadd.f32 %v7202, %v7214
    %v7216 = vpop.f32.mrf.mxu0
    %7217 = vdwg.mxu0
    %7218 = vmatpush.bf16.msra.mxu0 %v4585
    %7219 = vmatpush.bf16.msra.mxu0 %v4569
    %7220 = vmatpush.bf16.msra.mxu0 %v4553
    %7221 = vmatpush.bf16.msra.mxu0 %v4537
    %7222 = vmatpush.bf16.msra.mxu0 %v4521
    %7223 = vmatpush.bf16.msra.mxu0 %v4505
    %7224 = vmatpush.bf16.msra.mxu0 %v4489
    %7225 = vmatpush.bf16.msra.mxu0 %v4473
    %7226 = vmatmul.bf16.gmra.mxu0 %v1122
    %v7227 = vpop.f32.mrf.mxu0
    %v7228 = vadd.f32 %v7215, %v7227
    %v7229 = vpop.f32.mrf.mxu0
    %7230 = vdwg.mxu0
    %7231 = vmatpush.bf16.msra.mxu0 %v4713
    %7232 = vmatpush.bf16.msra.mxu0 %v4697
    %7233 = vmatpush.bf16.msra.mxu0 %v4681
    %7234 = vmatpush.bf16.msra.mxu0 %v4665
    %7235 = vmatpush.bf16.msra.mxu0 %v4649
    %7236 = vmatpush.bf16.msra.mxu0 %v4633
    %7237 = vmatpush.bf16.msra.mxu0 %v4617
    %7238 = vmatpush.bf16.msra.mxu0 %v4601
    %7239 = vmatmul.bf16.gmra.mxu0 %v1123
    %v7240 = vpop.f32.mrf.mxu0
    %v7241 = vadd.f32 %v7228, %v7240
    %v7242 = vpop.f32.mrf.mxu0
    %7243 = vdwg.mxu0
    %7244 = vmatpush.bf16.msra.mxu0 %v4841
    %7245 = vmatpush.bf16.msra.mxu0 %v4825
    %7246 = vmatpush.bf16.msra.mxu0 %v4809
    %7247 = vmatpush.bf16.msra.mxu0 %v4793
    %7248 = vmatpush.bf16.msra.mxu0 %v4777
    %7249 = vmatpush.bf16.msra.mxu0 %v4761
    %7250 = vmatpush.bf16.msra.mxu0 %v4745
    %7251 = vmatpush.bf16.msra.mxu0 %v4729
    %7252 = vmatmul.bf16.gmra.mxu0 %v1124
    %v7253 = vpop.f32.mrf.mxu0
    %v7254 = vadd.f32 %v7241, %v7253
    %v7255 = vpop.f32.mrf.mxu0
    %7256 = vdwg.mxu0
    %7257 = vmatpush.bf16.msra.mxu0 %v4969
    %7258 = vmatpush.bf16.msra.mxu0 %v4953
    %7259 = vmatpush.bf16.msra.mxu0 %v4937
    %7260 = vmatpush.bf16.msra.mxu0 %v4921
    %7261 = vmatpush.bf16.msra.mxu0 %v4905
    %7262 = vmatpush.bf16.msra.mxu0 %v4889
    %7263 = vmatpush.bf16.msra.mxu0 %v4873
    %7264 = vmatpush.bf16.msra.mxu0 %v4857
    %7265 = vmatmul.bf16.gmra.mxu0 %v1125
    %v7266 = vpop.f32.mrf.mxu0
    %v7267 = vadd.f32 %v7254, %v7266
    %v7268 = vpop.f32.mrf.mxu0
    %7269 = vdwg.mxu0
    %7270 = vmatpush.bf16.msra.mxu0 %v5097
    %7271 = vmatpush.bf16.msra.mxu0 %v5081
    %7272 = vmatpush.bf16.msra.mxu0 %v5065
    %7273 = vmatpush.bf16.msra.mxu0 %v5049
    %7274 = vmatpush.bf16.msra.mxu0 %v5033
    %7275 = vmatpush.bf16.msra.mxu0 %v5017
    %7276 = vmatpush.bf16.msra.mxu0 %v5001
    %7277 = vmatpush.bf16.msra.mxu0 %v4985
    %7278 = vmatmul.bf16.gmra.mxu0 %v1126
    %v7279 = vpop.f32.mrf.mxu0
    %v7280 = vadd.f32 %v7267, %v7279
    %v7281 = vpop.f32.mrf.mxu0
    %7282 = vdwg.mxu0
    %7283 = vmatpush.bf16.msra.mxu0 %v5225
    %7284 = vmatpush.bf16.msra.mxu0 %v5209
    %7285 = vmatpush.bf16.msra.mxu0 %v5193
    %7286 = vmatpush.bf16.msra.mxu0 %v5177
    %7287 = vmatpush.bf16.msra.mxu0 %v5161
    %7288 = vmatpush.bf16.msra.mxu0 %v5145
    %7289 = vmatpush.bf16.msra.mxu0 %v5129
    %7290 = vmatpush.bf16.msra.mxu0 %v5113
    %7291 = vmatmul.bf16.gmra.mxu0 %v1127
    %v7292 = vpop.f32.mrf.mxu0
    %v7293 = vadd.f32 %v7280, %v7292
    %v7294 = vpop.f32.mrf.mxu0
    %7295 = vdwg.mxu0
    %7296 = vmatpush.bf16.msra.mxu0 %v4330
    %7297 = vmatpush.bf16.msra.mxu0 %v4314
    %7298 = vmatpush.bf16.msra.mxu0 %v4298
    %7299 = vmatpush.bf16.msra.mxu0 %v4282
    %7300 = vmatpush.bf16.msra.mxu0 %v4266
    %7301 = vmatpush.bf16.msra.mxu0 %v4250
    %7302 = vmatpush.bf16.msra.mxu0 %v4234
    %7303 = vmatpush.bf16.msra.mxu0 %v4218
    %7304 = vmatmul.bf16.gmra.mxu0 %v1120
    %v7305 = vpop.f32.mrf.mxu0
    %v7306 = vadd.f32 0.0, %v7305
    %v7307 = vpop.f32.mrf.mxu0
    %7308 = vdwg.mxu0
    %7309 = vmatpush.bf16.msra.mxu0 %v4458
    %7310 = vmatpush.bf16.msra.mxu0 %v4442
    %7311 = vmatpush.bf16.msra.mxu0 %v4426
    %7312 = vmatpush.bf16.msra.mxu0 %v4410
    %7313 = vmatpush.bf16.msra.mxu0 %v4394
    %7314 = vmatpush.bf16.msra.mxu0 %v4378
    %7315 = vmatpush.bf16.msra.mxu0 %v4362
    %7316 = vmatpush.bf16.msra.mxu0 %v4346
    %7317 = vmatmul.bf16.gmra.mxu0 %v1121
    %v7318 = vpop.f32.mrf.mxu0
    %v7319 = vadd.f32 %v7306, %v7318
    %v7320 = vpop.f32.mrf.mxu0
    %7321 = vdwg.mxu0
    %7322 = vmatpush.bf16.msra.mxu0 %v4586
    %7323 = vmatpush.bf16.msra.mxu0 %v4570
    %7324 = vmatpush.bf16.msra.mxu0 %v4554
    %7325 = vmatpush.bf16.msra.mxu0 %v4538
    %7326 = vmatpush.bf16.msra.mxu0 %v4522
    %7327 = vmatpush.bf16.msra.mxu0 %v4506
    %7328 = vmatpush.bf16.msra.mxu0 %v4490
    %7329 = vmatpush.bf16.msra.mxu0 %v4474
    %7330 = vmatmul.bf16.gmra.mxu0 %v1122
    %v7331 = vpop.f32.mrf.mxu0
    %v7332 = vadd.f32 %v7319, %v7331
    %v7333 = vpop.f32.mrf.mxu0
    %7334 = vdwg.mxu0
    %7335 = vmatpush.bf16.msra.mxu0 %v4714
    %7336 = vmatpush.bf16.msra.mxu0 %v4698
    %7337 = vmatpush.bf16.msra.mxu0 %v4682
    %7338 = vmatpush.bf16.msra.mxu0 %v4666
    %7339 = vmatpush.bf16.msra.mxu0 %v4650
    %7340 = vmatpush.bf16.msra.mxu0 %v4634
    %7341 = vmatpush.bf16.msra.mxu0 %v4618
    %7342 = vmatpush.bf16.msra.mxu0 %v4602
    %7343 = vmatmul.bf16.gmra.mxu0 %v1123
    %v7344 = vpop.f32.mrf.mxu0
    %v7345 = vadd.f32 %v7332, %v7344
    %v7346 = vpop.f32.mrf.mxu0
    %7347 = vdwg.mxu0
    %7348 = vmatpush.bf16.msra.mxu0 %v4842
    %7349 = vmatpush.bf16.msra.mxu0 %v4826
    %7350 = vmatpush.bf16.msra.mxu0 %v4810
    %7351 = vmatpush.bf16.msra.mxu0 %v4794
    %7352 = vmatpush.bf16.msra.mxu0 %v4778
    %7353 = vmatpush.bf16.msra.mxu0 %v4762
    %7354 = vmatpush.bf16.msra.mxu0 %v4746
    %7355 = vmatpush.bf16.msra.mxu0 %v4730
    %7356 = vmatmul.bf16.gmra.mxu0 %v1124
    %v7357 = vpop.f32.mrf.mxu0
    %v7358 = vadd.f32 %v7345, %v7357
    %v7359 = vpop.f32.mrf.mxu0
    %7360 = vdwg.mxu0
    %7361 = vmatpush.bf16.msra.mxu0 %v4970
    %7362 = vmatpush.bf16.msra.mxu0 %v4954
    %7363 = vmatpush.bf16.msra.mxu0 %v4938
    %7364 = vmatpush.bf16.msra.mxu0 %v4922
    %7365 = vmatpush.bf16.msra.mxu0 %v4906
    %7366 = vmatpush.bf16.msra.mxu0 %v4890
    %7367 = vmatpush.bf16.msra.mxu0 %v4874
    %7368 = vmatpush.bf16.msra.mxu0 %v4858
    %7369 = vmatmul.bf16.gmra.mxu0 %v1125
    %v7370 = vpop.f32.mrf.mxu0
    %v7371 = vadd.f32 %v7358, %v7370
    %v7372 = vpop.f32.mrf.mxu0
    %7373 = vdwg.mxu0
    %7374 = vmatpush.bf16.msra.mxu0 %v5098
    %7375 = vmatpush.bf16.msra.mxu0 %v5082
    %7376 = vmatpush.bf16.msra.mxu0 %v5066
    %7377 = vmatpush.bf16.msra.mxu0 %v5050
    %7378 = vmatpush.bf16.msra.mxu0 %v5034
    %7379 = vmatpush.bf16.msra.mxu0 %v5018
    %7380 = vmatpush.bf16.msra.mxu0 %v5002
    %7381 = vmatpush.bf16.msra.mxu0 %v4986
    %7382 = vmatmul.bf16.gmra.mxu0 %v1126
    %v7383 = vpop.f32.mrf.mxu0
    %v7384 = vadd.f32 %v7371, %v7383
    %v7385 = vpop.f32.mrf.mxu0
    %7386 = vdwg.mxu0
    %7387 = vmatpush.bf16.msra.mxu0 %v5226
    %7388 = vmatpush.bf16.msra.mxu0 %v5210
    %7389 = vmatpush.bf16.msra.mxu0 %v5194
    %7390 = vmatpush.bf16.msra.mxu0 %v5178
    %7391 = vmatpush.bf16.msra.mxu0 %v5162
    %7392 = vmatpush.bf16.msra.mxu0 %v5146
    %7393 = vmatpush.bf16.msra.mxu0 %v5130
    %7394 = vmatpush.bf16.msra.mxu0 %v5114
    %7395 = vmatmul.bf16.gmra.mxu0 %v1127
    %v7396 = vpop.f32.mrf.mxu0
    %v7397 = vadd.f32 %v7384, %v7396
    %v7398 = vpop.f32.mrf.mxu0
    %7399 = vdwg.mxu0
    %7400 = vmatpush.bf16.msra.mxu0 %v4331
    %7401 = vmatpush.bf16.msra.mxu0 %v4315
    %7402 = vmatpush.bf16.msra.mxu0 %v4299
    %7403 = vmatpush.bf16.msra.mxu0 %v4283
    %7404 = vmatpush.bf16.msra.mxu0 %v4267
    %7405 = vmatpush.bf16.msra.mxu0 %v4251
    %7406 = vmatpush.bf16.msra.mxu0 %v4235
    %7407 = vmatpush.bf16.msra.mxu0 %v4219
    %7408 = vmatmul.bf16.gmra.mxu0 %v1120
    %v7409 = vpop.f32.mrf.mxu0
    %v7410 = vadd.f32 0.0, %v7409
    %v7411 = vpop.f32.mrf.mxu0
    %7412 = vdwg.mxu0
    %7413 = vmatpush.bf16.msra.mxu0 %v4459
    %7414 = vmatpush.bf16.msra.mxu0 %v4443
    %7415 = vmatpush.bf16.msra.mxu0 %v4427
    %7416 = vmatpush.bf16.msra.mxu0 %v4411
    %7417 = vmatpush.bf16.msra.mxu0 %v4395
    %7418 = vmatpush.bf16.msra.mxu0 %v4379
    %7419 = vmatpush.bf16.msra.mxu0 %v4363
    %7420 = vmatpush.bf16.msra.mxu0 %v4347
    %7421 = vmatmul.bf16.gmra.mxu0 %v1121
    %v7422 = vpop.f32.mrf.mxu0
    %v7423 = vadd.f32 %v7410, %v7422
    %v7424 = vpop.f32.mrf.mxu0
    %7425 = vdwg.mxu0
    %7426 = vmatpush.bf16.msra.mxu0 %v4587
    %7427 = vmatpush.bf16.msra.mxu0 %v4571
    %7428 = vmatpush.bf16.msra.mxu0 %v4555
    %7429 = vmatpush.bf16.msra.mxu0 %v4539
    %7430 = vmatpush.bf16.msra.mxu0 %v4523
    %7431 = vmatpush.bf16.msra.mxu0 %v4507
    %7432 = vmatpush.bf16.msra.mxu0 %v4491
    %7433 = vmatpush.bf16.msra.mxu0 %v4475
    %7434 = vmatmul.bf16.gmra.mxu0 %v1122
    %v7435 = vpop.f32.mrf.mxu0
    %v7436 = vadd.f32 %v7423, %v7435
    %v7437 = vpop.f32.mrf.mxu0
    %7438 = vdwg.mxu0
    %7439 = vmatpush.bf16.msra.mxu0 %v4715
    %7440 = vmatpush.bf16.msra.mxu0 %v4699
    %7441 = vmatpush.bf16.msra.mxu0 %v4683
    %7442 = vmatpush.bf16.msra.mxu0 %v4667
    %7443 = vmatpush.bf16.msra.mxu0 %v4651
    %7444 = vmatpush.bf16.msra.mxu0 %v4635
    %7445 = vmatpush.bf16.msra.mxu0 %v4619
    %7446 = vmatpush.bf16.msra.mxu0 %v4603
    %7447 = vmatmul.bf16.gmra.mxu0 %v1123
    %v7448 = vpop.f32.mrf.mxu0
    %v7449 = vadd.f32 %v7436, %v7448
    %v7450 = vpop.f32.mrf.mxu0
    %7451 = vdwg.mxu0
    %7452 = vmatpush.bf16.msra.mxu0 %v4843
    %7453 = vmatpush.bf16.msra.mxu0 %v4827
    %7454 = vmatpush.bf16.msra.mxu0 %v4811
    %7455 = vmatpush.bf16.msra.mxu0 %v4795
    %7456 = vmatpush.bf16.msra.mxu0 %v4779
    %7457 = vmatpush.bf16.msra.mxu0 %v4763
    %7458 = vmatpush.bf16.msra.mxu0 %v4747
    %7459 = vmatpush.bf16.msra.mxu0 %v4731
    %7460 = vmatmul.bf16.gmra.mxu0 %v1124
    %v7461 = vpop.f32.mrf.mxu0
    %v7462 = vadd.f32 %v7449, %v7461
    %v7463 = vpop.f32.mrf.mxu0
    %7464 = vdwg.mxu0
    %7465 = vmatpush.bf16.msra.mxu0 %v4971
    %7466 = vmatpush.bf16.msra.mxu0 %v4955
    %7467 = vmatpush.bf16.msra.mxu0 %v4939
    %7468 = vmatpush.bf16.msra.mxu0 %v4923
    %7469 = vmatpush.bf16.msra.mxu0 %v4907
    %7470 = vmatpush.bf16.msra.mxu0 %v4891
    %7471 = vmatpush.bf16.msra.mxu0 %v4875
    %7472 = vmatpush.bf16.msra.mxu0 %v4859
    %7473 = vmatmul.bf16.gmra.mxu0 %v1125
    %v7474 = vpop.f32.mrf.mxu0
    %v7475 = vadd.f32 %v7462, %v7474
    %v7476 = vpop.f32.mrf.mxu0
    %7477 = vdwg.mxu0
    %7478 = vmatpush.bf16.msra.mxu0 %v5099
    %7479 = vmatpush.bf16.msra.mxu0 %v5083
    %7480 = vmatpush.bf16.msra.mxu0 %v5067
    %7481 = vmatpush.bf16.msra.mxu0 %v5051
    %7482 = vmatpush.bf16.msra.mxu0 %v5035
    %7483 = vmatpush.bf16.msra.mxu0 %v5019
    %7484 = vmatpush.bf16.msra.mxu0 %v5003
    %7485 = vmatpush.bf16.msra.mxu0 %v4987
    %7486 = vmatmul.bf16.gmra.mxu0 %v1126
    %v7487 = vpop.f32.mrf.mxu0
    %v7488 = vadd.f32 %v7475, %v7487
    %v7489 = vpop.f32.mrf.mxu0
    %7490 = vdwg.mxu0
    %7491 = vmatpush.bf16.msra.mxu0 %v5227
    %7492 = vmatpush.bf16.msra.mxu0 %v5211
    %7493 = vmatpush.bf16.msra.mxu0 %v5195
    %7494 = vmatpush.bf16.msra.mxu0 %v5179
    %7495 = vmatpush.bf16.msra.mxu0 %v5163
    %7496 = vmatpush.bf16.msra.mxu0 %v5147
    %7497 = vmatpush.bf16.msra.mxu0 %v5131
    %7498 = vmatpush.bf16.msra.mxu0 %v5115
    %7499 = vmatmul.bf16.gmra.mxu0 %v1127
    %v7500 = vpop.f32.mrf.mxu0
    %v7501 = vadd.f32 %v7488, %v7500
    %v7502 = vpop.f32.mrf.mxu0
    %7503 = vdwg.mxu0
    %7504 = vmatpush.bf16.msra.mxu0 %v4332
    %7505 = vmatpush.bf16.msra.mxu0 %v4316
    %7506 = vmatpush.bf16.msra.mxu0 %v4300
    %7507 = vmatpush.bf16.msra.mxu0 %v4284
    %7508 = vmatpush.bf16.msra.mxu0 %v4268
    %7509 = vmatpush.bf16.msra.mxu0 %v4252
    %7510 = vmatpush.bf16.msra.mxu0 %v4236
    %7511 = vmatpush.bf16.msra.mxu0 %v4220
    %7512 = vmatmul.bf16.gmra.mxu0 %v1120
    %v7513 = vpop.f32.mrf.mxu0
    %v7514 = vadd.f32 0.0, %v7513
    %v7515 = vpop.f32.mrf.mxu0
    %7516 = vdwg.mxu0
    %7517 = vmatpush.bf16.msra.mxu0 %v4460
    %7518 = vmatpush.bf16.msra.mxu0 %v4444
    %7519 = vmatpush.bf16.msra.mxu0 %v4428
    %7520 = vmatpush.bf16.msra.mxu0 %v4412
    %7521 = vmatpush.bf16.msra.mxu0 %v4396
    %7522 = vmatpush.bf16.msra.mxu0 %v4380
    %7523 = vmatpush.bf16.msra.mxu0 %v4364
    %7524 = vmatpush.bf16.msra.mxu0 %v4348
    %7525 = vmatmul.bf16.gmra.mxu0 %v1121
    %v7526 = vpop.f32.mrf.mxu0
    %v7527 = vadd.f32 %v7514, %v7526
    %v7528 = vpop.f32.mrf.mxu0
    %7529 = vdwg.mxu0
    %7530 = vmatpush.bf16.msra.mxu0 %v4588
    %7531 = vmatpush.bf16.msra.mxu0 %v4572
    %7532 = vmatpush.bf16.msra.mxu0 %v4556
    %7533 = vmatpush.bf16.msra.mxu0 %v4540
    %7534 = vmatpush.bf16.msra.mxu0 %v4524
    %7535 = vmatpush.bf16.msra.mxu0 %v4508
    %7536 = vmatpush.bf16.msra.mxu0 %v4492
    %7537 = vmatpush.bf16.msra.mxu0 %v4476
    %7538 = vmatmul.bf16.gmra.mxu0 %v1122
    %v7539 = vpop.f32.mrf.mxu0
    %v7540 = vadd.f32 %v7527, %v7539
    %v7541 = vpop.f32.mrf.mxu0
    %7542 = vdwg.mxu0
    %7543 = vmatpush.bf16.msra.mxu0 %v4716
    %7544 = vmatpush.bf16.msra.mxu0 %v4700
    %7545 = vmatpush.bf16.msra.mxu0 %v4684
    %7546 = vmatpush.bf16.msra.mxu0 %v4668
    %7547 = vmatpush.bf16.msra.mxu0 %v4652
    %7548 = vmatpush.bf16.msra.mxu0 %v4636
    %7549 = vmatpush.bf16.msra.mxu0 %v4620
    %7550 = vmatpush.bf16.msra.mxu0 %v4604
    %7551 = vmatmul.bf16.gmra.mxu0 %v1123
    %v7552 = vpop.f32.mrf.mxu0
    %v7553 = vadd.f32 %v7540, %v7552
    %v7554 = vpop.f32.mrf.mxu0
    %7555 = vdwg.mxu0
    %7556 = vmatpush.bf16.msra.mxu0 %v4844
    %7557 = vmatpush.bf16.msra.mxu0 %v4828
    %7558 = vmatpush.bf16.msra.mxu0 %v4812
    %7559 = vmatpush.bf16.msra.mxu0 %v4796
    %7560 = vmatpush.bf16.msra.mxu0 %v4780
    %7561 = vmatpush.bf16.msra.mxu0 %v4764
    %7562 = vmatpush.bf16.msra.mxu0 %v4748
    %7563 = vmatpush.bf16.msra.mxu0 %v4732
    %7564 = vmatmul.bf16.gmra.mxu0 %v1124
    %v7565 = vpop.f32.mrf.mxu0
    %v7566 = vadd.f32 %v7553, %v7565
    %v7567 = vpop.f32.mrf.mxu0
    %7568 = vdwg.mxu0
    %7569 = vmatpush.bf16.msra.mxu0 %v4972
    %7570 = vmatpush.bf16.msra.mxu0 %v4956
    %7571 = vmatpush.bf16.msra.mxu0 %v4940
    %7572 = vmatpush.bf16.msra.mxu0 %v4924
    %7573 = vmatpush.bf16.msra.mxu0 %v4908
    %7574 = vmatpush.bf16.msra.mxu0 %v4892
    %7575 = vmatpush.bf16.msra.mxu0 %v4876
    %7576 = vmatpush.bf16.msra.mxu0 %v4860
    %7577 = vmatmul.bf16.gmra.mxu0 %v1125
    %v7578 = vpop.f32.mrf.mxu0
    %v7579 = vadd.f32 %v7566, %v7578
    %v7580 = vpop.f32.mrf.mxu0
    %7581 = vdwg.mxu0
    %7582 = vmatpush.bf16.msra.mxu0 %v5100
    %7583 = vmatpush.bf16.msra.mxu0 %v5084
    %7584 = vmatpush.bf16.msra.mxu0 %v5068
    %7585 = vmatpush.bf16.msra.mxu0 %v5052
    %7586 = vmatpush.bf16.msra.mxu0 %v5036
    %7587 = vmatpush.bf16.msra.mxu0 %v5020
    %7588 = vmatpush.bf16.msra.mxu0 %v5004
    %7589 = vmatpush.bf16.msra.mxu0 %v4988
    %7590 = vmatmul.bf16.gmra.mxu0 %v1126
    %v7591 = vpop.f32.mrf.mxu0
    %v7592 = vadd.f32 %v7579, %v7591
    %v7593 = vpop.f32.mrf.mxu0
    %7594 = vdwg.mxu0
    %7595 = vmatpush.bf16.msra.mxu0 %v5228
    %7596 = vmatpush.bf16.msra.mxu0 %v5212
    %7597 = vmatpush.bf16.msra.mxu0 %v5196
    %7598 = vmatpush.bf16.msra.mxu0 %v5180
    %7599 = vmatpush.bf16.msra.mxu0 %v5164
    %7600 = vmatpush.bf16.msra.mxu0 %v5148
    %7601 = vmatpush.bf16.msra.mxu0 %v5132
    %7602 = vmatpush.bf16.msra.mxu0 %v5116
    %7603 = vmatmul.bf16.gmra.mxu0 %v1127
    %v7604 = vpop.f32.mrf.mxu0
    %v7605 = vadd.f32 %v7592, %v7604
    %v7606 = vpop.f32.mrf.mxu0
    %7607 = vdwg.mxu0
    %7608 = vmatpush.bf16.msra.mxu0 %v4333
    %7609 = vmatpush.bf16.msra.mxu0 %v4317
    %7610 = vmatpush.bf16.msra.mxu0 %v4301
    %7611 = vmatpush.bf16.msra.mxu0 %v4285
    %7612 = vmatpush.bf16.msra.mxu0 %v4269
    %7613 = vmatpush.bf16.msra.mxu0 %v4253
    %7614 = vmatpush.bf16.msra.mxu0 %v4237
    %7615 = vmatpush.bf16.msra.mxu0 %v4221
    %7616 = vmatmul.bf16.gmra.mxu0 %v1120
    %v7617 = vpop.f32.mrf.mxu0
    %v7618 = vadd.f32 0.0, %v7617
    %v7619 = vpop.f32.mrf.mxu0
    %7620 = vdwg.mxu0
    %7621 = vmatpush.bf16.msra.mxu0 %v4461
    %7622 = vmatpush.bf16.msra.mxu0 %v4445
    %7623 = vmatpush.bf16.msra.mxu0 %v4429
    %7624 = vmatpush.bf16.msra.mxu0 %v4413
    %7625 = vmatpush.bf16.msra.mxu0 %v4397
    %7626 = vmatpush.bf16.msra.mxu0 %v4381
    %7627 = vmatpush.bf16.msra.mxu0 %v4365
    %7628 = vmatpush.bf16.msra.mxu0 %v4349
    %7629 = vmatmul.bf16.gmra.mxu0 %v1121
    %v7630 = vpop.f32.mrf.mxu0
    %v7631 = vadd.f32 %v7618, %v7630
    %v7632 = vpop.f32.mrf.mxu0
    %7633 = vdwg.mxu0
    %7634 = vmatpush.bf16.msra.mxu0 %v4589
    %7635 = vmatpush.bf16.msra.mxu0 %v4573
    %7636 = vmatpush.bf16.msra.mxu0 %v4557
    %7637 = vmatpush.bf16.msra.mxu0 %v4541
    %7638 = vmatpush.bf16.msra.mxu0 %v4525
    %7639 = vmatpush.bf16.msra.mxu0 %v4509
    %7640 = vmatpush.bf16.msra.mxu0 %v4493
    %7641 = vmatpush.bf16.msra.mxu0 %v4477
    %7642 = vmatmul.bf16.gmra.mxu0 %v1122
    %v7643 = vpop.f32.mrf.mxu0
    %v7644 = vadd.f32 %v7631, %v7643
    %v7645 = vpop.f32.mrf.mxu0
    %7646 = vdwg.mxu0
    %7647 = vmatpush.bf16.msra.mxu0 %v4717
    %7648 = vmatpush.bf16.msra.mxu0 %v4701
    %7649 = vmatpush.bf16.msra.mxu0 %v4685
    %7650 = vmatpush.bf16.msra.mxu0 %v4669
    %7651 = vmatpush.bf16.msra.mxu0 %v4653
    %7652 = vmatpush.bf16.msra.mxu0 %v4637
    %7653 = vmatpush.bf16.msra.mxu0 %v4621
    %7654 = vmatpush.bf16.msra.mxu0 %v4605
    %7655 = vmatmul.bf16.gmra.mxu0 %v1123
    %v7656 = vpop.f32.mrf.mxu0
    %v7657 = vadd.f32 %v7644, %v7656
    %v7658 = vpop.f32.mrf.mxu0
    %7659 = vdwg.mxu0
    %7660 = vmatpush.bf16.msra.mxu0 %v4845
    %7661 = vmatpush.bf16.msra.mxu0 %v4829
    %7662 = vmatpush.bf16.msra.mxu0 %v4813
    %7663 = vmatpush.bf16.msra.mxu0 %v4797
    %7664 = vmatpush.bf16.msra.mxu0 %v4781
    %7665 = vmatpush.bf16.msra.mxu0 %v4765
    %7666 = vmatpush.bf16.msra.mxu0 %v4749
    %7667 = vmatpush.bf16.msra.mxu0 %v4733
    %7668 = vmatmul.bf16.gmra.mxu0 %v1124
    %v7669 = vpop.f32.mrf.mxu0
    %v7670 = vadd.f32 %v7657, %v7669
    %v7671 = vpop.f32.mrf.mxu0
    %7672 = vdwg.mxu0
    %7673 = vmatpush.bf16.msra.mxu0 %v4973
    %7674 = vmatpush.bf16.msra.mxu0 %v4957
    %7675 = vmatpush.bf16.msra.mxu0 %v4941
    %7676 = vmatpush.bf16.msra.mxu0 %v4925
    %7677 = vmatpush.bf16.msra.mxu0 %v4909
    %7678 = vmatpush.bf16.msra.mxu0 %v4893
    %7679 = vmatpush.bf16.msra.mxu0 %v4877
    %7680 = vmatpush.bf16.msra.mxu0 %v4861
    %7681 = vmatmul.bf16.gmra.mxu0 %v1125
    %v7682 = vpop.f32.mrf.mxu0
    %v7683 = vadd.f32 %v7670, %v7682
    %v7684 = vpop.f32.mrf.mxu0
    %7685 = vdwg.mxu0
    %7686 = vmatpush.bf16.msra.mxu0 %v5101
    %7687 = vmatpush.bf16.msra.mxu0 %v5085
    %7688 = vmatpush.bf16.msra.mxu0 %v5069
    %7689 = vmatpush.bf16.msra.mxu0 %v5053
    %7690 = vmatpush.bf16.msra.mxu0 %v5037
    %7691 = vmatpush.bf16.msra.mxu0 %v5021
    %7692 = vmatpush.bf16.msra.mxu0 %v5005
    %7693 = vmatpush.bf16.msra.mxu0 %v4989
    %7694 = vmatmul.bf16.gmra.mxu0 %v1126
    %v7695 = vpop.f32.mrf.mxu0
    %v7696 = vadd.f32 %v7683, %v7695
    %v7697 = vpop.f32.mrf.mxu0
    %7698 = vdwg.mxu0
    %7699 = vmatpush.bf16.msra.mxu0 %v5229
    %7700 = vmatpush.bf16.msra.mxu0 %v5213
    %7701 = vmatpush.bf16.msra.mxu0 %v5197
    %7702 = vmatpush.bf16.msra.mxu0 %v5181
    %7703 = vmatpush.bf16.msra.mxu0 %v5165
    %7704 = vmatpush.bf16.msra.mxu0 %v5149
    %7705 = vmatpush.bf16.msra.mxu0 %v5133
    %7706 = vmatpush.bf16.msra.mxu0 %v5117
    %7707 = vmatmul.bf16.gmra.mxu0 %v1127
    %v7708 = vpop.f32.mrf.mxu0
    %v7709 = vadd.f32 %v7696, %v7708
    %v7710 = vpop.f32.mrf.mxu0
    %7711 = vdwg.mxu0
    %7712 = vmatpush.bf16.msra.mxu0 %v4334
    %7713 = vmatpush.bf16.msra.mxu0 %v4318
    %7714 = vmatpush.bf16.msra.mxu0 %v4302
    %7715 = vmatpush.bf16.msra.mxu0 %v4286
    %7716 = vmatpush.bf16.msra.mxu0 %v4270
    %7717 = vmatpush.bf16.msra.mxu0 %v4254
    %7718 = vmatpush.bf16.msra.mxu0 %v4238
    %7719 = vmatpush.bf16.msra.mxu0 %v4222
    %7720 = vmatmul.bf16.gmra.mxu0 %v1120
    %v7721 = vpop.f32.mrf.mxu0
    %v7722 = vadd.f32 0.0, %v7721
    %v7723 = vpop.f32.mrf.mxu0
    %7724 = vdwg.mxu0
    %7725 = vmatpush.bf16.msra.mxu0 %v4462
    %7726 = vmatpush.bf16.msra.mxu0 %v4446
    %7727 = vmatpush.bf16.msra.mxu0 %v4430
    %7728 = vmatpush.bf16.msra.mxu0 %v4414
    %7729 = vmatpush.bf16.msra.mxu0 %v4398
    %7730 = vmatpush.bf16.msra.mxu0 %v4382
    %7731 = vmatpush.bf16.msra.mxu0 %v4366
    %7732 = vmatpush.bf16.msra.mxu0 %v4350
    %7733 = vmatmul.bf16.gmra.mxu0 %v1121
    %v7734 = vpop.f32.mrf.mxu0
    %v7735 = vadd.f32 %v7722, %v7734
    %v7736 = vpop.f32.mrf.mxu0
    %7737 = vdwg.mxu0
    %7738 = vmatpush.bf16.msra.mxu0 %v4590
    %7739 = vmatpush.bf16.msra.mxu0 %v4574
    %7740 = vmatpush.bf16.msra.mxu0 %v4558
    %7741 = vmatpush.bf16.msra.mxu0 %v4542
    %7742 = vmatpush.bf16.msra.mxu0 %v4526
    %7743 = vmatpush.bf16.msra.mxu0 %v4510
    %7744 = vmatpush.bf16.msra.mxu0 %v4494
    %7745 = vmatpush.bf16.msra.mxu0 %v4478
    %7746 = vmatmul.bf16.gmra.mxu0 %v1122
    %v7747 = vpop.f32.mrf.mxu0
    %v7748 = vadd.f32 %v7735, %v7747
    %v7749 = vpop.f32.mrf.mxu0
    %7750 = vdwg.mxu0
    %7751 = vmatpush.bf16.msra.mxu0 %v4718
    %7752 = vmatpush.bf16.msra.mxu0 %v4702
    %7753 = vmatpush.bf16.msra.mxu0 %v4686
    %7754 = vmatpush.bf16.msra.mxu0 %v4670
    %7755 = vmatpush.bf16.msra.mxu0 %v4654
    %7756 = vmatpush.bf16.msra.mxu0 %v4638
    %7757 = vmatpush.bf16.msra.mxu0 %v4622
    %7758 = vmatpush.bf16.msra.mxu0 %v4606
    %7759 = vmatmul.bf16.gmra.mxu0 %v1123
    %v7760 = vpop.f32.mrf.mxu0
    %v7761 = vadd.f32 %v7748, %v7760
    %v7762 = vpop.f32.mrf.mxu0
    %7763 = vdwg.mxu0
    %7764 = vmatpush.bf16.msra.mxu0 %v4846
    %7765 = vmatpush.bf16.msra.mxu0 %v4830
    %7766 = vmatpush.bf16.msra.mxu0 %v4814
    %7767 = vmatpush.bf16.msra.mxu0 %v4798
    %7768 = vmatpush.bf16.msra.mxu0 %v4782
    %7769 = vmatpush.bf16.msra.mxu0 %v4766
    %7770 = vmatpush.bf16.msra.mxu0 %v4750
    %7771 = vmatpush.bf16.msra.mxu0 %v4734
    %7772 = vmatmul.bf16.gmra.mxu0 %v1124
    %v7773 = vpop.f32.mrf.mxu0
    %v7774 = vadd.f32 %v7761, %v7773
    %v7775 = vpop.f32.mrf.mxu0
    %7776 = vdwg.mxu0
    %7777 = vmatpush.bf16.msra.mxu0 %v4974
    %7778 = vmatpush.bf16.msra.mxu0 %v4958
    %7779 = vmatpush.bf16.msra.mxu0 %v4942
    %7780 = vmatpush.bf16.msra.mxu0 %v4926
    %7781 = vmatpush.bf16.msra.mxu0 %v4910
    %7782 = vmatpush.bf16.msra.mxu0 %v4894
    %7783 = vmatpush.bf16.msra.mxu0 %v4878
    %7784 = vmatpush.bf16.msra.mxu0 %v4862
    %7785 = vmatmul.bf16.gmra.mxu0 %v1125
    %v7786 = vpop.f32.mrf.mxu0
    %v7787 = vadd.f32 %v7774, %v7786
    %v7788 = vpop.f32.mrf.mxu0
    %7789 = vdwg.mxu0
    %7790 = vmatpush.bf16.msra.mxu0 %v5102
    %7791 = vmatpush.bf16.msra.mxu0 %v5086
    %7792 = vmatpush.bf16.msra.mxu0 %v5070
    %7793 = vmatpush.bf16.msra.mxu0 %v5054
    %7794 = vmatpush.bf16.msra.mxu0 %v5038
    %7795 = vmatpush.bf16.msra.mxu0 %v5022
    %7796 = vmatpush.bf16.msra.mxu0 %v5006
    %7797 = vmatpush.bf16.msra.mxu0 %v4990
    %7798 = vmatmul.bf16.gmra.mxu0 %v1126
    %v7799 = vpop.f32.mrf.mxu0
    %v7800 = vadd.f32 %v7787, %v7799
    %v7801 = vpop.f32.mrf.mxu0
    %7802 = vdwg.mxu0
    %7803 = vmatpush.bf16.msra.mxu0 %v5230
    %7804 = vmatpush.bf16.msra.mxu0 %v5214
    %7805 = vmatpush.bf16.msra.mxu0 %v5198
    %7806 = vmatpush.bf16.msra.mxu0 %v5182
    %7807 = vmatpush.bf16.msra.mxu0 %v5166
    %7808 = vmatpush.bf16.msra.mxu0 %v5150
    %7809 = vmatpush.bf16.msra.mxu0 %v5134
    %7810 = vmatpush.bf16.msra.mxu0 %v5118
    %7811 = vmatmul.bf16.gmra.mxu0 %v1127
    %v7812 = vpop.f32.mrf.mxu0
    %v7813 = vadd.f32 %v7800, %v7812
    %v7814 = vpop.f32.mrf.mxu0
    %7815 = vdwg.mxu0
    %7816 = vmatpush.bf16.msra.mxu0 %v4335
    %7817 = vmatpush.bf16.msra.mxu0 %v4319
    %7818 = vmatpush.bf16.msra.mxu0 %v4303
    %7819 = vmatpush.bf16.msra.mxu0 %v4287
    %7820 = vmatpush.bf16.msra.mxu0 %v4271
    %7821 = vmatpush.bf16.msra.mxu0 %v4255
    %7822 = vmatpush.bf16.msra.mxu0 %v4239
    %7823 = vmatpush.bf16.msra.mxu0 %v4223
    %7824 = vmatmul.bf16.gmra.mxu0 %v1120
    %v7825 = vpop.f32.mrf.mxu0
    %v7826 = vadd.f32 0.0, %v7825
    %v7827 = vpop.f32.mrf.mxu0
    %7828 = vdwg.mxu0
    %7829 = vmatpush.bf16.msra.mxu0 %v4463
    %7830 = vmatpush.bf16.msra.mxu0 %v4447
    %7831 = vmatpush.bf16.msra.mxu0 %v4431
    %7832 = vmatpush.bf16.msra.mxu0 %v4415
    %7833 = vmatpush.bf16.msra.mxu0 %v4399
    %7834 = vmatpush.bf16.msra.mxu0 %v4383
    %7835 = vmatpush.bf16.msra.mxu0 %v4367
    %7836 = vmatpush.bf16.msra.mxu0 %v4351
    %7837 = vmatmul.bf16.gmra.mxu0 %v1121
    %v7838 = vpop.f32.mrf.mxu0
    %v7839 = vadd.f32 %v7826, %v7838
    %v7840 = vpop.f32.mrf.mxu0
    %7841 = vdwg.mxu0
    %7842 = vmatpush.bf16.msra.mxu0 %v4591
    %7843 = vmatpush.bf16.msra.mxu0 %v4575
    %7844 = vmatpush.bf16.msra.mxu0 %v4559
    %7845 = vmatpush.bf16.msra.mxu0 %v4543
    %7846 = vmatpush.bf16.msra.mxu0 %v4527
    %7847 = vmatpush.bf16.msra.mxu0 %v4511
    %7848 = vmatpush.bf16.msra.mxu0 %v4495
    %7849 = vmatpush.bf16.msra.mxu0 %v4479
    %7850 = vmatmul.bf16.gmra.mxu0 %v1122
    %v7851 = vpop.f32.mrf.mxu0
    %v7852 = vadd.f32 %v7839, %v7851
    %v7853 = vpop.f32.mrf.mxu0
    %7854 = vdwg.mxu0
    %7855 = vmatpush.bf16.msra.mxu0 %v4719
    %7856 = vmatpush.bf16.msra.mxu0 %v4703
    %7857 = vmatpush.bf16.msra.mxu0 %v4687
    %7858 = vmatpush.bf16.msra.mxu0 %v4671
    %7859 = vmatpush.bf16.msra.mxu0 %v4655
    %7860 = vmatpush.bf16.msra.mxu0 %v4639
    %7861 = vmatpush.bf16.msra.mxu0 %v4623
    %7862 = vmatpush.bf16.msra.mxu0 %v4607
    %7863 = vmatmul.bf16.gmra.mxu0 %v1123
    %v7864 = vpop.f32.mrf.mxu0
    %v7865 = vadd.f32 %v7852, %v7864
    %v7866 = vpop.f32.mrf.mxu0
    %7867 = vdwg.mxu0
    %7868 = vmatpush.bf16.msra.mxu0 %v4847
    %7869 = vmatpush.bf16.msra.mxu0 %v4831
    %7870 = vmatpush.bf16.msra.mxu0 %v4815
    %7871 = vmatpush.bf16.msra.mxu0 %v4799
    %7872 = vmatpush.bf16.msra.mxu0 %v4783
    %7873 = vmatpush.bf16.msra.mxu0 %v4767
    %7874 = vmatpush.bf16.msra.mxu0 %v4751
    %7875 = vmatpush.bf16.msra.mxu0 %v4735
    %7876 = vmatmul.bf16.gmra.mxu0 %v1124
    %v7877 = vpop.f32.mrf.mxu0
    %v7878 = vadd.f32 %v7865, %v7877
    %v7879 = vpop.f32.mrf.mxu0
    %7880 = vdwg.mxu0
    %7881 = vmatpush.bf16.msra.mxu0 %v4975
    %7882 = vmatpush.bf16.msra.mxu0 %v4959
    %7883 = vmatpush.bf16.msra.mxu0 %v4943
    %7884 = vmatpush.bf16.msra.mxu0 %v4927
    %7885 = vmatpush.bf16.msra.mxu0 %v4911
    %7886 = vmatpush.bf16.msra.mxu0 %v4895
    %7887 = vmatpush.bf16.msra.mxu0 %v4879
    %7888 = vmatpush.bf16.msra.mxu0 %v4863
    %7889 = vmatmul.bf16.gmra.mxu0 %v1125
    %v7890 = vpop.f32.mrf.mxu0
    %v7891 = vadd.f32 %v7878, %v7890
    %v7892 = vpop.f32.mrf.mxu0
    %7893 = vdwg.mxu0
    %7894 = vmatpush.bf16.msra.mxu0 %v5103
    %7895 = vmatpush.bf16.msra.mxu0 %v5087
    %7896 = vmatpush.bf16.msra.mxu0 %v5071
    %7897 = vmatpush.bf16.msra.mxu0 %v5055
    %7898 = vmatpush.bf16.msra.mxu0 %v5039
    %7899 = vmatpush.bf16.msra.mxu0 %v5023
    %7900 = vmatpush.bf16.msra.mxu0 %v5007
    %7901 = vmatpush.bf16.msra.mxu0 %v4991
    %7902 = vmatmul.bf16.gmra.mxu0 %v1126
    %v7903 = vpop.f32.mrf.mxu0
    %v7904 = vadd.f32 %v7891, %v7903
    %v7905 = vpop.f32.mrf.mxu0
    %7906 = vdwg.mxu0
    %7907 = vmatpush.bf16.msra.mxu0 %v5231
    %7908 = vmatpush.bf16.msra.mxu0 %v5215
    %7909 = vmatpush.bf16.msra.mxu0 %v5199
    %7910 = vmatpush.bf16.msra.mxu0 %v5183
    %7911 = vmatpush.bf16.msra.mxu0 %v5167
    %7912 = vmatpush.bf16.msra.mxu0 %v5151
    %7913 = vmatpush.bf16.msra.mxu0 %v5135
    %7914 = vmatpush.bf16.msra.mxu0 %v5119
    %7915 = vmatmul.bf16.gmra.mxu0 %v1127
    %v7916 = vpop.f32.mrf.mxu0
    %v7917 = vadd.f32 %v7904, %v7916
    %v7918 = vpop.f32.mrf.mxu0
    %7919 = vdwg.mxu0
    %v7936 = vrot.slane %v6461, 6
    %v7937 = vrot.slane %v6565, 4
    %v7938 = vrot.slane %v6669, 2
    %v7939 = vrot.slane %v6877, 6
    %v7940 = vrot.slane %v6981, 4
    %v7941 = vrot.slane %v7085, 2
    %v7942 = vrot.slane %v7293, 6
    %v7943 = vrot.slane %v7397, 4
    %v7944 = vrot.slane %v7501, 2
    %v7945 = vrot.slane %v7709, 6
    %v7946 = vrot.slane %v7813, 4
    %v7947 = vrot.slane %v7917, 2
    %vm7948 = vcmask 1041408
    %v7949 = vsel %vm7948, %v6357, %v7936
    %vm7950 = vcmask 1045508
    %v7951 = vsel %vm7950, %v7937, %v7938
    %vm7952 = vcmask 1043456
    %v7953 = vsel %vm7952, %v7949, %v7951
    %v7954 = vsel %vm7948, %v6773, %v7939
    %v7955 = vsel %vm7950, %v7940, %v7941
    %v7956 = vsel %vm7952, %v7954, %v7955
    %v7957 = vsel %vm7948, %v7189, %v7942
    %v7958 = vsel %vm7950, %v7943, %v7944
    %v7959 = vsel %vm7952, %v7957, %v7958
    %v7960 = vsel %vm7948, %v7605, %v7945
    %v7961 = vsel %vm7950, %v7946, %v7947
    %v7962 = vsel %vm7952, %v7960, %v7961
    %v7967 = vadd.f32 %v90, %v7953
    %v7968 = vadd.f32 %v91, %v7956
    %v7969 = vadd.f32 %v92, %v7959
    %v7970 = vadd.f32 %v93, %v7962
    %7971 = vst [vmem:[%s5] sm:$0xff] %v7967
    %7972 = vst [vmem:[%s5 + $0x8] sm:$0xff] %v7968
    %7973 = vst [vmem:[%s5 + $0x10] sm:$0xff] %v7969
    %7974 = vst [vmem:[%s5 + $0x18] sm:$0xff] %v7970
    // Predicated region
    $region42: #{dann2_forward.6} parent=1 // pred_check
      %p7975 = pneg %p77
    $region43: #{dann2_forward.6} parent=1 // pred_check_branch
      %7977 = sbr.rel (%p7975) target = $region45
    $region44: #{dann2_forward.6} parent=1 // pred_region
      %v7978 = vld [vmem:[%s5] sm:$0xff]
      %v7979 = vld [vmem:[%s5 + $0x8] sm:$0xff]
      %v7980 = vld [vmem:[%s5 + $0x10] sm:$0xff]
      %v7981 = vld [vmem:[%s5 + $0x18] sm:$0xff]
      %v7982 = vld [vmem:[#allocation4] sm:$0xff]
      %v7983 = vld [vmem:[#allocation4 + $0x8] sm:$0xff]
      %v7986 = vperm.slane %v7982, 0
      %v7987 = vperm.slane %v7982, 1
      %v7988 = vperm.slane %v7982, 2
      %v7989 = vperm.slane %v7982, 3
      %v7990 = vperm.slane %v7982, 4
      %v7991 = vperm.slane %v7982, 5
      %v7992 = vperm.slane %v7982, 6
      %v7993 = vperm.slane %v7982, 7
      %v7994 = vperm.slane %v7983, 0
      %v7995 = vperm.slane %v7983, 1
      %v7996 = vperm.slane %v7983, 2
      %v7997 = vperm.slane %v7983, 3
      %v7998 = vperm.slane %v7983, 4
      %v7999 = vperm.slane %v7983, 5
      %v8000 = vperm.slane %v7983, 6
      %v8001 = vperm.slane %v7983, 7
      %v8002 = vrot.slane %v7987, 6
      %v8003 = vrot.slane %v7988, 4
      %v8004 = vrot.slane %v7989, 2
      %v8005 = vrot.slane %v7991, 6
      %v8006 = vrot.slane %v7992, 4
      %v8007 = vrot.slane %v7993, 2
      %v8008 = vrot.slane %v7995, 6
      %v8009 = vrot.slane %v7996, 4
      %v8010 = vrot.slane %v7997, 2
      %v8011 = vrot.slane %v7999, 6
      %v8012 = vrot.slane %v8000, 4
      %v8013 = vrot.slane %v8001, 2
      %v8014 = vsel %vm7948, %v7986, %v8002
      %v8015 = vsel %vm7950, %v8003, %v8004
      %v8016 = vsel %vm7952, %v8014, %v8015
      %v8017 = vsel %vm7948, %v7990, %v8005
      %v8018 = vsel %vm7950, %v8006, %v8007
      %v8019 = vsel %vm7952, %v8017, %v8018
      %v8020 = vsel %vm7948, %v7994, %v8008
      %v8021 = vsel %vm7950, %v8009, %v8010
      %v8022 = vsel %vm7952, %v8020, %v8021
      %v8023 = vsel %vm7948, %v7998, %v8011
      %v8024 = vsel %vm7950, %v8012, %v8013
      %v8025 = vsel %vm7952, %v8023, %v8024
      %v8030 = vadd.f32 %v7978, %v8016
      %v8031 = vadd.f32 %v7979, %v8019
      %v8032 = vadd.f32 %v7980, %v8022
      %v8033 = vadd.f32 %v7981, %v8025
      %8038 = vst [vmem:[#allocation1] ss:$4 sm:$0xff] %v8030
      %s8039 = scalar_lea.vmem [#allocation1], 32
      %8040 = vst [vmem:[%s8039] ss:$4 sm:$0xff] %v8031
      %v8041 = vld.sshfl [vmem:[#allocation1] sm:$0xff pattern:$0x73625140]
      %v8042 = vld.sshfl [vmem:[#allocation1 + $0x8] sm:$0xff pattern:$0x73625140]
      %v8043 = vld.sshfl [vmem:[#allocation1 + $0x10] sm:$0xff pattern:$0x73625140]
      %v8044 = vld.sshfl [vmem:[#allocation1 + $0x18] sm:$0xff pattern:$0x73625140]
      %v8045 = vld.sshfl [vmem:[#allocation1 + $0x20] sm:$0xff pattern:$0x73625140]
      %v8046 = vld.sshfl [vmem:[#allocation1 + $0x28] sm:$0xff pattern:$0x73625140]
      %v8047 = vld.sshfl [vmem:[#allocation1 + $0x30] sm:$0xff pattern:$0x73625140]
      %v8048 = vld.sshfl [vmem:[#allocation1 + $0x38] sm:$0xff pattern:$0x73625140]
      %8049 = vst [vmem:[#allocation1] ss:$4 sm:$0xff] %v8032
      %8050 = vst [vmem:[%s8039] ss:$4 sm:$0xff] %v8033
      %v8051 = vld.sshfl [vmem:[#allocation1] sm:$0xff pattern:$0x73625140]
      %v8052 = vld.sshfl [vmem:[#allocation1 + $0x8] sm:$0xff pattern:$0x73625140]
      %v8053 = vld.sshfl [vmem:[#allocation1 + $0x10] sm:$0xff pattern:$0x73625140]
      %v8054 = vld.sshfl [vmem:[#allocation1 + $0x18] sm:$0xff pattern:$0x73625140]
      %v8055 = vld.sshfl [vmem:[#allocation1 + $0x20] sm:$0xff pattern:$0x73625140]
      %v8056 = vld.sshfl [vmem:[#allocation1 + $0x28] sm:$0xff pattern:$0x73625140]
      %v8057 = vld.sshfl [vmem:[#allocation1 + $0x30] sm:$0xff pattern:$0x73625140]
      %v8058 = vld.sshfl [vmem:[#allocation1 + $0x38] sm:$0xff pattern:$0x73625140]
      %v8075 = vsel %vm7948, %v8041, 0.0
      %v8076 = vrot.slane %v8075, 4
      %v8077 = vadd.f32 %v8075, %v8076
      %v8078 = vrot.slane %v8077, 2
      %v8079 = vadd.f32 %v8077, %v8078
      %v8080 = vrot.slane %v8079, 1
      %v8081 = vadd.f32 %v8079, %v8080
      %v8082 = vsel %vm7948, %v8042, 0.0
      %v8083 = vrot.slane %v8082, 4
      %v8084 = vadd.f32 %v8082, %v8083
      %v8085 = vrot.slane %v8084, 2
      %v8086 = vadd.f32 %v8084, %v8085
      %v8087 = vrot.slane %v8086, 1
      %v8088 = vadd.f32 %v8086, %v8087
      %v8089 = vsel %vm7948, %v8043, 0.0
      %v8090 = vrot.slane %v8089, 4
      %v8091 = vadd.f32 %v8089, %v8090
      %v8092 = vrot.slane %v8091, 2
      %v8093 = vadd.f32 %v8091, %v8092
      %v8094 = vrot.slane %v8093, 1
      %v8095 = vadd.f32 %v8093, %v8094
      %v8096 = vsel %vm7948, %v8044, 0.0
      %v8097 = vrot.slane %v8096, 4
      %v8098 = vadd.f32 %v8096, %v8097
      %v8099 = vrot.slane %v8098, 2
      %v8100 = vadd.f32 %v8098, %v8099
      %v8101 = vrot.slane %v8100, 1
      %v8102 = vadd.f32 %v8100, %v8101
      %v8103 = vsel %vm7948, %v8045, 0.0
      %v8104 = vrot.slane %v8103, 4
      %v8105 = vadd.f32 %v8103, %v8104
      %v8106 = vrot.slane %v8105, 2
      %v8107 = vadd.f32 %v8105, %v8106
      %v8108 = vrot.slane %v8107, 1
      %v8109 = vadd.f32 %v8107, %v8108
      %v8110 = vsel %vm7948, %v8046, 0.0
      %v8111 = vrot.slane %v8110, 4
      %v8112 = vadd.f32 %v8110, %v8111
      %v8113 = vrot.slane %v8112, 2
      %v8114 = vadd.f32 %v8112, %v8113
      %v8115 = vrot.slane %v8114, 1
      %v8116 = vadd.f32 %v8114, %v8115
      %v8117 = vsel %vm7948, %v8047, 0.0
      %v8118 = vrot.slane %v8117, 4
      %v8119 = vadd.f32 %v8117, %v8118
      %v8120 = vrot.slane %v8119, 2
      %v8121 = vadd.f32 %v8119, %v8120
      %v8122 = vrot.slane %v8121, 1
      %v8123 = vadd.f32 %v8121, %v8122
      %v8124 = vsel %vm7948, %v8048, 0.0
      %v8125 = vrot.slane %v8124, 4
      %v8126 = vadd.f32 %v8124, %v8125
      %v8127 = vrot.slane %v8126, 2
      %v8128 = vadd.f32 %v8126, %v8127
      %v8129 = vrot.slane %v8128, 1
      %v8130 = vadd.f32 %v8128, %v8129
      %v8131 = vsel %vm7948, %v8051, 0.0
      %v8132 = vrot.slane %v8131, 4
      %v8133 = vadd.f32 %v8131, %v8132
      %v8134 = vrot.slane %v8133, 2
      %v8135 = vadd.f32 %v8133, %v8134
      %v8136 = vrot.slane %v8135, 1
      %v8137 = vadd.f32 %v8135, %v8136
      %v8138 = vsel %vm7948, %v8052, 0.0
      %v8139 = vrot.slane %v8138, 4
      %v8140 = vadd.f32 %v8138, %v8139
      %v8141 = vrot.slane %v8140, 2
      %v8142 = vadd.f32 %v8140, %v8141
      %v8143 = vrot.slane %v8142, 1
      %v8144 = vadd.f32 %v8142, %v8143
      %v8145 = vsel %vm7948, %v8053, 0.0
      %v8146 = vrot.slane %v8145, 4
      %v8147 = vadd.f32 %v8145, %v8146
      %v8148 = vrot.slane %v8147, 2
      %v8149 = vadd.f32 %v8147, %v8148
      %v8150 = vrot.slane %v8149, 1
      %v8151 = vadd.f32 %v8149, %v8150
      %v8152 = vsel %vm7948, %v8054, 0.0
      %v8153 = vrot.slane %v8152, 4
      %v8154 = vadd.f32 %v8152, %v8153
      %v8155 = vrot.slane %v8154, 2
      %v8156 = vadd.f32 %v8154, %v8155
      %v8157 = vrot.slane %v8156, 1
      %v8158 = vadd.f32 %v8156, %v8157
      %v8159 = vsel %vm7948, %v8055, 0.0
      %v8160 = vrot.slane %v8159, 4
      %v8161 = vadd.f32 %v8159, %v8160
      %v8162 = vrot.slane %v8161, 2
      %v8163 = vadd.f32 %v8161, %v8162
      %v8164 = vrot.slane %v8163, 1
      %v8165 = vadd.f32 %v8163, %v8164
      %v8166 = vsel %vm7948, %v8056, 0.0
      %v8167 = vrot.slane %v8166, 4
      %v8168 = vadd.f32 %v8166, %v8167
      %v8169 = vrot.slane %v8168, 2
      %v8170 = vadd.f32 %v8168, %v8169
      %v8171 = vrot.slane %v8170, 1
      %v8172 = vadd.f32 %v8170, %v8171
      %v8173 = vsel %vm7948, %v8057, 0.0
      %v8174 = vrot.slane %v8173, 4
      %v8175 = vadd.f32 %v8173, %v8174
      %v8176 = vrot.slane %v8175, 2
      %v8177 = vadd.f32 %v8175, %v8176
      %v8178 = vrot.slane %v8177, 1
      %v8179 = vadd.f32 %v8177, %v8178
      %v8180 = vsel %vm7948, %v8058, 0.0
      %v8181 = vrot.slane %v8180, 4
      %v8182 = vadd.f32 %v8180, %v8181
      %v8183 = vrot.slane %v8182, 2
      %v8184 = vadd.f32 %v8182, %v8183
      %v8185 = vrot.slane %v8184, 1
      %v8186 = vadd.f32 %v8184, %v8185
      %v8187 = vrcp.pop 2.0
      %v8188 = vmul.f32 2.0, %v8187
      %v8189 = vsub.f32 1.0, %v8188
      %v8190 = vmul.f32 %v8187, %v8189
      %v8191 = vadd.f32 %v8187, %v8190
      %vm8192 = vweird.f32 %v8187
      %v8193 = vsel %vm8192, %v8187, %v8191
      %v8194 = vmul.f32 %v8081, %v8193
      %v8195 = vmul.f32 %v8088, %v8193
      %v8196 = vmul.f32 %v8095, %v8193
      %v8197 = vmul.f32 %v8102, %v8193
      %v8198 = vmul.f32 %v8109, %v8193
      %v8199 = vmul.f32 %v8116, %v8193
      %v8200 = vmul.f32 %v8123, %v8193
      %v8201 = vmul.f32 %v8130, %v8193
      %v8202 = vmul.f32 %v8137, %v8193
      %v8203 = vmul.f32 %v8144, %v8193
      %v8204 = vmul.f32 %v8151, %v8193
      %v8205 = vmul.f32 %v8158, %v8193
      %v8206 = vmul.f32 %v8165, %v8193
      %v8207 = vmul.f32 %v8172, %v8193
      %v8208 = vmul.f32 %v8179, %v8193
      %v8209 = vmul.f32 %v8186, %v8193
      %v8226 = vrot.slane %v8195, 6
      %v8227 = vrot.slane %v8196, 4
      %v8228 = vrot.slane %v8197, 2
      %v8229 = vrot.slane %v8199, 6
      %v8230 = vrot.slane %v8200, 4
      %v8231 = vrot.slane %v8201, 2
      %v8232 = vrot.slane %v8203, 6
      %v8233 = vrot.slane %v8204, 4
      %v8234 = vrot.slane %v8205, 2
      %v8235 = vrot.slane %v8207, 6
      %v8236 = vrot.slane %v8208, 4
      %v8237 = vrot.slane %v8209, 2
      %v8238 = vsel %vm7948, %v8194, %v8226
      %v8239 = vsel %vm7950, %v8227, %v8228
      %v8240 = vsel %vm7952, %v8238, %v8239
      %v8241 = vsel %vm7948, %v8198, %v8229
      %v8242 = vsel %vm7950, %v8230, %v8231
      %v8243 = vsel %vm7952, %v8241, %v8242
      %v8244 = vsel %vm7948, %v8202, %v8232
      %v8245 = vsel %vm7950, %v8233, %v8234
      %v8246 = vsel %vm7952, %v8244, %v8245
      %v8247 = vsel %vm7948, %v8206, %v8235
      %v8248 = vsel %vm7950, %v8236, %v8237
      %v8249 = vsel %vm7952, %v8247, %v8248
      %v8254 = vsub.f32 %v8030, %v8240
      %v8255 = vsub.f32 %v8031, %v8243
      %v8256 = vsub.f32 %v8032, %v8246
      %v8257 = vsub.f32 %v8033, %v8249
      %v8258 = vmul.f32 %v8254, %v8254
      %v8259 = vmul.f32 %v8255, %v8255
      %v8260 = vmul.f32 %v8256, %v8256
      %v8261 = vmul.f32 %v8257, %v8257
      %8266 = vst [vmem:[#allocation1] ss:$4 sm:$0xff] %v8258
      %s8267 = scalar_lea.vmem [#allocation1], 32
      %8268 = vst [vmem:[%s8267] ss:$4 sm:$0xff] %v8259
      %v8269 = vld.sshfl [vmem:[#allocation1] sm:$0xff pattern:$0x73625140]
      %v8270 = vld.sshfl [vmem:[#allocation1 + $0x8] sm:$0xff pattern:$0x73625140]
      %v8271 = vld.sshfl [vmem:[#allocation1 + $0x10] sm:$0xff pattern:$0x73625140]
      %v8272 = vld.sshfl [vmem:[#allocation1 + $0x18] sm:$0xff pattern:$0x73625140]
      %v8273 = vld.sshfl [vmem:[#allocation1 + $0x20] sm:$0xff pattern:$0x73625140]
      %v8274 = vld.sshfl [vmem:[#allocation1 + $0x28] sm:$0xff pattern:$0x73625140]
      %v8275 = vld.sshfl [vmem:[#allocation1 + $0x30] sm:$0xff pattern:$0x73625140]
      %v8276 = vld.sshfl [vmem:[#allocation1 + $0x38] sm:$0xff pattern:$0x73625140]
      %8277 = vst [vmem:[#allocation1] ss:$4 sm:$0xff] %v8260
      %8278 = vst [vmem:[%s8267] ss:$4 sm:$0xff] %v8261
      %v8279 = vld.sshfl [vmem:[#allocation1] sm:$0xff pattern:$0x73625140]
      %v8280 = vld.sshfl [vmem:[#allocation1 + $0x8] sm:$0xff pattern:$0x73625140]
      %v8281 = vld.sshfl [vmem:[#allocation1 + $0x10] sm:$0xff pattern:$0x73625140]
      %v8282 = vld.sshfl [vmem:[#allocation1 + $0x18] sm:$0xff pattern:$0x73625140]
      %v8283 = vld.sshfl [vmem:[#allocation1 + $0x20] sm:$0xff pattern:$0x73625140]
      %v8284 = vld.sshfl [vmem:[#allocation1 + $0x28] sm:$0xff pattern:$0x73625140]
      %v8285 = vld.sshfl [vmem:[#allocation1 + $0x30] sm:$0xff pattern:$0x73625140]
      %v8286 = vld.sshfl [vmem:[#allocation1 + $0x38] sm:$0xff pattern:$0x73625140]
      %v8303 = vsel %vm7948, %v8269, 0.0
      %v8304 = vrot.slane %v8303, 4
      %v8305 = vadd.f32 %v8303, %v8304
      %v8306 = vrot.slane %v8305, 2
      %v8307 = vadd.f32 %v8305, %v8306
      %v8308 = vrot.slane %v8307, 1
      %v8309 = vadd.f32 %v8307, %v8308
      %v8310 = vsel %vm7948, %v8270, 0.0
      %v8311 = vrot.slane %v8310, 4
      %v8312 = vadd.f32 %v8310, %v8311
      %v8313 = vrot.slane %v8312, 2
      %v8314 = vadd.f32 %v8312, %v8313
      %v8315 = vrot.slane %v8314, 1
      %v8316 = vadd.f32 %v8314, %v8315
      %v8317 = vsel %vm7948, %v8271, 0.0
      %v8318 = vrot.slane %v8317, 4
      %v8319 = vadd.f32 %v8317, %v8318
      %v8320 = vrot.slane %v8319, 2
      %v8321 = vadd.f32 %v8319, %v8320
      %v8322 = vrot.slane %v8321, 1
      %v8323 = vadd.f32 %v8321, %v8322
      %v8324 = vsel %vm7948, %v8272, 0.0
      %v8325 = vrot.slane %v8324, 4
      %v8326 = vadd.f32 %v8324, %v8325
      %v8327 = vrot.slane %v8326, 2
      %v8328 = vadd.f32 %v8326, %v8327
      %v8329 = vrot.slane %v8328, 1
      %v8330 = vadd.f32 %v8328, %v8329
      %v8331 = vsel %vm7948, %v8273, 0.0
      %v8332 = vrot.slane %v8331, 4
      %v8333 = vadd.f32 %v8331, %v8332
      %v8334 = vrot.slane %v8333, 2
      %v8335 = vadd.f32 %v8333, %v8334
      %v8336 = vrot.slane %v8335, 1
      %v8337 = vadd.f32 %v8335, %v8336
      %v8338 = vsel %vm7948, %v8274, 0.0
      %v8339 = vrot.slane %v8338, 4
      %v8340 = vadd.f32 %v8338, %v8339
      %v8341 = vrot.slane %v8340, 2
      %v8342 = vadd.f32 %v8340, %v8341
      %v8343 = vrot.slane %v8342, 1
      %v8344 = vadd.f32 %v8342, %v8343
      %v8345 = vsel %vm7948, %v8275, 0.0
      %v8346 = vrot.slane %v8345, 4
      %v8347 = vadd.f32 %v8345, %v8346
      %v8348 = vrot.slane %v8347, 2
      %v8349 = vadd.f32 %v8347, %v8348
      %v8350 = vrot.slane %v8349, 1
      %v8351 = vadd.f32 %v8349, %v8350
      %v8352 = vsel %vm7948, %v8276, 0.0
      %v8353 = vrot.slane %v8352, 4
      %v8354 = vadd.f32 %v8352, %v8353
      %v8355 = vrot.slane %v8354, 2
      %v8356 = vadd.f32 %v8354, %v8355
      %v8357 = vrot.slane %v8356, 1
      %v8358 = vadd.f32 %v8356, %v8357
      %v8359 = vsel %vm7948, %v8279, 0.0
      %v8360 = vrot.slane %v8359, 4
      %v8361 = vadd.f32 %v8359, %v8360
      %v8362 = vrot.slane %v8361, 2
      %v8363 = vadd.f32 %v8361, %v8362
      %v8364 = vrot.slane %v8363, 1
      %v8365 = vadd.f32 %v8363, %v8364
      %v8366 = vsel %vm7948, %v8280, 0.0
      %v8367 = vrot.slane %v8366, 4
      %v8368 = vadd.f32 %v8366, %v8367
      %v8369 = vrot.slane %v8368, 2
      %v8370 = vadd.f32 %v8368, %v8369
      %v8371 = vrot.slane %v8370, 1
      %v8372 = vadd.f32 %v8370, %v8371
      %v8373 = vsel %vm7948, %v8281, 0.0
      %v8374 = vrot.slane %v8373, 4
      %v8375 = vadd.f32 %v8373, %v8374
      %v8376 = vrot.slane %v8375, 2
      %v8377 = vadd.f32 %v8375, %v8376
      %v8378 = vrot.slane %v8377, 1
      %v8379 = vadd.f32 %v8377, %v8378
      %v8380 = vsel %vm7948, %v8282, 0.0
      %v8381 = vrot.slane %v8380, 4
      %v8382 = vadd.f32 %v8380, %v8381
      %v8383 = vrot.slane %v8382, 2
      %v8384 = vadd.f32 %v8382, %v8383
      %v8385 = vrot.slane %v8384, 1
      %v8386 = vadd.f32 %v8384, %v8385
      %v8387 = vsel %vm7948, %v8283, 0.0
      %v8388 = vrot.slane %v8387, 4
      %v8389 = vadd.f32 %v8387, %v8388
      %v8390 = vrot.slane %v8389, 2
      %v8391 = vadd.f32 %v8389, %v8390
      %v8392 = vrot.slane %v8391, 1
      %v8393 = vadd.f32 %v8391, %v8392
      %v8394 = vsel %vm7948, %v8284, 0.0
      %v8395 = vrot.slane %v8394, 4
      %v8396 = vadd.f32 %v8394, %v8395
      %v8397 = vrot.slane %v8396, 2
      %v8398 = vadd.f32 %v8396, %v8397
      %v8399 = vrot.slane %v8398, 1
      %v8400 = vadd.f32 %v8398, %v8399
      %v8401 = vsel %vm7948, %v8285, 0.0
      %v8402 = vrot.slane %v8401, 4
      %v8403 = vadd.f32 %v8401, %v8402
      %v8404 = vrot.slane %v8403, 2
      %v8405 = vadd.f32 %v8403, %v8404
      %v8406 = vrot.slane %v8405, 1
      %v8407 = vadd.f32 %v8405, %v8406
      %v8408 = vsel %vm7948, %v8286, 0.0
      %v8409 = vrot.slane %v8408, 4
      %v8410 = vadd.f32 %v8408, %v8409
      %v8411 = vrot.slane %v8410, 2
      %v8412 = vadd.f32 %v8410, %v8411
      %v8413 = vrot.slane %v8412, 1
      %v8414 = vadd.f32 %v8412, %v8413
      %v8415 = vmul.f32 %v8309, %v8193
      %v8416 = vmul.f32 %v8316, %v8193
      %v8417 = vmul.f32 %v8323, %v8193
      %v8418 = vmul.f32 %v8330, %v8193
      %v8419 = vmul.f32 %v8337, %v8193
      %v8420 = vmul.f32 %v8344, %v8193
      %v8421 = vmul.f32 %v8351, %v8193
      %v8422 = vmul.f32 %v8358, %v8193
      %v8423 = vmul.f32 %v8365, %v8193
      %v8424 = vmul.f32 %v8372, %v8193
      %v8425 = vmul.f32 %v8379, %v8193
      %v8426 = vmul.f32 %v8386, %v8193
      %v8427 = vmul.f32 %v8393, %v8193
      %v8428 = vmul.f32 %v8400, %v8193
      %v8429 = vmul.f32 %v8407, %v8193
      %v8430 = vmul.f32 %v8414, %v8193
      %v8431 = vadd.f32 %v8415, 1e-05
      %v8432 = vadd.f32 %v8416, 1e-05
      %v8433 = vadd.f32 %v8417, 1e-05
      %v8434 = vadd.f32 %v8418, 1e-05
      %v8435 = vadd.f32 %v8419, 1e-05
      %v8436 = vadd.f32 %v8420, 1e-05
      %v8437 = vadd.f32 %v8421, 1e-05
      %v8438 = vadd.f32 %v8422, 1e-05
      %v8439 = vadd.f32 %v8423, 1e-05
      %v8440 = vadd.f32 %v8424, 1e-05
      %v8441 = vadd.f32 %v8425, 1e-05
      %v8442 = vadd.f32 %v8426, 1e-05
      %v8443 = vadd.f32 %v8427, 1e-05
      %v8444 = vadd.f32 %v8428, 1e-05
      %v8445 = vadd.f32 %v8429, 1e-05
      %v8446 = vadd.f32 %v8430, 1e-05
      %v8447 = vrsqrt.pop %v8431
      %v8448 = vmul.f32 %v8447, %v8431
      %v8449 = vmul.f32 %v8448, %v8447
      %v8450 = vmul.f32 0.5, %v8449
      %v8451 = vsub.f32 1.5, %v8450
      %v8452 = vmul.f32 %v8447, %v8451
      %vm8453 = vweird.f32 %v8431
      %vm8454 = vweird.f32 %v8447
      %vm8455 = vmor %vm8453, %vm8454
      %v8456 = vsel %vm8455, %v8447, %v8452
      %v8457 = vrsqrt.pop %v8432
      %v8458 = vmul.f32 %v8457, %v8432
      %v8459 = vmul.f32 %v8458, %v8457
      %v8460 = vmul.f32 0.5, %v8459
      %v8461 = vsub.f32 1.5, %v8460
      %v8462 = vmul.f32 %v8457, %v8461
      %vm8463 = vweird.f32 %v8432
      %vm8464 = vweird.f32 %v8457
      %vm8465 = vmor %vm8463, %vm8464
      %v8466 = vsel %vm8465, %v8457, %v8462
      %v8467 = vrsqrt.pop %v8433
      %v8468 = vmul.f32 %v8467, %v8433
      %v8469 = vmul.f32 %v8468, %v8467
      %v8470 = vmul.f32 0.5, %v8469
      %v8471 = vsub.f32 1.5, %v8470
      %v8472 = vmul.f32 %v8467, %v8471
      %vm8473 = vweird.f32 %v8433
      %vm8474 = vweird.f32 %v8467
      %vm8475 = vmor %vm8473, %vm8474
      %v8476 = vsel %vm8475, %v8467, %v8472
      %v8477 = vrsqrt.pop %v8434
      %v8478 = vmul.f32 %v8477, %v8434
      %v8479 = vmul.f32 %v8478, %v8477
      %v8480 = vmul.f32 0.5, %v8479
      %v8481 = vsub.f32 1.5, %v8480
      %v8482 = vmul.f32 %v8477, %v8481
      %vm8483 = vweird.f32 %v8434
      %vm8484 = vweird.f32 %v8477
      %vm8485 = vmor %vm8483, %vm8484
      %v8486 = vsel %vm8485, %v8477, %v8482
      %v8487 = vrsqrt.pop %v8435
      %v8488 = vmul.f32 %v8487, %v8435
      %v8489 = vmul.f32 %v8488, %v8487
      %v8490 = vmul.f32 0.5, %v8489
      %v8491 = vsub.f32 1.5, %v8490
      %v8492 = vmul.f32 %v8487, %v8491
      %vm8493 = vweird.f32 %v8435
      %vm8494 = vweird.f32 %v8487
      %vm8495 = vmor %vm8493, %vm8494
      %v8496 = vsel %vm8495, %v8487, %v8492
      %v8497 = vrsqrt.pop %v8436
      %v8498 = vmul.f32 %v8497, %v8436
      %v8499 = vmul.f32 %v8498, %v8497
      %v8500 = vmul.f32 0.5, %v8499
      %v8501 = vsub.f32 1.5, %v8500
      %v8502 = vmul.f32 %v8497, %v8501
      %vm8503 = vweird.f32 %v8436
      %vm8504 = vweird.f32 %v8497
      %vm8505 = vmor %vm8503, %vm8504
      %v8506 = vsel %vm8505, %v8497, %v8502
      %v8507 = vrsqrt.pop %v8437
      %v8508 = vmul.f32 %v8507, %v8437
      %v8509 = vmul.f32 %v8508, %v8507
      %v8510 = vmul.f32 0.5, %v8509
      %v8511 = vsub.f32 1.5, %v8510
      %v8512 = vmul.f32 %v8507, %v8511
      %vm8513 = vweird.f32 %v8437
      %vm8514 = vweird.f32 %v8507
      %vm8515 = vmor %vm8513, %vm8514
      %v8516 = vsel %vm8515, %v8507, %v8512
      %v8517 = vrsqrt.pop %v8438
      %v8518 = vmul.f32 %v8517, %v8438
      %v8519 = vmul.f32 %v8518, %v8517
      %v8520 = vmul.f32 0.5, %v8519
      %v8521 = vsub.f32 1.5, %v8520
      %v8522 = vmul.f32 %v8517, %v8521
      %vm8523 = vweird.f32 %v8438
      %vm8524 = vweird.f32 %v8517
      %vm8525 = vmor %vm8523, %vm8524
      %v8526 = vsel %vm8525, %v8517, %v8522
      %v8527 = vrsqrt.pop %v8439
      %v8528 = vmul.f32 %v8527, %v8439
      %v8529 = vmul.f32 %v8528, %v8527
      %v8530 = vmul.f32 0.5, %v8529
      %v8531 = vsub.f32 1.5, %v8530
      %v8532 = vmul.f32 %v8527, %v8531
      %vm8533 = vweird.f32 %v8439
      %vm8534 = vweird.f32 %v8527
      %vm8535 = vmor %vm8533, %vm8534
      %v8536 = vsel %vm8535, %v8527, %v8532
      %v8537 = vrsqrt.pop %v8440
      %v8538 = vmul.f32 %v8537, %v8440
      %v8539 = vmul.f32 %v8538, %v8537
      %v8540 = vmul.f32 0.5, %v8539
      %v8541 = vsub.f32 1.5, %v8540
      %v8542 = vmul.f32 %v8537, %v8541
      %vm8543 = vweird.f32 %v8440
      %vm8544 = vweird.f32 %v8537
      %vm8545 = vmor %vm8543, %vm8544
      %v8546 = vsel %vm8545, %v8537, %v8542
      %v8547 = vrsqrt.pop %v8441
      %v8548 = vmul.f32 %v8547, %v8441
      %v8549 = vmul.f32 %v8548, %v8547
      %v8550 = vmul.f32 0.5, %v8549
      %v8551 = vsub.f32 1.5, %v8550
      %v8552 = vmul.f32 %v8547, %v8551
      %vm8553 = vweird.f32 %v8441
      %vm8554 = vweird.f32 %v8547
      %vm8555 = vmor %vm8553, %vm8554
      %v8556 = vsel %vm8555, %v8547, %v8552
      %v8557 = vrsqrt.pop %v8442
      %v8558 = vmul.f32 %v8557, %v8442
      %v8559 = vmul.f32 %v8558, %v8557
      %v8560 = vmul.f32 0.5, %v8559
      %v8561 = vsub.f32 1.5, %v8560
      %v8562 = vmul.f32 %v8557, %v8561
      %vm8563 = vweird.f32 %v8442
      %vm8564 = vweird.f32 %v8557
      %vm8565 = vmor %vm8563, %vm8564
      %v8566 = vsel %vm8565, %v8557, %v8562
      %v8567 = vrsqrt.pop %v8443
      %v8568 = vmul.f32 %v8567, %v8443
      %v8569 = vmul.f32 %v8568, %v8567
      %v8570 = vmul.f32 0.5, %v8569
      %v8571 = vsub.f32 1.5, %v8570
      %v8572 = vmul.f32 %v8567, %v8571
      %vm8573 = vweird.f32 %v8443
      %vm8574 = vweird.f32 %v8567
      %vm8575 = vmor %vm8573, %vm8574
      %v8576 = vsel %vm8575, %v8567, %v8572
      %v8577 = vrsqrt.pop %v8444
      %v8578 = vmul.f32 %v8577, %v8444
      %v8579 = vmul.f32 %v8578, %v8577
      %v8580 = vmul.f32 0.5, %v8579
      %v8581 = vsub.f32 1.5, %v8580
      %v8582 = vmul.f32 %v8577, %v8581
      %vm8583 = vweird.f32 %v8444
      %vm8584 = vweird.f32 %v8577
      %vm8585 = vmor %vm8583, %vm8584
      %v8586 = vsel %vm8585, %v8577, %v8582
      %v8587 = vrsqrt.pop %v8445
      %v8588 = vmul.f32 %v8587, %v8445
      %v8589 = vmul.f32 %v8588, %v8587
      %v8590 = vmul.f32 0.5, %v8589
      %v8591 = vsub.f32 1.5, %v8590
      %v8592 = vmul.f32 %v8587, %v8591
      %vm8593 = vweird.f32 %v8445
      %vm8594 = vweird.f32 %v8587
      %vm8595 = vmor %vm8593, %vm8594
      %v8596 = vsel %vm8595, %v8587, %v8592
      %v8597 = vrsqrt.pop %v8446
      %v8598 = vmul.f32 %v8597, %v8446
      %v8599 = vmul.f32 %v8598, %v8597
      %v8600 = vmul.f32 0.5, %v8599
      %v8601 = vsub.f32 1.5, %v8600
      %v8602 = vmul.f32 %v8597, %v8601
      %vm8603 = vweird.f32 %v8446
      %vm8604 = vweird.f32 %v8597
      %vm8605 = vmor %vm8603, %vm8604
      %v8606 = vsel %vm8605, %v8597, %v8602
      %v8623 = vrot.slane %v8466, 6
      %v8624 = vrot.slane %v8476, 4
      %v8625 = vrot.slane %v8486, 2
      %v8626 = vrot.slane %v8506, 6
      %v8627 = vrot.slane %v8516, 4
      %v8628 = vrot.slane %v8526, 2
      %v8629 = vrot.slane %v8546, 6
      %v8630 = vrot.slane %v8556, 4
      %v8631 = vrot.slane %v8566, 2
      %v8632 = vrot.slane %v8586, 6
      %v8633 = vrot.slane %v8596, 4
      %v8634 = vrot.slane %v8606, 2
      %v8635 = vsel %vm7948, %v8456, %v8623
      %v8636 = vsel %vm7950, %v8624, %v8625
      %v8637 = vsel %vm7952, %v8635, %v8636
      %v8638 = vsel %vm7948, %v8496, %v8626
      %v8639 = vsel %vm7950, %v8627, %v8628
      %v8640 = vsel %vm7952, %v8638, %v8639
      %v8641 = vsel %vm7948, %v8536, %v8629
      %v8642 = vsel %vm7950, %v8630, %v8631
      %v8643 = vsel %vm7952, %v8641, %v8642
      %v8644 = vsel %vm7948, %v8576, %v8632
      %v8645 = vsel %vm7950, %v8633, %v8634
      %v8646 = vsel %vm7952, %v8644, %v8645
      %v8651 = vmul.f32 %v8254, %v8637
      %v8652 = vmul.f32 %v8255, %v8640
      %v8653 = vmul.f32 %v8256, %v8643
      %v8654 = vmul.f32 %v8257, %v8646
      %v8655 = vld [vmem:[#allocation6] sm:$0xff]
      %v8656 = vld [vmem:[#allocation6 + $0x8] sm:$0xff]
      %v8659 = vperm.slane %v8655, 0
      %v8660 = vperm.slane %v8655, 1
      %v8661 = vperm.slane %v8655, 2
      %v8662 = vperm.slane %v8655, 3
      %v8663 = vperm.slane %v8655, 4
      %v8664 = vperm.slane %v8655, 5
      %v8665 = vperm.slane %v8655, 6
      %v8666 = vperm.slane %v8655, 7
      %v8667 = vperm.slane %v8656, 0
      %v8668 = vperm.slane %v8656, 1
      %v8669 = vperm.slane %v8656, 2
      %v8670 = vperm.slane %v8656, 3
      %v8671 = vperm.slane %v8656, 4
      %v8672 = vperm.slane %v8656, 5
      %v8673 = vperm.slane %v8656, 6
      %v8674 = vperm.slane %v8656, 7
      %v8675 = vrot.slane %v8660, 6
      %v8676 = vrot.slane %v8661, 4
      %v8677 = vrot.slane %v8662, 2
      %v8678 = vrot.slane %v8664, 6
      %v8679 = vrot.slane %v8665, 4
      %v8680 = vrot.slane %v8666, 2
      %v8681 = vrot.slane %v8668, 6
      %v8682 = vrot.slane %v8669, 4
      %v8683 = vrot.slane %v8670, 2
      %v8684 = vrot.slane %v8672, 6
      %v8685 = vrot.slane %v8673, 4
      %v8686 = vrot.slane %v8674, 2
      %v8687 = vsel %vm7948, %v8659, %v8675
      %v8688 = vsel %vm7950, %v8676, %v8677
      %v8689 = vsel %vm7952, %v8687, %v8688
      %v8690 = vsel %vm7948, %v8663, %v8678
      %v8691 = vsel %vm7950, %v8679, %v8680
      %v8692 = vsel %vm7952, %v8690, %v8691
      %v8693 = vsel %vm7948, %v8667, %v8681
      %v8694 = vsel %vm7950, %v8682, %v8683
      %v8695 = vsel %vm7952, %v8693, %v8694
      %v8696 = vsel %vm7948, %v8671, %v8684
      %v8697 = vsel %vm7950, %v8685, %v8686
      %v8698 = vsel %vm7952, %v8696, %v8697
      %v8703 = vmul.f32 %v8651, %v8689
      %v8704 = vmul.f32 %v8652, %v8692
      %v8705 = vmul.f32 %v8653, %v8695
      %v8706 = vmul.f32 %v8654, %v8698
      %v8707 = vld [vmem:[#allocation7] sm:$0xff]
      %v8708 = vld [vmem:[#allocation7 + $0x8] sm:$0xff]
      %v8711 = vperm.slane %v8707, 0
      %v8712 = vperm.slane %v8707, 1
      %v8713 = vperm.slane %v8707, 2
      %v8714 = vperm.slane %v8707, 3
      %v8715 = vperm.slane %v8707, 4
      %v8716 = vperm.slane %v8707, 5
      %v8717 = vperm.slane %v8707, 6
      %v8718 = vperm.slane %v8707, 7
      %v8719 = vperm.slane %v8708, 0
      %v8720 = vperm.slane %v8708, 1
      %v8721 = vperm.slane %v8708, 2
      %v8722 = vperm.slane %v8708, 3
      %v8723 = vperm.slane %v8708, 4
      %v8724 = vperm.slane %v8708, 5
      %v8725 = vperm.slane %v8708, 6
      %v8726 = vperm.slane %v8708, 7
      %v8727 = vrot.slane %v8712, 6
      %v8728 = vrot.slane %v8713, 4
      %v8729 = vrot.slane %v8714, 2
      %v8730 = vrot.slane %v8716, 6
      %v8731 = vrot.slane %v8717, 4
      %v8732 = vrot.slane %v8718, 2
      %v8733 = vrot.slane %v8720, 6
      %v8734 = vrot.slane %v8721, 4
      %v8735 = vrot.slane %v8722, 2
      %v8736 = vrot.slane %v8724, 6
      %v8737 = vrot.slane %v8725, 4
      %v8738 = vrot.slane %v8726, 2
      %v8739 = vsel %vm7948, %v8711, %v8727
      %v8740 = vsel %vm7950, %v8728, %v8729
      %v8741 = vsel %vm7952, %v8739, %v8740
      %v8742 = vsel %vm7948, %v8715, %v8730
      %v8743 = vsel %vm7950, %v8731, %v8732
      %v8744 = vsel %vm7952, %v8742, %v8743
      %v8745 = vsel %vm7948, %v8719, %v8733
      %v8746 = vsel %vm7950, %v8734, %v8735
      %v8747 = vsel %vm7952, %v8745, %v8746
      %v8748 = vsel %vm7948, %v8723, %v8736
      %v8749 = vsel %vm7950, %v8737, %v8738
      %v8750 = vsel %vm7952, %v8748, %v8749
      %v8755 = vadd.f32 %v8703, %v8741
      %v8756 = vadd.f32 %v8704, %v8744
      %v8757 = vadd.f32 %v8705, %v8747
      %v8758 = vadd.f32 %v8706, %v8750
      %v8759 = vmax.f32 %v8755, 0.0
      %v8760 = vmax.f32 %v8756, 0.0
      %v8761 = vmax.f32 %v8757, 0.0
      %v8762 = vmax.f32 %v8758, 0.0
      %8763 = vst [vmem:[%s5] sm:$0xff] %v8759
      %8764 = vst [vmem:[%s5 + $0x8] sm:$0xff] %v8760
      %8765 = vst [vmem:[%s5 + $0x10] sm:$0xff] %v8761
      %8766 = vst [vmem:[%s5 + $0x18] sm:$0xff] %v8762
    $region45: #{dann2_forward.6} parent=1 // pred_fallthru
      _
    // Predicated region
    $region46: #{dann2_forward.6} parent=1 // pred_check
      _
    $region47: #{dann2_forward.6} parent=1 // pred_check_branch
      %8768 = sbr.rel (0) target = $region49
    $region48: #{dann2_forward.6} parent=1 // pred_region
      _
    $region49: #{dann2_forward.6} parent=1 // pred_fallthru
      _
    // Predicated region
    $region50: #{dann2_forward.6} parent=1 // pred_check
      _
    $region51: #{dann2_forward.6} parent=1 // pred_check_branch
      %8770 = sbr.rel (0) target = $region53
    $region52: #{dann2_forward.6} parent=1 // pred_region
      _
    $region53: #{dann2_forward.6} parent=1 // pred_fallthru
      _
    %8771 = vsyncpa [#allocation3], 1
    %8772 = vsyncpa [#allocation5], 1
    %8773 = vsyncpa [#allocation8], 1

</llo_original>
